<compile_context>
chip_gen: v7x
topology: tpu7x:2x2x1
jax: 0.10.0
libtpu: 0.0.40
codegen_flags: <defaults>
</compile_context>

<pallas_src>
import functools

import jax
import jax.numpy as jnp
from jax.experimental import pallas as pl
from jax.experimental.pallas import tpu as pltpu


# ---------------------------------------------------------------------------
# Fused kernel
# ---------------------------------------------------------------------------
def _encoder_kernel(x_ref,
                    t_w1, t_b1, t_w2, t_b2, t_w3, t_b3,
                    t_u1, t_c1, t_u2, t_c2, t_u3, t_c3,
                    m_w0, m_b0, m_w1, m_b1, m_w2, m_b2, m_w3, m_b3,
                    f0_w, f0_b, f1_w, f1_b, f2_w, f2_b, f3_w, f3_b,
                    out_ref, *, batch, npts):
    """Fused T-Net + PointNet encoder on a packed (B*N, C) point slab."""

    def dot(a, w_ref):
        # bf16 operands on the MXU, f32 accumulation.
        return jnp.dot(a.astype(jnp.bfloat16), w_ref[...],
                       preferred_element_type=jnp.float32)

    def ldr(a, w_ref, b_ref):            # linear -> bias -> relu, f32 epilogue (VPU)
        return jnp.maximum(dot(a, w_ref) + b_ref[...], 0.0)

    def seg_max(a):                      # per-batch max over the point dimension
        return jnp.concatenate(
            [jnp.max(a[b * npts:(b + 1) * npts, :], axis=0, keepdims=True)
             for b in range(batch)], axis=0)

    x = x_ref[...]                                           # (B*N, 3) f32

    # ---- T-Net: per-point MLP 3->64->128->1024, per-batch max-pool, FC tail -> 9 ----
    h = ldr(x, t_w1, t_b1)
    h = ldr(h, t_w2, t_b2)
    h = ldr(h, t_w3, t_b3)                                   # (B*N, 1024)
    g = seg_max(h)                                           # (B, 1024)
    g = ldr(g, t_u1, t_c1)
    g = ldr(g, t_u2, t_c2)
    t9 = dot(g, t_u3) + t_c3[...]                            # (B, 9) row-major 3x3 (identity added below)

    # ---- Apply per-batch transform: out[n,c] = sum_d p[n,d] * (t9[3c+d] + delta(c,d)) ----
    # torch does bmm(T, P) on channels-first (3, N); channels-last that is p @ T^T.
    # Done with VPU broadcasts only (no reshape of the tiny (B, 9) tensor).
    blocks = []
    for b in range(batch):
        pb = x[b * npts:(b + 1) * npts, :]                   # (N, 3)
        tb = t9[b:b + 1, :]                                  # (1, 9)
        cols = []
        for c in range(3):
            col = (pb[:, 0:1] * tb[:, 3 * c + 0:3 * c + 1]
                   + pb[:, 1:2] * tb[:, 3 * c + 1:3 * c + 2]
                   + pb[:, 2:3] * tb[:, 3 * c + 2:3 * c + 3]
                   + pb[:, c:c + 1])                         # + identity term
            cols.append(col)
        blocks.append(jnp.concatenate(cols, axis=1))         # (N, 3)
    q = jnp.concatenate(blocks, axis=0)                      # (B*N, 3)

    # ---- Main per-point stack 3->32->128->256->DESC, per-batch max-pool ----
    q = ldr(q, m_w0, m_b0)
    q = ldr(q, m_w1, m_b1)
    q = ldr(q, m_w2, m_b2)
    q = ldr(q, m_w3, m_b3)                                   # (B*N, DESC)
    f = seg_max(q)                                           # (B, DESC)

    # ---- Batched FC stack DESC->512->256->128, final linear (lane-padded to 128) ----
    f = ldr(f, f0_w, f0_b)
    f = ldr(f, f1_w, f1_b)
    f = ldr(f, f2_w, f2_b)
    out_ref[...] = dot(f, f3_w) + f3_b[...]                  # (B, 128) unmasked lane-dense store


# ---------------------------------------------------------------------------
# Wrapper
# ---------------------------------------------------------------------------
@functools.partial(jax.jit, static_argnames=("out_dim",))
def encoder_forward(x, tnet_flat, main_flat, *, out_dim):
    B, N, _ = x.shape
    x2d = x.reshape(B * N, 3)                                # pack points across batch
    padded_out = main_flat[-1].shape[-1]                     # 128-lane padded output width
    out = pl.pallas_call(
        functools.partial(_encoder_kernel, batch=B, npts=N),
        out_shape=jax.ShapeDtypeStruct((B, padded_out), jnp.float32),
        # Gridless: the whole problem (B*N=128 points, ~2 MB bf16 weights, <1 MB
        # activations) fits VMEM in one shot -> inputs/weights are loaded exactly once
        # (no double-buffering) and there is a single kernel launch.
    )(x2d, *tnet_flat, *main_flat)
    return out[:, :out_dim]


# ---------------------------------------------------------------------------
# Deterministic synthetic parameters (eval-mode BN folded; bf16 weights, f32 biases)
# ---------------------------------------------------------------------------
def init_encoder_params(key, desc_size, latent_space):
    def dense(k, cin, cout, scale=None):
        kw, kb = jax.random.split(k)
        s = (1.0 / float(cin) ** 0.5) if scale is None else scale
        w = s * jax.random.normal(kw, (cin, cout), jnp.float32)
        b = 0.1 * jax.random.normal(kb, (1, cout), jnp.float32)
        return w, b

    def bn(k, c):
        kg, kb, km, kv = jax.random.split(k, 4)
        gamma = 1.0 + 0.1 * jax.random.normal(kg, (1, c), jnp.float32)
        beta = 0.1 * jax.random.normal(kb, (1, c), jnp.float32)
        mean = 0.1 * jax.random.normal(km, (1, c), jnp.float32)
        var = 1.0 + 0.1 * jax.random.uniform(kv, (1, c), jnp.float32)
        return gamma, beta, mean, var

    def fold(wb, bnp, eps=1e-5):
        w, b = wb
        gamma, beta, mean, var = bnp
        s = gamma / jnp.sqrt(var + eps)
        return w * s, (b - mean) * s + beta

    keys = jax.random.split(key, 32)
    ki = iter(keys)

    # T-Net: conv 3->64->128->1024 (+BN), pool, fc 1024->512->256 (+BN), fc 256->9.
    tnet = []
    tdims = [3, 64, 128, 1024]
    for cin, cout in zip(tdims[:-1], tdims[1:]):
        tnet.append(fold(dense(next(ki), cin, cout), bn(next(ki), cout)))
    for cin, cout in [(1024, 512), (512, 256)]:
        tnet.append(fold(dense(next(ki), cin, cout), bn(next(ki), cout)))
    tnet.append(dense(next(ki), 256, 9, scale=0.01))   # final fc (identity added in forward)

    # Main: conv 3->32->128->256->DESC (+BN), pool, fc DESC->512->256->128, fc ->2*LATENT.
    main = []
    cdims = [3, 32, 128, 256, desc_size]
    for cin, cout in zip(cdims[:-1], cdims[1:]):
        main.append(fold(dense(next(ki), cin, cout), bn(next(ki), cout)))
    fdims = [desc_size, 512, 256, 128]
    for cin, cout in zip(fdims[:-1], fdims[1:]):
        main.append(dense(next(ki), cin, cout))

    # Final linear, zero-padded to a multiple of 128 output lanes (lane-dense store).
    out_dim = 2 * latent_space
    padded = ((out_dim + 127) // 128) * 128
    w_last, b_last = dense(next(ki), 128, out_dim)
    w_last = jnp.pad(w_last, ((0, 0), (0, padded - out_dim)))
    b_last = jnp.pad(b_last, ((0, 0), (0, padded - out_dim)))
    main.append((w_last, b_last))

    def cast(pairs):
        flat = []
        for w, b in pairs:
            flat.append(w.astype(jnp.bfloat16))    # bf16 weights: MXU rate + half DMA bytes
            flat.append(b.astype(jnp.float32))     # f32 bias / relu epilogue
        return flat

    return cast(tnet), cast(main)


# ---------------------------------------------------------------------------
# Pure-JAX reference (same folded params, same bf16-dot / f32-accumulate math)
# ---------------------------------------------------------------------------
def reference_forward(x, tnet_flat, main_flat, out_dim):
    B, N, _ = x.shape
    (tw1, tb1, tw2, tb2, tw3, tb3, tu1, tc1, tu2, tc2, tu3, tc3) = tnet_flat
    (mw0, mb0, mw1, mb1, mw2, mb2, mw3, mb3,
     f0w, f0b, f1w, f1b, f2w, f2b, f3w, f3b) = main_flat

    def dot(a, w):
        return jnp.dot(a.astype(jnp.bfloat16), w, preferred_element_type=jnp.float32)

    def ldr(a, w, b):
        return jnp.maximum(dot(a, w) + b, 0.0)

    p = x.reshape(B * N, 3)
    h = ldr(ldr(ldr(p, tw1, tb1), tw2, tb2), tw3, tb3)
    g = jnp.max(h.reshape(B, N, -1), axis=1)
    g = ldr(ldr(g, tu1, tc1), tu2, tc2)
    t9 = dot(g, tu3) + tc3
    T = t9.reshape(B, 3, 3) + jnp.eye(3, dtype=jnp.float32)[None]
    q = jnp.einsum('bnd,bcd->bnc', x, T).reshape(B * N, 3)   # p @ T^T per batch
    q = ldr(ldr(ldr(ldr(q, mw0, mb0), mw1, mb1), mw2, mb2), mw3, mb3)
    f = jnp.max(q.reshape(B, N, -1), axis=1)
    f = ldr(ldr(ldr(f, f0w, f0b), f1w, f1b), f2w, f2b)
    return (dot(f, f3w) + f3b)[:, :out_dim]


if __name__ == "__main__":
    B, N = 2, 64            # batch, number of points
    DESC_SIZE = 64          # opt.DESC_SIZE (per-point descriptor dim from the conv stack)
    LATENT_SPACE = 16       # opt.LATENT_SPACE -> output dim is 2 * LATENT_SPACE
    OUT_DIM = 2 * LATENT_SPACE

    key = jax.random.PRNGKey(0)
    kp, kx = jax.random.split(key)
    tnet_flat, main_flat = init_encoder_params(kp, DESC_SIZE, LATENT_SPACE)
    x = jax.random.normal(kx, (B, N, 3), jnp.float32)

    out = encoder_forward(x, tnet_flat, main_flat, out_dim=OUT_DIM)
    out = jax.block_until_ready(out)
    assert out.shape == (B, OUT_DIM), out.shape

    ref = reference_forward(x, tnet_flat, main_flat, OUT_DIM)
    max_err = float(jnp.max(jnp.abs(out - ref)))
    assert bool(jnp.allclose(out, ref, atol=2e-2, rtol=2e-2)), max_err

    print("KERNEL_OK")
</pallas_src>

<mosaic_0001>
module attributes {stable_mosaic.version = 11 : i64} {
  func.func @_encoder_kernel(%arg0: memref<128x3xf32, #tpu.memory_space<vmem>>, %arg1: memref<3x64xbf16, #tpu.memory_space<vmem>>, %arg2: memref<1x64xf32, #tpu.memory_space<vmem>>, %arg3: memref<64x128xbf16, #tpu.memory_space<vmem>>, %arg4: memref<1x128xf32, #tpu.memory_space<vmem>>, %arg5: memref<128x1024xbf16, #tpu.memory_space<vmem>>, %arg6: memref<1x1024xf32, #tpu.memory_space<vmem>>, %arg7: memref<1024x512xbf16, #tpu.memory_space<vmem>>, %arg8: memref<1x512xf32, #tpu.memory_space<vmem>>, %arg9: memref<512x256xbf16, #tpu.memory_space<vmem>>, %arg10: memref<1x256xf32, #tpu.memory_space<vmem>>, %arg11: memref<256x9xbf16, #tpu.memory_space<vmem>>, %arg12: memref<1x9xf32, #tpu.memory_space<vmem>>, %arg13: memref<3x32xbf16, #tpu.memory_space<vmem>>, %arg14: memref<1x32xf32, #tpu.memory_space<vmem>>, %arg15: memref<32x128xbf16, #tpu.memory_space<vmem>>, %arg16: memref<1x128xf32, #tpu.memory_space<vmem>>, %arg17: memref<128x256xbf16, #tpu.memory_space<vmem>>, %arg18: memref<1x256xf32, #tpu.memory_space<vmem>>, %arg19: memref<256x64xbf16, #tpu.memory_space<vmem>>, %arg20: memref<1x64xf32, #tpu.memory_space<vmem>>, %arg21: memref<64x512xbf16, #tpu.memory_space<vmem>>, %arg22: memref<1x512xf32, #tpu.memory_space<vmem>>, %arg23: memref<512x256xbf16, #tpu.memory_space<vmem>>, %arg24: memref<1x256xf32, #tpu.memory_space<vmem>>, %arg25: memref<256x128xbf16, #tpu.memory_space<vmem>>, %arg26: memref<1x128xf32, #tpu.memory_space<vmem>>, %arg27: memref<128x128xbf16, #tpu.memory_space<vmem>>, %arg28: memref<1x128xf32, #tpu.memory_space<vmem>>, %arg29: memref<2x128xf32, #tpu.memory_space<vmem>>) attributes {dimension_semantics = [], scalar_prefetch = 0 : i64, scratch_operands = 0 : i64, tpu.core_type = #tpu.core_type<tc>} {
    %c0 = arith.constant 0 : index
    %c0_0 = arith.constant 0 : index
    %0 = vector.load %arg0[%c0, %c0_0] : memref<128x3xf32, #tpu.memory_space<vmem>>, vector<128x3xf32>
    %1 = arith.truncf %0 : vector<128x3xf32> to vector<128x3xbf16>
    %c0_1 = arith.constant 0 : index
    %c0_2 = arith.constant 0 : index
    %2 = vector.load %arg1[%c0_1, %c0_2] : memref<3x64xbf16, #tpu.memory_space<vmem>>, vector<3x64xbf16>
    %cst = arith.constant dense<0.000000e+00> : vector<128x64xf32>
    %3 = tpu.matmul %1, %2, %cst {dimension_numbers = #tpu.dot_dimension_numbers<[1], [0], [0], [1], [0, 0, 1, 1], [], []>} : vector<128x3xbf16>, vector<3x64xbf16>, vector<128x64xf32> -> vector<128x64xf32>
    %c0_3 = arith.constant 0 : index
    %c0_4 = arith.constant 0 : index
    %4 = vector.load %arg2[%c0_3, %c0_4] : memref<1x64xf32, #tpu.memory_space<vmem>>, vector<1x64xf32>
    %5 = vector.broadcast %4 : vector<1x64xf32> to vector<128x64xf32>
    %6 = arith.addf %3, %5 : vector<128x64xf32>
    %cst_5 = arith.constant 0.000000e+00 : f32
    %7 = vector.broadcast %cst_5 : f32 to vector<128x64xf32>
    %8 = arith.maximumf %6, %7 : vector<128x64xf32>
    %9 = arith.truncf %8 : vector<128x64xf32> to vector<128x64xbf16>
    %c0_6 = arith.constant 0 : index
    %c0_7 = arith.constant 0 : index
    %10 = vector.load %arg3[%c0_6, %c0_7] : memref<64x128xbf16, #tpu.memory_space<vmem>>, vector<64x128xbf16>
    %cst_8 = arith.constant dense<0.000000e+00> : vector<128x128xf32>
    %11 = tpu.matmul %9, %10, %cst_8 {dimension_numbers = #tpu.dot_dimension_numbers<[1], [0], [0], [1], [0, 0, 1, 1], [], []>} : vector<128x64xbf16>, vector<64x128xbf16>, vector<128x128xf32> -> vector<128x128xf32>
    %c0_9 = arith.constant 0 : index
    %c0_10 = arith.constant 0 : index
    %12 = vector.load %arg4[%c0_9, %c0_10] : memref<1x128xf32, #tpu.memory_space<vmem>>, vector<1x128xf32>
    %13 = vector.broadcast %12 : vector<1x128xf32> to vector<128x128xf32>
    %14 = arith.addf %11, %13 : vector<128x128xf32>
    %cst_11 = arith.constant 0.000000e+00 : f32
    %15 = vector.broadcast %cst_11 : f32 to vector<128x128xf32>
    %16 = arith.maximumf %14, %15 : vector<128x128xf32>
    %17 = arith.truncf %16 : vector<128x128xf32> to vector<128x128xbf16>
    %c0_12 = arith.constant 0 : index
    %c0_13 = arith.constant 0 : index
    %18 = vector.load %arg5[%c0_12, %c0_13] : memref<128x1024xbf16, #tpu.memory_space<vmem>>, vector<128x1024xbf16>
    %cst_14 = arith.constant dense<0.000000e+00> : vector<128x1024xf32>
    %19 = tpu.matmul %17, %18, %cst_14 {dimension_numbers = #tpu.dot_dimension_numbers<[1], [0], [0], [1], [0, 0, 1, 1], [], []>} : vector<128x128xbf16>, vector<128x1024xbf16>, vector<128x1024xf32> -> vector<128x1024xf32>
    %c0_15 = arith.constant 0 : index
    %c0_16 = arith.constant 0 : index
    %20 = vector.load %arg6[%c0_15, %c0_16] : memref<1x1024xf32, #tpu.memory_space<vmem>>, vector<1x1024xf32>
    %21 = vector.broadcast %20 : vector<1x1024xf32> to vector<128x1024xf32>
    %22 = arith.addf %19, %21 : vector<128x1024xf32>
    %cst_17 = arith.constant 0.000000e+00 : f32
    %23 = vector.broadcast %cst_17 : f32 to vector<128x1024xf32>
    %24 = arith.maximumf %22, %23 : vector<128x1024xf32>
    %25 = vector.extract_strided_slice %24 {offsets = [0, 0], sizes = [64, 1024], strides = [1, 1]} : vector<128x1024xf32> to vector<64x1024xf32>
    %cst_18 = arith.constant dense<0xFF800000> : vector<1024xf32>
    %26 = vector.multi_reduction <maximumf>, %25, %cst_18 [0] : vector<64x1024xf32> to vector<1024xf32>
    %27 = vector.shape_cast %26 : vector<1024xf32> to vector<1x1024xf32>
    %28 = vector.extract_strided_slice %24 {offsets = [64, 0], sizes = [64, 1024], strides = [1, 1]} : vector<128x1024xf32> to vector<64x1024xf32>
    %cst_19 = arith.constant dense<0xFF800000> : vector<1024xf32>
    %29 = vector.multi_reduction <maximumf>, %28, %cst_19 [0] : vector<64x1024xf32> to vector<1024xf32>
    %30 = vector.shape_cast %29 : vector<1024xf32> to vector<1x1024xf32>
    %31 = tpu.concatenate %27, %30 in 0 : vector<1x1024xf32>, vector<1x1024xf32> -> vector<2x1024xf32>
    %32 = arith.truncf %31 : vector<2x1024xf32> to vector<2x1024xbf16>
    %c0_20 = arith.constant 0 : index
    %c0_21 = arith.constant 0 : index
    %33 = vector.load %arg7[%c0_20, %c0_21] : memref<1024x512xbf16, #tpu.memory_space<vmem>>, vector<1024x512xbf16>
    %cst_22 = arith.constant dense<0.000000e+00> : vector<2x512xf32>
    %34 = tpu.matmul %32, %33, %cst_22 {dimension_numbers = #tpu.dot_dimension_numbers<[1], [0], [0], [1], [0, 0, 1, 1], [], []>} : vector<2x1024xbf16>, vector<1024x512xbf16>, vector<2x512xf32> -> vector<2x512xf32>
    %c0_23 = arith.constant 0 : index
    %c0_24 = arith.constant 0 : index
    %35 = vector.load %arg8[%c0_23, %c0_24] : memref<1x512xf32, #tpu.memory_space<vmem>>, vector<1x512xf32>
    %36 = vector.broadcast %35 : vector<1x512xf32> to vector<2x512xf32>
    %37 = arith.addf %34, %36 : vector<2x512xf32>
    %cst_25 = arith.constant 0.000000e+00 : f32
    %38 = vector.broadcast %cst_25 : f32 to vector<2x512xf32>
    %39 = arith.maximumf %37, %38 : vector<2x512xf32>
    %40 = arith.truncf %39 : vector<2x512xf32> to vector<2x512xbf16>
    %c0_26 = arith.constant 0 : index
    %c0_27 = arith.constant 0 : index
    %41 = vector.load %arg9[%c0_26, %c0_27] : memref<512x256xbf16, #tpu.memory_space<vmem>>, vector<512x256xbf16>
    %cst_28 = arith.constant dense<0.000000e+00> : vector<2x256xf32>
    %42 = tpu.matmul %40, %41, %cst_28 {dimension_numbers = #tpu.dot_dimension_numbers<[1], [0], [0], [1], [0, 0, 1, 1], [], []>} : vector<2x512xbf16>, vector<512x256xbf16>, vector<2x256xf32> -> vector<2x256xf32>
    %c0_29 = arith.constant 0 : index
    %c0_30 = arith.constant 0 : index
    %43 = vector.load %arg10[%c0_29, %c0_30] : memref<1x256xf32, #tpu.memory_space<vmem>>, vector<1x256xf32>
    %44 = vector.broadcast %43 : vector<1x256xf32> to vector<2x256xf32>
    %45 = arith.addf %42, %44 : vector<2x256xf32>
    %cst_31 = arith.constant 0.000000e+00 : f32
    %46 = vector.broadcast %cst_31 : f32 to vector<2x256xf32>
    %47 = arith.maximumf %45, %46 : vector<2x256xf32>
    %48 = arith.truncf %47 : vector<2x256xf32> to vector<2x256xbf16>
    %c0_32 = arith.constant 0 : index
    %c0_33 = arith.constant 0 : index
    %49 = vector.load %arg11[%c0_32, %c0_33] : memref<256x9xbf16, #tpu.memory_space<vmem>>, vector<256x9xbf16>
    %cst_34 = arith.constant dense<0.000000e+00> : vector<2x9xf32>
    %50 = tpu.matmul %48, %49, %cst_34 {dimension_numbers = #tpu.dot_dimension_numbers<[1], [0], [0], [1], [0, 0, 1, 1], [], []>} : vector<2x256xbf16>, vector<256x9xbf16>, vector<2x9xf32> -> vector<2x9xf32>
    %c0_35 = arith.constant 0 : index
    %c0_36 = arith.constant 0 : index
    %51 = vector.load %arg12[%c0_35, %c0_36] : memref<1x9xf32, #tpu.memory_space<vmem>>, vector<1x9xf32>
    %52 = vector.broadcast %51 : vector<1x9xf32> to vector<2x9xf32>
    %53 = arith.addf %50, %52 : vector<2x9xf32>
    %54 = vector.extract_strided_slice %0 {offsets = [0, 0], sizes = [64, 3], strides = [1, 1]} : vector<128x3xf32> to vector<64x3xf32>
    %55 = vector.extract_strided_slice %53 {offsets = [0, 0], sizes = [1, 9], strides = [1, 1]} : vector<2x9xf32> to vector<1x9xf32>
    %56 = vector.extract_strided_slice %54 {offsets = [0, 0], sizes = [64, 1], strides = [1, 1]} : vector<64x3xf32> to vector<64x1xf32>
    %57 = vector.extract_strided_slice %55 {offsets = [0, 0], sizes = [1, 1], strides = [1, 1]} : vector<1x9xf32> to vector<1x1xf32>
    %58 = vector.broadcast %57 : vector<1x1xf32> to vector<64x1xf32>
    %59 = arith.mulf %56, %58 : vector<64x1xf32>
    %60 = vector.extract_strided_slice %54 {offsets = [0, 1], sizes = [64, 1], strides = [1, 1]} : vector<64x3xf32> to vector<64x1xf32>
    %61 = vector.extract_strided_slice %55 {offsets = [0, 1], sizes = [1, 1], strides = [1, 1]} : vector<1x9xf32> to vector<1x1xf32>
    %62 = vector.broadcast %61 : vector<1x1xf32> to vector<64x1xf32>
    %63 = arith.mulf %60, %62 : vector<64x1xf32>
    %64 = arith.addf %59, %63 : vector<64x1xf32>
    %65 = vector.extract_strided_slice %54 {offsets = [0, 2], sizes = [64, 1], strides = [1, 1]} : vector<64x3xf32> to vector<64x1xf32>
    %66 = vector.extract_strided_slice %55 {offsets = [0, 2], sizes = [1, 1], strides = [1, 1]} : vector<1x9xf32> to vector<1x1xf32>
    %67 = vector.broadcast %66 : vector<1x1xf32> to vector<64x1xf32>
    %68 = arith.mulf %65, %67 : vector<64x1xf32>
    %69 = arith.addf %64, %68 : vector<64x1xf32>
    %70 = vector.extract_strided_slice %54 {offsets = [0, 0], sizes = [64, 1], strides = [1, 1]} : vector<64x3xf32> to vector<64x1xf32>
    %71 = arith.addf %69, %70 : vector<64x1xf32>
    %72 = vector.extract_strided_slice %54 {offsets = [0, 0], sizes = [64, 1], strides = [1, 1]} : vector<64x3xf32> to vector<64x1xf32>
    %73 = vector.extract_strided_slice %55 {offsets = [0, 3], sizes = [1, 1], strides = [1, 1]} : vector<1x9xf32> to vector<1x1xf32>
    %74 = vector.broadcast %73 : vector<1x1xf32> to vector<64x1xf32>
    %75 = arith.mulf %72, %74 : vector<64x1xf32>
    %76 = vector.extract_strided_slice %54 {offsets = [0, 1], sizes = [64, 1], strides = [1, 1]} : vector<64x3xf32> to vector<64x1xf32>
    %77 = vector.extract_strided_slice %55 {offsets = [0, 4], sizes = [1, 1], strides = [1, 1]} : vector<1x9xf32> to vector<1x1xf32>
    %78 = vector.broadcast %77 : vector<1x1xf32> to vector<64x1xf32>
    %79 = arith.mulf %76, %78 : vector<64x1xf32>
    %80 = arith.addf %75, %79 : vector<64x1xf32>
    %81 = vector.extract_strided_slice %54 {offsets = [0, 2], sizes = [64, 1], strides = [1, 1]} : vector<64x3xf32> to vector<64x1xf32>
    %82 = vector.extract_strided_slice %55 {offsets = [0, 5], sizes = [1, 1], strides = [1, 1]} : vector<1x9xf32> to vector<1x1xf32>
    %83 = vector.broadcast %82 : vector<1x1xf32> to vector<64x1xf32>
    %84 = arith.mulf %81, %83 : vector<64x1xf32>
    %85 = arith.addf %80, %84 : vector<64x1xf32>
    %86 = vector.extract_strided_slice %54 {offsets = [0, 1], sizes = [64, 1], strides = [1, 1]} : vector<64x3xf32> to vector<64x1xf32>
    %87 = arith.addf %85, %86 : vector<64x1xf32>
    %88 = vector.extract_strided_slice %54 {offsets = [0, 0], sizes = [64, 1], strides = [1, 1]} : vector<64x3xf32> to vector<64x1xf32>
    %89 = vector.extract_strided_slice %55 {offsets = [0, 6], sizes = [1, 1], strides = [1, 1]} : vector<1x9xf32> to vector<1x1xf32>
    %90 = vector.broadcast %89 : vector<1x1xf32> to vector<64x1xf32>
    %91 = arith.mulf %88, %90 : vector<64x1xf32>
    %92 = vector.extract_strided_slice %54 {offsets = [0, 1], sizes = [64, 1], strides = [1, 1]} : vector<64x3xf32> to vector<64x1xf32>
    %93 = vector.extract_strided_slice %55 {offsets = [0, 7], sizes = [1, 1], strides = [1, 1]} : vector<1x9xf32> to vector<1x1xf32>
    %94 = vector.broadcast %93 : vector<1x1xf32> to vector<64x1xf32>
    %95 = arith.mulf %92, %94 : vector<64x1xf32>
    %96 = arith.addf %91, %95 : vector<64x1xf32>
    %97 = vector.extract_strided_slice %54 {offsets = [0, 2], sizes = [64, 1], strides = [1, 1]} : vector<64x3xf32> to vector<64x1xf32>
    %98 = vector.extract_strided_slice %55 {offsets = [0, 8], sizes = [1, 1], strides = [1, 1]} : vector<1x9xf32> to vector<1x1xf32>
    %99 = vector.broadcast %98 : vector<1x1xf32> to vector<64x1xf32>
    %100 = arith.mulf %97, %99 : vector<64x1xf32>
    %101 = arith.addf %96, %100 : vector<64x1xf32>
    %102 = vector.extract_strided_slice %54 {offsets = [0, 2], sizes = [64, 1], strides = [1, 1]} : vector<64x3xf32> to vector<64x1xf32>
    %103 = arith.addf %101, %102 : vector<64x1xf32>
    %104 = tpu.concatenate %71, %87, %103 in 1 : vector<64x1xf32>, vector<64x1xf32>, vector<64x1xf32> -> vector<64x3xf32>
    %105 = vector.extract_strided_slice %0 {offsets = [64, 0], sizes = [64, 3], strides = [1, 1]} : vector<128x3xf32> to vector<64x3xf32>
    %106 = vector.extract_strided_slice %53 {offsets = [1, 0], sizes = [1, 9], strides = [1, 1]} : vector<2x9xf32> to vector<1x9xf32>
    %107 = vector.extract_strided_slice %105 {offsets = [0, 0], sizes = [64, 1], strides = [1, 1]} : vector<64x3xf32> to vector<64x1xf32>
    %108 = vector.extract_strided_slice %106 {offsets = [0, 0], sizes = [1, 1], strides = [1, 1]} : vector<1x9xf32> to vector<1x1xf32>
    %109 = vector.broadcast %108 : vector<1x1xf32> to vector<64x1xf32>
    %110 = arith.mulf %107, %109 : vector<64x1xf32>
    %111 = vector.extract_strided_slice %105 {offsets = [0, 1], sizes = [64, 1], strides = [1, 1]} : vector<64x3xf32> to vector<64x1xf32>
    %112 = vector.extract_strided_slice %106 {offsets = [0, 1], sizes = [1, 1], strides = [1, 1]} : vector<1x9xf32> to vector<1x1xf32>
    %113 = vector.broadcast %112 : vector<1x1xf32> to vector<64x1xf32>
    %114 = arith.mulf %111, %113 : vector<64x1xf32>
    %115 = arith.addf %110, %114 : vector<64x1xf32>
    %116 = vector.extract_strided_slice %105 {offsets = [0, 2], sizes = [64, 1], strides = [1, 1]} : vector<64x3xf32> to vector<64x1xf32>
    %117 = vector.extract_strided_slice %106 {offsets = [0, 2], sizes = [1, 1], strides = [1, 1]} : vector<1x9xf32> to vector<1x1xf32>
    %118 = vector.broadcast %117 : vector<1x1xf32> to vector<64x1xf32>
    %119 = arith.mulf %116, %118 : vector<64x1xf32>
    %120 = arith.addf %115, %119 : vector<64x1xf32>
    %121 = vector.extract_strided_slice %105 {offsets = [0, 0], sizes = [64, 1], strides = [1, 1]} : vector<64x3xf32> to vector<64x1xf32>
    %122 = arith.addf %120, %121 : vector<64x1xf32>
    %123 = vector.extract_strided_slice %105 {offsets = [0, 0], sizes = [64, 1], strides = [1, 1]} : vector<64x3xf32> to vector<64x1xf32>
    %124 = vector.extract_strided_slice %106 {offsets = [0, 3], sizes = [1, 1], strides = [1, 1]} : vector<1x9xf32> to vector<1x1xf32>
    %125 = vector.broadcast %124 : vector<1x1xf32> to vector<64x1xf32>
    %126 = arith.mulf %123, %125 : vector<64x1xf32>
    %127 = vector.extract_strided_slice %105 {offsets = [0, 1], sizes = [64, 1], strides = [1, 1]} : vector<64x3xf32> to vector<64x1xf32>
    %128 = vector.extract_strided_slice %106 {offsets = [0, 4], sizes = [1, 1], strides = [1, 1]} : vector<1x9xf32> to vector<1x1xf32>
    %129 = vector.broadcast %128 : vector<1x1xf32> to vector<64x1xf32>
    %130 = arith.mulf %127, %129 : vector<64x1xf32>
    %131 = arith.addf %126, %130 : vector<64x1xf32>
    %132 = vector.extract_strided_slice %105 {offsets = [0, 2], sizes = [64, 1], strides = [1, 1]} : vector<64x3xf32> to vector<64x1xf32>
    %133 = vector.extract_strided_slice %106 {offsets = [0, 5], sizes = [1, 1], strides = [1, 1]} : vector<1x9xf32> to vector<1x1xf32>
    %134 = vector.broadcast %133 : vector<1x1xf32> to vector<64x1xf32>
    %135 = arith.mulf %132, %134 : vector<64x1xf32>
    %136 = arith.addf %131, %135 : vector<64x1xf32>
    %137 = vector.extract_strided_slice %105 {offsets = [0, 1], sizes = [64, 1], strides = [1, 1]} : vector<64x3xf32> to vector<64x1xf32>
    %138 = arith.addf %136, %137 : vector<64x1xf32>
    %139 = vector.extract_strided_slice %105 {offsets = [0, 0], sizes = [64, 1], strides = [1, 1]} : vector<64x3xf32> to vector<64x1xf32>
    %140 = vector.extract_strided_slice %106 {offsets = [0, 6], sizes = [1, 1], strides = [1, 1]} : vector<1x9xf32> to vector<1x1xf32>
    %141 = vector.broadcast %140 : vector<1x1xf32> to vector<64x1xf32>
    %142 = arith.mulf %139, %141 : vector<64x1xf32>
    %143 = vector.extract_strided_slice %105 {offsets = [0, 1], sizes = [64, 1], strides = [1, 1]} : vector<64x3xf32> to vector<64x1xf32>
    %144 = vector.extract_strided_slice %106 {offsets = [0, 7], sizes = [1, 1], strides = [1, 1]} : vector<1x9xf32> to vector<1x1xf32>
    %145 = vector.broadcast %144 : vector<1x1xf32> to vector<64x1xf32>
    %146 = arith.mulf %143, %145 : vector<64x1xf32>
    %147 = arith.addf %142, %146 : vector<64x1xf32>
    %148 = vector.extract_strided_slice %105 {offsets = [0, 2], sizes = [64, 1], strides = [1, 1]} : vector<64x3xf32> to vector<64x1xf32>
    %149 = vector.extract_strided_slice %106 {offsets = [0, 8], sizes = [1, 1], strides = [1, 1]} : vector<1x9xf32> to vector<1x1xf32>
    %150 = vector.broadcast %149 : vector<1x1xf32> to vector<64x1xf32>
    %151 = arith.mulf %148, %150 : vector<64x1xf32>
    %152 = arith.addf %147, %151 : vector<64x1xf32>
    %153 = vector.extract_strided_slice %105 {offsets = [0, 2], sizes = [64, 1], strides = [1, 1]} : vector<64x3xf32> to vector<64x1xf32>
    %154 = arith.addf %152, %153 : vector<64x1xf32>
    %155 = tpu.concatenate %122, %138, %154 in 1 : vector<64x1xf32>, vector<64x1xf32>, vector<64x1xf32> -> vector<64x3xf32>
    %156 = tpu.concatenate %104, %155 in 0 : vector<64x3xf32>, vector<64x3xf32> -> vector<128x3xf32>
    %157 = arith.truncf %156 : vector<128x3xf32> to vector<128x3xbf16>
    %c0_37 = arith.constant 0 : index
    %c0_38 = arith.constant 0 : index
    %158 = vector.load %arg13[%c0_37, %c0_38] : memref<3x32xbf16, #tpu.memory_space<vmem>>, vector<3x32xbf16>
    %cst_39 = arith.constant dense<0.000000e+00> : vector<128x32xf32>
    %159 = tpu.matmul %157, %158, %cst_39 {dimension_numbers = #tpu.dot_dimension_numbers<[1], [0], [0], [1], [0, 0, 1, 1], [], []>} : vector<128x3xbf16>, vector<3x32xbf16>, vector<128x32xf32> -> vector<128x32xf32>
    %c0_40 = arith.constant 0 : index
    %c0_41 = arith.constant 0 : index
    %160 = vector.load %arg14[%c0_40, %c0_41] : memref<1x32xf32, #tpu.memory_space<vmem>>, vector<1x32xf32>
    %161 = vector.broadcast %160 : vector<1x32xf32> to vector<128x32xf32>
    %162 = arith.addf %159, %161 : vector<128x32xf32>
    %cst_42 = arith.constant 0.000000e+00 : f32
    %163 = vector.broadcast %cst_42 : f32 to vector<128x32xf32>
    %164 = arith.maximumf %162, %163 : vector<128x32xf32>
    %165 = arith.truncf %164 : vector<128x32xf32> to vector<128x32xbf16>
    %c0_43 = arith.constant 0 : index
    %c0_44 = arith.constant 0 : index
    %166 = vector.load %arg15[%c0_43, %c0_44] : memref<32x128xbf16, #tpu.memory_space<vmem>>, vector<32x128xbf16>
    %cst_45 = arith.constant dense<0.000000e+00> : vector<128x128xf32>
    %167 = tpu.matmul %165, %166, %cst_45 {dimension_numbers = #tpu.dot_dimension_numbers<[1], [0], [0], [1], [0, 0, 1, 1], [], []>} : vector<128x32xbf16>, vector<32x128xbf16>, vector<128x128xf32> -> vector<128x128xf32>
    %c0_46 = arith.constant 0 : index
    %c0_47 = arith.constant 0 : index
    %168 = vector.load %arg16[%c0_46, %c0_47] : memref<1x128xf32, #tpu.memory_space<vmem>>, vector<1x128xf32>
    %169 = vector.broadcast %168 : vector<1x128xf32> to vector<128x128xf32>
    %170 = arith.addf %167, %169 : vector<128x128xf32>
    %cst_48 = arith.constant 0.000000e+00 : f32
    %171 = vector.broadcast %cst_48 : f32 to vector<128x128xf32>
    %172 = arith.maximumf %170, %171 : vector<128x128xf32>
    %173 = arith.truncf %172 : vector<128x128xf32> to vector<128x128xbf16>
    %c0_49 = arith.constant 0 : index
    %c0_50 = arith.constant 0 : index
    %174 = vector.load %arg17[%c0_49, %c0_50] : memref<128x256xbf16, #tpu.memory_space<vmem>>, vector<128x256xbf16>
    %cst_51 = arith.constant dense<0.000000e+00> : vector<128x256xf32>
    %175 = tpu.matmul %173, %174, %cst_51 {dimension_numbers = #tpu.dot_dimension_numbers<[1], [0], [0], [1], [0, 0, 1, 1], [], []>} : vector<128x128xbf16>, vector<128x256xbf16>, vector<128x256xf32> -> vector<128x256xf32>
    %c0_52 = arith.constant 0 : index
    %c0_53 = arith.constant 0 : index
    %176 = vector.load %arg18[%c0_52, %c0_53] : memref<1x256xf32, #tpu.memory_space<vmem>>, vector<1x256xf32>
    %177 = vector.broadcast %176 : vector<1x256xf32> to vector<128x256xf32>
    %178 = arith.addf %175, %177 : vector<128x256xf32>
    %cst_54 = arith.constant 0.000000e+00 : f32
    %179 = vector.broadcast %cst_54 : f32 to vector<128x256xf32>
    %180 = arith.maximumf %178, %179 : vector<128x256xf32>
    %181 = arith.truncf %180 : vector<128x256xf32> to vector<128x256xbf16>
    %c0_55 = arith.constant 0 : index
    %c0_56 = arith.constant 0 : index
    %182 = vector.load %arg19[%c0_55, %c0_56] : memref<256x64xbf16, #tpu.memory_space<vmem>>, vector<256x64xbf16>
    %cst_57 = arith.constant dense<0.000000e+00> : vector<128x64xf32>
    %183 = tpu.matmul %181, %182, %cst_57 {dimension_numbers = #tpu.dot_dimension_numbers<[1], [0], [0], [1], [0, 0, 1, 1], [], []>} : vector<128x256xbf16>, vector<256x64xbf16>, vector<128x64xf32> -> vector<128x64xf32>
    %c0_58 = arith.constant 0 : index
    %c0_59 = arith.constant 0 : index
    %184 = vector.load %arg20[%c0_58, %c0_59] : memref<1x64xf32, #tpu.memory_space<vmem>>, vector<1x64xf32>
    %185 = vector.broadcast %184 : vector<1x64xf32> to vector<128x64xf32>
    %186 = arith.addf %183, %185 : vector<128x64xf32>
    %cst_60 = arith.constant 0.000000e+00 : f32
    %187 = vector.broadcast %cst_60 : f32 to vector<128x64xf32>
    %188 = arith.maximumf %186, %187 : vector<128x64xf32>
    %189 = vector.extract_strided_slice %188 {offsets = [0, 0], sizes = [64, 64], strides = [1, 1]} : vector<128x64xf32> to vector<64x64xf32>
    %cst_61 = arith.constant dense<0xFF800000> : vector<64xf32>
    %190 = vector.multi_reduction <maximumf>, %189, %cst_61 [0] : vector<64x64xf32> to vector<64xf32>
    %191 = vector.shape_cast %190 : vector<64xf32> to vector<1x64xf32>
    %192 = vector.extract_strided_slice %188 {offsets = [64, 0], sizes = [64, 64], strides = [1, 1]} : vector<128x64xf32> to vector<64x64xf32>
    %cst_62 = arith.constant dense<0xFF800000> : vector<64xf32>
    %193 = vector.multi_reduction <maximumf>, %192, %cst_62 [0] : vector<64x64xf32> to vector<64xf32>
    %194 = vector.shape_cast %193 : vector<64xf32> to vector<1x64xf32>
    %195 = tpu.concatenate %191, %194 in 0 : vector<1x64xf32>, vector<1x64xf32> -> vector<2x64xf32>
    %196 = arith.truncf %195 : vector<2x64xf32> to vector<2x64xbf16>
    %c0_63 = arith.constant 0 : index
    %c0_64 = arith.constant 0 : index
    %197 = vector.load %arg21[%c0_63, %c0_64] : memref<64x512xbf16, #tpu.memory_space<vmem>>, vector<64x512xbf16>
    %cst_65 = arith.constant dense<0.000000e+00> : vector<2x512xf32>
    %198 = tpu.matmul %196, %197, %cst_65 {dimension_numbers = #tpu.dot_dimension_numbers<[1], [0], [0], [1], [0, 0, 1, 1], [], []>} : vector<2x64xbf16>, vector<64x512xbf16>, vector<2x512xf32> -> vector<2x512xf32>
    %c0_66 = arith.constant 0 : index
    %c0_67 = arith.constant 0 : index
    %199 = vector.load %arg22[%c0_66, %c0_67] : memref<1x512xf32, #tpu.memory_space<vmem>>, vector<1x512xf32>
    %200 = vector.broadcast %199 : vector<1x512xf32> to vector<2x512xf32>
    %201 = arith.addf %198, %200 : vector<2x512xf32>
    %cst_68 = arith.constant 0.000000e+00 : f32
    %202 = vector.broadcast %cst_68 : f32 to vector<2x512xf32>
    %203 = arith.maximumf %201, %202 : vector<2x512xf32>
    %204 = arith.truncf %203 : vector<2x512xf32> to vector<2x512xbf16>
    %c0_69 = arith.constant 0 : index
    %c0_70 = arith.constant 0 : index
    %205 = vector.load %arg23[%c0_69, %c0_70] : memref<512x256xbf16, #tpu.memory_space<vmem>>, vector<512x256xbf16>
    %cst_71 = arith.constant dense<0.000000e+00> : vector<2x256xf32>
    %206 = tpu.matmul %204, %205, %cst_71 {dimension_numbers = #tpu.dot_dimension_numbers<[1], [0], [0], [1], [0, 0, 1, 1], [], []>} : vector<2x512xbf16>, vector<512x256xbf16>, vector<2x256xf32> -> vector<2x256xf32>
    %c0_72 = arith.constant 0 : index
    %c0_73 = arith.constant 0 : index
    %207 = vector.load %arg24[%c0_72, %c0_73] : memref<1x256xf32, #tpu.memory_space<vmem>>, vector<1x256xf32>
    %208 = vector.broadcast %207 : vector<1x256xf32> to vector<2x256xf32>
    %209 = arith.addf %206, %208 : vector<2x256xf32>
    %cst_74 = arith.constant 0.000000e+00 : f32
    %210 = vector.broadcast %cst_74 : f32 to vector<2x256xf32>
    %211 = arith.maximumf %209, %210 : vector<2x256xf32>
    %212 = arith.truncf %211 : vector<2x256xf32> to vector<2x256xbf16>
    %c0_75 = arith.constant 0 : index
    %c0_76 = arith.constant 0 : index
    %213 = vector.load %arg25[%c0_75, %c0_76] : memref<256x128xbf16, #tpu.memory_space<vmem>>, vector<256x128xbf16>
    %cst_77 = arith.constant dense<0.000000e+00> : vector<2x128xf32>
    %214 = tpu.matmul %212, %213, %cst_77 {dimension_numbers = #tpu.dot_dimension_numbers<[1], [0], [0], [1], [0, 0, 1, 1], [], []>} : vector<2x256xbf16>, vector<256x128xbf16>, vector<2x128xf32> -> vector<2x128xf32>
    %c0_78 = arith.constant 0 : index
    %c0_79 = arith.constant 0 : index
    %215 = vector.load %arg26[%c0_78, %c0_79] : memref<1x128xf32, #tpu.memory_space<vmem>>, vector<1x128xf32>
    %216 = vector.broadcast %215 : vector<1x128xf32> to vector<2x128xf32>
    %217 = arith.addf %214, %216 : vector<2x128xf32>
    %cst_80 = arith.constant 0.000000e+00 : f32
    %218 = vector.broadcast %cst_80 : f32 to vector<2x128xf32>
    %219 = arith.maximumf %217, %218 : vector<2x128xf32>
    %220 = arith.truncf %219 : vector<2x128xf32> to vector<2x128xbf16>
    %c0_81 = arith.constant 0 : index
    %c0_82 = arith.constant 0 : index
    %221 = vector.load %arg27[%c0_81, %c0_82] : memref<128x128xbf16, #tpu.memory_space<vmem>>, vector<128x128xbf16>
    %cst_83 = arith.constant dense<0.000000e+00> : vector<2x128xf32>
    %222 = tpu.matmul %220, %221, %cst_83 {dimension_numbers = #tpu.dot_dimension_numbers<[1], [0], [0], [1], [0, 0, 1, 1], [], []>} : vector<2x128xbf16>, vector<128x128xbf16>, vector<2x128xf32> -> vector<2x128xf32>
    %c0_84 = arith.constant 0 : index
    %c0_85 = arith.constant 0 : index
    %223 = vector.load %arg28[%c0_84, %c0_85] : memref<1x128xf32, #tpu.memory_space<vmem>>, vector<1x128xf32>
    %224 = vector.broadcast %223 : vector<1x128xf32> to vector<2x128xf32>
    %225 = arith.addf %222, %224 : vector<2x128xf32>
    %c0_86 = arith.constant 0 : index
    %c0_87 = arith.constant 0 : index
    %226 = vector.load %arg29[%c0_86, %c0_87] : memref<2x128xf32, #tpu.memory_space<vmem>>, vector<2x128xf32>
    tpu.vector_store %arg29[%c0_86, %c0_87], %225 {strides = array<i32>} : memref<2x128xf32, #tpu.memory_space<vmem>>, vector<2x128xf32>,
    return
  }
}

</mosaic_0001>

<llo_original>
// kernel: encoder_forward.1
$region0: #{encoder_forward.1}
  #allocation0 [shape = 'u32[]', space=smem, size = 0x4, offset = 0x4, fixed_abs, tag = 'smem constant byte address 0x4 - core index']
  #allocation1 [shape = 'u32[144,128]{1,0:T(1,128)}', space=vmem, size = 0x12000, scoped, tag = 'internal scratch']
  %s0 = inlined_call_operand.smem [shape: u32[30], index: -1, kind: input, shape index: {}]
  %s1 = sld [smem:[%s0]]
  %s2 = scalar_lea.smem %s0, 1
  %s3 = sld [smem:[%s2]]
  %s4 = scalar_lea.smem %s0, 2
  %s5 = sld [smem:[%s4]]
  %s6 = scalar_lea.smem %s0, 3
  %s7 = sld [smem:[%s6]]
  %s8 = scalar_lea.smem %s0, 4
  %s9 = sld [smem:[%s8]]
  %s10 = scalar_lea.smem %s0, 5
  %s11 = sld [smem:[%s10]]
  %s12 = scalar_lea.smem %s0, 6
  %s13 = sld [smem:[%s12]]
  %s14 = scalar_lea.smem %s0, 7
  %s15 = sld [smem:[%s14]]
  %s16 = scalar_lea.smem %s0, 8
  %s17 = sld [smem:[%s16]]
  %s18 = scalar_lea.smem %s0, 9
  %s19 = sld [smem:[%s18]]
  %s20 = scalar_lea.smem %s0, 10
  %s21 = sld [smem:[%s20]]
  %s22 = scalar_lea.smem %s0, 11
  %s23 = sld [smem:[%s22]]
  %s24 = scalar_lea.smem %s0, 12
  %s25 = sld [smem:[%s24]]
  %s26 = scalar_lea.smem %s0, 13
  %s27 = sld [smem:[%s26]]
  %s28 = scalar_lea.smem %s0, 14
  %s29 = sld [smem:[%s28]]
  %s30 = scalar_lea.smem %s0, 15
  %s31 = sld [smem:[%s30]]
  %s32 = scalar_lea.smem %s0, 16
  %s33 = sld [smem:[%s32]]
  %s34 = scalar_lea.smem %s0, 17
  %s35 = sld [smem:[%s34]]
  %s36 = scalar_lea.smem %s0, 18
  %s37 = sld [smem:[%s36]]
  %s38 = scalar_lea.smem %s0, 19
  %s39 = sld [smem:[%s38]]
  %s40 = scalar_lea.smem %s0, 20
  %s41 = sld [smem:[%s40]]
  %s42 = scalar_lea.smem %s0, 21
  %s43 = sld [smem:[%s42]]
  %s44 = scalar_lea.smem %s0, 22
  %s45 = sld [smem:[%s44]]
  %s46 = scalar_lea.smem %s0, 23
  %s47 = sld [smem:[%s46]]
  %s48 = scalar_lea.smem %s0, 24
  %s49 = sld [smem:[%s48]]
  %s50 = scalar_lea.smem %s0, 25
  %s51 = sld [smem:[%s50]]
  %s52 = scalar_lea.smem %s0, 26
  %s53 = sld [smem:[%s52]]
  %s54 = scalar_lea.smem %s0, 27
  %s55 = sld [smem:[%s54]]
  %s56 = scalar_lea.smem %s0, 28
  %s57 = sld [smem:[%s56]]
  %s58 = scalar_lea.smem %s0, 29
  %s59 = sld [smem:[%s58]]
  %s60 = sld [smem:[#allocation0]]
  $region206: #{encoder_forward.1} parent=0
    _
  %s62 = ssub.s32 1, %s60
  %s63 = scalar_select 0, %s62, %s60
  $region1: #{encoder_forward.1} parent=0
    #allocation2 [shape = 'u8[1024]{0}', space=vmem, size = 0x400, scoped, tag = 'input window, operand 1, single buffered']
    #allocation3 [shape = 's32[1]{0}', space=sflag, size = 0x4, scoped, tag = 'scoped memory for encoder_forward.1']
    #allocation4 [shape = 's32[1]{0}', space=sflag, size = 0x4, scoped, tag = 'scoped memory for encoder_forward.1']
    #allocation5 [shape = 'u8[512]{0}', space=vmem, size = 0x400, scoped, tag = 'input window, operand 2, single buffered']
    #allocation6 [shape = 's32[1]{0}', space=sflag, size = 0x4, scoped, tag = 'scoped memory for encoder_forward.1']
    #allocation7 [shape = 'u8[512]{0}', space=vmem, size = 0x400, scoped, tag = 'input window, operand 4, single buffered']
    #allocation8 [shape = 'u8[262144]{0}', space=vmem, size = 0x40000, scoped, tag = 'input window, operand 5, single buffered']
    #allocation9 [shape = 's32[1]{0}', space=sflag, size = 0x4, scoped, tag = 'scoped memory for encoder_forward.1']
    #allocation10 [shape = 'u8[4096]{0}', space=vmem, size = 0x1000, scoped, tag = 'input window, operand 6, single buffered']
    #allocation11 [shape = 'u8[1048576]{0}', space=vmem, size = 0x100000, scoped, tag = 'input window, operand 7, single buffered']
    #allocation12 [shape = 's32[1]{0}', space=sflag, size = 0x4, scoped, tag = 'scoped memory for encoder_forward.1']
    #allocation13 [shape = 'u8[2048]{0}', space=vmem, size = 0x800, scoped, tag = 'input window, operand 8, single buffered']
    #allocation14 [shape = 'u8[262144]{0}', space=vmem, size = 0x40000, scoped, tag = 'input window, operand 9, single buffered']
    #allocation15 [shape = 's32[1]{0}', space=sflag, size = 0x4, scoped, tag = 'scoped memory for encoder_forward.1']
    #allocation16 [shape = 'u8[1024]{0}', space=vmem, size = 0x400, scoped, tag = 'input window, operand 10, single buffered']
    #allocation17 [shape = 'u8[512]{0}', space=vmem, size = 0x400, scoped, tag = 'input window, operand 12, single buffered']
    #allocation18 [shape = 's32[1]{0}', space=sflag, size = 0x4, scoped, tag = 'scoped memory for encoder_forward.1']
    #allocation19 [shape = 'u8[1024]{0}', space=vmem, size = 0x400, scoped, tag = 'input window, operand 13, single buffered']
    #allocation20 [shape = 'u8[512]{0}', space=vmem, size = 0x400, scoped, tag = 'input window, operand 14, single buffered']
    #allocation21 [shape = 's32[1]{0}', space=sflag, size = 0x4, scoped, tag = 'scoped memory for encoder_forward.1']
    #allocation22 [shape = 'u8[512]{0}', space=vmem, size = 0x400, scoped, tag = 'input window, operand 16, single buffered']
    #allocation23 [shape = 'u8[65536]{0}', space=vmem, size = 0x10000, scoped, tag = 'input window, operand 17, single buffered']
    #allocation24 [shape = 's32[1]{0}', space=sflag, size = 0x4, scoped, tag = 'scoped memory for encoder_forward.1']
    #allocation25 [shape = 'u8[1024]{0}', space=vmem, size = 0x400, scoped, tag = 'input window, operand 18, single buffered']
    #allocation26 [shape = 'u8[512]{0}', space=vmem, size = 0x400, scoped, tag = 'input window, operand 20, single buffered']
    #allocation27 [shape = 's32[1]{0}', space=sflag, size = 0x4, scoped, tag = 'scoped memory for encoder_forward.1']
    #allocation28 [shape = 'u8[65536]{0}', space=vmem, size = 0x10000, scoped, tag = 'input window, operand 21, single buffered']
    #allocation29 [shape = 'u8[2048]{0}', space=vmem, size = 0x800, scoped, tag = 'input window, operand 22, single buffered']
    #allocation30 [shape = 's32[1]{0}', space=sflag, size = 0x4, scoped, tag = 'scoped memory for encoder_forward.1']
    #allocation31 [shape = 'u8[65536]{0}', space=vmem, size = 0x10000, scoped, tag = 'input window, operand 25, single buffered']
    #allocation32 [shape = 'u8[32768]{0}', space=vmem, size = 0x8000, scoped, tag = 'input window, operand 27, single buffered']
    #allocation33 [shape = 's32[1]{0}', space=sflag, size = 0x4, scoped, tag = 'scoped memory for encoder_forward.1']
    #allocation34 [shape = 'u8[1024]{0}', space=vmem, size = 0x400, scoped, tag = 'output window, operand 0, single buffered']
    %64 = vsyncpa [#allocation3], 0
    %65 = vsyncpa [#allocation6], 0
    %66 = vsyncpa [#allocation9], 0
    %67 = vsyncpa [#allocation12], 0
    %68 = vsyncpa [#allocation15], 0
    %69 = vsyncpa [#allocation18], 0
    %70 = vsyncpa [#allocation21], 0
    %71 = vsyncpa [#allocation24], 0
    %72 = vsyncpa [#allocation27], 0
    %73 = vsyncpa [#allocation30], 0
    %74 = vsyncpa [#allocation33], 0
    %75 = vsyncpa [#allocation4], 0
    // Predicated region
    $region2: #{encoder_forward.1} parent=1 // pred_check
      _
    $region3: #{encoder_forward.1} parent=1 // pred_check_branch
      %77 = sbr.rel (0) target = $region5
    $region4: #{encoder_forward.1} parent=1 // pred_region
      _
    $region5: #{encoder_forward.1} parent=1 // pred_fallthru
      _
    // Predicated region
    $region6: #{encoder_forward.1} parent=1 // pred_check
      _
    $region7: #{encoder_forward.1} parent=1 // pred_check_branch
      %79 = sbr.rel (0) target = $region9
    $region8: #{encoder_forward.1} parent=1 // pred_region
      %s81 = ssub.s32 32, 32
      %82 = vsyncadd [#allocation3], %s81
      %s84 = sshll.u32 [#allocation2], 4
      %s85 = int_to_ptr.vmem [resolvable:$true] %s84
      %87 = dma.hbm_to_vmem [thread:$0]  %s3, 32, %s85, [#allocation3]
    $region9: #{encoder_forward.1} parent=1 // pred_fallthru
      _
    // Predicated region
    $region10: #{encoder_forward.1} parent=1 // pred_check
      _
    $region11: #{encoder_forward.1} parent=1 // pred_check_branch
      %89 = sbr.rel (0) target = $region13
    $region12: #{encoder_forward.1} parent=1 // pred_region
      %s91 = ssub.s32 16, 16
      %92 = vsyncadd [#allocation6], %s91
      %s94 = sshll.u32 [#allocation5], 4
      %s95 = int_to_ptr.vmem [resolvable:$true] %s94
      %97 = dma.hbm_to_vmem [thread:$0]  %s5, 16, %s95, [#allocation6]
    $region13: #{encoder_forward.1} parent=1 // pred_fallthru
      _
    // Predicated region
    $region14: #{encoder_forward.1} parent=1 // pred_check
      _
    $region15: #{encoder_forward.1} parent=1 // pred_check_branch
      %99 = sbr.rel (0) target = $region17
    $region16: #{encoder_forward.1} parent=1 // pred_region
      _
    $region17: #{encoder_forward.1} parent=1 // pred_fallthru
      _
    // Predicated region
    $region18: #{encoder_forward.1} parent=1 // pred_check
      _
    $region19: #{encoder_forward.1} parent=1 // pred_check_branch
      %101 = sbr.rel (0) target = $region21
    $region20: #{encoder_forward.1} parent=1 // pred_region
      %s103 = ssub.s32 16, 16
      %104 = vsyncadd [#allocation6], %s103
      %s106 = sshll.u32 [#allocation7], 4
      %s107 = int_to_ptr.vmem [resolvable:$true] %s106
      %109 = dma.hbm_to_vmem [thread:$0]  %s9, 16, %s107, [#allocation6]
    $region21: #{encoder_forward.1} parent=1 // pred_fallthru
      _
    // Predicated region
    $region22: #{encoder_forward.1} parent=1 // pred_check
      _
    $region23: #{encoder_forward.1} parent=1 // pred_check_branch
      %111 = sbr.rel (0) target = $region25
    $region24: #{encoder_forward.1} parent=1 // pred_region
      %s113 = ssub.s32 8192, 8192
      %114 = vsyncadd [#allocation9], %s113
      %s115 = sshll.u32 [#allocation8], 4
      %s116 = int_to_ptr.vmem [resolvable:$true] %s115
      %121 = dma.hbm_to_vmem [thread:$0]  %s11, 8192, %s116, [#allocation9], 512, 512, 32
    $region25: #{encoder_forward.1} parent=1 // pred_fallthru
      _
    // Predicated region
    $region26: #{encoder_forward.1} parent=1 // pred_check
      _
    $region27: #{encoder_forward.1} parent=1 // pred_check_branch
      %123 = sbr.rel (0) target = $region29
    $region28: #{encoder_forward.1} parent=1 // pred_region
      %s125 = ssub.s32 128, 128
      %126 = vsyncadd [#allocation9], %s125
      %s128 = sshll.u32 [#allocation10], 4
      %s129 = int_to_ptr.vmem [resolvable:$true] %s128
      %131 = dma.hbm_to_vmem [thread:$0]  %s13, 128, %s129, [#allocation9]
    $region29: #{encoder_forward.1} parent=1 // pred_fallthru
      _
    // Predicated region
    $region30: #{encoder_forward.1} parent=1 // pred_check
      _
    $region31: #{encoder_forward.1} parent=1 // pred_check_branch
      %133 = sbr.rel (0) target = $region33
    $region32: #{encoder_forward.1} parent=1 // pred_region
      %s135 = ssub.s32 32768, 32768
      %136 = vsyncadd [#allocation12], %s135
      %s137 = sshll.u32 [#allocation11], 4
      %s138 = int_to_ptr.vmem [resolvable:$true] %s137
      %143 = dma.hbm_to_vmem [thread:$0]  %s15, 32768, %s138, [#allocation12], 256, 256, 16
    $region33: #{encoder_forward.1} parent=1 // pred_fallthru
      _
    // Predicated region
    $region34: #{encoder_forward.1} parent=1 // pred_check
      _
    $region35: #{encoder_forward.1} parent=1 // pred_check_branch
      %145 = sbr.rel (0) target = $region37
    $region36: #{encoder_forward.1} parent=1 // pred_region
      %s147 = ssub.s32 64, 64
      %148 = vsyncadd [#allocation12], %s147
      %s150 = sshll.u32 [#allocation13], 4
      %s151 = int_to_ptr.vmem [resolvable:$true] %s150
      %153 = dma.hbm_to_vmem [thread:$0]  %s17, 64, %s151, [#allocation12]
    $region37: #{encoder_forward.1} parent=1 // pred_fallthru
      _
    // Predicated region
    $region38: #{encoder_forward.1} parent=1 // pred_check
      _
    $region39: #{encoder_forward.1} parent=1 // pred_check_branch
      %155 = sbr.rel (0) target = $region41
    $region40: #{encoder_forward.1} parent=1 // pred_region
      %s157 = ssub.s32 8192, 8192
      %158 = vsyncadd [#allocation15], %s157
      %s159 = sshll.u32 [#allocation14], 4
      %s160 = int_to_ptr.vmem [resolvable:$true] %s159
      %165 = dma.hbm_to_vmem [thread:$0]  %s19, 8192, %s160, [#allocation15], 128, 128, 8
    $region41: #{encoder_forward.1} parent=1 // pred_fallthru
      _
    // Predicated region
    $region42: #{encoder_forward.1} parent=1 // pred_check
      _
    $region43: #{encoder_forward.1} parent=1 // pred_check_branch
      %167 = sbr.rel (0) target = $region45
    $region44: #{encoder_forward.1} parent=1 // pred_region
      %s169 = ssub.s32 32, 32
      %170 = vsyncadd [#allocation15], %s169
      %s172 = sshll.u32 [#allocation16], 4
      %s173 = int_to_ptr.vmem [resolvable:$true] %s172
      %175 = dma.hbm_to_vmem [thread:$0]  %s21, 32, %s173, [#allocation15]
    $region45: #{encoder_forward.1} parent=1 // pred_fallthru
      _
    // Predicated region
    $region46: #{encoder_forward.1} parent=1 // pred_check
      _
    $region47: #{encoder_forward.1} parent=1 // pred_check_branch
      %177 = sbr.rel (0) target = $region49
    $region48: #{encoder_forward.1} parent=1 // pred_region
      _
    $region49: #{encoder_forward.1} parent=1 // pred_fallthru
      _
    // Predicated region
    $region50: #{encoder_forward.1} parent=1 // pred_check
      _
    $region51: #{encoder_forward.1} parent=1 // pred_check_branch
      %179 = sbr.rel (0) target = $region53
    $region52: #{encoder_forward.1} parent=1 // pred_region
      %s181 = ssub.s32 16, 16
      %182 = vsyncadd [#allocation18], %s181
      %s184 = sshll.u32 [#allocation17], 4
      %s185 = int_to_ptr.vmem [resolvable:$true] %s184
      %187 = dma.hbm_to_vmem [thread:$0]  %s25, 16, %s185, [#allocation18]
    $region53: #{encoder_forward.1} parent=1 // pred_fallthru
      _
    // Predicated region
    $region54: #{encoder_forward.1} parent=1 // pred_check
      _
    $region55: #{encoder_forward.1} parent=1 // pred_check_branch
      %189 = sbr.rel (0) target = $region57
    $region56: #{encoder_forward.1} parent=1 // pred_region
      %s191 = ssub.s32 32, 32
      %192 = vsyncadd [#allocation18], %s191
      %s194 = sshll.u32 [#allocation19], 4
      %s195 = int_to_ptr.vmem [resolvable:$true] %s194
      %197 = dma.hbm_to_vmem [thread:$0]  %s27, 32, %s195, [#allocation18]
    $region57: #{encoder_forward.1} parent=1 // pred_fallthru
      _
    // Predicated region
    $region58: #{encoder_forward.1} parent=1 // pred_check
      _
    $region59: #{encoder_forward.1} parent=1 // pred_check_branch
      %199 = sbr.rel (0) target = $region61
    $region60: #{encoder_forward.1} parent=1 // pred_region
      %s201 = ssub.s32 16, 16
      %202 = vsyncadd [#allocation21], %s201
      %s204 = sshll.u32 [#allocation20], 4
      %s205 = int_to_ptr.vmem [resolvable:$true] %s204
      %207 = dma.hbm_to_vmem [thread:$0]  %s29, 16, %s205, [#allocation21]
    $region61: #{encoder_forward.1} parent=1 // pred_fallthru
      _
    // Predicated region
    $region62: #{encoder_forward.1} parent=1 // pred_check
      _
    $region63: #{encoder_forward.1} parent=1 // pred_check_branch
      %209 = sbr.rel (0) target = $region65
    $region64: #{encoder_forward.1} parent=1 // pred_region
      _
    $region65: #{encoder_forward.1} parent=1 // pred_fallthru
      _
    // Predicated region
    $region66: #{encoder_forward.1} parent=1 // pred_check
      _
    $region67: #{encoder_forward.1} parent=1 // pred_check_branch
      %211 = sbr.rel (0) target = $region69
    $region68: #{encoder_forward.1} parent=1 // pred_region
      %s213 = ssub.s32 16, 16
      %214 = vsyncadd [#allocation21], %s213
      %s216 = sshll.u32 [#allocation22], 4
      %s217 = int_to_ptr.vmem [resolvable:$true] %s216
      %219 = dma.hbm_to_vmem [thread:$0]  %s33, 16, %s217, [#allocation21]
    $region69: #{encoder_forward.1} parent=1 // pred_fallthru
      _
    // Predicated region
    $region70: #{encoder_forward.1} parent=1 // pred_check
      _
    $region71: #{encoder_forward.1} parent=1 // pred_check_branch
      %221 = sbr.rel (0) target = $region73
    $region72: #{encoder_forward.1} parent=1 // pred_region
      %s223 = ssub.s32 2048, 2048
      %224 = vsyncadd [#allocation24], %s223
      %s225 = sshll.u32 [#allocation23], 4
      %s226 = int_to_ptr.vmem [resolvable:$true] %s225
      %231 = dma.hbm_to_vmem [thread:$0]  %s35, 2048, %s226, [#allocation24], 128, 128, 8
    $region73: #{encoder_forward.1} parent=1 // pred_fallthru
      _
    // Predicated region
    $region74: #{encoder_forward.1} parent=1 // pred_check
      _
    $region75: #{encoder_forward.1} parent=1 // pred_check_branch
      %233 = sbr.rel (0) target = $region77
    $region76: #{encoder_forward.1} parent=1 // pred_region
      %s235 = ssub.s32 32, 32
      %236 = vsyncadd [#allocation24], %s235
      %s238 = sshll.u32 [#allocation25], 4
      %s239 = int_to_ptr.vmem [resolvable:$true] %s238
      %241 = dma.hbm_to_vmem [thread:$0]  %s37, 32, %s239, [#allocation24]
    $region77: #{encoder_forward.1} parent=1 // pred_fallthru
      _
    // Predicated region
    $region78: #{encoder_forward.1} parent=1 // pred_check
      _
    $region79: #{encoder_forward.1} parent=1 // pred_check_branch
      %243 = sbr.rel (0) target = $region81
    $region80: #{encoder_forward.1} parent=1 // pred_region
      _
    $region81: #{encoder_forward.1} parent=1 // pred_fallthru
      _
    // Predicated region
    $region82: #{encoder_forward.1} parent=1 // pred_check
      _
    $region83: #{encoder_forward.1} parent=1 // pred_check_branch
      %245 = sbr.rel (0) target = $region85
    $region84: #{encoder_forward.1} parent=1 // pred_region
      %s247 = ssub.s32 16, 16
      %248 = vsyncadd [#allocation27], %s247
      %s250 = sshll.u32 [#allocation26], 4
      %s251 = int_to_ptr.vmem [resolvable:$true] %s250
      %253 = dma.hbm_to_vmem [thread:$0]  %s41, 16, %s251, [#allocation27]
    $region85: #{encoder_forward.1} parent=1 // pred_fallthru
      _
    // Predicated region
    $region86: #{encoder_forward.1} parent=1 // pred_check
      _
    $region87: #{encoder_forward.1} parent=1 // pred_check_branch
      %255 = sbr.rel (0) target = $region89
    $region88: #{encoder_forward.1} parent=1 // pred_region
      %s257 = ssub.s32 2048, 2048
      %258 = vsyncadd [#allocation27], %s257
      %s259 = sshll.u32 [#allocation28], 4
      %s260 = int_to_ptr.vmem [resolvable:$true] %s259
      %265 = dma.hbm_to_vmem [thread:$0]  %s43, 2048, %s260, [#allocation27], 256, 256, 16
    $region89: #{encoder_forward.1} parent=1 // pred_fallthru
      _
    // Predicated region
    $region90: #{encoder_forward.1} parent=1 // pred_check
      _
    $region91: #{encoder_forward.1} parent=1 // pred_check_branch
      %267 = sbr.rel (0) target = $region93
    $region92: #{encoder_forward.1} parent=1 // pred_region
      %s269 = ssub.s32 64, 64
      %270 = vsyncadd [#allocation30], %s269
      %s272 = sshll.u32 [#allocation29], 4
      %s273 = int_to_ptr.vmem [resolvable:$true] %s272
      %275 = dma.hbm_to_vmem [thread:$0]  %s45, 64, %s273, [#allocation30]
    $region93: #{encoder_forward.1} parent=1 // pred_fallthru
      _
    // Predicated region
    $region94: #{encoder_forward.1} parent=1 // pred_check
      _
    $region95: #{encoder_forward.1} parent=1 // pred_check_branch
      %277 = sbr.rel (0) target = $region97
    $region96: #{encoder_forward.1} parent=1 // pred_region
      _
    $region97: #{encoder_forward.1} parent=1 // pred_fallthru
      _
    // Predicated region
    $region98: #{encoder_forward.1} parent=1 // pred_check
      _
    $region99: #{encoder_forward.1} parent=1 // pred_check_branch
      %279 = sbr.rel (0) target = $region101
    $region100: #{encoder_forward.1} parent=1 // pred_region
      _
    $region101: #{encoder_forward.1} parent=1 // pred_fallthru
      _
    // Predicated region
    $region102: #{encoder_forward.1} parent=1 // pred_check
      _
    $region103: #{encoder_forward.1} parent=1 // pred_check_branch
      %281 = sbr.rel (0) target = $region105
    $region104: #{encoder_forward.1} parent=1 // pred_region
      %s283 = ssub.s32 2048, 2048
      %284 = vsyncadd [#allocation30], %s283
      %s285 = sshll.u32 [#allocation31], 4
      %s286 = int_to_ptr.vmem [resolvable:$true] %s285
      %291 = dma.hbm_to_vmem [thread:$0]  %s51, 2048, %s286, [#allocation30], 64, 64, 4
    $region105: #{encoder_forward.1} parent=1 // pred_fallthru
      _
    // Predicated region
    $region106: #{encoder_forward.1} parent=1 // pred_check
      _
    $region107: #{encoder_forward.1} parent=1 // pred_check_branch
      %293 = sbr.rel (0) target = $region109
    $region108: #{encoder_forward.1} parent=1 // pred_region
      _
    $region109: #{encoder_forward.1} parent=1 // pred_fallthru
      _
    // Predicated region
    $region110: #{encoder_forward.1} parent=1 // pred_check
      _
    $region111: #{encoder_forward.1} parent=1 // pred_check_branch
      %295 = sbr.rel (0) target = $region113
    $region112: #{encoder_forward.1} parent=1 // pred_region
      %s297 = ssub.s32 1024, 1024
      %298 = vsyncadd [#allocation33], %s297
      %s299 = sshll.u32 [#allocation32], 4
      %s300 = int_to_ptr.vmem [resolvable:$true] %s299
      %305 = dma.hbm_to_vmem [thread:$0]  %s55, 1024, %s300, [#allocation33], 64, 64, 4
    $region113: #{encoder_forward.1} parent=1 // pred_fallthru
      _
    // Predicated region
    $region114: #{encoder_forward.1} parent=1 // pred_check
      _
    $region115: #{encoder_forward.1} parent=1 // pred_check_branch
      %307 = sbr.rel (0) target = $region117
    $region116: #{encoder_forward.1} parent=1 // pred_region
      _
    $region117: #{encoder_forward.1} parent=1 // pred_fallthru
      _
    // Predicated region
    $region118: #{encoder_forward.1} parent=1 // pred_check
      _
    $region119: #{encoder_forward.1} parent=1 // pred_check_branch
      %309 = sbr.rel (0) target = $region121
    $region120: #{encoder_forward.1} parent=1 // pred_region
      %310 = dma.done [#allocation3], 32
    $region121: #{encoder_forward.1} parent=1 // pred_fallthru
      _
    // Predicated region
    $region122: #{encoder_forward.1} parent=1 // pred_check
      _
    $region123: #{encoder_forward.1} parent=1 // pred_check_branch
      %312 = sbr.rel (0) target = $region125
    $region124: #{encoder_forward.1} parent=1 // pred_region
      %313 = dma.done [#allocation6], 16
    $region125: #{encoder_forward.1} parent=1 // pred_fallthru
      _
    // Predicated region
    $region126: #{encoder_forward.1} parent=1 // pred_check
      _
    $region127: #{encoder_forward.1} parent=1 // pred_check_branch
      %315 = sbr.rel (0) target = $region129
    $region128: #{encoder_forward.1} parent=1 // pred_region
      %316 = dma.done [#allocation6], 16
    $region129: #{encoder_forward.1} parent=1 // pred_fallthru
      _
    // Predicated region
    $region130: #{encoder_forward.1} parent=1 // pred_check
      _
    $region131: #{encoder_forward.1} parent=1 // pred_check_branch
      %318 = sbr.rel (0) target = $region133
    $region132: #{encoder_forward.1} parent=1 // pred_region
      %319 = dma.done [#allocation9], 8192
    $region133: #{encoder_forward.1} parent=1 // pred_fallthru
      _
    // Predicated region
    $region134: #{encoder_forward.1} parent=1 // pred_check
      _
    $region135: #{encoder_forward.1} parent=1 // pred_check_branch
      %321 = sbr.rel (0) target = $region137
    $region136: #{encoder_forward.1} parent=1 // pred_region
      %322 = dma.done [#allocation9], 128
    $region137: #{encoder_forward.1} parent=1 // pred_fallthru
      _
    // Predicated region
    $region138: #{encoder_forward.1} parent=1 // pred_check
      _
    $region139: #{encoder_forward.1} parent=1 // pred_check_branch
      %324 = sbr.rel (0) target = $region141
    $region140: #{encoder_forward.1} parent=1 // pred_region
      %325 = dma.done [#allocation12], 32768
    $region141: #{encoder_forward.1} parent=1 // pred_fallthru
      _
    // Predicated region
    $region142: #{encoder_forward.1} parent=1 // pred_check
      _
    $region143: #{encoder_forward.1} parent=1 // pred_check_branch
      %327 = sbr.rel (0) target = $region145
    $region144: #{encoder_forward.1} parent=1 // pred_region
      %328 = dma.done [#allocation12], 64
    $region145: #{encoder_forward.1} parent=1 // pred_fallthru
      _
    // Predicated region
    $region146: #{encoder_forward.1} parent=1 // pred_check
      _
    $region147: #{encoder_forward.1} parent=1 // pred_check_branch
      %330 = sbr.rel (0) target = $region149
    $region148: #{encoder_forward.1} parent=1 // pred_region
      %331 = dma.done [#allocation15], 8192
    $region149: #{encoder_forward.1} parent=1 // pred_fallthru
      _
    // Predicated region
    $region150: #{encoder_forward.1} parent=1 // pred_check
      _
    $region151: #{encoder_forward.1} parent=1 // pred_check_branch
      %333 = sbr.rel (0) target = $region153
    $region152: #{encoder_forward.1} parent=1 // pred_region
      %334 = dma.done [#allocation15], 32
    $region153: #{encoder_forward.1} parent=1 // pred_fallthru
      _
    // Predicated region
    $region154: #{encoder_forward.1} parent=1 // pred_check
      _
    $region155: #{encoder_forward.1} parent=1 // pred_check_branch
      %336 = sbr.rel (0) target = $region157
    $region156: #{encoder_forward.1} parent=1 // pred_region
      %337 = dma.done [#allocation18], 16
    $region157: #{encoder_forward.1} parent=1 // pred_fallthru
      _
    // Predicated region
    $region158: #{encoder_forward.1} parent=1 // pred_check
      _
    $region159: #{encoder_forward.1} parent=1 // pred_check_branch
      %339 = sbr.rel (0) target = $region161
    $region160: #{encoder_forward.1} parent=1 // pred_region
      %340 = dma.done [#allocation18], 32
    $region161: #{encoder_forward.1} parent=1 // pred_fallthru
      _
    // Predicated region
    $region162: #{encoder_forward.1} parent=1 // pred_check
      _
    $region163: #{encoder_forward.1} parent=1 // pred_check_branch
      %342 = sbr.rel (0) target = $region165
    $region164: #{encoder_forward.1} parent=1 // pred_region
      %343 = dma.done [#allocation21], 16
    $region165: #{encoder_forward.1} parent=1 // pred_fallthru
      _
    // Predicated region
    $region166: #{encoder_forward.1} parent=1 // pred_check
      _
    $region167: #{encoder_forward.1} parent=1 // pred_check_branch
      %345 = sbr.rel (0) target = $region169
    $region168: #{encoder_forward.1} parent=1 // pred_region
      %346 = dma.done [#allocation21], 16
    $region169: #{encoder_forward.1} parent=1 // pred_fallthru
      _
    // Predicated region
    $region170: #{encoder_forward.1} parent=1 // pred_check
      _
    $region171: #{encoder_forward.1} parent=1 // pred_check_branch
      %348 = sbr.rel (0) target = $region173
    $region172: #{encoder_forward.1} parent=1 // pred_region
      %349 = dma.done [#allocation24], 2048
    $region173: #{encoder_forward.1} parent=1 // pred_fallthru
      _
    // Predicated region
    $region174: #{encoder_forward.1} parent=1 // pred_check
      _
    $region175: #{encoder_forward.1} parent=1 // pred_check_branch
      %351 = sbr.rel (0) target = $region177
    $region176: #{encoder_forward.1} parent=1 // pred_region
      %352 = dma.done [#allocation24], 32
    $region177: #{encoder_forward.1} parent=1 // pred_fallthru
      _
    // Predicated region
    $region178: #{encoder_forward.1} parent=1 // pred_check
      _
    $region179: #{encoder_forward.1} parent=1 // pred_check_branch
      %354 = sbr.rel (0) target = $region181
    $region180: #{encoder_forward.1} parent=1 // pred_region
      %355 = dma.done [#allocation27], 16
    $region181: #{encoder_forward.1} parent=1 // pred_fallthru
      _
    // Predicated region
    $region182: #{encoder_forward.1} parent=1 // pred_check
      _
    $region183: #{encoder_forward.1} parent=1 // pred_check_branch
      %357 = sbr.rel (0) target = $region185
    $region184: #{encoder_forward.1} parent=1 // pred_region
      %358 = dma.done [#allocation27], 2048
    $region185: #{encoder_forward.1} parent=1 // pred_fallthru
      _
    // Predicated region
    $region186: #{encoder_forward.1} parent=1 // pred_check
      _
    $region187: #{encoder_forward.1} parent=1 // pred_check_branch
      %360 = sbr.rel (0) target = $region189
    $region188: #{encoder_forward.1} parent=1 // pred_region
      %361 = dma.done [#allocation30], 64
    $region189: #{encoder_forward.1} parent=1 // pred_fallthru
      _
    // Predicated region
    $region190: #{encoder_forward.1} parent=1 // pred_check
      _
    $region191: #{encoder_forward.1} parent=1 // pred_check_branch
      %363 = sbr.rel (0) target = $region193
    $region192: #{encoder_forward.1} parent=1 // pred_region
      %364 = dma.done [#allocation30], 2048
    $region193: #{encoder_forward.1} parent=1 // pred_fallthru
      _
    // Predicated region
    $region194: #{encoder_forward.1} parent=1 // pred_check
      _
    $region195: #{encoder_forward.1} parent=1 // pred_check_branch
      %366 = sbr.rel (0) target = $region197
    $region196: #{encoder_forward.1} parent=1 // pred_region
      %367 = dma.done [#allocation33], 1024
    $region197: #{encoder_forward.1} parent=1 // pred_fallthru
      _
    %v369 = vld [vmem:[%s1] sm:$0xff]
    %v370 = vld [vmem:[%s1 + $0x8] sm:$0xff]
    %v371 = vld [vmem:[%s1 + $0x10] sm:$0xff]
    %v372 = vld [vmem:[%s1 + $0x18] sm:$0xff]
    %v373 = vld [vmem:[%s1 + $0x20] sm:$0xff]
    %v374 = vld [vmem:[%s1 + $0x28] sm:$0xff]
    %v375 = vld [vmem:[%s1 + $0x30] sm:$0xff]
    %v376 = vld [vmem:[%s1 + $0x38] sm:$0xff]
    %v377 = vld [vmem:[%s1 + $0x40] sm:$0xff]
    %v378 = vld [vmem:[%s1 + $0x48] sm:$0xff]
    %v379 = vld [vmem:[%s1 + $0x50] sm:$0xff]
    %v380 = vld [vmem:[%s1 + $0x58] sm:$0xff]
    %v381 = vld [vmem:[%s1 + $0x60] sm:$0xff]
    %v382 = vld [vmem:[%s1 + $0x68] sm:$0xff]
    %v383 = vld [vmem:[%s1 + $0x70] sm:$0xff]
    %v384 = vld [vmem:[%s1 + $0x78] sm:$0xff]
    %v385 = vpack.c.bf16 %v370, %v369
    %v386 = vpack.c.bf16 %v372, %v371
    %v387 = vpack.c.bf16 %v374, %v373
    %v388 = vpack.c.bf16 %v376, %v375
    %v389 = vpack.c.bf16 %v378, %v377
    %v390 = vpack.c.bf16 %v380, %v379
    %v391 = vpack.c.bf16 %v382, %v381
    %v392 = vpack.c.bf16 %v384, %v383
    %v393 = vld [vmem:[#allocation2] sm:$0x3]
    %v394 = vld [vmem:[#allocation5] sm:$0x1]
    %v396 = vlaneseq
    %v397 = vshrl.u32 %v396, 7
    %v398 = vsub.s32 0, %v397
    %v399 = vrot.slane %v394, %v398
    %vm401 = vcmask 23552
    %v403 = vsel %vm401, %v385, 0
    %v406 = vsel %vm401, %v386, 0
    %v409 = vsel %vm401, %v387, 0
    %v412 = vsel %vm401, %v388, 0
    %v415 = vsel %vm401, %v389, 0
    %v418 = vsel %vm401, %v390, 0
    %v421 = vsel %vm401, %v391, 0
    %v424 = vsel %vm401, %v392, 0
    %vm426 = vcmask 1040384
    %vm427 = vcmask 1041408
    %v428 = vsel %vm426, 4294967295, 65535
    %v429 = vsel %vm427, %v428, 0
    %v431 = vand.u32 %v393, %v429
    %433 = vmatprep.subr.bf16.mxu0 0
    %434 = vmatpush1.bf16.msra.mxu0 %v431
    %435 = vmatprep.subr.bf16.mxu0 0
    %436 = vmatpush1.bf16.msra.mxu0 0
    %437 = vmatprep.subr.bf16.mxu0 0
    %438 = vmatpush1.bf16.msra.mxu0 0
    %439 = vmatprep.subr.bf16.mxu0 0
    %440 = vmatpush1.bf16.msra.mxu0 0
    %441 = vmatprep.subr.bf16.mxu0 0
    %442 = vmatpush1.bf16.msra.mxu0 0
    %443 = vmatprep.subr.bf16.mxu0 0
    %444 = vmatpush1.bf16.msra.mxu0 0
    %445 = vmatprep.subr.bf16.mxu0 0
    %446 = vmatpush1.bf16.msra.mxu0 0
    %447 = vmatprep.subr.bf16.mxu0 0
    %448 = vmatpush1.bf16.msra.mxu0 0
    %449 = vmatprep.subr.bf16.mxu0 0
    %450 = vmatpush1.bf16.msra.mxu0 0
    %451 = vmatprep.subr.bf16.mxu0 0
    %452 = vmatpush1.bf16.msra.mxu0 0
    %453 = vmatprep.subr.bf16.mxu0 0
    %454 = vmatpush1.bf16.msra.mxu0 0
    %455 = vmatprep.subr.bf16.mxu0 0
    %456 = vmatpush1.bf16.msra.mxu0 0
    %457 = vmatprep.subr.bf16.mxu0 0
    %458 = vmatpush1.bf16.msra.mxu0 0
    %459 = vmatprep.subr.bf16.mxu0 0
    %460 = vmatpush1.bf16.msra.mxu0 0
    %461 = vmatprep.subr.bf16.mxu0 0
    %462 = vmatpush1.bf16.msra.mxu0 0
    %463 = vmatprep.subr.bf16.mxu0 0
    %464 = vmatpush1.bf16.msra.mxu0 0
    %465 = vmatprep.mubr.bf16.mxu0 0
    %466 = vmatmul.mubr.bf16.gmra.mrb[0].mxu0 %v403
    %v467 = vpop.f32.mrb[0].mxu0
    %v468 = vadd.f32 %v399, %v467
    %v469 = vpop.f32.mrb[0].mxu0
    %v470 = vpop.f32.mrb[0].mxu0
    %v471 = vadd.f32 %v399, %v470
    %v472 = vpop.f32.mrb[0].mxu0
    %473 = vmatprep.mubr.bf16.mxu0 0
    %474 = vmatmul.mubr.bf16.gmra.mrb[0].mxu0 %v406
    %v475 = vpop.f32.mrb[0].mxu0
    %v476 = vadd.f32 %v399, %v475
    %v477 = vpop.f32.mrb[0].mxu0
    %v478 = vpop.f32.mrb[0].mxu0
    %v479 = vadd.f32 %v399, %v478
    %v480 = vpop.f32.mrb[0].mxu0
    %481 = vmatprep.mubr.bf16.mxu0 0
    %482 = vmatmul.mubr.bf16.gmra.mrb[0].mxu0 %v409
    %v483 = vpop.f32.mrb[0].mxu0
    %v484 = vadd.f32 %v399, %v483
    %v485 = vpop.f32.mrb[0].mxu0
    %v486 = vpop.f32.mrb[0].mxu0
    %v487 = vadd.f32 %v399, %v486
    %v488 = vpop.f32.mrb[0].mxu0
    %489 = vmatprep.mubr.bf16.mxu0 0
    %490 = vmatmul.mubr.bf16.gmra.mrb[0].mxu0 %v412
    %v491 = vpop.f32.mrb[0].mxu0
    %v492 = vadd.f32 %v399, %v491
    %v493 = vpop.f32.mrb[0].mxu0
    %v494 = vpop.f32.mrb[0].mxu0
    %v495 = vadd.f32 %v399, %v494
    %v496 = vpop.f32.mrb[0].mxu0
    %497 = vmatprep.mubr.bf16.mxu0 0
    %498 = vmatmul.mubr.bf16.gmra.mrb[0].mxu0 %v415
    %v499 = vpop.f32.mrb[0].mxu0
    %v500 = vadd.f32 %v399, %v499
    %v501 = vpop.f32.mrb[0].mxu0
    %v502 = vpop.f32.mrb[0].mxu0
    %v503 = vadd.f32 %v399, %v502
    %v504 = vpop.f32.mrb[0].mxu0
    %505 = vmatprep.mubr.bf16.mxu0 0
    %506 = vmatmul.mubr.bf16.gmra.mrb[0].mxu0 %v418
    %v507 = vpop.f32.mrb[0].mxu0
    %v508 = vadd.f32 %v399, %v507
    %v509 = vpop.f32.mrb[0].mxu0
    %v510 = vpop.f32.mrb[0].mxu0
    %v511 = vadd.f32 %v399, %v510
    %v512 = vpop.f32.mrb[0].mxu0
    %513 = vmatprep.mubr.bf16.mxu0 0
    %514 = vmatmul.mubr.bf16.gmra.mrb[0].mxu0 %v421
    %v515 = vpop.f32.mrb[0].mxu0
    %v516 = vadd.f32 %v399, %v515
    %v517 = vpop.f32.mrb[0].mxu0
    %v518 = vpop.f32.mrb[0].mxu0
    %v519 = vadd.f32 %v399, %v518
    %v520 = vpop.f32.mrb[0].mxu0
    %521 = vmatprep.mubr.bf16.mxu0 0
    %522 = vmatmul.mubr.bf16.gmra.mrb[0].mxu0 %v424
    %v523 = vpop.f32.mrb[0].mxu0
    %v524 = vadd.f32 %v399, %v523
    %v525 = vpop.f32.mrb[0].mxu0
    %v526 = vpop.f32.mrb[0].mxu0
    %v527 = vadd.f32 %v399, %v526
    %v528 = vpop.f32.mrb[0].mxu0
    %529 = vdwg.mxu0
    %v530 = vmax.f32 %v468, 0.0
    %v531 = vmax.f32 %v471, 0.0
    %v532 = vmax.f32 %v476, 0.0
    %v533 = vmax.f32 %v479, 0.0
    %v534 = vmax.f32 %v484, 0.0
    %v535 = vmax.f32 %v487, 0.0
    %v536 = vmax.f32 %v492, 0.0
    %v537 = vmax.f32 %v495, 0.0
    %v538 = vmax.f32 %v500, 0.0
    %v539 = vmax.f32 %v503, 0.0
    %v540 = vmax.f32 %v508, 0.0
    %v541 = vmax.f32 %v511, 0.0
    %v542 = vmax.f32 %v516, 0.0
    %v543 = vmax.f32 %v519, 0.0
    %v544 = vmax.f32 %v524, 0.0
    %v545 = vmax.f32 %v527, 0.0
    %v546 = vpack.c.bf16 %v531, %v530
    %v547 = vpack.c.bf16 %v533, %v532
    %v548 = vpack.c.bf16 %v535, %v534
    %v549 = vpack.c.bf16 %v537, %v536
    %v550 = vpack.c.bf16 %v539, %v538
    %v551 = vpack.c.bf16 %v541, %v540
    %v552 = vpack.c.bf16 %v543, %v542
    %v553 = vpack.c.bf16 %v545, %v544
    %v554 = vld [vmem:[%s7] sm:$0xf]
    %v555 = vld [vmem:[%s7 + $0x4] sm:$0xf]
    %v556 = vld [vmem:[%s7 + $0x8] sm:$0xf]
    %v557 = vld [vmem:[%s7 + $0xc] sm:$0xf]
    %v558 = vld [vmem:[%s7 + $0x10] sm:$0xf]
    %v559 = vld [vmem:[%s7 + $0x14] sm:$0xf]
    %v560 = vld [vmem:[%s7 + $0x18] sm:$0xf]
    %v561 = vld [vmem:[%s7 + $0x1c] sm:$0xf]
    %v562 = vld [vmem:[#allocation7] sm:$0x1]
    %v564 = vlaneseq
    %v565 = vshrl.u32 %v564, 7
    %v566 = vsub.s32 0, %v565
    %v567 = vrot.slane %v562, %v566
    %v577 = vunpack.c.l.b16 %v554
    %v578 = vunpack.c.l.b16 %v555
    %v579 = vunpack.c.l.b16 %v556
    %v580 = vunpack.c.l.b16 %v557
    %v581 = vunpack.c.l.b16 %v558
    %v582 = vunpack.c.l.b16 %v559
    %v583 = vunpack.c.l.b16 %v560
    %v584 = vunpack.c.l.b16 %v561
    %v585 = vpack.c.b16 %v578, %v577
    %v586 = vpack.c.b16 %v580, %v579
    %v587 = vpack.c.b16 %v582, %v581
    %v588 = vpack.c.b16 %v584, %v583
    %vm593 = vcmask 523264
    %v595 = vsel %vm593, %v546, 0
    %v598 = vsel %vm593, %v547, 0
    %v601 = vsel %vm593, %v548, 0
    %v604 = vsel %vm593, %v549, 0
    %v607 = vsel %vm593, %v550, 0
    %v610 = vsel %vm593, %v551, 0
    %v613 = vsel %vm593, %v552, 0
    %v616 = vsel %vm593, %v553, 0
    %618 = vmatprep.subr.bf16.mxu0 0
    %619 = vmatpush1.bf16.msra.mxu0 %v585
    %620 = vmatprep.subr.bf16.mxu0 0
    %621 = vmatpush1.bf16.msra.mxu0 %v586
    %622 = vmatprep.subr.bf16.mxu0 0
    %623 = vmatpush1.bf16.msra.mxu0 %v587
    %624 = vmatprep.subr.bf16.mxu0 0
    %625 = vmatpush1.bf16.msra.mxu0 %v588
    %626 = vmatprep.subr.bf16.mxu0 0
    %627 = vmatpush1.bf16.msra.mxu0 0
    %628 = vmatprep.subr.bf16.mxu0 0
    %629 = vmatpush1.bf16.msra.mxu0 0
    %630 = vmatprep.subr.bf16.mxu0 0
    %631 = vmatpush1.bf16.msra.mxu0 0
    %632 = vmatprep.subr.bf16.mxu0 0
    %633 = vmatpush1.bf16.msra.mxu0 0
    %634 = vmatprep.subr.bf16.mxu0 0
    %635 = vmatpush1.bf16.msra.mxu0 0
    %636 = vmatprep.subr.bf16.mxu0 0
    %637 = vmatpush1.bf16.msra.mxu0 0
    %638 = vmatprep.subr.bf16.mxu0 0
    %639 = vmatpush1.bf16.msra.mxu0 0
    %640 = vmatprep.subr.bf16.mxu0 0
    %641 = vmatpush1.bf16.msra.mxu0 0
    %642 = vmatprep.subr.bf16.mxu0 0
    %643 = vmatpush1.bf16.msra.mxu0 0
    %644 = vmatprep.subr.bf16.mxu0 0
    %645 = vmatpush1.bf16.msra.mxu0 0
    %646 = vmatprep.subr.bf16.mxu0 0
    %647 = vmatpush1.bf16.msra.mxu0 0
    %648 = vmatprep.subr.bf16.mxu0 0
    %649 = vmatpush1.bf16.msra.mxu0 0
    %650 = vmatprep.mubr.bf16.mxu0 0
    %651 = vmatmul.mubr.bf16.gmra.mrb[0].mxu0 %v595
    %v652 = vpop.f32.mrb[0].mxu0
    %v653 = vadd.f32 %v567, %v652
    %v654 = vpop.f32.mrb[0].mxu0
    %v655 = vpop.f32.mrb[0].mxu0
    %v656 = vadd.f32 %v567, %v655
    %v657 = vpop.f32.mrb[0].mxu0
    %658 = vmatprep.mubr.bf16.mxu0 0
    %659 = vmatmul.mubr.bf16.gmra.mrb[0].mxu0 %v598
    %v660 = vpop.f32.mrb[0].mxu0
    %v661 = vadd.f32 %v567, %v660
    %v662 = vpop.f32.mrb[0].mxu0
    %v663 = vpop.f32.mrb[0].mxu0
    %v664 = vadd.f32 %v567, %v663
    %v665 = vpop.f32.mrb[0].mxu0
    %666 = vmatprep.mubr.bf16.mxu0 0
    %667 = vmatmul.mubr.bf16.gmra.mrb[0].mxu0 %v601
    %v668 = vpop.f32.mrb[0].mxu0
    %v669 = vadd.f32 %v567, %v668
    %v670 = vpop.f32.mrb[0].mxu0
    %v671 = vpop.f32.mrb[0].mxu0
    %v672 = vadd.f32 %v567, %v671
    %v673 = vpop.f32.mrb[0].mxu0
    %674 = vmatprep.mubr.bf16.mxu0 0
    %675 = vmatmul.mubr.bf16.gmra.mrb[0].mxu0 %v604
    %v676 = vpop.f32.mrb[0].mxu0
    %v677 = vadd.f32 %v567, %v676
    %v678 = vpop.f32.mrb[0].mxu0
    %v679 = vpop.f32.mrb[0].mxu0
    %v680 = vadd.f32 %v567, %v679
    %v681 = vpop.f32.mrb[0].mxu0
    %682 = vmatprep.mubr.bf16.mxu0 0
    %683 = vmatmul.mubr.bf16.gmra.mrb[0].mxu0 %v607
    %v684 = vpop.f32.mrb[0].mxu0
    %v685 = vadd.f32 %v567, %v684
    %v686 = vpop.f32.mrb[0].mxu0
    %v687 = vpop.f32.mrb[0].mxu0
    %v688 = vadd.f32 %v567, %v687
    %v689 = vpop.f32.mrb[0].mxu0
    %690 = vmatprep.mubr.bf16.mxu0 0
    %691 = vmatmul.mubr.bf16.gmra.mrb[0].mxu0 %v610
    %v692 = vpop.f32.mrb[0].mxu0
    %v693 = vadd.f32 %v567, %v692
    %v694 = vpop.f32.mrb[0].mxu0
    %v695 = vpop.f32.mrb[0].mxu0
    %v696 = vadd.f32 %v567, %v695
    %v697 = vpop.f32.mrb[0].mxu0
    %698 = vmatprep.mubr.bf16.mxu0 0
    %699 = vmatmul.mubr.bf16.gmra.mrb[0].mxu0 %v613
    %v700 = vpop.f32.mrb[0].mxu0
    %v701 = vadd.f32 %v567, %v700
    %v702 = vpop.f32.mrb[0].mxu0
    %v703 = vpop.f32.mrb[0].mxu0
    %v704 = vadd.f32 %v567, %v703
    %v705 = vpop.f32.mrb[0].mxu0
    %706 = vmatprep.mubr.bf16.mxu0 0
    %707 = vmatmul.mubr.bf16.gmra.mrb[0].mxu0 %v616
    %v708 = vpop.f32.mrb[0].mxu0
    %v709 = vadd.f32 %v567, %v708
    %v710 = vpop.f32.mrb[0].mxu0
    %v711 = vpop.f32.mrb[0].mxu0
    %v712 = vadd.f32 %v567, %v711
    %v713 = vpop.f32.mrb[0].mxu0
    %714 = vdwg.mxu0
    %v715 = vmax.f32 %v653, 0.0
    %v716 = vmax.f32 %v656, 0.0
    %v717 = vmax.f32 %v661, 0.0
    %v718 = vmax.f32 %v664, 0.0
    %v719 = vmax.f32 %v669, 0.0
    %v720 = vmax.f32 %v672, 0.0
    %v721 = vmax.f32 %v677, 0.0
    %v722 = vmax.f32 %v680, 0.0
    %v723 = vmax.f32 %v685, 0.0
    %v724 = vmax.f32 %v688, 0.0
    %v725 = vmax.f32 %v693, 0.0
    %v726 = vmax.f32 %v696, 0.0
    %v727 = vmax.f32 %v701, 0.0
    %v728 = vmax.f32 %v704, 0.0
    %v729 = vmax.f32 %v709, 0.0
    %v730 = vmax.f32 %v712, 0.0
    %v731 = vpack.c.bf16 %v716, %v715
    %v732 = vpack.c.bf16 %v718, %v717
    %v733 = vpack.c.bf16 %v720, %v719
    %v734 = vpack.c.bf16 %v722, %v721
    %v735 = vpack.c.bf16 %v724, %v723
    %v736 = vpack.c.bf16 %v726, %v725
    %v737 = vpack.c.bf16 %v728, %v727
    %v738 = vpack.c.bf16 %v730, %v729
    %v739 = vld [vmem:[#allocation8] sm:$0xff]
    %v740 = vld [vmem:[#allocation8 + $0x8] sm:$0xff]
    %v741 = vld [vmem:[#allocation8 + $0x10] sm:$0xff]
    %v742 = vld [vmem:[#allocation8 + $0x18] sm:$0xff]
    %v743 = vld [vmem:[#allocation8 + $0x20] sm:$0xff]
    %v744 = vld [vmem:[#allocation8 + $0x28] sm:$0xff]
    %v745 = vld [vmem:[#allocation8 + $0x30] sm:$0xff]
    %v746 = vld [vmem:[#allocation8 + $0x38] sm:$0xff]
    %v747 = vld [vmem:[#allocation8 + $0x40] sm:$0xff]
    %v748 = vld [vmem:[#allocation8 + $0x48] sm:$0xff]
    %v749 = vld [vmem:[#allocation8 + $0x50] sm:$0xff]
    %v750 = vld [vmem:[#allocation8 + $0x58] sm:$0xff]
    %v751 = vld [vmem:[#allocation8 + $0x60] sm:$0xff]
    %v752 = vld [vmem:[#allocation8 + $0x68] sm:$0xff]
    %v753 = vld [vmem:[#allocation8 + $0x70] sm:$0xff]
    %v754 = vld [vmem:[#allocation8 + $0x78] sm:$0xff]
    %v755 = vld [vmem:[#allocation8 + $0x80] sm:$0xff]
    %v756 = vld [vmem:[#allocation8 + $0x88] sm:$0xff]
    %v757 = vld [vmem:[#allocation8 + $0x90] sm:$0xff]
    %v758 = vld [vmem:[#allocation8 + $0x98] sm:$0xff]
    %v759 = vld [vmem:[#allocation8 + $0xa0] sm:$0xff]
    %v760 = vld [vmem:[#allocation8 + $0xa8] sm:$0xff]
    %v761 = vld [vmem:[#allocation8 + $0xb0] sm:$0xff]
    %v762 = vld [vmem:[#allocation8 + $0xb8] sm:$0xff]
    %v763 = vld [vmem:[#allocation8 + $0xc0] sm:$0xff]
    %v764 = vld [vmem:[#allocation8 + $0xc8] sm:$0xff]
    %v765 = vld [vmem:[#allocation8 + $0xd0] sm:$0xff]
    %v766 = vld [vmem:[#allocation8 + $0xd8] sm:$0xff]
    %v767 = vld [vmem:[#allocation8 + $0xe0] sm:$0xff]
    %v768 = vld [vmem:[#allocation8 + $0xe8] sm:$0xff]
    %v769 = vld [vmem:[#allocation8 + $0xf0] sm:$0xff]
    %v770 = vld [vmem:[#allocation8 + $0xf8] sm:$0xff]
    %v771 = vld [vmem:[#allocation8 + $0x100] sm:$0xff]
    %v772 = vld [vmem:[#allocation8 + $0x108] sm:$0xff]
    %v773 = vld [vmem:[#allocation8 + $0x110] sm:$0xff]
    %v774 = vld [vmem:[#allocation8 + $0x118] sm:$0xff]
    %v775 = vld [vmem:[#allocation8 + $0x120] sm:$0xff]
    %v776 = vld [vmem:[#allocation8 + $0x128] sm:$0xff]
    %v777 = vld [vmem:[#allocation8 + $0x130] sm:$0xff]
    %v778 = vld [vmem:[#allocation8 + $0x138] sm:$0xff]
    %v779 = vld [vmem:[#allocation8 + $0x140] sm:$0xff]
    %v780 = vld [vmem:[#allocation8 + $0x148] sm:$0xff]
    %v781 = vld [vmem:[#allocation8 + $0x150] sm:$0xff]
    %v782 = vld [vmem:[#allocation8 + $0x158] sm:$0xff]
    %v783 = vld [vmem:[#allocation8 + $0x160] sm:$0xff]
    %v784 = vld [vmem:[#allocation8 + $0x168] sm:$0xff]
    %v785 = vld [vmem:[#allocation8 + $0x170] sm:$0xff]
    %v786 = vld [vmem:[#allocation8 + $0x178] sm:$0xff]
    %v787 = vld [vmem:[#allocation8 + $0x180] sm:$0xff]
    %v788 = vld [vmem:[#allocation8 + $0x188] sm:$0xff]
    %v789 = vld [vmem:[#allocation8 + $0x190] sm:$0xff]
    %v790 = vld [vmem:[#allocation8 + $0x198] sm:$0xff]
    %v791 = vld [vmem:[#allocation8 + $0x1a0] sm:$0xff]
    %v792 = vld [vmem:[#allocation8 + $0x1a8] sm:$0xff]
    %v793 = vld [vmem:[#allocation8 + $0x1b0] sm:$0xff]
    %v794 = vld [vmem:[#allocation8 + $0x1b8] sm:$0xff]
    %v795 = vld [vmem:[#allocation8 + $0x1c0] sm:$0xff]
    %v796 = vld [vmem:[#allocation8 + $0x1c8] sm:$0xff]
    %v797 = vld [vmem:[#allocation8 + $0x1d0] sm:$0xff]
    %v798 = vld [vmem:[#allocation8 + $0x1d8] sm:$0xff]
    %v799 = vld [vmem:[#allocation8 + $0x1e0] sm:$0xff]
    %v800 = vld [vmem:[#allocation8 + $0x1e8] sm:$0xff]
    %v801 = vld [vmem:[#allocation8 + $0x1f0] sm:$0xff]
    %v802 = vld [vmem:[#allocation8 + $0x1f8] sm:$0xff]
    %v803 = vld [vmem:[#allocation10] sm:$0xff]
    %v805 = vlaneseq
    %v806 = vshrl.u32 %v805, 7
    %v807 = vsub.s32 0, %v806
    %v808 = vrot.slane %v803, %v807
    %v809 = vlaneseq
    %v810 = vshrl.u32 %v809, 7
    %v811 = vsub.s32 1, %v810
    %v812 = vrot.slane %v803, %v811
    %v813 = vlaneseq
    %v814 = vshrl.u32 %v813, 7
    %v815 = vsub.s32 2, %v814
    %v816 = vrot.slane %v803, %v815
    %v817 = vlaneseq
    %v818 = vshrl.u32 %v817, 7
    %v819 = vsub.s32 3, %v818
    %v820 = vrot.slane %v803, %v819
    %v821 = vlaneseq
    %v822 = vshrl.u32 %v821, 7
    %v823 = vsub.s32 4, %v822
    %v824 = vrot.slane %v803, %v823
    %v825 = vlaneseq
    %v826 = vshrl.u32 %v825, 7
    %v827 = vsub.s32 5, %v826
    %v828 = vrot.slane %v803, %v827
    %v829 = vlaneseq
    %v830 = vshrl.u32 %v829, 7
    %v831 = vsub.s32 6, %v830
    %v832 = vrot.slane %v803, %v831
    %v833 = vlaneseq
    %v834 = vshrl.u32 %v833, 7
    %v835 = vsub.s32 7, %v834
    %v836 = vrot.slane %v803, %v835
    %v909 = vunpack.c.l.b16 %v739
    %v910 = vunpack.c.h.b16 %v739
    %v911 = vunpack.c.l.b16 %v740
    %v912 = vunpack.c.h.b16 %v740
    %v913 = vunpack.c.l.b16 %v741
    %v914 = vunpack.c.h.b16 %v741
    %v915 = vunpack.c.l.b16 %v742
    %v916 = vunpack.c.h.b16 %v742
    %v917 = vunpack.c.l.b16 %v743
    %v918 = vunpack.c.h.b16 %v743
    %v919 = vunpack.c.l.b16 %v744
    %v920 = vunpack.c.h.b16 %v744
    %v921 = vunpack.c.l.b16 %v745
    %v922 = vunpack.c.h.b16 %v745
    %v923 = vunpack.c.l.b16 %v746
    %v924 = vunpack.c.h.b16 %v746
    %v925 = vunpack.c.l.b16 %v747
    %v926 = vunpack.c.h.b16 %v747
    %v927 = vunpack.c.l.b16 %v748
    %v928 = vunpack.c.h.b16 %v748
    %v929 = vunpack.c.l.b16 %v749
    %v930 = vunpack.c.h.b16 %v749
    %v931 = vunpack.c.l.b16 %v750
    %v932 = vunpack.c.h.b16 %v750
    %v933 = vunpack.c.l.b16 %v751
    %v934 = vunpack.c.h.b16 %v751
    %v935 = vunpack.c.l.b16 %v752
    %v936 = vunpack.c.h.b16 %v752
    %v937 = vunpack.c.l.b16 %v753
    %v938 = vunpack.c.h.b16 %v753
    %v939 = vunpack.c.l.b16 %v754
    %v940 = vunpack.c.h.b16 %v754
    %v941 = vunpack.c.l.b16 %v755
    %v942 = vunpack.c.h.b16 %v755
    %v943 = vunpack.c.l.b16 %v756
    %v944 = vunpack.c.h.b16 %v756
    %v945 = vunpack.c.l.b16 %v757
    %v946 = vunpack.c.h.b16 %v757
    %v947 = vunpack.c.l.b16 %v758
    %v948 = vunpack.c.h.b16 %v758
    %v949 = vunpack.c.l.b16 %v759
    %v950 = vunpack.c.h.b16 %v759
    %v951 = vunpack.c.l.b16 %v760
    %v952 = vunpack.c.h.b16 %v760
    %v953 = vunpack.c.l.b16 %v761
    %v954 = vunpack.c.h.b16 %v761
    %v955 = vunpack.c.l.b16 %v762
    %v956 = vunpack.c.h.b16 %v762
    %v957 = vunpack.c.l.b16 %v763
    %v958 = vunpack.c.h.b16 %v763
    %v959 = vunpack.c.l.b16 %v764
    %v960 = vunpack.c.h.b16 %v764
    %v961 = vunpack.c.l.b16 %v765
    %v962 = vunpack.c.h.b16 %v765
    %v963 = vunpack.c.l.b16 %v766
    %v964 = vunpack.c.h.b16 %v766
    %v965 = vunpack.c.l.b16 %v767
    %v966 = vunpack.c.h.b16 %v767
    %v967 = vunpack.c.l.b16 %v768
    %v968 = vunpack.c.h.b16 %v768
    %v969 = vunpack.c.l.b16 %v769
    %v970 = vunpack.c.h.b16 %v769
    %v971 = vunpack.c.l.b16 %v770
    %v972 = vunpack.c.h.b16 %v770
    %v973 = vunpack.c.l.b16 %v771
    %v974 = vunpack.c.h.b16 %v771
    %v975 = vunpack.c.l.b16 %v772
    %v976 = vunpack.c.h.b16 %v772
    %v977 = vunpack.c.l.b16 %v773
    %v978 = vunpack.c.h.b16 %v773
    %v979 = vunpack.c.l.b16 %v774
    %v980 = vunpack.c.h.b16 %v774
    %v981 = vunpack.c.l.b16 %v775
    %v982 = vunpack.c.h.b16 %v775
    %v983 = vunpack.c.l.b16 %v776
    %v984 = vunpack.c.h.b16 %v776
    %v985 = vunpack.c.l.b16 %v777
    %v986 = vunpack.c.h.b16 %v777
    %v987 = vunpack.c.l.b16 %v778
    %v988 = vunpack.c.h.b16 %v778
    %v989 = vunpack.c.l.b16 %v779
    %v990 = vunpack.c.h.b16 %v779
    %v991 = vunpack.c.l.b16 %v780
    %v992 = vunpack.c.h.b16 %v780
    %v993 = vunpack.c.l.b16 %v781
    %v994 = vunpack.c.h.b16 %v781
    %v995 = vunpack.c.l.b16 %v782
    %v996 = vunpack.c.h.b16 %v782
    %v997 = vunpack.c.l.b16 %v783
    %v998 = vunpack.c.h.b16 %v783
    %v999 = vunpack.c.l.b16 %v784
    %v1000 = vunpack.c.h.b16 %v784
    %v1001 = vunpack.c.l.b16 %v785
    %v1002 = vunpack.c.h.b16 %v785
    %v1003 = vunpack.c.l.b16 %v786
    %v1004 = vunpack.c.h.b16 %v786
    %v1005 = vunpack.c.l.b16 %v787
    %v1006 = vunpack.c.h.b16 %v787
    %v1007 = vunpack.c.l.b16 %v788
    %v1008 = vunpack.c.h.b16 %v788
    %v1009 = vunpack.c.l.b16 %v789
    %v1010 = vunpack.c.h.b16 %v789
    %v1011 = vunpack.c.l.b16 %v790
    %v1012 = vunpack.c.h.b16 %v790
    %v1013 = vunpack.c.l.b16 %v791
    %v1014 = vunpack.c.h.b16 %v791
    %v1015 = vunpack.c.l.b16 %v792
    %v1016 = vunpack.c.h.b16 %v792
    %v1017 = vunpack.c.l.b16 %v793
    %v1018 = vunpack.c.h.b16 %v793
    %v1019 = vunpack.c.l.b16 %v794
    %v1020 = vunpack.c.h.b16 %v794
    %v1021 = vunpack.c.l.b16 %v795
    %v1022 = vunpack.c.h.b16 %v795
    %v1023 = vunpack.c.l.b16 %v796
    %v1024 = vunpack.c.h.b16 %v796
    %v1025 = vunpack.c.l.b16 %v797
    %v1026 = vunpack.c.h.b16 %v797
    %v1027 = vunpack.c.l.b16 %v798
    %v1028 = vunpack.c.h.b16 %v798
    %v1029 = vunpack.c.l.b16 %v799
    %v1030 = vunpack.c.h.b16 %v799
    %v1031 = vunpack.c.l.b16 %v800
    %v1032 = vunpack.c.h.b16 %v800
    %v1033 = vunpack.c.l.b16 %v801
    %v1034 = vunpack.c.h.b16 %v801
    %v1035 = vunpack.c.l.b16 %v802
    %v1036 = vunpack.c.h.b16 %v802
    %v1037 = vpack.c.b16 %v917, %v909
    %v1038 = vpack.c.b16 %v918, %v910
    %v1039 = vpack.c.b16 %v919, %v911
    %v1040 = vpack.c.b16 %v920, %v912
    %v1041 = vpack.c.b16 %v921, %v913
    %v1042 = vpack.c.b16 %v922, %v914
    %v1043 = vpack.c.b16 %v923, %v915
    %v1044 = vpack.c.b16 %v924, %v916
    %v1045 = vpack.c.b16 %v933, %v925
    %v1046 = vpack.c.b16 %v934, %v926
    %v1047 = vpack.c.b16 %v935, %v927
    %v1048 = vpack.c.b16 %v936, %v928
    %v1049 = vpack.c.b16 %v937, %v929
    %v1050 = vpack.c.b16 %v938, %v930
    %v1051 = vpack.c.b16 %v939, %v931
    %v1052 = vpack.c.b16 %v940, %v932
    %v1053 = vpack.c.b16 %v949, %v941
    %v1054 = vpack.c.b16 %v950, %v942
    %v1055 = vpack.c.b16 %v951, %v943
    %v1056 = vpack.c.b16 %v952, %v944
    %v1057 = vpack.c.b16 %v953, %v945
    %v1058 = vpack.c.b16 %v954, %v946
    %v1059 = vpack.c.b16 %v955, %v947
    %v1060 = vpack.c.b16 %v956, %v948
    %v1061 = vpack.c.b16 %v965, %v957
    %v1062 = vpack.c.b16 %v966, %v958
    %v1063 = vpack.c.b16 %v967, %v959
    %v1064 = vpack.c.b16 %v968, %v960
    %v1065 = vpack.c.b16 %v969, %v961
    %v1066 = vpack.c.b16 %v970, %v962
    %v1067 = vpack.c.b16 %v971, %v963
    %v1068 = vpack.c.b16 %v972, %v964
    %v1069 = vpack.c.b16 %v981, %v973
    %v1070 = vpack.c.b16 %v982, %v974
    %v1071 = vpack.c.b16 %v983, %v975
    %v1072 = vpack.c.b16 %v984, %v976
    %v1073 = vpack.c.b16 %v985, %v977
    %v1074 = vpack.c.b16 %v986, %v978
    %v1075 = vpack.c.b16 %v987, %v979
    %v1076 = vpack.c.b16 %v988, %v980
    %v1077 = vpack.c.b16 %v997, %v989
    %v1078 = vpack.c.b16 %v998, %v990
    %v1079 = vpack.c.b16 %v999, %v991
    %v1080 = vpack.c.b16 %v1000, %v992
    %v1081 = vpack.c.b16 %v1001, %v993
    %v1082 = vpack.c.b16 %v1002, %v994
    %v1083 = vpack.c.b16 %v1003, %v995
    %v1084 = vpack.c.b16 %v1004, %v996
    %v1085 = vpack.c.b16 %v1013, %v1005
    %v1086 = vpack.c.b16 %v1014, %v1006
    %v1087 = vpack.c.b16 %v1015, %v1007
    %v1088 = vpack.c.b16 %v1016, %v1008
    %v1089 = vpack.c.b16 %v1017, %v1009
    %v1090 = vpack.c.b16 %v1018, %v1010
    %v1091 = vpack.c.b16 %v1019, %v1011
    %v1092 = vpack.c.b16 %v1020, %v1012
    %v1093 = vpack.c.b16 %v1029, %v1021
    %v1094 = vpack.c.b16 %v1030, %v1022
    %v1095 = vpack.c.b16 %v1031, %v1023
    %v1096 = vpack.c.b16 %v1032, %v1024
    %v1097 = vpack.c.b16 %v1033, %v1025
    %v1098 = vpack.c.b16 %v1034, %v1026
    %v1099 = vpack.c.b16 %v1035, %v1027
    %v1100 = vpack.c.b16 %v1036, %v1028
    %1165 = vmatprep.subr.bf16.mxu0 %v1038
    %1166 = vmatpush1.bf16.msra.mxu0 %v1037
    %1167 = vmatprep.subr.bf16.mxu0 %v1046
    %1168 = vmatpush1.bf16.msra.mxu0 %v1045
    %1169 = vmatprep.subr.bf16.mxu0 %v1054
    %1170 = vmatpush1.bf16.msra.mxu0 %v1053
    %1171 = vmatprep.subr.bf16.mxu0 %v1062
    %1172 = vmatpush1.bf16.msra.mxu0 %v1061
    %1173 = vmatprep.subr.bf16.mxu0 %v1070
    %1174 = vmatpush1.bf16.msra.mxu0 %v1069
    %1175 = vmatprep.subr.bf16.mxu0 %v1078
    %1176 = vmatpush1.bf16.msra.mxu0 %v1077
    %1177 = vmatprep.subr.bf16.mxu0 %v1086
    %1178 = vmatpush1.bf16.msra.mxu0 %v1085
    %1179 = vmatprep.subr.bf16.mxu0 %v1094
    %1180 = vmatpush1.bf16.msra.mxu0 %v1093
    %1181 = vmatprep.subr.bf16.mxu0 0
    %1182 = vmatpush1.bf16.msra.mxu0 0
    %1183 = vmatprep.subr.bf16.mxu0 0
    %1184 = vmatpush1.bf16.msra.mxu0 0
    %1185 = vmatprep.subr.bf16.mxu0 0
    %1186 = vmatpush1.bf16.msra.mxu0 0
    %1187 = vmatprep.subr.bf16.mxu0 0
    %1188 = vmatpush1.bf16.msra.mxu0 0
    %1189 = vmatprep.subr.bf16.mxu0 0
    %1190 = vmatpush1.bf16.msra.mxu0 0
    %1191 = vmatprep.subr.bf16.mxu0 0
    %1192 = vmatpush1.bf16.msra.mxu0 0
    %1193 = vmatprep.subr.bf16.mxu0 0
    %1194 = vmatpush1.bf16.msra.mxu0 0
    %1195 = vmatprep.subr.bf16.mxu0 0
    %1196 = vmatpush1.bf16.msra.mxu0 0
    %1197 = vmatprep.mubr.bf16.mxu0 0
    %1198 = vmatmul.mubr.bf16.gmra.mrb[0].mxu0 %v731
    %v1199 = vpop.f32.mrb[0].mxu0
    %v1200 = vadd.f32 %v808, %v1199
    %v1201 = vpop.f32.mrb[0].mxu0
    %v1202 = vadd.f32 %v812, %v1201
    %v1203 = vpop.f32.mrb[0].mxu0
    %v1204 = vadd.f32 %v808, %v1203
    %v1205 = vpop.f32.mrb[0].mxu0
    %v1206 = vadd.f32 %v812, %v1205
    %1207 = vmatprep.mubr.bf16.mxu0 0
    %1208 = vmatmul.mubr.bf16.gmra.mrb[0].mxu0 %v732
    %v1209 = vpop.f32.mrb[0].mxu0
    %v1210 = vadd.f32 %v808, %v1209
    %v1211 = vpop.f32.mrb[0].mxu0
    %v1212 = vadd.f32 %v812, %v1211
    %v1213 = vpop.f32.mrb[0].mxu0
    %v1214 = vadd.f32 %v808, %v1213
    %v1215 = vpop.f32.mrb[0].mxu0
    %v1216 = vadd.f32 %v812, %v1215
    %1217 = vmatprep.mubr.bf16.mxu0 0
    %1218 = vmatmul.mubr.bf16.gmra.mrb[0].mxu0 %v733
    %v1219 = vpop.f32.mrb[0].mxu0
    %v1220 = vadd.f32 %v808, %v1219
    %v1221 = vpop.f32.mrb[0].mxu0
    %v1222 = vadd.f32 %v812, %v1221
    %v1223 = vpop.f32.mrb[0].mxu0
    %v1224 = vadd.f32 %v808, %v1223
    %v1225 = vpop.f32.mrb[0].mxu0
    %v1226 = vadd.f32 %v812, %v1225
    %1227 = vmatprep.mubr.bf16.mxu0 0
    %1228 = vmatmul.mubr.bf16.gmra.mrb[0].mxu0 %v734
    %v1229 = vpop.f32.mrb[0].mxu0
    %v1230 = vadd.f32 %v808, %v1229
    %v1231 = vpop.f32.mrb[0].mxu0
    %v1232 = vadd.f32 %v812, %v1231
    %v1233 = vpop.f32.mrb[0].mxu0
    %v1234 = vadd.f32 %v808, %v1233
    %v1235 = vpop.f32.mrb[0].mxu0
    %v1236 = vadd.f32 %v812, %v1235
    %1237 = vmatprep.mubr.bf16.mxu0 0
    %1238 = vmatmul.mubr.bf16.gmra.mrb[0].mxu0 %v735
    %v1239 = vpop.f32.mrb[0].mxu0
    %v1240 = vadd.f32 %v808, %v1239
    %v1241 = vpop.f32.mrb[0].mxu0
    %v1242 = vadd.f32 %v812, %v1241
    %v1243 = vpop.f32.mrb[0].mxu0
    %v1244 = vadd.f32 %v808, %v1243
    %v1245 = vpop.f32.mrb[0].mxu0
    %v1246 = vadd.f32 %v812, %v1245
    %1247 = vmatprep.mubr.bf16.mxu0 0
    %1248 = vmatmul.mubr.bf16.gmra.mrb[0].mxu0 %v736
    %v1249 = vpop.f32.mrb[0].mxu0
    %v1250 = vadd.f32 %v808, %v1249
    %v1251 = vpop.f32.mrb[0].mxu0
    %v1252 = vadd.f32 %v812, %v1251
    %v1253 = vpop.f32.mrb[0].mxu0
    %v1254 = vadd.f32 %v808, %v1253
    %v1255 = vpop.f32.mrb[0].mxu0
    %v1256 = vadd.f32 %v812, %v1255
    %1257 = vmatprep.mubr.bf16.mxu0 0
    %1258 = vmatmul.mubr.bf16.gmra.mrb[0].mxu0 %v737
    %v1259 = vpop.f32.mrb[0].mxu0
    %v1260 = vadd.f32 %v808, %v1259
    %v1261 = vpop.f32.mrb[0].mxu0
    %v1262 = vadd.f32 %v812, %v1261
    %v1263 = vpop.f32.mrb[0].mxu0
    %v1264 = vadd.f32 %v808, %v1263
    %v1265 = vpop.f32.mrb[0].mxu0
    %v1266 = vadd.f32 %v812, %v1265
    %1267 = vmatprep.mubr.bf16.mxu0 0
    %1268 = vmatmul.mubr.bf16.gmra.mrb[0].mxu0 %v738
    %v1269 = vpop.f32.mrb[0].mxu0
    %v1270 = vadd.f32 %v808, %v1269
    %v1271 = vpop.f32.mrb[0].mxu0
    %v1272 = vadd.f32 %v812, %v1271
    %v1273 = vpop.f32.mrb[0].mxu0
    %v1274 = vadd.f32 %v808, %v1273
    %v1275 = vpop.f32.mrb[0].mxu0
    %v1276 = vadd.f32 %v812, %v1275
    %1277 = vdwg.mxu0
    %1278 = vmatprep.subr.bf16.mxu0 %v1040
    %1279 = vmatpush1.bf16.msra.mxu0 %v1039
    %1280 = vmatprep.subr.bf16.mxu0 %v1048
    %1281 = vmatpush1.bf16.msra.mxu0 %v1047
    %1282 = vmatprep.subr.bf16.mxu0 %v1056
    %1283 = vmatpush1.bf16.msra.mxu0 %v1055
    %1284 = vmatprep.subr.bf16.mxu0 %v1064
    %1285 = vmatpush1.bf16.msra.mxu0 %v1063
    %1286 = vmatprep.subr.bf16.mxu0 %v1072
    %1287 = vmatpush1.bf16.msra.mxu0 %v1071
    %1288 = vmatprep.subr.bf16.mxu0 %v1080
    %1289 = vmatpush1.bf16.msra.mxu0 %v1079
    %1290 = vmatprep.subr.bf16.mxu0 %v1088
    %1291 = vmatpush1.bf16.msra.mxu0 %v1087
    %1292 = vmatprep.subr.bf16.mxu0 %v1096
    %1293 = vmatpush1.bf16.msra.mxu0 %v1095
    %1294 = vmatprep.subr.bf16.mxu0 0
    %1295 = vmatpush1.bf16.msra.mxu0 0
    %1296 = vmatprep.subr.bf16.mxu0 0
    %1297 = vmatpush1.bf16.msra.mxu0 0
    %1298 = vmatprep.subr.bf16.mxu0 0
    %1299 = vmatpush1.bf16.msra.mxu0 0
    %1300 = vmatprep.subr.bf16.mxu0 0
    %1301 = vmatpush1.bf16.msra.mxu0 0
    %1302 = vmatprep.subr.bf16.mxu0 0
    %1303 = vmatpush1.bf16.msra.mxu0 0
    %1304 = vmatprep.subr.bf16.mxu0 0
    %1305 = vmatpush1.bf16.msra.mxu0 0
    %1306 = vmatprep.subr.bf16.mxu0 0
    %1307 = vmatpush1.bf16.msra.mxu0 0
    %1308 = vmatprep.subr.bf16.mxu0 0
    %1309 = vmatpush1.bf16.msra.mxu0 0
    %1310 = vmatprep.mubr.bf16.mxu0 0
    %1311 = vmatmul.mubr.bf16.gmra.mrb[0].mxu0 %v731
    %v1312 = vpop.f32.mrb[0].mxu0
    %v1313 = vadd.f32 %v816, %v1312
    %v1314 = vpop.f32.mrb[0].mxu0
    %v1315 = vadd.f32 %v820, %v1314
    %v1316 = vpop.f32.mrb[0].mxu0
    %v1317 = vadd.f32 %v816, %v1316
    %v1318 = vpop.f32.mrb[0].mxu0
    %v1319 = vadd.f32 %v820, %v1318
    %1320 = vmatprep.mubr.bf16.mxu0 0
    %1321 = vmatmul.mubr.bf16.gmra.mrb[0].mxu0 %v732
    %v1322 = vpop.f32.mrb[0].mxu0
    %v1323 = vadd.f32 %v816, %v1322
    %v1324 = vpop.f32.mrb[0].mxu0
    %v1325 = vadd.f32 %v820, %v1324
    %v1326 = vpop.f32.mrb[0].mxu0
    %v1327 = vadd.f32 %v816, %v1326
    %v1328 = vpop.f32.mrb[0].mxu0
    %v1329 = vadd.f32 %v820, %v1328
    %1330 = vmatprep.mubr.bf16.mxu0 0
    %1331 = vmatmul.mubr.bf16.gmra.mrb[0].mxu0 %v733
    %v1332 = vpop.f32.mrb[0].mxu0
    %v1333 = vadd.f32 %v816, %v1332
    %v1334 = vpop.f32.mrb[0].mxu0
    %v1335 = vadd.f32 %v820, %v1334
    %v1336 = vpop.f32.mrb[0].mxu0
    %v1337 = vadd.f32 %v816, %v1336
    %v1338 = vpop.f32.mrb[0].mxu0
    %v1339 = vadd.f32 %v820, %v1338
    %1340 = vmatprep.mubr.bf16.mxu0 0
    %1341 = vmatmul.mubr.bf16.gmra.mrb[0].mxu0 %v734
    %v1342 = vpop.f32.mrb[0].mxu0
    %v1343 = vadd.f32 %v816, %v1342
    %v1344 = vpop.f32.mrb[0].mxu0
    %v1345 = vadd.f32 %v820, %v1344
    %v1346 = vpop.f32.mrb[0].mxu0
    %v1347 = vadd.f32 %v816, %v1346
    %v1348 = vpop.f32.mrb[0].mxu0
    %v1349 = vadd.f32 %v820, %v1348
    %1350 = vmatprep.mubr.bf16.mxu0 0
    %1351 = vmatmul.mubr.bf16.gmra.mrb[0].mxu0 %v735
    %v1352 = vpop.f32.mrb[0].mxu0
    %v1353 = vadd.f32 %v816, %v1352
    %v1354 = vpop.f32.mrb[0].mxu0
    %v1355 = vadd.f32 %v820, %v1354
    %v1356 = vpop.f32.mrb[0].mxu0
    %v1357 = vadd.f32 %v816, %v1356
    %v1358 = vpop.f32.mrb[0].mxu0
    %v1359 = vadd.f32 %v820, %v1358
    %1360 = vmatprep.mubr.bf16.mxu0 0
    %1361 = vmatmul.mubr.bf16.gmra.mrb[0].mxu0 %v736
    %v1362 = vpop.f32.mrb[0].mxu0
    %v1363 = vadd.f32 %v816, %v1362
    %v1364 = vpop.f32.mrb[0].mxu0
    %v1365 = vadd.f32 %v820, %v1364
    %v1366 = vpop.f32.mrb[0].mxu0
    %v1367 = vadd.f32 %v816, %v1366
    %v1368 = vpop.f32.mrb[0].mxu0
    %v1369 = vadd.f32 %v820, %v1368
    %1370 = vmatprep.mubr.bf16.mxu0 0
    %1371 = vmatmul.mubr.bf16.gmra.mrb[0].mxu0 %v737
    %v1372 = vpop.f32.mrb[0].mxu0
    %v1373 = vadd.f32 %v816, %v1372
    %v1374 = vpop.f32.mrb[0].mxu0
    %v1375 = vadd.f32 %v820, %v1374
    %v1376 = vpop.f32.mrb[0].mxu0
    %v1377 = vadd.f32 %v816, %v1376
    %v1378 = vpop.f32.mrb[0].mxu0
    %v1379 = vadd.f32 %v820, %v1378
    %1380 = vmatprep.mubr.bf16.mxu0 0
    %1381 = vmatmul.mubr.bf16.gmra.mrb[0].mxu0 %v738
    %v1382 = vpop.f32.mrb[0].mxu0
    %v1383 = vadd.f32 %v816, %v1382
    %v1384 = vpop.f32.mrb[0].mxu0
    %v1385 = vadd.f32 %v820, %v1384
    %v1386 = vpop.f32.mrb[0].mxu0
    %v1387 = vadd.f32 %v816, %v1386
    %v1388 = vpop.f32.mrb[0].mxu0
    %v1389 = vadd.f32 %v820, %v1388
    %1390 = vdwg.mxu0
    %1391 = vmatprep.subr.bf16.mxu0 %v1042
    %1392 = vmatpush1.bf16.msra.mxu0 %v1041
    %1393 = vmatprep.subr.bf16.mxu0 %v1050
    %1394 = vmatpush1.bf16.msra.mxu0 %v1049
    %1395 = vmatprep.subr.bf16.mxu0 %v1058
    %1396 = vmatpush1.bf16.msra.mxu0 %v1057
    %1397 = vmatprep.subr.bf16.mxu0 %v1066
    %1398 = vmatpush1.bf16.msra.mxu0 %v1065
    %1399 = vmatprep.subr.bf16.mxu0 %v1074
    %1400 = vmatpush1.bf16.msra.mxu0 %v1073
    %1401 = vmatprep.subr.bf16.mxu0 %v1082
    %1402 = vmatpush1.bf16.msra.mxu0 %v1081
    %1403 = vmatprep.subr.bf16.mxu0 %v1090
    %1404 = vmatpush1.bf16.msra.mxu0 %v1089
    %1405 = vmatprep.subr.bf16.mxu0 %v1098
    %1406 = vmatpush1.bf16.msra.mxu0 %v1097
    %1407 = vmatprep.subr.bf16.mxu0 0
    %1408 = vmatpush1.bf16.msra.mxu0 0
    %1409 = vmatprep.subr.bf16.mxu0 0
    %1410 = vmatpush1.bf16.msra.mxu0 0
    %1411 = vmatprep.subr.bf16.mxu0 0
    %1412 = vmatpush1.bf16.msra.mxu0 0
    %1413 = vmatprep.subr.bf16.mxu0 0
    %1414 = vmatpush1.bf16.msra.mxu0 0
    %1415 = vmatprep.subr.bf16.mxu0 0
    %1416 = vmatpush1.bf16.msra.mxu0 0
    %1417 = vmatprep.subr.bf16.mxu0 0
    %1418 = vmatpush1.bf16.msra.mxu0 0
    %1419 = vmatprep.subr.bf16.mxu0 0
    %1420 = vmatpush1.bf16.msra.mxu0 0
    %1421 = vmatprep.subr.bf16.mxu0 0
    %1422 = vmatpush1.bf16.msra.mxu0 0
    %1423 = vmatprep.mubr.bf16.mxu0 0
    %1424 = vmatmul.mubr.bf16.gmra.mrb[0].mxu0 %v731
    %v1425 = vpop.f32.mrb[0].mxu0
    %v1426 = vadd.f32 %v824, %v1425
    %v1427 = vpop.f32.mrb[0].mxu0
    %v1428 = vadd.f32 %v828, %v1427
    %v1429 = vpop.f32.mrb[0].mxu0
    %v1430 = vadd.f32 %v824, %v1429
    %v1431 = vpop.f32.mrb[0].mxu0
    %v1432 = vadd.f32 %v828, %v1431
    %1433 = vmatprep.mubr.bf16.mxu0 0
    %1434 = vmatmul.mubr.bf16.gmra.mrb[0].mxu0 %v732
    %v1435 = vpop.f32.mrb[0].mxu0
    %v1436 = vadd.f32 %v824, %v1435
    %v1437 = vpop.f32.mrb[0].mxu0
    %v1438 = vadd.f32 %v828, %v1437
    %v1439 = vpop.f32.mrb[0].mxu0
    %v1440 = vadd.f32 %v824, %v1439
    %v1441 = vpop.f32.mrb[0].mxu0
    %v1442 = vadd.f32 %v828, %v1441
    %1443 = vmatprep.mubr.bf16.mxu0 0
    %1444 = vmatmul.mubr.bf16.gmra.mrb[0].mxu0 %v733
    %v1445 = vpop.f32.mrb[0].mxu0
    %v1446 = vadd.f32 %v824, %v1445
    %v1447 = vpop.f32.mrb[0].mxu0
    %v1448 = vadd.f32 %v828, %v1447
    %v1449 = vpop.f32.mrb[0].mxu0
    %v1450 = vadd.f32 %v824, %v1449
    %v1451 = vpop.f32.mrb[0].mxu0
    %v1452 = vadd.f32 %v828, %v1451
    %1453 = vmatprep.mubr.bf16.mxu0 0
    %1454 = vmatmul.mubr.bf16.gmra.mrb[0].mxu0 %v734
    %v1455 = vpop.f32.mrb[0].mxu0
    %v1456 = vadd.f32 %v824, %v1455
    %v1457 = vpop.f32.mrb[0].mxu0
    %v1458 = vadd.f32 %v828, %v1457
    %v1459 = vpop.f32.mrb[0].mxu0
    %v1460 = vadd.f32 %v824, %v1459
    %v1461 = vpop.f32.mrb[0].mxu0
    %v1462 = vadd.f32 %v828, %v1461
    %1463 = vmatprep.mubr.bf16.mxu0 0
    %1464 = vmatmul.mubr.bf16.gmra.mrb[0].mxu0 %v735
    %v1465 = vpop.f32.mrb[0].mxu0
    %v1466 = vadd.f32 %v824, %v1465
    %v1467 = vpop.f32.mrb[0].mxu0
    %v1468 = vadd.f32 %v828, %v1467
    %v1469 = vpop.f32.mrb[0].mxu0
    %v1470 = vadd.f32 %v824, %v1469
    %v1471 = vpop.f32.mrb[0].mxu0
    %v1472 = vadd.f32 %v828, %v1471
    %1473 = vmatprep.mubr.bf16.mxu0 0
    %1474 = vmatmul.mubr.bf16.gmra.mrb[0].mxu0 %v736
    %v1475 = vpop.f32.mrb[0].mxu0
    %v1476 = vadd.f32 %v824, %v1475
    %v1477 = vpop.f32.mrb[0].mxu0
    %v1478 = vadd.f32 %v828, %v1477
    %v1479 = vpop.f32.mrb[0].mxu0
    %v1480 = vadd.f32 %v824, %v1479
    %v1481 = vpop.f32.mrb[0].mxu0
    %v1482 = vadd.f32 %v828, %v1481
    %1483 = vmatprep.mubr.bf16.mxu0 0
    %1484 = vmatmul.mubr.bf16.gmra.mrb[0].mxu0 %v737
    %v1485 = vpop.f32.mrb[0].mxu0
    %v1486 = vadd.f32 %v824, %v1485
    %v1487 = vpop.f32.mrb[0].mxu0
    %v1488 = vadd.f32 %v828, %v1487
    %v1489 = vpop.f32.mrb[0].mxu0
    %v1490 = vadd.f32 %v824, %v1489
    %v1491 = vpop.f32.mrb[0].mxu0
    %v1492 = vadd.f32 %v828, %v1491
    %1493 = vmatprep.mubr.bf16.mxu0 0
    %1494 = vmatmul.mubr.bf16.gmra.mrb[0].mxu0 %v738
    %v1495 = vpop.f32.mrb[0].mxu0
    %v1496 = vadd.f32 %v824, %v1495
    %v1497 = vpop.f32.mrb[0].mxu0
    %v1498 = vadd.f32 %v828, %v1497
    %v1499 = vpop.f32.mrb[0].mxu0
    %v1500 = vadd.f32 %v824, %v1499
    %v1501 = vpop.f32.mrb[0].mxu0
    %v1502 = vadd.f32 %v828, %v1501
    %1503 = vdwg.mxu0
    %1504 = vmatprep.subr.bf16.mxu0 %v1044
    %1505 = vmatpush1.bf16.msra.mxu0 %v1043
    %1506 = vmatprep.subr.bf16.mxu0 %v1052
    %1507 = vmatpush1.bf16.msra.mxu0 %v1051
    %1508 = vmatprep.subr.bf16.mxu0 %v1060
    %1509 = vmatpush1.bf16.msra.mxu0 %v1059
    %1510 = vmatprep.subr.bf16.mxu0 %v1068
    %1511 = vmatpush1.bf16.msra.mxu0 %v1067
    %1512 = vmatprep.subr.bf16.mxu0 %v1076
    %1513 = vmatpush1.bf16.msra.mxu0 %v1075
    %1514 = vmatprep.subr.bf16.mxu0 %v1084
    %1515 = vmatpush1.bf16.msra.mxu0 %v1083
    %1516 = vmatprep.subr.bf16.mxu0 %v1092
    %1517 = vmatpush1.bf16.msra.mxu0 %v1091
    %1518 = vmatprep.subr.bf16.mxu0 %v1100
    %1519 = vmatpush1.bf16.msra.mxu0 %v1099
    %1520 = vmatprep.subr.bf16.mxu0 0
    %1521 = vmatpush1.bf16.msra.mxu0 0
    %1522 = vmatprep.subr.bf16.mxu0 0
    %1523 = vmatpush1.bf16.msra.mxu0 0
    %1524 = vmatprep.subr.bf16.mxu0 0
    %1525 = vmatpush1.bf16.msra.mxu0 0
    %1526 = vmatprep.subr.bf16.mxu0 0
    %1527 = vmatpush1.bf16.msra.mxu0 0
    %1528 = vmatprep.subr.bf16.mxu0 0
    %1529 = vmatpush1.bf16.msra.mxu0 0
    %1530 = vmatprep.subr.bf16.mxu0 0
    %1531 = vmatpush1.bf16.msra.mxu0 0
    %1532 = vmatprep.subr.bf16.mxu0 0
    %1533 = vmatpush1.bf16.msra.mxu0 0
    %1534 = vmatprep.subr.bf16.mxu0 0
    %1535 = vmatpush1.bf16.msra.mxu0 0
    %1536 = vmatprep.mubr.bf16.mxu0 0
    %1537 = vmatmul.mubr.bf16.gmra.mrb[0].mxu0 %v731
    %v1538 = vpop.f32.mrb[0].mxu0
    %v1539 = vadd.f32 %v832, %v1538
    %v1540 = vpop.f32.mrb[0].mxu0
    %v1541 = vadd.f32 %v836, %v1540
    %v1542 = vpop.f32.mrb[0].mxu0
    %v1543 = vadd.f32 %v832, %v1542
    %v1544 = vpop.f32.mrb[0].mxu0
    %v1545 = vadd.f32 %v836, %v1544
    %1546 = vmatprep.mubr.bf16.mxu0 0
    %1547 = vmatmul.mubr.bf16.gmra.mrb[0].mxu0 %v732
    %v1548 = vpop.f32.mrb[0].mxu0
    %v1549 = vadd.f32 %v832, %v1548
    %v1550 = vpop.f32.mrb[0].mxu0
    %v1551 = vadd.f32 %v836, %v1550
    %v1552 = vpop.f32.mrb[0].mxu0
    %v1553 = vadd.f32 %v832, %v1552
    %v1554 = vpop.f32.mrb[0].mxu0
    %v1555 = vadd.f32 %v836, %v1554
    %1556 = vmatprep.mubr.bf16.mxu0 0
    %1557 = vmatmul.mubr.bf16.gmra.mrb[0].mxu0 %v733
    %v1558 = vpop.f32.mrb[0].mxu0
    %v1559 = vadd.f32 %v832, %v1558
    %v1560 = vpop.f32.mrb[0].mxu0
    %v1561 = vadd.f32 %v836, %v1560
    %v1562 = vpop.f32.mrb[0].mxu0
    %v1563 = vadd.f32 %v832, %v1562
    %v1564 = vpop.f32.mrb[0].mxu0
    %v1565 = vadd.f32 %v836, %v1564
    %1566 = vmatprep.mubr.bf16.mxu0 0
    %1567 = vmatmul.mubr.bf16.gmra.mrb[0].mxu0 %v734
    %v1568 = vpop.f32.mrb[0].mxu0
    %v1569 = vadd.f32 %v832, %v1568
    %v1570 = vpop.f32.mrb[0].mxu0
    %v1571 = vadd.f32 %v836, %v1570
    %v1572 = vpop.f32.mrb[0].mxu0
    %v1573 = vadd.f32 %v832, %v1572
    %v1574 = vpop.f32.mrb[0].mxu0
    %v1575 = vadd.f32 %v836, %v1574
    %1576 = vmatprep.mubr.bf16.mxu0 0
    %1577 = vmatmul.mubr.bf16.gmra.mrb[0].mxu0 %v735
    %v1578 = vpop.f32.mrb[0].mxu0
    %v1579 = vadd.f32 %v832, %v1578
    %v1580 = vpop.f32.mrb[0].mxu0
    %v1581 = vadd.f32 %v836, %v1580
    %v1582 = vpop.f32.mrb[0].mxu0
    %v1583 = vadd.f32 %v832, %v1582
    %v1584 = vpop.f32.mrb[0].mxu0
    %v1585 = vadd.f32 %v836, %v1584
    %1586 = vmatprep.mubr.bf16.mxu0 0
    %1587 = vmatmul.mubr.bf16.gmra.mrb[0].mxu0 %v736
    %v1588 = vpop.f32.mrb[0].mxu0
    %v1589 = vadd.f32 %v832, %v1588
    %v1590 = vpop.f32.mrb[0].mxu0
    %v1591 = vadd.f32 %v836, %v1590
    %v1592 = vpop.f32.mrb[0].mxu0
    %v1593 = vadd.f32 %v832, %v1592
    %v1594 = vpop.f32.mrb[0].mxu0
    %v1595 = vadd.f32 %v836, %v1594
    %1596 = vmatprep.mubr.bf16.mxu0 0
    %1597 = vmatmul.mubr.bf16.gmra.mrb[0].mxu0 %v737
    %v1598 = vpop.f32.mrb[0].mxu0
    %v1599 = vadd.f32 %v832, %v1598
    %v1600 = vpop.f32.mrb[0].mxu0
    %v1601 = vadd.f32 %v836, %v1600
    %v1602 = vpop.f32.mrb[0].mxu0
    %v1603 = vadd.f32 %v832, %v1602
    %v1604 = vpop.f32.mrb[0].mxu0
    %v1605 = vadd.f32 %v836, %v1604
    %1606 = vmatprep.mubr.bf16.mxu0 0
    %1607 = vmatmul.mubr.bf16.gmra.mrb[0].mxu0 %v738
    %v1608 = vpop.f32.mrb[0].mxu0
    %v1609 = vadd.f32 %v832, %v1608
    %v1610 = vpop.f32.mrb[0].mxu0
    %v1611 = vadd.f32 %v836, %v1610
    %v1612 = vpop.f32.mrb[0].mxu0
    %v1613 = vadd.f32 %v832, %v1612
    %v1614 = vpop.f32.mrb[0].mxu0
    %v1615 = vadd.f32 %v836, %v1614
    %1616 = vdwg.mxu0
    %v1617 = vmax.f32 %v1200, 0.0
    %v1618 = vmax.f32 %v1202, 0.0
    %v1619 = vmax.f32 %v1313, 0.0
    %v1620 = vmax.f32 %v1315, 0.0
    %v1621 = vmax.f32 %v1426, 0.0
    %v1622 = vmax.f32 %v1428, 0.0
    %v1623 = vmax.f32 %v1539, 0.0
    %v1624 = vmax.f32 %v1541, 0.0
    %v1625 = vmax.f32 %v1204, 0.0
    %v1626 = vmax.f32 %v1206, 0.0
    %v1627 = vmax.f32 %v1317, 0.0
    %v1628 = vmax.f32 %v1319, 0.0
    %v1629 = vmax.f32 %v1430, 0.0
    %v1630 = vmax.f32 %v1432, 0.0
    %v1631 = vmax.f32 %v1543, 0.0
    %v1632 = vmax.f32 %v1545, 0.0
    %v1633 = vmax.f32 %v1210, 0.0
    %v1634 = vmax.f32 %v1212, 0.0
    %v1635 = vmax.f32 %v1323, 0.0
    %v1636 = vmax.f32 %v1325, 0.0
    %v1637 = vmax.f32 %v1436, 0.0
    %v1638 = vmax.f32 %v1438, 0.0
    %v1639 = vmax.f32 %v1549, 0.0
    %v1640 = vmax.f32 %v1551, 0.0
    %v1641 = vmax.f32 %v1214, 0.0
    %v1642 = vmax.f32 %v1216, 0.0
    %v1643 = vmax.f32 %v1327, 0.0
    %v1644 = vmax.f32 %v1329, 0.0
    %v1645 = vmax.f32 %v1440, 0.0
    %v1646 = vmax.f32 %v1442, 0.0
    %v1647 = vmax.f32 %v1553, 0.0
    %v1648 = vmax.f32 %v1555, 0.0
    %v1649 = vmax.f32 %v1220, 0.0
    %v1650 = vmax.f32 %v1222, 0.0
    %v1651 = vmax.f32 %v1333, 0.0
    %v1652 = vmax.f32 %v1335, 0.0
    %v1653 = vmax.f32 %v1446, 0.0
    %v1654 = vmax.f32 %v1448, 0.0
    %v1655 = vmax.f32 %v1559, 0.0
    %v1656 = vmax.f32 %v1561, 0.0
    %v1657 = vmax.f32 %v1224, 0.0
    %v1658 = vmax.f32 %v1226, 0.0
    %v1659 = vmax.f32 %v1337, 0.0
    %v1660 = vmax.f32 %v1339, 0.0
    %v1661 = vmax.f32 %v1450, 0.0
    %v1662 = vmax.f32 %v1452, 0.0
    %v1663 = vmax.f32 %v1563, 0.0
    %v1664 = vmax.f32 %v1565, 0.0
    %v1665 = vmax.f32 %v1230, 0.0
    %v1666 = vmax.f32 %v1232, 0.0
    %v1667 = vmax.f32 %v1343, 0.0
    %v1668 = vmax.f32 %v1345, 0.0
    %v1669 = vmax.f32 %v1456, 0.0
    %v1670 = vmax.f32 %v1458, 0.0
    %v1671 = vmax.f32 %v1569, 0.0
    %v1672 = vmax.f32 %v1571, 0.0
    %v1673 = vmax.f32 %v1234, 0.0
    %v1674 = vmax.f32 %v1236, 0.0
    %v1675 = vmax.f32 %v1347, 0.0
    %v1676 = vmax.f32 %v1349, 0.0
    %v1677 = vmax.f32 %v1460, 0.0
    %v1678 = vmax.f32 %v1462, 0.0
    %v1679 = vmax.f32 %v1573, 0.0
    %v1680 = vmax.f32 %v1575, 0.0
    %v1681 = vmax.f32 %v1240, 0.0
    %v1682 = vmax.f32 %v1242, 0.0
    %v1683 = vmax.f32 %v1353, 0.0
    %v1684 = vmax.f32 %v1355, 0.0
    %v1685 = vmax.f32 %v1466, 0.0
    %v1686 = vmax.f32 %v1468, 0.0
    %v1687 = vmax.f32 %v1579, 0.0
    %v1688 = vmax.f32 %v1581, 0.0
    %v1689 = vmax.f32 %v1244, 0.0
    %v1690 = vmax.f32 %v1246, 0.0
    %v1691 = vmax.f32 %v1357, 0.0
    %v1692 = vmax.f32 %v1359, 0.0
    %v1693 = vmax.f32 %v1470, 0.0
    %v1694 = vmax.f32 %v1472, 0.0
    %v1695 = vmax.f32 %v1583, 0.0
    %v1696 = vmax.f32 %v1585, 0.0
    %v1697 = vmax.f32 %v1250, 0.0
    %v1698 = vmax.f32 %v1252, 0.0
    %v1699 = vmax.f32 %v1363, 0.0
    %v1700 = vmax.f32 %v1365, 0.0
    %v1701 = vmax.f32 %v1476, 0.0
    %v1702 = vmax.f32 %v1478, 0.0
    %v1703 = vmax.f32 %v1589, 0.0
    %v1704 = vmax.f32 %v1591, 0.0
    %v1705 = vmax.f32 %v1254, 0.0
    %v1706 = vmax.f32 %v1256, 0.0
    %v1707 = vmax.f32 %v1367, 0.0
    %v1708 = vmax.f32 %v1369, 0.0
    %v1709 = vmax.f32 %v1480, 0.0
    %v1710 = vmax.f32 %v1482, 0.0
    %v1711 = vmax.f32 %v1593, 0.0
    %v1712 = vmax.f32 %v1595, 0.0
    %v1713 = vmax.f32 %v1260, 0.0
    %v1714 = vmax.f32 %v1262, 0.0
    %v1715 = vmax.f32 %v1373, 0.0
    %v1716 = vmax.f32 %v1375, 0.0
    %v1717 = vmax.f32 %v1486, 0.0
    %v1718 = vmax.f32 %v1488, 0.0
    %v1719 = vmax.f32 %v1599, 0.0
    %v1720 = vmax.f32 %v1601, 0.0
    %v1721 = vmax.f32 %v1264, 0.0
    %v1722 = vmax.f32 %v1266, 0.0
    %v1723 = vmax.f32 %v1377, 0.0
    %v1724 = vmax.f32 %v1379, 0.0
    %v1725 = vmax.f32 %v1490, 0.0
    %v1726 = vmax.f32 %v1492, 0.0
    %v1727 = vmax.f32 %v1603, 0.0
    %v1728 = vmax.f32 %v1605, 0.0
    %v1729 = vmax.f32 %v1270, 0.0
    %v1730 = vmax.f32 %v1272, 0.0
    %v1731 = vmax.f32 %v1383, 0.0
    %v1732 = vmax.f32 %v1385, 0.0
    %v1733 = vmax.f32 %v1496, 0.0
    %v1734 = vmax.f32 %v1498, 0.0
    %v1735 = vmax.f32 %v1609, 0.0
    %v1736 = vmax.f32 %v1611, 0.0
    %v1737 = vmax.f32 %v1274, 0.0
    %v1738 = vmax.f32 %v1276, 0.0
    %v1739 = vmax.f32 %v1387, 0.0
    %v1740 = vmax.f32 %v1389, 0.0
    %v1741 = vmax.f32 %v1500, 0.0
    %v1742 = vmax.f32 %v1502, 0.0
    %v1743 = vmax.f32 %v1613, 0.0
    %v1744 = vmax.f32 %v1615, 0.0
    %v1745 = vmax.f32 %v1617, %v1625
    %v1746 = vmax.f32 %v1745, %v1633
    %v1747 = vmax.f32 %v1746, %v1641
    %v1748 = vmax.f32 %v1747, %v1649
    %v1749 = vmax.f32 %v1748, %v1657
    %v1750 = vmax.f32 %v1749, %v1665
    %v1751 = vmax.f32 %v1750, %v1673
    %v1752 = vrot.slane %v1751, 4
    %v1753 = vmax.f32 %v1751, %v1752
    %v1754 = vrot.slane %v1753, 2
    %v1755 = vmax.f32 %v1753, %v1754
    %v1756 = vrot.slane %v1755, 1
    %v1757 = vmax.f32 %v1755, %v1756
    %v1758 = vmax.f32 %v1618, %v1626
    %v1759 = vmax.f32 %v1758, %v1634
    %v1760 = vmax.f32 %v1759, %v1642
    %v1761 = vmax.f32 %v1760, %v1650
    %v1762 = vmax.f32 %v1761, %v1658
    %v1763 = vmax.f32 %v1762, %v1666
    %v1764 = vmax.f32 %v1763, %v1674
    %v1765 = vrot.slane %v1764, 4
    %v1766 = vmax.f32 %v1764, %v1765
    %v1767 = vrot.slane %v1766, 2
    %v1768 = vmax.f32 %v1766, %v1767
    %v1769 = vrot.slane %v1768, 1
    %v1770 = vmax.f32 %v1768, %v1769
    %v1771 = vmax.f32 %v1619, %v1627
    %v1772 = vmax.f32 %v1771, %v1635
    %v1773 = vmax.f32 %v1772, %v1643
    %v1774 = vmax.f32 %v1773, %v1651
    %v1775 = vmax.f32 %v1774, %v1659
    %v1776 = vmax.f32 %v1775, %v1667
    %v1777 = vmax.f32 %v1776, %v1675
    %v1778 = vrot.slane %v1777, 4
    %v1779 = vmax.f32 %v1777, %v1778
    %v1780 = vrot.slane %v1779, 2
    %v1781 = vmax.f32 %v1779, %v1780
    %v1782 = vrot.slane %v1781, 1
    %v1783 = vmax.f32 %v1781, %v1782
    %v1784 = vmax.f32 %v1620, %v1628
    %v1785 = vmax.f32 %v1784, %v1636
    %v1786 = vmax.f32 %v1785, %v1644
    %v1787 = vmax.f32 %v1786, %v1652
    %v1788 = vmax.f32 %v1787, %v1660
    %v1789 = vmax.f32 %v1788, %v1668
    %v1790 = vmax.f32 %v1789, %v1676
    %v1791 = vrot.slane %v1790, 4
    %v1792 = vmax.f32 %v1790, %v1791
    %v1793 = vrot.slane %v1792, 2
    %v1794 = vmax.f32 %v1792, %v1793
    %v1795 = vrot.slane %v1794, 1
    %v1796 = vmax.f32 %v1794, %v1795
    %v1797 = vmax.f32 %v1621, %v1629
    %v1798 = vmax.f32 %v1797, %v1637
    %v1799 = vmax.f32 %v1798, %v1645
    %v1800 = vmax.f32 %v1799, %v1653
    %v1801 = vmax.f32 %v1800, %v1661
    %v1802 = vmax.f32 %v1801, %v1669
    %v1803 = vmax.f32 %v1802, %v1677
    %v1804 = vrot.slane %v1803, 4
    %v1805 = vmax.f32 %v1803, %v1804
    %v1806 = vrot.slane %v1805, 2
    %v1807 = vmax.f32 %v1805, %v1806
    %v1808 = vrot.slane %v1807, 1
    %v1809 = vmax.f32 %v1807, %v1808
    %v1810 = vmax.f32 %v1622, %v1630
    %v1811 = vmax.f32 %v1810, %v1638
    %v1812 = vmax.f32 %v1811, %v1646
    %v1813 = vmax.f32 %v1812, %v1654
    %v1814 = vmax.f32 %v1813, %v1662
    %v1815 = vmax.f32 %v1814, %v1670
    %v1816 = vmax.f32 %v1815, %v1678
    %v1817 = vrot.slane %v1816, 4
    %v1818 = vmax.f32 %v1816, %v1817
    %v1819 = vrot.slane %v1818, 2
    %v1820 = vmax.f32 %v1818, %v1819
    %v1821 = vrot.slane %v1820, 1
    %v1822 = vmax.f32 %v1820, %v1821
    %v1823 = vmax.f32 %v1623, %v1631
    %v1824 = vmax.f32 %v1823, %v1639
    %v1825 = vmax.f32 %v1824, %v1647
    %v1826 = vmax.f32 %v1825, %v1655
    %v1827 = vmax.f32 %v1826, %v1663
    %v1828 = vmax.f32 %v1827, %v1671
    %v1829 = vmax.f32 %v1828, %v1679
    %v1830 = vrot.slane %v1829, 4
    %v1831 = vmax.f32 %v1829, %v1830
    %v1832 = vrot.slane %v1831, 2
    %v1833 = vmax.f32 %v1831, %v1832
    %v1834 = vrot.slane %v1833, 1
    %v1835 = vmax.f32 %v1833, %v1834
    %v1836 = vmax.f32 %v1624, %v1632
    %v1837 = vmax.f32 %v1836, %v1640
    %v1838 = vmax.f32 %v1837, %v1648
    %v1839 = vmax.f32 %v1838, %v1656
    %v1840 = vmax.f32 %v1839, %v1664
    %v1841 = vmax.f32 %v1840, %v1672
    %v1842 = vmax.f32 %v1841, %v1680
    %v1843 = vrot.slane %v1842, 4
    %v1844 = vmax.f32 %v1842, %v1843
    %v1845 = vrot.slane %v1844, 2
    %v1846 = vmax.f32 %v1844, %v1845
    %v1847 = vrot.slane %v1846, 1
    %v1848 = vmax.f32 %v1846, %v1847
    %v1849 = vmax.f32 %v1681, %v1689
    %v1850 = vmax.f32 %v1849, %v1697
    %v1851 = vmax.f32 %v1850, %v1705
    %v1852 = vmax.f32 %v1851, %v1713
    %v1853 = vmax.f32 %v1852, %v1721
    %v1854 = vmax.f32 %v1853, %v1729
    %v1855 = vmax.f32 %v1854, %v1737
    %v1856 = vrot.slane %v1855, 4
    %v1857 = vmax.f32 %v1855, %v1856
    %v1858 = vrot.slane %v1857, 2
    %v1859 = vmax.f32 %v1857, %v1858
    %v1860 = vrot.slane %v1859, 1
    %v1861 = vmax.f32 %v1859, %v1860
    %v1862 = vmax.f32 %v1682, %v1690
    %v1863 = vmax.f32 %v1862, %v1698
    %v1864 = vmax.f32 %v1863, %v1706
    %v1865 = vmax.f32 %v1864, %v1714
    %v1866 = vmax.f32 %v1865, %v1722
    %v1867 = vmax.f32 %v1866, %v1730
    %v1868 = vmax.f32 %v1867, %v1738
    %v1869 = vrot.slane %v1868, 4
    %v1870 = vmax.f32 %v1868, %v1869
    %v1871 = vrot.slane %v1870, 2
    %v1872 = vmax.f32 %v1870, %v1871
    %v1873 = vrot.slane %v1872, 1
    %v1874 = vmax.f32 %v1872, %v1873
    %v1875 = vmax.f32 %v1683, %v1691
    %v1876 = vmax.f32 %v1875, %v1699
    %v1877 = vmax.f32 %v1876, %v1707
    %v1878 = vmax.f32 %v1877, %v1715
    %v1879 = vmax.f32 %v1878, %v1723
    %v1880 = vmax.f32 %v1879, %v1731
    %v1881 = vmax.f32 %v1880, %v1739
    %v1882 = vrot.slane %v1881, 4
    %v1883 = vmax.f32 %v1881, %v1882
    %v1884 = vrot.slane %v1883, 2
    %v1885 = vmax.f32 %v1883, %v1884
    %v1886 = vrot.slane %v1885, 1
    %v1887 = vmax.f32 %v1885, %v1886
    %v1888 = vmax.f32 %v1684, %v1692
    %v1889 = vmax.f32 %v1888, %v1700
    %v1890 = vmax.f32 %v1889, %v1708
    %v1891 = vmax.f32 %v1890, %v1716
    %v1892 = vmax.f32 %v1891, %v1724
    %v1893 = vmax.f32 %v1892, %v1732
    %v1894 = vmax.f32 %v1893, %v1740
    %v1895 = vrot.slane %v1894, 4
    %v1896 = vmax.f32 %v1894, %v1895
    %v1897 = vrot.slane %v1896, 2
    %v1898 = vmax.f32 %v1896, %v1897
    %v1899 = vrot.slane %v1898, 1
    %v1900 = vmax.f32 %v1898, %v1899
    %v1901 = vmax.f32 %v1685, %v1693
    %v1902 = vmax.f32 %v1901, %v1701
    %v1903 = vmax.f32 %v1902, %v1709
    %v1904 = vmax.f32 %v1903, %v1717
    %v1905 = vmax.f32 %v1904, %v1725
    %v1906 = vmax.f32 %v1905, %v1733
    %v1907 = vmax.f32 %v1906, %v1741
    %v1908 = vrot.slane %v1907, 4
    %v1909 = vmax.f32 %v1907, %v1908
    %v1910 = vrot.slane %v1909, 2
    %v1911 = vmax.f32 %v1909, %v1910
    %v1912 = vrot.slane %v1911, 1
    %v1913 = vmax.f32 %v1911, %v1912
    %v1914 = vmax.f32 %v1686, %v1694
    %v1915 = vmax.f32 %v1914, %v1702
    %v1916 = vmax.f32 %v1915, %v1710
    %v1917 = vmax.f32 %v1916, %v1718
    %v1918 = vmax.f32 %v1917, %v1726
    %v1919 = vmax.f32 %v1918, %v1734
    %v1920 = vmax.f32 %v1919, %v1742
    %v1921 = vrot.slane %v1920, 4
    %v1922 = vmax.f32 %v1920, %v1921
    %v1923 = vrot.slane %v1922, 2
    %v1924 = vmax.f32 %v1922, %v1923
    %v1925 = vrot.slane %v1924, 1
    %v1926 = vmax.f32 %v1924, %v1925
    %v1927 = vmax.f32 %v1687, %v1695
    %v1928 = vmax.f32 %v1927, %v1703
    %v1929 = vmax.f32 %v1928, %v1711
    %v1930 = vmax.f32 %v1929, %v1719
    %v1931 = vmax.f32 %v1930, %v1727
    %v1932 = vmax.f32 %v1931, %v1735
    %v1933 = vmax.f32 %v1932, %v1743
    %v1934 = vrot.slane %v1933, 4
    %v1935 = vmax.f32 %v1933, %v1934
    %v1936 = vrot.slane %v1935, 2
    %v1937 = vmax.f32 %v1935, %v1936
    %v1938 = vrot.slane %v1937, 1
    %v1939 = vmax.f32 %v1937, %v1938
    %v1940 = vmax.f32 %v1688, %v1696
    %v1941 = vmax.f32 %v1940, %v1704
    %v1942 = vmax.f32 %v1941, %v1712
    %v1943 = vmax.f32 %v1942, %v1720
    %v1944 = vmax.f32 %v1943, %v1728
    %v1945 = vmax.f32 %v1944, %v1736
    %v1946 = vmax.f32 %v1945, %v1744
    %v1947 = vrot.slane %v1946, 4
    %v1948 = vmax.f32 %v1946, %v1947
    %v1949 = vrot.slane %v1948, 2
    %v1950 = vmax.f32 %v1948, %v1949
    %v1951 = vrot.slane %v1950, 1
    %v1952 = vmax.f32 %v1950, %v1951
    %v1953 = vsel %vm426, %v1757, %v1861
    %v1954 = vsel %vm426, %v1770, %v1874
    %v1955 = vsel %vm426, %v1783, %v1887
    %v1956 = vsel %vm426, %v1796, %v1900
    %v1957 = vsel %vm426, %v1809, %v1913
    %v1958 = vsel %vm426, %v1822, %v1926
    %v1959 = vsel %vm426, %v1835, %v1939
    %v1960 = vsel %vm426, %v1848, %v1952
    %v1961 = vpack.c.bf16 %v1953, %v1953
    %v1962 = vpack.c.bf16 %v1954, %v1954
    %v1963 = vpack.c.bf16 %v1955, %v1955
    %v1964 = vpack.c.bf16 %v1956, %v1956
    %v1965 = vpack.c.bf16 %v1957, %v1957
    %v1966 = vpack.c.bf16 %v1958, %v1958
    %v1967 = vpack.c.bf16 %v1959, %v1959
    %v1968 = vpack.c.bf16 %v1960, %v1960
    %v1969 = vld [vmem:[#allocation11] sm:$0xff]
    %v1970 = vld [vmem:[#allocation11 + $0x8] sm:$0xff]
    %v1971 = vld [vmem:[#allocation11 + $0x10] sm:$0xff]
    %v1972 = vld [vmem:[#allocation11 + $0x18] sm:$0xff]
    %v1973 = vld [vmem:[#allocation11 + $0x20] sm:$0xff]
    %v1974 = vld [vmem:[#allocation11 + $0x28] sm:$0xff]
    %v1975 = vld [vmem:[#allocation11 + $0x30] sm:$0xff]
    %v1976 = vld [vmem:[#allocation11 + $0x38] sm:$0xff]
    %v1977 = vld [vmem:[#allocation11 + $0x40] sm:$0xff]
    %v1978 = vld [vmem:[#allocation11 + $0x48] sm:$0xff]
    %v1979 = vld [vmem:[#allocation11 + $0x50] sm:$0xff]
    %v1980 = vld [vmem:[#allocation11 + $0x58] sm:$0xff]
    %v1981 = vld [vmem:[#allocation11 + $0x60] sm:$0xff]
    %v1982 = vld [vmem:[#allocation11 + $0x68] sm:$0xff]
    %v1983 = vld [vmem:[#allocation11 + $0x70] sm:$0xff]
    %v1984 = vld [vmem:[#allocation11 + $0x78] sm:$0xff]
    %v1985 = vld [vmem:[#allocation11 + $0x80] sm:$0xff]
    %v1986 = vld [vmem:[#allocation11 + $0x88] sm:$0xff]
    %v1987 = vld [vmem:[#allocation11 + $0x90] sm:$0xff]
    %v1988 = vld [vmem:[#allocation11 + $0x98] sm:$0xff]
    %v1989 = vld [vmem:[#allocation11 + $0xa0] sm:$0xff]
    %v1990 = vld [vmem:[#allocation11 + $0xa8] sm:$0xff]
    %v1991 = vld [vmem:[#allocation11 + $0xb0] sm:$0xff]
    %v1992 = vld [vmem:[#allocation11 + $0xb8] sm:$0xff]
    %v1993 = vld [vmem:[#allocation11 + $0xc0] sm:$0xff]
    %v1994 = vld [vmem:[#allocation11 + $0xc8] sm:$0xff]
    %v1995 = vld [vmem:[#allocation11 + $0xd0] sm:$0xff]
    %v1996 = vld [vmem:[#allocation11 + $0xd8] sm:$0xff]
    %v1997 = vld [vmem:[#allocation11 + $0xe0] sm:$0xff]
    %v1998 = vld [vmem:[#allocation11 + $0xe8] sm:$0xff]
    %v1999 = vld [vmem:[#allocation11 + $0xf0] sm:$0xff]
    %v2000 = vld [vmem:[#allocation11 + $0xf8] sm:$0xff]
    %v2001 = vld [vmem:[#allocation11 + $0x100] sm:$0xff]
    %v2002 = vld [vmem:[#allocation11 + $0x108] sm:$0xff]
    %v2003 = vld [vmem:[#allocation11 + $0x110] sm:$0xff]
    %v2004 = vld [vmem:[#allocation11 + $0x118] sm:$0xff]
    %v2005 = vld [vmem:[#allocation11 + $0x120] sm:$0xff]
    %v2006 = vld [vmem:[#allocation11 + $0x128] sm:$0xff]
    %v2007 = vld [vmem:[#allocation11 + $0x130] sm:$0xff]
    %v2008 = vld [vmem:[#allocation11 + $0x138] sm:$0xff]
    %v2009 = vld [vmem:[#allocation11 + $0x140] sm:$0xff]
    %v2010 = vld [vmem:[#allocation11 + $0x148] sm:$0xff]
    %v2011 = vld [vmem:[#allocation11 + $0x150] sm:$0xff]
    %v2012 = vld [vmem:[#allocation11 + $0x158] sm:$0xff]
    %v2013 = vld [vmem:[#allocation11 + $0x160] sm:$0xff]
    %v2014 = vld [vmem:[#allocation11 + $0x168] sm:$0xff]
    %v2015 = vld [vmem:[#allocation11 + $0x170] sm:$0xff]
    %v2016 = vld [vmem:[#allocation11 + $0x178] sm:$0xff]
    %v2017 = vld [vmem:[#allocation11 + $0x180] sm:$0xff]
    %v2018 = vld [vmem:[#allocation11 + $0x188] sm:$0xff]
    %v2019 = vld [vmem:[#allocation11 + $0x190] sm:$0xff]
    %v2020 = vld [vmem:[#allocation11 + $0x198] sm:$0xff]
    %v2021 = vld [vmem:[#allocation11 + $0x1a0] sm:$0xff]
    %v2022 = vld [vmem:[#allocation11 + $0x1a8] sm:$0xff]
    %v2023 = vld [vmem:[#allocation11 + $0x1b0] sm:$0xff]
    %v2024 = vld [vmem:[#allocation11 + $0x1b8] sm:$0xff]
    %v2025 = vld [vmem:[#allocation11 + $0x1c0] sm:$0xff]
    %v2026 = vld [vmem:[#allocation11 + $0x1c8] sm:$0xff]
    %v2027 = vld [vmem:[#allocation11 + $0x1d0] sm:$0xff]
    %v2028 = vld [vmem:[#allocation11 + $0x1d8] sm:$0xff]
    %v2029 = vld [vmem:[#allocation11 + $0x1e0] sm:$0xff]
    %v2030 = vld [vmem:[#allocation11 + $0x1e8] sm:$0xff]
    %v2031 = vld [vmem:[#allocation11 + $0x1f0] sm:$0xff]
    %v2032 = vld [vmem:[#allocation11 + $0x1f8] sm:$0xff]
    %v2033 = vld [vmem:[#allocation11 + $0x200] sm:$0xff]
    %v2034 = vld [vmem:[#allocation11 + $0x208] sm:$0xff]
    %v2035 = vld [vmem:[#allocation11 + $0x210] sm:$0xff]
    %v2036 = vld [vmem:[#allocation11 + $0x218] sm:$0xff]
    %v2037 = vld [vmem:[#allocation11 + $0x220] sm:$0xff]
    %v2038 = vld [vmem:[#allocation11 + $0x228] sm:$0xff]
    %v2039 = vld [vmem:[#allocation11 + $0x230] sm:$0xff]
    %v2040 = vld [vmem:[#allocation11 + $0x238] sm:$0xff]
    %v2041 = vld [vmem:[#allocation11 + $0x240] sm:$0xff]
    %v2042 = vld [vmem:[#allocation11 + $0x248] sm:$0xff]
    %v2043 = vld [vmem:[#allocation11 + $0x250] sm:$0xff]
    %v2044 = vld [vmem:[#allocation11 + $0x258] sm:$0xff]
    %v2045 = vld [vmem:[#allocation11 + $0x260] sm:$0xff]
    %v2046 = vld [vmem:[#allocation11 + $0x268] sm:$0xff]
    %v2047 = vld [vmem:[#allocation11 + $0x270] sm:$0xff]
    %v2048 = vld [vmem:[#allocation11 + $0x278] sm:$0xff]
    %v2049 = vld [vmem:[#allocation11 + $0x280] sm:$0xff]
    %v2050 = vld [vmem:[#allocation11 + $0x288] sm:$0xff]
    %v2051 = vld [vmem:[#allocation11 + $0x290] sm:$0xff]
    %v2052 = vld [vmem:[#allocation11 + $0x298] sm:$0xff]
    %v2053 = vld [vmem:[#allocation11 + $0x2a0] sm:$0xff]
    %v2054 = vld [vmem:[#allocation11 + $0x2a8] sm:$0xff]
    %v2055 = vld [vmem:[#allocation11 + $0x2b0] sm:$0xff]
    %v2056 = vld [vmem:[#allocation11 + $0x2b8] sm:$0xff]
    %v2057 = vld [vmem:[#allocation11 + $0x2c0] sm:$0xff]
    %v2058 = vld [vmem:[#allocation11 + $0x2c8] sm:$0xff]
    %v2059 = vld [vmem:[#allocation11 + $0x2d0] sm:$0xff]
    %v2060 = vld [vmem:[#allocation11 + $0x2d8] sm:$0xff]
    %v2061 = vld [vmem:[#allocation11 + $0x2e0] sm:$0xff]
    %v2062 = vld [vmem:[#allocation11 + $0x2e8] sm:$0xff]
    %v2063 = vld [vmem:[#allocation11 + $0x2f0] sm:$0xff]
    %v2064 = vld [vmem:[#allocation11 + $0x2f8] sm:$0xff]
    %v2065 = vld [vmem:[#allocation11 + $0x300] sm:$0xff]
    %v2066 = vld [vmem:[#allocation11 + $0x308] sm:$0xff]
    %v2067 = vld [vmem:[#allocation11 + $0x310] sm:$0xff]
    %v2068 = vld [vmem:[#allocation11 + $0x318] sm:$0xff]
    %v2069 = vld [vmem:[#allocation11 + $0x320] sm:$0xff]
    %v2070 = vld [vmem:[#allocation11 + $0x328] sm:$0xff]
    %v2071 = vld [vmem:[#allocation11 + $0x330] sm:$0xff]
    %v2072 = vld [vmem:[#allocation11 + $0x338] sm:$0xff]
    %v2073 = vld [vmem:[#allocation11 + $0x340] sm:$0xff]
    %v2074 = vld [vmem:[#allocation11 + $0x348] sm:$0xff]
    %v2075 = vld [vmem:[#allocation11 + $0x350] sm:$0xff]
    %v2076 = vld [vmem:[#allocation11 + $0x358] sm:$0xff]
    %v2077 = vld [vmem:[#allocation11 + $0x360] sm:$0xff]
    %v2078 = vld [vmem:[#allocation11 + $0x368] sm:$0xff]
    %v2079 = vld [vmem:[#allocation11 + $0x370] sm:$0xff]
    %v2080 = vld [vmem:[#allocation11 + $0x378] sm:$0xff]
    %v2081 = vld [vmem:[#allocation11 + $0x380] sm:$0xff]
    %v2082 = vld [vmem:[#allocation11 + $0x388] sm:$0xff]
    %v2083 = vld [vmem:[#allocation11 + $0x390] sm:$0xff]
    %v2084 = vld [vmem:[#allocation11 + $0x398] sm:$0xff]
    %v2085 = vld [vmem:[#allocation11 + $0x3a0] sm:$0xff]
    %v2086 = vld [vmem:[#allocation11 + $0x3a8] sm:$0xff]
    %v2087 = vld [vmem:[#allocation11 + $0x3b0] sm:$0xff]
    %v2088 = vld [vmem:[#allocation11 + $0x3b8] sm:$0xff]
    %v2089 = vld [vmem:[#allocation11 + $0x3c0] sm:$0xff]
    %v2090 = vld [vmem:[#allocation11 + $0x3c8] sm:$0xff]
    %v2091 = vld [vmem:[#allocation11 + $0x3d0] sm:$0xff]
    %v2092 = vld [vmem:[#allocation11 + $0x3d8] sm:$0xff]
    %v2093 = vld [vmem:[#allocation11 + $0x3e0] sm:$0xff]
    %v2094 = vld [vmem:[#allocation11 + $0x3e8] sm:$0xff]
    %v2095 = vld [vmem:[#allocation11 + $0x3f0] sm:$0xff]
    %v2096 = vld [vmem:[#allocation11 + $0x3f8] sm:$0xff]
    %v2097 = vld [vmem:[#allocation11 + $0x400] sm:$0xff]
    %v2098 = vld [vmem:[#allocation11 + $0x408] sm:$0xff]
    %v2099 = vld [vmem:[#allocation11 + $0x410] sm:$0xff]
    %v2100 = vld [vmem:[#allocation11 + $0x418] sm:$0xff]
    %v2101 = vld [vmem:[#allocation11 + $0x420] sm:$0xff]
    %v2102 = vld [vmem:[#allocation11 + $0x428] sm:$0xff]
    %v2103 = vld [vmem:[#allocation11 + $0x430] sm:$0xff]
    %v2104 = vld [vmem:[#allocation11 + $0x438] sm:$0xff]
    %v2105 = vld [vmem:[#allocation11 + $0x440] sm:$0xff]
    %v2106 = vld [vmem:[#allocation11 + $0x448] sm:$0xff]
    %v2107 = vld [vmem:[#allocation11 + $0x450] sm:$0xff]
    %v2108 = vld [vmem:[#allocation11 + $0x458] sm:$0xff]
    %v2109 = vld [vmem:[#allocation11 + $0x460] sm:$0xff]
    %v2110 = vld [vmem:[#allocation11 + $0x468] sm:$0xff]
    %v2111 = vld [vmem:[#allocation11 + $0x470] sm:$0xff]
    %v2112 = vld [vmem:[#allocation11 + $0x478] sm:$0xff]
    %v2113 = vld [vmem:[#allocation11 + $0x480] sm:$0xff]
    %v2114 = vld [vmem:[#allocation11 + $0x488] sm:$0xff]
    %v2115 = vld [vmem:[#allocation11 + $0x490] sm:$0xff]
    %v2116 = vld [vmem:[#allocation11 + $0x498] sm:$0xff]
    %v2117 = vld [vmem:[#allocation11 + $0x4a0] sm:$0xff]
    %v2118 = vld [vmem:[#allocation11 + $0x4a8] sm:$0xff]
    %v2119 = vld [vmem:[#allocation11 + $0x4b0] sm:$0xff]
    %v2120 = vld [vmem:[#allocation11 + $0x4b8] sm:$0xff]
    %v2121 = vld [vmem:[#allocation11 + $0x4c0] sm:$0xff]
    %v2122 = vld [vmem:[#allocation11 + $0x4c8] sm:$0xff]
    %v2123 = vld [vmem:[#allocation11 + $0x4d0] sm:$0xff]
    %v2124 = vld [vmem:[#allocation11 + $0x4d8] sm:$0xff]
    %v2125 = vld [vmem:[#allocation11 + $0x4e0] sm:$0xff]
    %v2126 = vld [vmem:[#allocation11 + $0x4e8] sm:$0xff]
    %v2127 = vld [vmem:[#allocation11 + $0x4f0] sm:$0xff]
    %v2128 = vld [vmem:[#allocation11 + $0x4f8] sm:$0xff]
    %v2129 = vld [vmem:[#allocation11 + $0x500] sm:$0xff]
    %v2130 = vld [vmem:[#allocation11 + $0x508] sm:$0xff]
    %v2131 = vld [vmem:[#allocation11 + $0x510] sm:$0xff]
    %v2132 = vld [vmem:[#allocation11 + $0x518] sm:$0xff]
    %v2133 = vld [vmem:[#allocation11 + $0x520] sm:$0xff]
    %v2134 = vld [vmem:[#allocation11 + $0x528] sm:$0xff]
    %v2135 = vld [vmem:[#allocation11 + $0x530] sm:$0xff]
    %v2136 = vld [vmem:[#allocation11 + $0x538] sm:$0xff]
    %v2137 = vld [vmem:[#allocation11 + $0x540] sm:$0xff]
    %v2138 = vld [vmem:[#allocation11 + $0x548] sm:$0xff]
    %v2139 = vld [vmem:[#allocation11 + $0x550] sm:$0xff]
    %v2140 = vld [vmem:[#allocation11 + $0x558] sm:$0xff]
    %v2141 = vld [vmem:[#allocation11 + $0x560] sm:$0xff]
    %v2142 = vld [vmem:[#allocation11 + $0x568] sm:$0xff]
    %v2143 = vld [vmem:[#allocation11 + $0x570] sm:$0xff]
    %v2144 = vld [vmem:[#allocation11 + $0x578] sm:$0xff]
    %v2145 = vld [vmem:[#allocation11 + $0x580] sm:$0xff]
    %v2146 = vld [vmem:[#allocation11 + $0x588] sm:$0xff]
    %v2147 = vld [vmem:[#allocation11 + $0x590] sm:$0xff]
    %v2148 = vld [vmem:[#allocation11 + $0x598] sm:$0xff]
    %v2149 = vld [vmem:[#allocation11 + $0x5a0] sm:$0xff]
    %v2150 = vld [vmem:[#allocation11 + $0x5a8] sm:$0xff]
    %v2151 = vld [vmem:[#allocation11 + $0x5b0] sm:$0xff]
    %v2152 = vld [vmem:[#allocation11 + $0x5b8] sm:$0xff]
    %v2153 = vld [vmem:[#allocation11 + $0x5c0] sm:$0xff]
    %v2154 = vld [vmem:[#allocation11 + $0x5c8] sm:$0xff]
    %v2155 = vld [vmem:[#allocation11 + $0x5d0] sm:$0xff]
    %v2156 = vld [vmem:[#allocation11 + $0x5d8] sm:$0xff]
    %v2157 = vld [vmem:[#allocation11 + $0x5e0] sm:$0xff]
    %v2158 = vld [vmem:[#allocation11 + $0x5e8] sm:$0xff]
    %v2159 = vld [vmem:[#allocation11 + $0x5f0] sm:$0xff]
    %v2160 = vld [vmem:[#allocation11 + $0x5f8] sm:$0xff]
    %v2161 = vld [vmem:[#allocation11 + $0x600] sm:$0xff]
    %v2162 = vld [vmem:[#allocation11 + $0x608] sm:$0xff]
    %v2163 = vld [vmem:[#allocation11 + $0x610] sm:$0xff]
    %v2164 = vld [vmem:[#allocation11 + $0x618] sm:$0xff]
    %v2165 = vld [vmem:[#allocation11 + $0x620] sm:$0xff]
    %v2166 = vld [vmem:[#allocation11 + $0x628] sm:$0xff]
    %v2167 = vld [vmem:[#allocation11 + $0x630] sm:$0xff]
    %v2168 = vld [vmem:[#allocation11 + $0x638] sm:$0xff]
    %v2169 = vld [vmem:[#allocation11 + $0x640] sm:$0xff]
    %v2170 = vld [vmem:[#allocation11 + $0x648] sm:$0xff]
    %v2171 = vld [vmem:[#allocation11 + $0x650] sm:$0xff]
    %v2172 = vld [vmem:[#allocation11 + $0x658] sm:$0xff]
    %v2173 = vld [vmem:[#allocation11 + $0x660] sm:$0xff]
    %v2174 = vld [vmem:[#allocation11 + $0x668] sm:$0xff]
    %v2175 = vld [vmem:[#allocation11 + $0x670] sm:$0xff]
    %v2176 = vld [vmem:[#allocation11 + $0x678] sm:$0xff]
    %v2177 = vld [vmem:[#allocation11 + $0x680] sm:$0xff]
    %v2178 = vld [vmem:[#allocation11 + $0x688] sm:$0xff]
    %v2179 = vld [vmem:[#allocation11 + $0x690] sm:$0xff]
    %v2180 = vld [vmem:[#allocation11 + $0x698] sm:$0xff]
    %v2181 = vld [vmem:[#allocation11 + $0x6a0] sm:$0xff]
    %v2182 = vld [vmem:[#allocation11 + $0x6a8] sm:$0xff]
    %v2183 = vld [vmem:[#allocation11 + $0x6b0] sm:$0xff]
    %v2184 = vld [vmem:[#allocation11 + $0x6b8] sm:$0xff]
    %v2185 = vld [vmem:[#allocation11 + $0x6c0] sm:$0xff]
    %v2186 = vld [vmem:[#allocation11 + $0x6c8] sm:$0xff]
    %v2187 = vld [vmem:[#allocation11 + $0x6d0] sm:$0xff]
    %v2188 = vld [vmem:[#allocation11 + $0x6d8] sm:$0xff]
    %v2189 = vld [vmem:[#allocation11 + $0x6e0] sm:$0xff]
    %v2190 = vld [vmem:[#allocation11 + $0x6e8] sm:$0xff]
    %v2191 = vld [vmem:[#allocation11 + $0x6f0] sm:$0xff]
    %v2192 = vld [vmem:[#allocation11 + $0x6f8] sm:$0xff]
    %v2193 = vld [vmem:[#allocation11 + $0x700] sm:$0xff]
    %v2194 = vld [vmem:[#allocation11 + $0x708] sm:$0xff]
    %v2195 = vld [vmem:[#allocation11 + $0x710] sm:$0xff]
    %v2196 = vld [vmem:[#allocation11 + $0x718] sm:$0xff]
    %v2197 = vld [vmem:[#allocation11 + $0x720] sm:$0xff]
    %v2198 = vld [vmem:[#allocation11 + $0x728] sm:$0xff]
    %v2199 = vld [vmem:[#allocation11 + $0x730] sm:$0xff]
    %v2200 = vld [vmem:[#allocation11 + $0x738] sm:$0xff]
    %v2201 = vld [vmem:[#allocation11 + $0x740] sm:$0xff]
    %v2202 = vld [vmem:[#allocation11 + $0x748] sm:$0xff]
    %v2203 = vld [vmem:[#allocation11 + $0x750] sm:$0xff]
    %v2204 = vld [vmem:[#allocation11 + $0x758] sm:$0xff]
    %v2205 = vld [vmem:[#allocation11 + $0x760] sm:$0xff]
    %v2206 = vld [vmem:[#allocation11 + $0x768] sm:$0xff]
    %v2207 = vld [vmem:[#allocation11 + $0x770] sm:$0xff]
    %v2208 = vld [vmem:[#allocation11 + $0x778] sm:$0xff]
    %v2209 = vld [vmem:[#allocation11 + $0x780] sm:$0xff]
    %v2210 = vld [vmem:[#allocation11 + $0x788] sm:$0xff]
    %v2211 = vld [vmem:[#allocation11 + $0x790] sm:$0xff]
    %v2212 = vld [vmem:[#allocation11 + $0x798] sm:$0xff]
    %v2213 = vld [vmem:[#allocation11 + $0x7a0] sm:$0xff]
    %v2214 = vld [vmem:[#allocation11 + $0x7a8] sm:$0xff]
    %v2215 = vld [vmem:[#allocation11 + $0x7b0] sm:$0xff]
    %v2216 = vld [vmem:[#allocation11 + $0x7b8] sm:$0xff]
    %v2217 = vld [vmem:[#allocation11 + $0x7c0] sm:$0xff]
    %v2218 = vld [vmem:[#allocation11 + $0x7c8] sm:$0xff]
    %v2219 = vld [vmem:[#allocation11 + $0x7d0] sm:$0xff]
    %v2220 = vld [vmem:[#allocation11 + $0x7d8] sm:$0xff]
    %v2221 = vld [vmem:[#allocation11 + $0x7e0] sm:$0xff]
    %v2222 = vld [vmem:[#allocation11 + $0x7e8] sm:$0xff]
    %v2223 = vld [vmem:[#allocation11 + $0x7f0] sm:$0xff]
    %v2224 = vld [vmem:[#allocation11 + $0x7f8] sm:$0xff]
    %v2225 = vld [vmem:[#allocation13] sm:$0xf]
    %v2227 = vlaneseq
    %v2228 = vshrl.u32 %v2227, 7
    %v2229 = vsub.s32 0, %v2228
    %v2230 = vrot.slane %v2225, %v2229
    %v2231 = vlaneseq
    %v2232 = vshrl.u32 %v2231, 7
    %v2233 = vsub.s32 1, %v2232
    %v2234 = vrot.slane %v2225, %v2233
    %v2235 = vlaneseq
    %v2236 = vshrl.u32 %v2235, 7
    %v2237 = vsub.s32 2, %v2236
    %v2238 = vrot.slane %v2225, %v2237
    %v2239 = vlaneseq
    %v2240 = vshrl.u32 %v2239, 7
    %v2241 = vsub.s32 3, %v2240
    %v2242 = vrot.slane %v2225, %v2241
    %v2503 = vunpack.c.l.b16 %v1969
    %v2504 = vunpack.c.h.b16 %v1969
    %v2505 = vunpack.c.l.b16 %v1970
    %v2506 = vunpack.c.h.b16 %v1970
    %v2507 = vunpack.c.l.b16 %v1971
    %v2508 = vunpack.c.h.b16 %v1971
    %v2509 = vunpack.c.l.b16 %v1972
    %v2510 = vunpack.c.h.b16 %v1972
    %v2511 = vunpack.c.l.b16 %v1973
    %v2512 = vunpack.c.h.b16 %v1973
    %v2513 = vunpack.c.l.b16 %v1974
    %v2514 = vunpack.c.h.b16 %v1974
    %v2515 = vunpack.c.l.b16 %v1975
    %v2516 = vunpack.c.h.b16 %v1975
    %v2517 = vunpack.c.l.b16 %v1976
    %v2518 = vunpack.c.h.b16 %v1976
    %v2519 = vunpack.c.l.b16 %v1977
    %v2520 = vunpack.c.h.b16 %v1977
    %v2521 = vunpack.c.l.b16 %v1978
    %v2522 = vunpack.c.h.b16 %v1978
    %v2523 = vunpack.c.l.b16 %v1979
    %v2524 = vunpack.c.h.b16 %v1979
    %v2525 = vunpack.c.l.b16 %v1980
    %v2526 = vunpack.c.h.b16 %v1980
    %v2527 = vunpack.c.l.b16 %v1981
    %v2528 = vunpack.c.h.b16 %v1981
    %v2529 = vunpack.c.l.b16 %v1982
    %v2530 = vunpack.c.h.b16 %v1982
    %v2531 = vunpack.c.l.b16 %v1983
    %v2532 = vunpack.c.h.b16 %v1983
    %v2533 = vunpack.c.l.b16 %v1984
    %v2534 = vunpack.c.h.b16 %v1984
    %v2535 = vunpack.c.l.b16 %v1985
    %v2536 = vunpack.c.h.b16 %v1985
    %v2537 = vunpack.c.l.b16 %v1986
    %v2538 = vunpack.c.h.b16 %v1986
    %v2539 = vunpack.c.l.b16 %v1987
    %v2540 = vunpack.c.h.b16 %v1987
    %v2541 = vunpack.c.l.b16 %v1988
    %v2542 = vunpack.c.h.b16 %v1988
    %v2543 = vunpack.c.l.b16 %v1989
    %v2544 = vunpack.c.h.b16 %v1989
    %v2545 = vunpack.c.l.b16 %v1990
    %v2546 = vunpack.c.h.b16 %v1990
    %v2547 = vunpack.c.l.b16 %v1991
    %v2548 = vunpack.c.h.b16 %v1991
    %v2549 = vunpack.c.l.b16 %v1992
    %v2550 = vunpack.c.h.b16 %v1992
    %v2551 = vunpack.c.l.b16 %v1993
    %v2552 = vunpack.c.h.b16 %v1993
    %v2553 = vunpack.c.l.b16 %v1994
    %v2554 = vunpack.c.h.b16 %v1994
    %v2555 = vunpack.c.l.b16 %v1995
    %v2556 = vunpack.c.h.b16 %v1995
    %v2557 = vunpack.c.l.b16 %v1996
    %v2558 = vunpack.c.h.b16 %v1996
    %v2559 = vunpack.c.l.b16 %v1997
    %v2560 = vunpack.c.h.b16 %v1997
    %v2561 = vunpack.c.l.b16 %v1998
    %v2562 = vunpack.c.h.b16 %v1998
    %v2563 = vunpack.c.l.b16 %v1999
    %v2564 = vunpack.c.h.b16 %v1999
    %v2565 = vunpack.c.l.b16 %v2000
    %v2566 = vunpack.c.h.b16 %v2000
    %v2567 = vunpack.c.l.b16 %v2001
    %v2568 = vunpack.c.h.b16 %v2001
    %v2569 = vunpack.c.l.b16 %v2002
    %v2570 = vunpack.c.h.b16 %v2002
    %v2571 = vunpack.c.l.b16 %v2003
    %v2572 = vunpack.c.h.b16 %v2003
    %v2573 = vunpack.c.l.b16 %v2004
    %v2574 = vunpack.c.h.b16 %v2004
    %v2575 = vunpack.c.l.b16 %v2005
    %v2576 = vunpack.c.h.b16 %v2005
    %v2577 = vunpack.c.l.b16 %v2006
    %v2578 = vunpack.c.h.b16 %v2006
    %v2579 = vunpack.c.l.b16 %v2007
    %v2580 = vunpack.c.h.b16 %v2007
    %v2581 = vunpack.c.l.b16 %v2008
    %v2582 = vunpack.c.h.b16 %v2008
    %v2583 = vunpack.c.l.b16 %v2009
    %v2584 = vunpack.c.h.b16 %v2009
    %v2585 = vunpack.c.l.b16 %v2010
    %v2586 = vunpack.c.h.b16 %v2010
    %v2587 = vunpack.c.l.b16 %v2011
    %v2588 = vunpack.c.h.b16 %v2011
    %v2589 = vunpack.c.l.b16 %v2012
    %v2590 = vunpack.c.h.b16 %v2012
    %v2591 = vunpack.c.l.b16 %v2013
    %v2592 = vunpack.c.h.b16 %v2013
    %v2593 = vunpack.c.l.b16 %v2014
    %v2594 = vunpack.c.h.b16 %v2014
    %v2595 = vunpack.c.l.b16 %v2015
    %v2596 = vunpack.c.h.b16 %v2015
    %v2597 = vunpack.c.l.b16 %v2016
    %v2598 = vunpack.c.h.b16 %v2016
    %v2599 = vunpack.c.l.b16 %v2017
    %v2600 = vunpack.c.h.b16 %v2017
    %v2601 = vunpack.c.l.b16 %v2018
    %v2602 = vunpack.c.h.b16 %v2018
    %v2603 = vunpack.c.l.b16 %v2019
    %v2604 = vunpack.c.h.b16 %v2019
    %v2605 = vunpack.c.l.b16 %v2020
    %v2606 = vunpack.c.h.b16 %v2020
    %v2607 = vunpack.c.l.b16 %v2021
    %v2608 = vunpack.c.h.b16 %v2021
    %v2609 = vunpack.c.l.b16 %v2022
    %v2610 = vunpack.c.h.b16 %v2022
    %v2611 = vunpack.c.l.b16 %v2023
    %v2612 = vunpack.c.h.b16 %v2023
    %v2613 = vunpack.c.l.b16 %v2024
    %v2614 = vunpack.c.h.b16 %v2024
    %v2615 = vunpack.c.l.b16 %v2025
    %v2616 = vunpack.c.h.b16 %v2025
    %v2617 = vunpack.c.l.b16 %v2026
    %v2618 = vunpack.c.h.b16 %v2026
    %v2619 = vunpack.c.l.b16 %v2027
    %v2620 = vunpack.c.h.b16 %v2027
    %v2621 = vunpack.c.l.b16 %v2028
    %v2622 = vunpack.c.h.b16 %v2028
    %v2623 = vunpack.c.l.b16 %v2029
    %v2624 = vunpack.c.h.b16 %v2029
    %v2625 = vunpack.c.l.b16 %v2030
    %v2626 = vunpack.c.h.b16 %v2030
    %v2627 = vunpack.c.l.b16 %v2031
    %v2628 = vunpack.c.h.b16 %v2031
    %v2629 = vunpack.c.l.b16 %v2032
    %v2630 = vunpack.c.h.b16 %v2032
    %v2631 = vunpack.c.l.b16 %v2033
    %v2632 = vunpack.c.h.b16 %v2033
    %v2633 = vunpack.c.l.b16 %v2034
    %v2634 = vunpack.c.h.b16 %v2034
    %v2635 = vunpack.c.l.b16 %v2035
    %v2636 = vunpack.c.h.b16 %v2035
    %v2637 = vunpack.c.l.b16 %v2036
    %v2638 = vunpack.c.h.b16 %v2036
    %v2639 = vunpack.c.l.b16 %v2037
    %v2640 = vunpack.c.h.b16 %v2037
    %v2641 = vunpack.c.l.b16 %v2038
    %v2642 = vunpack.c.h.b16 %v2038
    %v2643 = vunpack.c.l.b16 %v2039
    %v2644 = vunpack.c.h.b16 %v2039
    %v2645 = vunpack.c.l.b16 %v2040
    %v2646 = vunpack.c.h.b16 %v2040
    %v2647 = vunpack.c.l.b16 %v2041
    %v2648 = vunpack.c.h.b16 %v2041
    %v2649 = vunpack.c.l.b16 %v2042
    %v2650 = vunpack.c.h.b16 %v2042
    %v2651 = vunpack.c.l.b16 %v2043
    %v2652 = vunpack.c.h.b16 %v2043
    %v2653 = vunpack.c.l.b16 %v2044
    %v2654 = vunpack.c.h.b16 %v2044
    %v2655 = vunpack.c.l.b16 %v2045
    %v2656 = vunpack.c.h.b16 %v2045
    %v2657 = vunpack.c.l.b16 %v2046
    %v2658 = vunpack.c.h.b16 %v2046
    %v2659 = vunpack.c.l.b16 %v2047
    %v2660 = vunpack.c.h.b16 %v2047
    %v2661 = vunpack.c.l.b16 %v2048
    %v2662 = vunpack.c.h.b16 %v2048
    %v2663 = vunpack.c.l.b16 %v2049
    %v2664 = vunpack.c.h.b16 %v2049
    %v2665 = vunpack.c.l.b16 %v2050
    %v2666 = vunpack.c.h.b16 %v2050
    %v2667 = vunpack.c.l.b16 %v2051
    %v2668 = vunpack.c.h.b16 %v2051
    %v2669 = vunpack.c.l.b16 %v2052
    %v2670 = vunpack.c.h.b16 %v2052
    %v2671 = vunpack.c.l.b16 %v2053
    %v2672 = vunpack.c.h.b16 %v2053
    %v2673 = vunpack.c.l.b16 %v2054
    %v2674 = vunpack.c.h.b16 %v2054
    %v2675 = vunpack.c.l.b16 %v2055
    %v2676 = vunpack.c.h.b16 %v2055
    %v2677 = vunpack.c.l.b16 %v2056
    %v2678 = vunpack.c.h.b16 %v2056
    %v2679 = vunpack.c.l.b16 %v2057
    %v2680 = vunpack.c.h.b16 %v2057
    %v2681 = vunpack.c.l.b16 %v2058
    %v2682 = vunpack.c.h.b16 %v2058
    %v2683 = vunpack.c.l.b16 %v2059
    %v2684 = vunpack.c.h.b16 %v2059
    %v2685 = vunpack.c.l.b16 %v2060
    %v2686 = vunpack.c.h.b16 %v2060
    %v2687 = vunpack.c.l.b16 %v2061
    %v2688 = vunpack.c.h.b16 %v2061
    %v2689 = vunpack.c.l.b16 %v2062
    %v2690 = vunpack.c.h.b16 %v2062
    %v2691 = vunpack.c.l.b16 %v2063
    %v2692 = vunpack.c.h.b16 %v2063
    %v2693 = vunpack.c.l.b16 %v2064
    %v2694 = vunpack.c.h.b16 %v2064
    %v2695 = vunpack.c.l.b16 %v2065
    %v2696 = vunpack.c.h.b16 %v2065
    %v2697 = vunpack.c.l.b16 %v2066
    %v2698 = vunpack.c.h.b16 %v2066
    %v2699 = vunpack.c.l.b16 %v2067
    %v2700 = vunpack.c.h.b16 %v2067
    %v2701 = vunpack.c.l.b16 %v2068
    %v2702 = vunpack.c.h.b16 %v2068
    %v2703 = vunpack.c.l.b16 %v2069
    %v2704 = vunpack.c.h.b16 %v2069
    %v2705 = vunpack.c.l.b16 %v2070
    %v2706 = vunpack.c.h.b16 %v2070
    %v2707 = vunpack.c.l.b16 %v2071
    %v2708 = vunpack.c.h.b16 %v2071
    %v2709 = vunpack.c.l.b16 %v2072
    %v2710 = vunpack.c.h.b16 %v2072
    %v2711 = vunpack.c.l.b16 %v2073
    %v2712 = vunpack.c.h.b16 %v2073
    %v2713 = vunpack.c.l.b16 %v2074
    %v2714 = vunpack.c.h.b16 %v2074
    %v2715 = vunpack.c.l.b16 %v2075
    %v2716 = vunpack.c.h.b16 %v2075
    %v2717 = vunpack.c.l.b16 %v2076
    %v2718 = vunpack.c.h.b16 %v2076
    %v2719 = vunpack.c.l.b16 %v2077
    %v2720 = vunpack.c.h.b16 %v2077
    %v2721 = vunpack.c.l.b16 %v2078
    %v2722 = vunpack.c.h.b16 %v2078
    %v2723 = vunpack.c.l.b16 %v2079
    %v2724 = vunpack.c.h.b16 %v2079
    %v2725 = vunpack.c.l.b16 %v2080
    %v2726 = vunpack.c.h.b16 %v2080
    %v2727 = vunpack.c.l.b16 %v2081
    %v2728 = vunpack.c.h.b16 %v2081
    %v2729 = vunpack.c.l.b16 %v2082
    %v2730 = vunpack.c.h.b16 %v2082
    %v2731 = vunpack.c.l.b16 %v2083
    %v2732 = vunpack.c.h.b16 %v2083
    %v2733 = vunpack.c.l.b16 %v2084
    %v2734 = vunpack.c.h.b16 %v2084
    %v2735 = vunpack.c.l.b16 %v2085
    %v2736 = vunpack.c.h.b16 %v2085
    %v2737 = vunpack.c.l.b16 %v2086
    %v2738 = vunpack.c.h.b16 %v2086
    %v2739 = vunpack.c.l.b16 %v2087
    %v2740 = vunpack.c.h.b16 %v2087
    %v2741 = vunpack.c.l.b16 %v2088
    %v2742 = vunpack.c.h.b16 %v2088
    %v2743 = vunpack.c.l.b16 %v2089
    %v2744 = vunpack.c.h.b16 %v2089
    %v2745 = vunpack.c.l.b16 %v2090
    %v2746 = vunpack.c.h.b16 %v2090
    %v2747 = vunpack.c.l.b16 %v2091
    %v2748 = vunpack.c.h.b16 %v2091
    %v2749 = vunpack.c.l.b16 %v2092
    %v2750 = vunpack.c.h.b16 %v2092
    %v2751 = vunpack.c.l.b16 %v2093
    %v2752 = vunpack.c.h.b16 %v2093
    %v2753 = vunpack.c.l.b16 %v2094
    %v2754 = vunpack.c.h.b16 %v2094
    %v2755 = vunpack.c.l.b16 %v2095
    %v2756 = vunpack.c.h.b16 %v2095
    %v2757 = vunpack.c.l.b16 %v2096
    %v2758 = vunpack.c.h.b16 %v2096
    %v2759 = vunpack.c.l.b16 %v2097
    %v2760 = vunpack.c.h.b16 %v2097
    %v2761 = vunpack.c.l.b16 %v2098
    %v2762 = vunpack.c.h.b16 %v2098
    %v2763 = vunpack.c.l.b16 %v2099
    %v2764 = vunpack.c.h.b16 %v2099
    %v2765 = vunpack.c.l.b16 %v2100
    %v2766 = vunpack.c.h.b16 %v2100
    %v2767 = vunpack.c.l.b16 %v2101
    %v2768 = vunpack.c.h.b16 %v2101
    %v2769 = vunpack.c.l.b16 %v2102
    %v2770 = vunpack.c.h.b16 %v2102
    %v2771 = vunpack.c.l.b16 %v2103
    %v2772 = vunpack.c.h.b16 %v2103
    %v2773 = vunpack.c.l.b16 %v2104
    %v2774 = vunpack.c.h.b16 %v2104
    %v2775 = vunpack.c.l.b16 %v2105
    %v2776 = vunpack.c.h.b16 %v2105
    %v2777 = vunpack.c.l.b16 %v2106
    %v2778 = vunpack.c.h.b16 %v2106
    %v2779 = vunpack.c.l.b16 %v2107
    %v2780 = vunpack.c.h.b16 %v2107
    %v2781 = vunpack.c.l.b16 %v2108
    %v2782 = vunpack.c.h.b16 %v2108
    %v2783 = vunpack.c.l.b16 %v2109
    %v2784 = vunpack.c.h.b16 %v2109
    %v2785 = vunpack.c.l.b16 %v2110
    %v2786 = vunpack.c.h.b16 %v2110
    %v2787 = vunpack.c.l.b16 %v2111
    %v2788 = vunpack.c.h.b16 %v2111
    %v2789 = vunpack.c.l.b16 %v2112
    %v2790 = vunpack.c.h.b16 %v2112
    %v2791 = vunpack.c.l.b16 %v2113
    %v2792 = vunpack.c.h.b16 %v2113
    %v2793 = vunpack.c.l.b16 %v2114
    %v2794 = vunpack.c.h.b16 %v2114
    %v2795 = vunpack.c.l.b16 %v2115
    %v2796 = vunpack.c.h.b16 %v2115
    %v2797 = vunpack.c.l.b16 %v2116
    %v2798 = vunpack.c.h.b16 %v2116
    %v2799 = vunpack.c.l.b16 %v2117
    %v2800 = vunpack.c.h.b16 %v2117
    %v2801 = vunpack.c.l.b16 %v2118
    %v2802 = vunpack.c.h.b16 %v2118
    %v2803 = vunpack.c.l.b16 %v2119
    %v2804 = vunpack.c.h.b16 %v2119
    %v2805 = vunpack.c.l.b16 %v2120
    %v2806 = vunpack.c.h.b16 %v2120
    %v2807 = vunpack.c.l.b16 %v2121
    %v2808 = vunpack.c.h.b16 %v2121
    %v2809 = vunpack.c.l.b16 %v2122
    %v2810 = vunpack.c.h.b16 %v2122
    %v2811 = vunpack.c.l.b16 %v2123
    %v2812 = vunpack.c.h.b16 %v2123
    %v2813 = vunpack.c.l.b16 %v2124
    %v2814 = vunpack.c.h.b16 %v2124
    %v2815 = vunpack.c.l.b16 %v2125
    %v2816 = vunpack.c.h.b16 %v2125
    %v2817 = vunpack.c.l.b16 %v2126
    %v2818 = vunpack.c.h.b16 %v2126
    %v2819 = vunpack.c.l.b16 %v2127
    %v2820 = vunpack.c.h.b16 %v2127
    %v2821 = vunpack.c.l.b16 %v2128
    %v2822 = vunpack.c.h.b16 %v2128
    %v2823 = vunpack.c.l.b16 %v2129
    %v2824 = vunpack.c.h.b16 %v2129
    %v2825 = vunpack.c.l.b16 %v2130
    %v2826 = vunpack.c.h.b16 %v2130
    %v2827 = vunpack.c.l.b16 %v2131
    %v2828 = vunpack.c.h.b16 %v2131
    %v2829 = vunpack.c.l.b16 %v2132
    %v2830 = vunpack.c.h.b16 %v2132
    %v2831 = vunpack.c.l.b16 %v2133
    %v2832 = vunpack.c.h.b16 %v2133
    %v2833 = vunpack.c.l.b16 %v2134
    %v2834 = vunpack.c.h.b16 %v2134
    %v2835 = vunpack.c.l.b16 %v2135
    %v2836 = vunpack.c.h.b16 %v2135
    %v2837 = vunpack.c.l.b16 %v2136
    %v2838 = vunpack.c.h.b16 %v2136
    %v2839 = vunpack.c.l.b16 %v2137
    %v2840 = vunpack.c.h.b16 %v2137
    %v2841 = vunpack.c.l.b16 %v2138
    %v2842 = vunpack.c.h.b16 %v2138
    %v2843 = vunpack.c.l.b16 %v2139
    %v2844 = vunpack.c.h.b16 %v2139
    %v2845 = vunpack.c.l.b16 %v2140
    %v2846 = vunpack.c.h.b16 %v2140
    %v2847 = vunpack.c.l.b16 %v2141
    %v2848 = vunpack.c.h.b16 %v2141
    %v2849 = vunpack.c.l.b16 %v2142
    %v2850 = vunpack.c.h.b16 %v2142
    %v2851 = vunpack.c.l.b16 %v2143
    %v2852 = vunpack.c.h.b16 %v2143
    %v2853 = vunpack.c.l.b16 %v2144
    %v2854 = vunpack.c.h.b16 %v2144
    %v2855 = vunpack.c.l.b16 %v2145
    %v2856 = vunpack.c.h.b16 %v2145
    %v2857 = vunpack.c.l.b16 %v2146
    %v2858 = vunpack.c.h.b16 %v2146
    %v2859 = vunpack.c.l.b16 %v2147
    %v2860 = vunpack.c.h.b16 %v2147
    %v2861 = vunpack.c.l.b16 %v2148
    %v2862 = vunpack.c.h.b16 %v2148
    %v2863 = vunpack.c.l.b16 %v2149
    %v2864 = vunpack.c.h.b16 %v2149
    %v2865 = vunpack.c.l.b16 %v2150
    %v2866 = vunpack.c.h.b16 %v2150
    %v2867 = vunpack.c.l.b16 %v2151
    %v2868 = vunpack.c.h.b16 %v2151
    %v2869 = vunpack.c.l.b16 %v2152
    %v2870 = vunpack.c.h.b16 %v2152
    %v2871 = vunpack.c.l.b16 %v2153
    %v2872 = vunpack.c.h.b16 %v2153
    %v2873 = vunpack.c.l.b16 %v2154
    %v2874 = vunpack.c.h.b16 %v2154
    %v2875 = vunpack.c.l.b16 %v2155
    %v2876 = vunpack.c.h.b16 %v2155
    %v2877 = vunpack.c.l.b16 %v2156
    %v2878 = vunpack.c.h.b16 %v2156
    %v2879 = vunpack.c.l.b16 %v2157
    %v2880 = vunpack.c.h.b16 %v2157
    %v2881 = vunpack.c.l.b16 %v2158
    %v2882 = vunpack.c.h.b16 %v2158
    %v2883 = vunpack.c.l.b16 %v2159
    %v2884 = vunpack.c.h.b16 %v2159
    %v2885 = vunpack.c.l.b16 %v2160
    %v2886 = vunpack.c.h.b16 %v2160
    %v2887 = vunpack.c.l.b16 %v2161
    %v2888 = vunpack.c.h.b16 %v2161
    %v2889 = vunpack.c.l.b16 %v2162
    %v2890 = vunpack.c.h.b16 %v2162
    %v2891 = vunpack.c.l.b16 %v2163
    %v2892 = vunpack.c.h.b16 %v2163
    %v2893 = vunpack.c.l.b16 %v2164
    %v2894 = vunpack.c.h.b16 %v2164
    %v2895 = vunpack.c.l.b16 %v2165
    %v2896 = vunpack.c.h.b16 %v2165
    %v2897 = vunpack.c.l.b16 %v2166
    %v2898 = vunpack.c.h.b16 %v2166
    %v2899 = vunpack.c.l.b16 %v2167
    %v2900 = vunpack.c.h.b16 %v2167
    %v2901 = vunpack.c.l.b16 %v2168
    %v2902 = vunpack.c.h.b16 %v2168
    %v2903 = vunpack.c.l.b16 %v2169
    %v2904 = vunpack.c.h.b16 %v2169
    %v2905 = vunpack.c.l.b16 %v2170
    %v2906 = vunpack.c.h.b16 %v2170
    %v2907 = vunpack.c.l.b16 %v2171
    %v2908 = vunpack.c.h.b16 %v2171
    %v2909 = vunpack.c.l.b16 %v2172
    %v2910 = vunpack.c.h.b16 %v2172
    %v2911 = vunpack.c.l.b16 %v2173
    %v2912 = vunpack.c.h.b16 %v2173
    %v2913 = vunpack.c.l.b16 %v2174
    %v2914 = vunpack.c.h.b16 %v2174
    %v2915 = vunpack.c.l.b16 %v2175
    %v2916 = vunpack.c.h.b16 %v2175
    %v2917 = vunpack.c.l.b16 %v2176
    %v2918 = vunpack.c.h.b16 %v2176
    %v2919 = vunpack.c.l.b16 %v2177
    %v2920 = vunpack.c.h.b16 %v2177
    %v2921 = vunpack.c.l.b16 %v2178
    %v2922 = vunpack.c.h.b16 %v2178
    %v2923 = vunpack.c.l.b16 %v2179
    %v2924 = vunpack.c.h.b16 %v2179
    %v2925 = vunpack.c.l.b16 %v2180
    %v2926 = vunpack.c.h.b16 %v2180
    %v2927 = vunpack.c.l.b16 %v2181
    %v2928 = vunpack.c.h.b16 %v2181
    %v2929 = vunpack.c.l.b16 %v2182
    %v2930 = vunpack.c.h.b16 %v2182
    %v2931 = vunpack.c.l.b16 %v2183
    %v2932 = vunpack.c.h.b16 %v2183
    %v2933 = vunpack.c.l.b16 %v2184
    %v2934 = vunpack.c.h.b16 %v2184
    %v2935 = vunpack.c.l.b16 %v2185
    %v2936 = vunpack.c.h.b16 %v2185
    %v2937 = vunpack.c.l.b16 %v2186
    %v2938 = vunpack.c.h.b16 %v2186
    %v2939 = vunpack.c.l.b16 %v2187
    %v2940 = vunpack.c.h.b16 %v2187
    %v2941 = vunpack.c.l.b16 %v2188
    %v2942 = vunpack.c.h.b16 %v2188
    %v2943 = vunpack.c.l.b16 %v2189
    %v2944 = vunpack.c.h.b16 %v2189
    %v2945 = vunpack.c.l.b16 %v2190
    %v2946 = vunpack.c.h.b16 %v2190
    %v2947 = vunpack.c.l.b16 %v2191
    %v2948 = vunpack.c.h.b16 %v2191
    %v2949 = vunpack.c.l.b16 %v2192
    %v2950 = vunpack.c.h.b16 %v2192
    %v2951 = vunpack.c.l.b16 %v2193
    %v2952 = vunpack.c.h.b16 %v2193
    %v2953 = vunpack.c.l.b16 %v2194
    %v2954 = vunpack.c.h.b16 %v2194
    %v2955 = vunpack.c.l.b16 %v2195
    %v2956 = vunpack.c.h.b16 %v2195
    %v2957 = vunpack.c.l.b16 %v2196
    %v2958 = vunpack.c.h.b16 %v2196
    %v2959 = vunpack.c.l.b16 %v2197
    %v2960 = vunpack.c.h.b16 %v2197
    %v2961 = vunpack.c.l.b16 %v2198
    %v2962 = vunpack.c.h.b16 %v2198
    %v2963 = vunpack.c.l.b16 %v2199
    %v2964 = vunpack.c.h.b16 %v2199
    %v2965 = vunpack.c.l.b16 %v2200
    %v2966 = vunpack.c.h.b16 %v2200
    %v2967 = vunpack.c.l.b16 %v2201
    %v2968 = vunpack.c.h.b16 %v2201
    %v2969 = vunpack.c.l.b16 %v2202
    %v2970 = vunpack.c.h.b16 %v2202
    %v2971 = vunpack.c.l.b16 %v2203
    %v2972 = vunpack.c.h.b16 %v2203
    %v2973 = vunpack.c.l.b16 %v2204
    %v2974 = vunpack.c.h.b16 %v2204
    %v2975 = vunpack.c.l.b16 %v2205
    %v2976 = vunpack.c.h.b16 %v2205
    %v2977 = vunpack.c.l.b16 %v2206
    %v2978 = vunpack.c.h.b16 %v2206
    %v2979 = vunpack.c.l.b16 %v2207
    %v2980 = vunpack.c.h.b16 %v2207
    %v2981 = vunpack.c.l.b16 %v2208
    %v2982 = vunpack.c.h.b16 %v2208
    %v2983 = vunpack.c.l.b16 %v2209
    %v2984 = vunpack.c.h.b16 %v2209
    %v2985 = vunpack.c.l.b16 %v2210
    %v2986 = vunpack.c.h.b16 %v2210
    %v2987 = vunpack.c.l.b16 %v2211
    %v2988 = vunpack.c.h.b16 %v2211
    %v2989 = vunpack.c.l.b16 %v2212
    %v2990 = vunpack.c.h.b16 %v2212
    %v2991 = vunpack.c.l.b16 %v2213
    %v2992 = vunpack.c.h.b16 %v2213
    %v2993 = vunpack.c.l.b16 %v2214
    %v2994 = vunpack.c.h.b16 %v2214
    %v2995 = vunpack.c.l.b16 %v2215
    %v2996 = vunpack.c.h.b16 %v2215
    %v2997 = vunpack.c.l.b16 %v2216
    %v2998 = vunpack.c.h.b16 %v2216
    %v2999 = vunpack.c.l.b16 %v2217
    %v3000 = vunpack.c.h.b16 %v2217
    %v3001 = vunpack.c.l.b16 %v2218
    %v3002 = vunpack.c.h.b16 %v2218
    %v3003 = vunpack.c.l.b16 %v2219
    %v3004 = vunpack.c.h.b16 %v2219
    %v3005 = vunpack.c.l.b16 %v2220
    %v3006 = vunpack.c.h.b16 %v2220
    %v3007 = vunpack.c.l.b16 %v2221
    %v3008 = vunpack.c.h.b16 %v2221
    %v3009 = vunpack.c.l.b16 %v2222
    %v3010 = vunpack.c.h.b16 %v2222
    %v3011 = vunpack.c.l.b16 %v2223
    %v3012 = vunpack.c.h.b16 %v2223
    %v3013 = vunpack.c.l.b16 %v2224
    %v3014 = vunpack.c.h.b16 %v2224
    %v3015 = vpack.c.b16 %v2507, %v2503
    %v3016 = vpack.c.b16 %v2508, %v2504
    %v3017 = vpack.c.b16 %v2509, %v2505
    %v3018 = vpack.c.b16 %v2510, %v2506
    %v3019 = vpack.c.b16 %v2515, %v2511
    %v3020 = vpack.c.b16 %v2516, %v2512
    %v3021 = vpack.c.b16 %v2517, %v2513
    %v3022 = vpack.c.b16 %v2518, %v2514
    %v3023 = vpack.c.b16 %v2523, %v2519
    %v3024 = vpack.c.b16 %v2524, %v2520
    %v3025 = vpack.c.b16 %v2525, %v2521
    %v3026 = vpack.c.b16 %v2526, %v2522
    %v3027 = vpack.c.b16 %v2531, %v2527
    %v3028 = vpack.c.b16 %v2532, %v2528
    %v3029 = vpack.c.b16 %v2533, %v2529
    %v3030 = vpack.c.b16 %v2534, %v2530
    %v3031 = vpack.c.b16 %v2539, %v2535
    %v3032 = vpack.c.b16 %v2540, %v2536
    %v3033 = vpack.c.b16 %v2541, %v2537
    %v3034 = vpack.c.b16 %v2542, %v2538
    %v3035 = vpack.c.b16 %v2547, %v2543
    %v3036 = vpack.c.b16 %v2548, %v2544
    %v3037 = vpack.c.b16 %v2549, %v2545
    %v3038 = vpack.c.b16 %v2550, %v2546
    %v3039 = vpack.c.b16 %v2555, %v2551
    %v3040 = vpack.c.b16 %v2556, %v2552
    %v3041 = vpack.c.b16 %v2557, %v2553
    %v3042 = vpack.c.b16 %v2558, %v2554
    %v3043 = vpack.c.b16 %v2563, %v2559
    %v3044 = vpack.c.b16 %v2564, %v2560
    %v3045 = vpack.c.b16 %v2565, %v2561
    %v3046 = vpack.c.b16 %v2566, %v2562
    %v3047 = vpack.c.b16 %v2571, %v2567
    %v3048 = vpack.c.b16 %v2572, %v2568
    %v3049 = vpack.c.b16 %v2573, %v2569
    %v3050 = vpack.c.b16 %v2574, %v2570
    %v3051 = vpack.c.b16 %v2579, %v2575
    %v3052 = vpack.c.b16 %v2580, %v2576
    %v3053 = vpack.c.b16 %v2581, %v2577
    %v3054 = vpack.c.b16 %v2582, %v2578
    %v3055 = vpack.c.b16 %v2587, %v2583
    %v3056 = vpack.c.b16 %v2588, %v2584
    %v3057 = vpack.c.b16 %v2589, %v2585
    %v3058 = vpack.c.b16 %v2590, %v2586
    %v3059 = vpack.c.b16 %v2595, %v2591
    %v3060 = vpack.c.b16 %v2596, %v2592
    %v3061 = vpack.c.b16 %v2597, %v2593
    %v3062 = vpack.c.b16 %v2598, %v2594
    %v3063 = vpack.c.b16 %v2603, %v2599
    %v3064 = vpack.c.b16 %v2604, %v2600
    %v3065 = vpack.c.b16 %v2605, %v2601
    %v3066 = vpack.c.b16 %v2606, %v2602
    %v3067 = vpack.c.b16 %v2611, %v2607
    %v3068 = vpack.c.b16 %v2612, %v2608
    %v3069 = vpack.c.b16 %v2613, %v2609
    %v3070 = vpack.c.b16 %v2614, %v2610
    %v3071 = vpack.c.b16 %v2619, %v2615
    %v3072 = vpack.c.b16 %v2620, %v2616
    %v3073 = vpack.c.b16 %v2621, %v2617
    %v3074 = vpack.c.b16 %v2622, %v2618
    %v3075 = vpack.c.b16 %v2627, %v2623
    %v3076 = vpack.c.b16 %v2628, %v2624
    %v3077 = vpack.c.b16 %v2629, %v2625
    %v3078 = vpack.c.b16 %v2630, %v2626
    %v3079 = vpack.c.b16 %v2635, %v2631
    %v3080 = vpack.c.b16 %v2636, %v2632
    %v3081 = vpack.c.b16 %v2637, %v2633
    %v3082 = vpack.c.b16 %v2638, %v2634
    %v3083 = vpack.c.b16 %v2643, %v2639
    %v3084 = vpack.c.b16 %v2644, %v2640
    %v3085 = vpack.c.b16 %v2645, %v2641
    %v3086 = vpack.c.b16 %v2646, %v2642
    %v3087 = vpack.c.b16 %v2651, %v2647
    %v3088 = vpack.c.b16 %v2652, %v2648
    %v3089 = vpack.c.b16 %v2653, %v2649
    %v3090 = vpack.c.b16 %v2654, %v2650
    %v3091 = vpack.c.b16 %v2659, %v2655
    %v3092 = vpack.c.b16 %v2660, %v2656
    %v3093 = vpack.c.b16 %v2661, %v2657
    %v3094 = vpack.c.b16 %v2662, %v2658
    %v3095 = vpack.c.b16 %v2667, %v2663
    %v3096 = vpack.c.b16 %v2668, %v2664
    %v3097 = vpack.c.b16 %v2669, %v2665
    %v3098 = vpack.c.b16 %v2670, %v2666
    %v3099 = vpack.c.b16 %v2675, %v2671
    %v3100 = vpack.c.b16 %v2676, %v2672
    %v3101 = vpack.c.b16 %v2677, %v2673
    %v3102 = vpack.c.b16 %v2678, %v2674
    %v3103 = vpack.c.b16 %v2683, %v2679
    %v3104 = vpack.c.b16 %v2684, %v2680
    %v3105 = vpack.c.b16 %v2685, %v2681
    %v3106 = vpack.c.b16 %v2686, %v2682
    %v3107 = vpack.c.b16 %v2691, %v2687
    %v3108 = vpack.c.b16 %v2692, %v2688
    %v3109 = vpack.c.b16 %v2693, %v2689
    %v3110 = vpack.c.b16 %v2694, %v2690
    %v3111 = vpack.c.b16 %v2699, %v2695
    %v3112 = vpack.c.b16 %v2700, %v2696
    %v3113 = vpack.c.b16 %v2701, %v2697
    %v3114 = vpack.c.b16 %v2702, %v2698
    %v3115 = vpack.c.b16 %v2707, %v2703
    %v3116 = vpack.c.b16 %v2708, %v2704
    %v3117 = vpack.c.b16 %v2709, %v2705
    %v3118 = vpack.c.b16 %v2710, %v2706
    %v3119 = vpack.c.b16 %v2715, %v2711
    %v3120 = vpack.c.b16 %v2716, %v2712
    %v3121 = vpack.c.b16 %v2717, %v2713
    %v3122 = vpack.c.b16 %v2718, %v2714
    %v3123 = vpack.c.b16 %v2723, %v2719
    %v3124 = vpack.c.b16 %v2724, %v2720
    %v3125 = vpack.c.b16 %v2725, %v2721
    %v3126 = vpack.c.b16 %v2726, %v2722
    %v3127 = vpack.c.b16 %v2731, %v2727
    %v3128 = vpack.c.b16 %v2732, %v2728
    %v3129 = vpack.c.b16 %v2733, %v2729
    %v3130 = vpack.c.b16 %v2734, %v2730
    %v3131 = vpack.c.b16 %v2739, %v2735
    %v3132 = vpack.c.b16 %v2740, %v2736
    %v3133 = vpack.c.b16 %v2741, %v2737
    %v3134 = vpack.c.b16 %v2742, %v2738
    %v3135 = vpack.c.b16 %v2747, %v2743
    %v3136 = vpack.c.b16 %v2748, %v2744
    %v3137 = vpack.c.b16 %v2749, %v2745
    %v3138 = vpack.c.b16 %v2750, %v2746
    %v3139 = vpack.c.b16 %v2755, %v2751
    %v3140 = vpack.c.b16 %v2756, %v2752
    %v3141 = vpack.c.b16 %v2757, %v2753
    %v3142 = vpack.c.b16 %v2758, %v2754
    %v3143 = vpack.c.b16 %v2763, %v2759
    %v3144 = vpack.c.b16 %v2764, %v2760
    %v3145 = vpack.c.b16 %v2765, %v2761
    %v3146 = vpack.c.b16 %v2766, %v2762
    %v3147 = vpack.c.b16 %v2771, %v2767
    %v3148 = vpack.c.b16 %v2772, %v2768
    %v3149 = vpack.c.b16 %v2773, %v2769
    %v3150 = vpack.c.b16 %v2774, %v2770
    %v3151 = vpack.c.b16 %v2779, %v2775
    %v3152 = vpack.c.b16 %v2780, %v2776
    %v3153 = vpack.c.b16 %v2781, %v2777
    %v3154 = vpack.c.b16 %v2782, %v2778
    %v3155 = vpack.c.b16 %v2787, %v2783
    %v3156 = vpack.c.b16 %v2788, %v2784
    %v3157 = vpack.c.b16 %v2789, %v2785
    %v3158 = vpack.c.b16 %v2790, %v2786
    %v3159 = vpack.c.b16 %v2795, %v2791
    %v3160 = vpack.c.b16 %v2796, %v2792
    %v3161 = vpack.c.b16 %v2797, %v2793
    %v3162 = vpack.c.b16 %v2798, %v2794
    %v3163 = vpack.c.b16 %v2803, %v2799
    %v3164 = vpack.c.b16 %v2804, %v2800
    %v3165 = vpack.c.b16 %v2805, %v2801
    %v3166 = vpack.c.b16 %v2806, %v2802
    %v3167 = vpack.c.b16 %v2811, %v2807
    %v3168 = vpack.c.b16 %v2812, %v2808
    %v3169 = vpack.c.b16 %v2813, %v2809
    %v3170 = vpack.c.b16 %v2814, %v2810
    %v3171 = vpack.c.b16 %v2819, %v2815
    %v3172 = vpack.c.b16 %v2820, %v2816
    %v3173 = vpack.c.b16 %v2821, %v2817
    %v3174 = vpack.c.b16 %v2822, %v2818
    %v3175 = vpack.c.b16 %v2827, %v2823
    %v3176 = vpack.c.b16 %v2828, %v2824
    %v3177 = vpack.c.b16 %v2829, %v2825
    %v3178 = vpack.c.b16 %v2830, %v2826
    %v3179 = vpack.c.b16 %v2835, %v2831
    %v3180 = vpack.c.b16 %v2836, %v2832
    %v3181 = vpack.c.b16 %v2837, %v2833
    %v3182 = vpack.c.b16 %v2838, %v2834
    %v3183 = vpack.c.b16 %v2843, %v2839
    %v3184 = vpack.c.b16 %v2844, %v2840
    %v3185 = vpack.c.b16 %v2845, %v2841
    %v3186 = vpack.c.b16 %v2846, %v2842
    %v3187 = vpack.c.b16 %v2851, %v2847
    %v3188 = vpack.c.b16 %v2852, %v2848
    %v3189 = vpack.c.b16 %v2853, %v2849
    %v3190 = vpack.c.b16 %v2854, %v2850
    %v3191 = vpack.c.b16 %v2859, %v2855
    %v3192 = vpack.c.b16 %v2860, %v2856
    %v3193 = vpack.c.b16 %v2861, %v2857
    %v3194 = vpack.c.b16 %v2862, %v2858
    %v3195 = vpack.c.b16 %v2867, %v2863
    %v3196 = vpack.c.b16 %v2868, %v2864
    %v3197 = vpack.c.b16 %v2869, %v2865
    %v3198 = vpack.c.b16 %v2870, %v2866
    %v3199 = vpack.c.b16 %v2875, %v2871
    %v3200 = vpack.c.b16 %v2876, %v2872
    %v3201 = vpack.c.b16 %v2877, %v2873
    %v3202 = vpack.c.b16 %v2878, %v2874
    %v3203 = vpack.c.b16 %v2883, %v2879
    %v3204 = vpack.c.b16 %v2884, %v2880
    %v3205 = vpack.c.b16 %v2885, %v2881
    %v3206 = vpack.c.b16 %v2886, %v2882
    %v3207 = vpack.c.b16 %v2891, %v2887
    %v3208 = vpack.c.b16 %v2892, %v2888
    %v3209 = vpack.c.b16 %v2893, %v2889
    %v3210 = vpack.c.b16 %v2894, %v2890
    %v3211 = vpack.c.b16 %v2899, %v2895
    %v3212 = vpack.c.b16 %v2900, %v2896
    %v3213 = vpack.c.b16 %v2901, %v2897
    %v3214 = vpack.c.b16 %v2902, %v2898
    %v3215 = vpack.c.b16 %v2907, %v2903
    %v3216 = vpack.c.b16 %v2908, %v2904
    %v3217 = vpack.c.b16 %v2909, %v2905
    %v3218 = vpack.c.b16 %v2910, %v2906
    %v3219 = vpack.c.b16 %v2915, %v2911
    %v3220 = vpack.c.b16 %v2916, %v2912
    %v3221 = vpack.c.b16 %v2917, %v2913
    %v3222 = vpack.c.b16 %v2918, %v2914
    %v3223 = vpack.c.b16 %v2923, %v2919
    %v3224 = vpack.c.b16 %v2924, %v2920
    %v3225 = vpack.c.b16 %v2925, %v2921
    %v3226 = vpack.c.b16 %v2926, %v2922
    %v3227 = vpack.c.b16 %v2931, %v2927
    %v3228 = vpack.c.b16 %v2932, %v2928
    %v3229 = vpack.c.b16 %v2933, %v2929
    %v3230 = vpack.c.b16 %v2934, %v2930
    %v3231 = vpack.c.b16 %v2939, %v2935
    %v3232 = vpack.c.b16 %v2940, %v2936
    %v3233 = vpack.c.b16 %v2941, %v2937
    %v3234 = vpack.c.b16 %v2942, %v2938
    %v3235 = vpack.c.b16 %v2947, %v2943
    %v3236 = vpack.c.b16 %v2948, %v2944
    %v3237 = vpack.c.b16 %v2949, %v2945
    %v3238 = vpack.c.b16 %v2950, %v2946
    %v3239 = vpack.c.b16 %v2955, %v2951
    %v3240 = vpack.c.b16 %v2956, %v2952
    %v3241 = vpack.c.b16 %v2957, %v2953
    %v3242 = vpack.c.b16 %v2958, %v2954
    %v3243 = vpack.c.b16 %v2963, %v2959
    %v3244 = vpack.c.b16 %v2964, %v2960
    %v3245 = vpack.c.b16 %v2965, %v2961
    %v3246 = vpack.c.b16 %v2966, %v2962
    %v3247 = vpack.c.b16 %v2971, %v2967
    %v3248 = vpack.c.b16 %v2972, %v2968
    %v3249 = vpack.c.b16 %v2973, %v2969
    %v3250 = vpack.c.b16 %v2974, %v2970
    %v3251 = vpack.c.b16 %v2979, %v2975
    %v3252 = vpack.c.b16 %v2980, %v2976
    %v3253 = vpack.c.b16 %v2981, %v2977
    %v3254 = vpack.c.b16 %v2982, %v2978
    %v3255 = vpack.c.b16 %v2987, %v2983
    %v3256 = vpack.c.b16 %v2988, %v2984
    %v3257 = vpack.c.b16 %v2989, %v2985
    %v3258 = vpack.c.b16 %v2990, %v2986
    %v3259 = vpack.c.b16 %v2995, %v2991
    %v3260 = vpack.c.b16 %v2996, %v2992
    %v3261 = vpack.c.b16 %v2997, %v2993
    %v3262 = vpack.c.b16 %v2998, %v2994
    %v3263 = vpack.c.b16 %v3003, %v2999
    %v3264 = vpack.c.b16 %v3004, %v3000
    %v3265 = vpack.c.b16 %v3005, %v3001
    %v3266 = vpack.c.b16 %v3006, %v3002
    %v3267 = vpack.c.b16 %v3011, %v3007
    %v3268 = vpack.c.b16 %v3012, %v3008
    %v3269 = vpack.c.b16 %v3013, %v3009
    %v3270 = vpack.c.b16 %v3014, %v3010
    %3527 = vmatprep.subr.bf16.mxu0 %v3016
    %3528 = vmatpush1.bf16.msra.mxu0 %v3015
    %3529 = vmatprep.subr.bf16.mxu0 %v3020
    %3530 = vmatpush1.bf16.msra.mxu0 %v3019
    %3531 = vmatprep.subr.bf16.mxu0 %v3024
    %3532 = vmatpush1.bf16.msra.mxu0 %v3023
    %3533 = vmatprep.subr.bf16.mxu0 %v3028
    %3534 = vmatpush1.bf16.msra.mxu0 %v3027
    %3535 = vmatprep.subr.bf16.mxu0 %v3032
    %3536 = vmatpush1.bf16.msra.mxu0 %v3031
    %3537 = vmatprep.subr.bf16.mxu0 %v3036
    %3538 = vmatpush1.bf16.msra.mxu0 %v3035
    %3539 = vmatprep.subr.bf16.mxu0 %v3040
    %3540 = vmatpush1.bf16.msra.mxu0 %v3039
    %3541 = vmatprep.subr.bf16.mxu0 %v3044
    %3542 = vmatpush1.bf16.msra.mxu0 %v3043
    %3543 = vmatprep.subr.bf16.mxu0 %v3048
    %3544 = vmatpush1.bf16.msra.mxu0 %v3047
    %3545 = vmatprep.subr.bf16.mxu0 %v3052
    %3546 = vmatpush1.bf16.msra.mxu0 %v3051
    %3547 = vmatprep.subr.bf16.mxu0 %v3056
    %3548 = vmatpush1.bf16.msra.mxu0 %v3055
    %3549 = vmatprep.subr.bf16.mxu0 %v3060
    %3550 = vmatpush1.bf16.msra.mxu0 %v3059
    %3551 = vmatprep.subr.bf16.mxu0 %v3064
    %3552 = vmatpush1.bf16.msra.mxu0 %v3063
    %3553 = vmatprep.subr.bf16.mxu0 %v3068
    %3554 = vmatpush1.bf16.msra.mxu0 %v3067
    %3555 = vmatprep.subr.bf16.mxu0 %v3072
    %3556 = vmatpush1.bf16.msra.mxu0 %v3071
    %3557 = vmatprep.subr.bf16.mxu0 %v3076
    %3558 = vmatpush1.bf16.msra.mxu0 %v3075
    %3559 = vmatprep.mubr.bf16.mxu0 %v1962
    %3560 = vmatmul.mubr.bf16.gmra.mrb[0].mxu0 %v1961
    %v3561 = vpop.f32.mrb[0].mxu0
    %v3562 = vadd.f32 %v2230, %v3561
    %v3563 = vpop.f32.mrb[0].mxu0
    %v3564 = vadd.f32 %v2234, %v3563
    %v3565 = vpop.f32.mrb[0].mxu0
    %v3566 = vpop.f32.mrb[0].mxu0
    %3567 = vdwg.mxu0
    %3568 = vmatprep.subr.bf16.mxu0 %v3080
    %3569 = vmatpush1.bf16.msra.mxu0 %v3079
    %3570 = vmatprep.subr.bf16.mxu0 %v3084
    %3571 = vmatpush1.bf16.msra.mxu0 %v3083
    %3572 = vmatprep.subr.bf16.mxu0 %v3088
    %3573 = vmatpush1.bf16.msra.mxu0 %v3087
    %3574 = vmatprep.subr.bf16.mxu0 %v3092
    %3575 = vmatpush1.bf16.msra.mxu0 %v3091
    %3576 = vmatprep.subr.bf16.mxu0 %v3096
    %3577 = vmatpush1.bf16.msra.mxu0 %v3095
    %3578 = vmatprep.subr.bf16.mxu0 %v3100
    %3579 = vmatpush1.bf16.msra.mxu0 %v3099
    %3580 = vmatprep.subr.bf16.mxu0 %v3104
    %3581 = vmatpush1.bf16.msra.mxu0 %v3103
    %3582 = vmatprep.subr.bf16.mxu0 %v3108
    %3583 = vmatpush1.bf16.msra.mxu0 %v3107
    %3584 = vmatprep.subr.bf16.mxu0 %v3112
    %3585 = vmatpush1.bf16.msra.mxu0 %v3111
    %3586 = vmatprep.subr.bf16.mxu0 %v3116
    %3587 = vmatpush1.bf16.msra.mxu0 %v3115
    %3588 = vmatprep.subr.bf16.mxu0 %v3120
    %3589 = vmatpush1.bf16.msra.mxu0 %v3119
    %3590 = vmatprep.subr.bf16.mxu0 %v3124
    %3591 = vmatpush1.bf16.msra.mxu0 %v3123
    %3592 = vmatprep.subr.bf16.mxu0 %v3128
    %3593 = vmatpush1.bf16.msra.mxu0 %v3127
    %3594 = vmatprep.subr.bf16.mxu0 %v3132
    %3595 = vmatpush1.bf16.msra.mxu0 %v3131
    %3596 = vmatprep.subr.bf16.mxu0 %v3136
    %3597 = vmatpush1.bf16.msra.mxu0 %v3135
    %3598 = vmatprep.subr.bf16.mxu0 %v3140
    %3599 = vmatpush1.bf16.msra.mxu0 %v3139
    %3600 = vmatprep.mubr.bf16.mxu0 %v1964
    %3601 = vmatmul.mubr.bf16.gmra.mrb[0].mxu0 %v1963
    %v3602 = vpop.f32.mrb[0].mxu0
    %v3603 = vadd.f32 %v3562, %v3602
    %v3604 = vpop.f32.mrb[0].mxu0
    %v3605 = vadd.f32 %v3564, %v3604
    %v3606 = vpop.f32.mrb[0].mxu0
    %v3607 = vpop.f32.mrb[0].mxu0
    %3608 = vdwg.mxu0
    %3609 = vmatprep.subr.bf16.mxu0 %v3144
    %3610 = vmatpush1.bf16.msra.mxu0 %v3143
    %3611 = vmatprep.subr.bf16.mxu0 %v3148
    %3612 = vmatpush1.bf16.msra.mxu0 %v3147
    %3613 = vmatprep.subr.bf16.mxu0 %v3152
    %3614 = vmatpush1.bf16.msra.mxu0 %v3151
    %3615 = vmatprep.subr.bf16.mxu0 %v3156
    %3616 = vmatpush1.bf16.msra.mxu0 %v3155
    %3617 = vmatprep.subr.bf16.mxu0 %v3160
    %3618 = vmatpush1.bf16.msra.mxu0 %v3159
    %3619 = vmatprep.subr.bf16.mxu0 %v3164
    %3620 = vmatpush1.bf16.msra.mxu0 %v3163
    %3621 = vmatprep.subr.bf16.mxu0 %v3168
    %3622 = vmatpush1.bf16.msra.mxu0 %v3167
    %3623 = vmatprep.subr.bf16.mxu0 %v3172
    %3624 = vmatpush1.bf16.msra.mxu0 %v3171
    %3625 = vmatprep.subr.bf16.mxu0 %v3176
    %3626 = vmatpush1.bf16.msra.mxu0 %v3175
    %3627 = vmatprep.subr.bf16.mxu0 %v3180
    %3628 = vmatpush1.bf16.msra.mxu0 %v3179
    %3629 = vmatprep.subr.bf16.mxu0 %v3184
    %3630 = vmatpush1.bf16.msra.mxu0 %v3183
    %3631 = vmatprep.subr.bf16.mxu0 %v3188
    %3632 = vmatpush1.bf16.msra.mxu0 %v3187
    %3633 = vmatprep.subr.bf16.mxu0 %v3192
    %3634 = vmatpush1.bf16.msra.mxu0 %v3191
    %3635 = vmatprep.subr.bf16.mxu0 %v3196
    %3636 = vmatpush1.bf16.msra.mxu0 %v3195
    %3637 = vmatprep.subr.bf16.mxu0 %v3200
    %3638 = vmatpush1.bf16.msra.mxu0 %v3199
    %3639 = vmatprep.subr.bf16.mxu0 %v3204
    %3640 = vmatpush1.bf16.msra.mxu0 %v3203
    %3641 = vmatprep.mubr.bf16.mxu0 %v1966
    %3642 = vmatmul.mubr.bf16.gmra.mrb[0].mxu0 %v1965
    %v3643 = vpop.f32.mrb[0].mxu0
    %v3644 = vadd.f32 %v3603, %v3643
    %v3645 = vpop.f32.mrb[0].mxu0
    %v3646 = vadd.f32 %v3605, %v3645
    %v3647 = vpop.f32.mrb[0].mxu0
    %v3648 = vpop.f32.mrb[0].mxu0
    %3649 = vdwg.mxu0
    %3650 = vmatprep.subr.bf16.mxu0 %v3208
    %3651 = vmatpush1.bf16.msra.mxu0 %v3207
    %3652 = vmatprep.subr.bf16.mxu0 %v3212
    %3653 = vmatpush1.bf16.msra.mxu0 %v3211
    %3654 = vmatprep.subr.bf16.mxu0 %v3216
    %3655 = vmatpush1.bf16.msra.mxu0 %v3215
    %3656 = vmatprep.subr.bf16.mxu0 %v3220
    %3657 = vmatpush1.bf16.msra.mxu0 %v3219
    %3658 = vmatprep.subr.bf16.mxu0 %v3224
    %3659 = vmatpush1.bf16.msra.mxu0 %v3223
    %3660 = vmatprep.subr.bf16.mxu0 %v3228
    %3661 = vmatpush1.bf16.msra.mxu0 %v3227
    %3662 = vmatprep.subr.bf16.mxu0 %v3232
    %3663 = vmatpush1.bf16.msra.mxu0 %v3231
    %3664 = vmatprep.subr.bf16.mxu0 %v3236
    %3665 = vmatpush1.bf16.msra.mxu0 %v3235
    %3666 = vmatprep.subr.bf16.mxu0 %v3240
    %3667 = vmatpush1.bf16.msra.mxu0 %v3239
    %3668 = vmatprep.subr.bf16.mxu0 %v3244
    %3669 = vmatpush1.bf16.msra.mxu0 %v3243
    %3670 = vmatprep.subr.bf16.mxu0 %v3248
    %3671 = vmatpush1.bf16.msra.mxu0 %v3247
    %3672 = vmatprep.subr.bf16.mxu0 %v3252
    %3673 = vmatpush1.bf16.msra.mxu0 %v3251
    %3674 = vmatprep.subr.bf16.mxu0 %v3256
    %3675 = vmatpush1.bf16.msra.mxu0 %v3255
    %3676 = vmatprep.subr.bf16.mxu0 %v3260
    %3677 = vmatpush1.bf16.msra.mxu0 %v3259
    %3678 = vmatprep.subr.bf16.mxu0 %v3264
    %3679 = vmatpush1.bf16.msra.mxu0 %v3263
    %3680 = vmatprep.subr.bf16.mxu0 %v3268
    %3681 = vmatpush1.bf16.msra.mxu0 %v3267
    %3682 = vmatprep.mubr.bf16.mxu0 %v1968
    %3683 = vmatmul.mubr.bf16.gmra.mrb[0].mxu0 %v1967
    %v3684 = vpop.f32.mrb[0].mxu0
    %v3685 = vadd.f32 %v3644, %v3684
    %v3686 = vpop.f32.mrb[0].mxu0
    %v3687 = vadd.f32 %v3646, %v3686
    %v3688 = vpop.f32.mrb[0].mxu0
    %v3689 = vpop.f32.mrb[0].mxu0
    %3690 = vdwg.mxu0
    %3691 = vmatprep.subr.bf16.mxu0 %v3018
    %3692 = vmatpush1.bf16.msra.mxu0 %v3017
    %3693 = vmatprep.subr.bf16.mxu0 %v3022
    %3694 = vmatpush1.bf16.msra.mxu0 %v3021
    %3695 = vmatprep.subr.bf16.mxu0 %v3026
    %3696 = vmatpush1.bf16.msra.mxu0 %v3025
    %3697 = vmatprep.subr.bf16.mxu0 %v3030
    %3698 = vmatpush1.bf16.msra.mxu0 %v3029
    %3699 = vmatprep.subr.bf16.mxu0 %v3034
    %3700 = vmatpush1.bf16.msra.mxu0 %v3033
    %3701 = vmatprep.subr.bf16.mxu0 %v3038
    %3702 = vmatpush1.bf16.msra.mxu0 %v3037
    %3703 = vmatprep.subr.bf16.mxu0 %v3042
    %3704 = vmatpush1.bf16.msra.mxu0 %v3041
    %3705 = vmatprep.subr.bf16.mxu0 %v3046
    %3706 = vmatpush1.bf16.msra.mxu0 %v3045
    %3707 = vmatprep.subr.bf16.mxu0 %v3050
    %3708 = vmatpush1.bf16.msra.mxu0 %v3049
    %3709 = vmatprep.subr.bf16.mxu0 %v3054
    %3710 = vmatpush1.bf16.msra.mxu0 %v3053
    %3711 = vmatprep.subr.bf16.mxu0 %v3058
    %3712 = vmatpush1.bf16.msra.mxu0 %v3057
    %3713 = vmatprep.subr.bf16.mxu0 %v3062
    %3714 = vmatpush1.bf16.msra.mxu0 %v3061
    %3715 = vmatprep.subr.bf16.mxu0 %v3066
    %3716 = vmatpush1.bf16.msra.mxu0 %v3065
    %3717 = vmatprep.subr.bf16.mxu0 %v3070
    %3718 = vmatpush1.bf16.msra.mxu0 %v3069
    %3719 = vmatprep.subr.bf16.mxu0 %v3074
    %3720 = vmatpush1.bf16.msra.mxu0 %v3073
    %3721 = vmatprep.subr.bf16.mxu0 %v3078
    %3722 = vmatpush1.bf16.msra.mxu0 %v3077
    %3723 = vmatprep.mubr.bf16.mxu0 %v1962
    %3724 = vmatmul.mubr.bf16.gmra.mrb[0].mxu0 %v1961
    %v3725 = vpop.f32.mrb[0].mxu0
    %v3726 = vadd.f32 %v2238, %v3725
    %v3727 = vpop.f32.mrb[0].mxu0
    %v3728 = vadd.f32 %v2242, %v3727
    %v3729 = vpop.f32.mrb[0].mxu0
    %v3730 = vpop.f32.mrb[0].mxu0
    %3731 = vdwg.mxu0
    %3732 = vmatprep.subr.bf16.mxu0 %v3082
    %3733 = vmatpush1.bf16.msra.mxu0 %v3081
    %3734 = vmatprep.subr.bf16.mxu0 %v3086
    %3735 = vmatpush1.bf16.msra.mxu0 %v3085
    %3736 = vmatprep.subr.bf16.mxu0 %v3090
    %3737 = vmatpush1.bf16.msra.mxu0 %v3089
    %3738 = vmatprep.subr.bf16.mxu0 %v3094
    %3739 = vmatpush1.bf16.msra.mxu0 %v3093
    %3740 = vmatprep.subr.bf16.mxu0 %v3098
    %3741 = vmatpush1.bf16.msra.mxu0 %v3097
    %3742 = vmatprep.subr.bf16.mxu0 %v3102
    %3743 = vmatpush1.bf16.msra.mxu0 %v3101
    %3744 = vmatprep.subr.bf16.mxu0 %v3106
    %3745 = vmatpush1.bf16.msra.mxu0 %v3105
    %3746 = vmatprep.subr.bf16.mxu0 %v3110
    %3747 = vmatpush1.bf16.msra.mxu0 %v3109
    %3748 = vmatprep.subr.bf16.mxu0 %v3114
    %3749 = vmatpush1.bf16.msra.mxu0 %v3113
    %3750 = vmatprep.subr.bf16.mxu0 %v3118
    %3751 = vmatpush1.bf16.msra.mxu0 %v3117
    %3752 = vmatprep.subr.bf16.mxu0 %v3122
    %3753 = vmatpush1.bf16.msra.mxu0 %v3121
    %3754 = vmatprep.subr.bf16.mxu0 %v3126
    %3755 = vmatpush1.bf16.msra.mxu0 %v3125
    %3756 = vmatprep.subr.bf16.mxu0 %v3130
    %3757 = vmatpush1.bf16.msra.mxu0 %v3129
    %3758 = vmatprep.subr.bf16.mxu0 %v3134
    %3759 = vmatpush1.bf16.msra.mxu0 %v3133
    %3760 = vmatprep.subr.bf16.mxu0 %v3138
    %3761 = vmatpush1.bf16.msra.mxu0 %v3137
    %3762 = vmatprep.subr.bf16.mxu0 %v3142
    %3763 = vmatpush1.bf16.msra.mxu0 %v3141
    %3764 = vmatprep.mubr.bf16.mxu0 %v1964
    %3765 = vmatmul.mubr.bf16.gmra.mrb[0].mxu0 %v1963
    %v3766 = vpop.f32.mrb[0].mxu0
    %v3767 = vadd.f32 %v3726, %v3766
    %v3768 = vpop.f32.mrb[0].mxu0
    %v3769 = vadd.f32 %v3728, %v3768
    %v3770 = vpop.f32.mrb[0].mxu0
    %v3771 = vpop.f32.mrb[0].mxu0
    %3772 = vdwg.mxu0
    %3773 = vmatprep.subr.bf16.mxu0 %v3146
    %3774 = vmatpush1.bf16.msra.mxu0 %v3145
    %3775 = vmatprep.subr.bf16.mxu0 %v3150
    %3776 = vmatpush1.bf16.msra.mxu0 %v3149
    %3777 = vmatprep.subr.bf16.mxu0 %v3154
    %3778 = vmatpush1.bf16.msra.mxu0 %v3153
    %3779 = vmatprep.subr.bf16.mxu0 %v3158
    %3780 = vmatpush1.bf16.msra.mxu0 %v3157
    %3781 = vmatprep.subr.bf16.mxu0 %v3162
    %3782 = vmatpush1.bf16.msra.mxu0 %v3161
    %3783 = vmatprep.subr.bf16.mxu0 %v3166
    %3784 = vmatpush1.bf16.msra.mxu0 %v3165
    %3785 = vmatprep.subr.bf16.mxu0 %v3170
    %3786 = vmatpush1.bf16.msra.mxu0 %v3169
    %3787 = vmatprep.subr.bf16.mxu0 %v3174
    %3788 = vmatpush1.bf16.msra.mxu0 %v3173
    %3789 = vmatprep.subr.bf16.mxu0 %v3178
    %3790 = vmatpush1.bf16.msra.mxu0 %v3177
    %3791 = vmatprep.subr.bf16.mxu0 %v3182
    %3792 = vmatpush1.bf16.msra.mxu0 %v3181
    %3793 = vmatprep.subr.bf16.mxu0 %v3186
    %3794 = vmatpush1.bf16.msra.mxu0 %v3185
    %3795 = vmatprep.subr.bf16.mxu0 %v3190
    %3796 = vmatpush1.bf16.msra.mxu0 %v3189
    %3797 = vmatprep.subr.bf16.mxu0 %v3194
    %3798 = vmatpush1.bf16.msra.mxu0 %v3193
    %3799 = vmatprep.subr.bf16.mxu0 %v3198
    %3800 = vmatpush1.bf16.msra.mxu0 %v3197
    %3801 = vmatprep.subr.bf16.mxu0 %v3202
    %3802 = vmatpush1.bf16.msra.mxu0 %v3201
    %3803 = vmatprep.subr.bf16.mxu0 %v3206
    %3804 = vmatpush1.bf16.msra.mxu0 %v3205
    %3805 = vmatprep.mubr.bf16.mxu0 %v1966
    %3806 = vmatmul.mubr.bf16.gmra.mrb[0].mxu0 %v1965
    %v3807 = vpop.f32.mrb[0].mxu0
    %v3808 = vadd.f32 %v3767, %v3807
    %v3809 = vpop.f32.mrb[0].mxu0
    %v3810 = vadd.f32 %v3769, %v3809
    %v3811 = vpop.f32.mrb[0].mxu0
    %v3812 = vpop.f32.mrb[0].mxu0
    %3813 = vdwg.mxu0
    %3814 = vmatprep.subr.bf16.mxu0 %v3210
    %3815 = vmatpush1.bf16.msra.mxu0 %v3209
    %3816 = vmatprep.subr.bf16.mxu0 %v3214
    %3817 = vmatpush1.bf16.msra.mxu0 %v3213
    %3818 = vmatprep.subr.bf16.mxu0 %v3218
    %3819 = vmatpush1.bf16.msra.mxu0 %v3217
    %3820 = vmatprep.subr.bf16.mxu0 %v3222
    %3821 = vmatpush1.bf16.msra.mxu0 %v3221
    %3822 = vmatprep.subr.bf16.mxu0 %v3226
    %3823 = vmatpush1.bf16.msra.mxu0 %v3225
    %3824 = vmatprep.subr.bf16.mxu0 %v3230
    %3825 = vmatpush1.bf16.msra.mxu0 %v3229
    %3826 = vmatprep.subr.bf16.mxu0 %v3234
    %3827 = vmatpush1.bf16.msra.mxu0 %v3233
    %3828 = vmatprep.subr.bf16.mxu0 %v3238
    %3829 = vmatpush1.bf16.msra.mxu0 %v3237
    %3830 = vmatprep.subr.bf16.mxu0 %v3242
    %3831 = vmatpush1.bf16.msra.mxu0 %v3241
    %3832 = vmatprep.subr.bf16.mxu0 %v3246
    %3833 = vmatpush1.bf16.msra.mxu0 %v3245
    %3834 = vmatprep.subr.bf16.mxu0 %v3250
    %3835 = vmatpush1.bf16.msra.mxu0 %v3249
    %3836 = vmatprep.subr.bf16.mxu0 %v3254
    %3837 = vmatpush1.bf16.msra.mxu0 %v3253
    %3838 = vmatprep.subr.bf16.mxu0 %v3258
    %3839 = vmatpush1.bf16.msra.mxu0 %v3257
    %3840 = vmatprep.subr.bf16.mxu0 %v3262
    %3841 = vmatpush1.bf16.msra.mxu0 %v3261
    %3842 = vmatprep.subr.bf16.mxu0 %v3266
    %3843 = vmatpush1.bf16.msra.mxu0 %v3265
    %3844 = vmatprep.subr.bf16.mxu0 %v3270
    %3845 = vmatpush1.bf16.msra.mxu0 %v3269
    %3846 = vmatprep.mubr.bf16.mxu0 %v1968
    %3847 = vmatmul.mubr.bf16.gmra.mrb[0].mxu0 %v1967
    %v3848 = vpop.f32.mrb[0].mxu0
    %v3849 = vadd.f32 %v3808, %v3848
    %v3850 = vpop.f32.mrb[0].mxu0
    %v3851 = vadd.f32 %v3810, %v3850
    %v3852 = vpop.f32.mrb[0].mxu0
    %v3853 = vpop.f32.mrb[0].mxu0
    %3854 = vdwg.mxu0
    %v3855 = vmax.f32 %v3685, 0.0
    %v3856 = vmax.f32 %v3687, 0.0
    %v3857 = vmax.f32 %v3849, 0.0
    %v3858 = vmax.f32 %v3851, 0.0
    %v3859 = vpack.c.bf16 %v3855, %v3855
    %v3860 = vpack.c.bf16 %v3856, %v3856
    %v3861 = vpack.c.bf16 %v3857, %v3857
    %v3862 = vpack.c.bf16 %v3858, %v3858
    %v3863 = vld [vmem:[#allocation14] sm:$0xff]
    %v3864 = vld [vmem:[#allocation14 + $0x8] sm:$0xff]
    %v3865 = vld [vmem:[#allocation14 + $0x10] sm:$0xff]
    %v3866 = vld [vmem:[#allocation14 + $0x18] sm:$0xff]
    %v3867 = vld [vmem:[#allocation14 + $0x20] sm:$0xff]
    %v3868 = vld [vmem:[#allocation14 + $0x28] sm:$0xff]
    %v3869 = vld [vmem:[#allocation14 + $0x30] sm:$0xff]
    %v3870 = vld [vmem:[#allocation14 + $0x38] sm:$0xff]
    %v3871 = vld [vmem:[#allocation14 + $0x40] sm:$0xff]
    %v3872 = vld [vmem:[#allocation14 + $0x48] sm:$0xff]
    %v3873 = vld [vmem:[#allocation14 + $0x50] sm:$0xff]
    %v3874 = vld [vmem:[#allocation14 + $0x58] sm:$0xff]
    %v3875 = vld [vmem:[#allocation14 + $0x60] sm:$0xff]
    %v3876 = vld [vmem:[#allocation14 + $0x68] sm:$0xff]
    %v3877 = vld [vmem:[#allocation14 + $0x70] sm:$0xff]
    %v3878 = vld [vmem:[#allocation14 + $0x78] sm:$0xff]
    %v3879 = vld [vmem:[#allocation14 + $0x80] sm:$0xff]
    %v3880 = vld [vmem:[#allocation14 + $0x88] sm:$0xff]
    %v3881 = vld [vmem:[#allocation14 + $0x90] sm:$0xff]
    %v3882 = vld [vmem:[#allocation14 + $0x98] sm:$0xff]
    %v3883 = vld [vmem:[#allocation14 + $0xa0] sm:$0xff]
    %v3884 = vld [vmem:[#allocation14 + $0xa8] sm:$0xff]
    %v3885 = vld [vmem:[#allocation14 + $0xb0] sm:$0xff]
    %v3886 = vld [vmem:[#allocation14 + $0xb8] sm:$0xff]
    %v3887 = vld [vmem:[#allocation14 + $0xc0] sm:$0xff]
    %v3888 = vld [vmem:[#allocation14 + $0xc8] sm:$0xff]
    %v3889 = vld [vmem:[#allocation14 + $0xd0] sm:$0xff]
    %v3890 = vld [vmem:[#allocation14 + $0xd8] sm:$0xff]
    %v3891 = vld [vmem:[#allocation14 + $0xe0] sm:$0xff]
    %v3892 = vld [vmem:[#allocation14 + $0xe8] sm:$0xff]
    %v3893 = vld [vmem:[#allocation14 + $0xf0] sm:$0xff]
    %v3894 = vld [vmem:[#allocation14 + $0xf8] sm:$0xff]
    %v3895 = vld [vmem:[#allocation14 + $0x100] sm:$0xff]
    %v3896 = vld [vmem:[#allocation14 + $0x108] sm:$0xff]
    %v3897 = vld [vmem:[#allocation14 + $0x110] sm:$0xff]
    %v3898 = vld [vmem:[#allocation14 + $0x118] sm:$0xff]
    %v3899 = vld [vmem:[#allocation14 + $0x120] sm:$0xff]
    %v3900 = vld [vmem:[#allocation14 + $0x128] sm:$0xff]
    %v3901 = vld [vmem:[#allocation14 + $0x130] sm:$0xff]
    %v3902 = vld [vmem:[#allocation14 + $0x138] sm:$0xff]
    %v3903 = vld [vmem:[#allocation14 + $0x140] sm:$0xff]
    %v3904 = vld [vmem:[#allocation14 + $0x148] sm:$0xff]
    %v3905 = vld [vmem:[#allocation14 + $0x150] sm:$0xff]
    %v3906 = vld [vmem:[#allocation14 + $0x158] sm:$0xff]
    %v3907 = vld [vmem:[#allocation14 + $0x160] sm:$0xff]
    %v3908 = vld [vmem:[#allocation14 + $0x168] sm:$0xff]
    %v3909 = vld [vmem:[#allocation14 + $0x170] sm:$0xff]
    %v3910 = vld [vmem:[#allocation14 + $0x178] sm:$0xff]
    %v3911 = vld [vmem:[#allocation14 + $0x180] sm:$0xff]
    %v3912 = vld [vmem:[#allocation14 + $0x188] sm:$0xff]
    %v3913 = vld [vmem:[#allocation14 + $0x190] sm:$0xff]
    %v3914 = vld [vmem:[#allocation14 + $0x198] sm:$0xff]
    %v3915 = vld [vmem:[#allocation14 + $0x1a0] sm:$0xff]
    %v3916 = vld [vmem:[#allocation14 + $0x1a8] sm:$0xff]
    %v3917 = vld [vmem:[#allocation14 + $0x1b0] sm:$0xff]
    %v3918 = vld [vmem:[#allocation14 + $0x1b8] sm:$0xff]
    %v3919 = vld [vmem:[#allocation14 + $0x1c0] sm:$0xff]
    %v3920 = vld [vmem:[#allocation14 + $0x1c8] sm:$0xff]
    %v3921 = vld [vmem:[#allocation14 + $0x1d0] sm:$0xff]
    %v3922 = vld [vmem:[#allocation14 + $0x1d8] sm:$0xff]
    %v3923 = vld [vmem:[#allocation14 + $0x1e0] sm:$0xff]
    %v3924 = vld [vmem:[#allocation14 + $0x1e8] sm:$0xff]
    %v3925 = vld [vmem:[#allocation14 + $0x1f0] sm:$0xff]
    %v3926 = vld [vmem:[#allocation14 + $0x1f8] sm:$0xff]
    %v3927 = vld [vmem:[#allocation16] sm:$0x3]
    %v3929 = vlaneseq
    %v3930 = vshrl.u32 %v3929, 7
    %v3931 = vsub.s32 0, %v3930
    %v3932 = vrot.slane %v3927, %v3931
    %v3933 = vlaneseq
    %v3934 = vshrl.u32 %v3933, 7
    %v3935 = vsub.s32 1, %v3934
    %v3936 = vrot.slane %v3927, %v3935
    %v4003 = vunpack.c.l.b16 %v3863
    %v4004 = vunpack.c.h.b16 %v3863
    %v4005 = vunpack.c.l.b16 %v3864
    %v4006 = vunpack.c.h.b16 %v3864
    %v4007 = vunpack.c.l.b16 %v3865
    %v4008 = vunpack.c.h.b16 %v3865
    %v4009 = vunpack.c.l.b16 %v3866
    %v4010 = vunpack.c.h.b16 %v3866
    %v4011 = vunpack.c.l.b16 %v3867
    %v4012 = vunpack.c.h.b16 %v3867
    %v4013 = vunpack.c.l.b16 %v3868
    %v4014 = vunpack.c.h.b16 %v3868
    %v4015 = vunpack.c.l.b16 %v3869
    %v4016 = vunpack.c.h.b16 %v3869
    %v4017 = vunpack.c.l.b16 %v3870
    %v4018 = vunpack.c.h.b16 %v3870
    %v4019 = vunpack.c.l.b16 %v3871
    %v4020 = vunpack.c.h.b16 %v3871
    %v4021 = vunpack.c.l.b16 %v3872
    %v4022 = vunpack.c.h.b16 %v3872
    %v4023 = vunpack.c.l.b16 %v3873
    %v4024 = vunpack.c.h.b16 %v3873
    %v4025 = vunpack.c.l.b16 %v3874
    %v4026 = vunpack.c.h.b16 %v3874
    %v4027 = vunpack.c.l.b16 %v3875
    %v4028 = vunpack.c.h.b16 %v3875
    %v4029 = vunpack.c.l.b16 %v3876
    %v4030 = vunpack.c.h.b16 %v3876
    %v4031 = vunpack.c.l.b16 %v3877
    %v4032 = vunpack.c.h.b16 %v3877
    %v4033 = vunpack.c.l.b16 %v3878
    %v4034 = vunpack.c.h.b16 %v3878
    %v4035 = vunpack.c.l.b16 %v3879
    %v4036 = vunpack.c.h.b16 %v3879
    %v4037 = vunpack.c.l.b16 %v3880
    %v4038 = vunpack.c.h.b16 %v3880
    %v4039 = vunpack.c.l.b16 %v3881
    %v4040 = vunpack.c.h.b16 %v3881
    %v4041 = vunpack.c.l.b16 %v3882
    %v4042 = vunpack.c.h.b16 %v3882
    %v4043 = vunpack.c.l.b16 %v3883
    %v4044 = vunpack.c.h.b16 %v3883
    %v4045 = vunpack.c.l.b16 %v3884
    %v4046 = vunpack.c.h.b16 %v3884
    %v4047 = vunpack.c.l.b16 %v3885
    %v4048 = vunpack.c.h.b16 %v3885
    %v4049 = vunpack.c.l.b16 %v3886
    %v4050 = vunpack.c.h.b16 %v3886
    %v4051 = vunpack.c.l.b16 %v3887
    %v4052 = vunpack.c.h.b16 %v3887
    %v4053 = vunpack.c.l.b16 %v3888
    %v4054 = vunpack.c.h.b16 %v3888
    %v4055 = vunpack.c.l.b16 %v3889
    %v4056 = vunpack.c.h.b16 %v3889
    %v4057 = vunpack.c.l.b16 %v3890
    %v4058 = vunpack.c.h.b16 %v3890
    %v4059 = vunpack.c.l.b16 %v3891
    %v4060 = vunpack.c.h.b16 %v3891
    %v4061 = vunpack.c.l.b16 %v3892
    %v4062 = vunpack.c.h.b16 %v3892
    %v4063 = vunpack.c.l.b16 %v3893
    %v4064 = vunpack.c.h.b16 %v3893
    %v4065 = vunpack.c.l.b16 %v3894
    %v4066 = vunpack.c.h.b16 %v3894
    %v4067 = vunpack.c.l.b16 %v3895
    %v4068 = vunpack.c.h.b16 %v3895
    %v4069 = vunpack.c.l.b16 %v3896
    %v4070 = vunpack.c.h.b16 %v3896
    %v4071 = vunpack.c.l.b16 %v3897
    %v4072 = vunpack.c.h.b16 %v3897
    %v4073 = vunpack.c.l.b16 %v3898
    %v4074 = vunpack.c.h.b16 %v3898
    %v4075 = vunpack.c.l.b16 %v3899
    %v4076 = vunpack.c.h.b16 %v3899
    %v4077 = vunpack.c.l.b16 %v3900
    %v4078 = vunpack.c.h.b16 %v3900
    %v4079 = vunpack.c.l.b16 %v3901
    %v4080 = vunpack.c.h.b16 %v3901
    %v4081 = vunpack.c.l.b16 %v3902
    %v4082 = vunpack.c.h.b16 %v3902
    %v4083 = vunpack.c.l.b16 %v3903
    %v4084 = vunpack.c.h.b16 %v3903
    %v4085 = vunpack.c.l.b16 %v3904
    %v4086 = vunpack.c.h.b16 %v3904
    %v4087 = vunpack.c.l.b16 %v3905
    %v4088 = vunpack.c.h.b16 %v3905
    %v4089 = vunpack.c.l.b16 %v3906
    %v4090 = vunpack.c.h.b16 %v3906
    %v4091 = vunpack.c.l.b16 %v3907
    %v4092 = vunpack.c.h.b16 %v3907
    %v4093 = vunpack.c.l.b16 %v3908
    %v4094 = vunpack.c.h.b16 %v3908
    %v4095 = vunpack.c.l.b16 %v3909
    %v4096 = vunpack.c.h.b16 %v3909
    %v4097 = vunpack.c.l.b16 %v3910
    %v4098 = vunpack.c.h.b16 %v3910
    %v4099 = vunpack.c.l.b16 %v3911
    %v4100 = vunpack.c.h.b16 %v3911
    %v4101 = vunpack.c.l.b16 %v3912
    %v4102 = vunpack.c.h.b16 %v3912
    %v4103 = vunpack.c.l.b16 %v3913
    %v4104 = vunpack.c.h.b16 %v3913
    %v4105 = vunpack.c.l.b16 %v3914
    %v4106 = vunpack.c.h.b16 %v3914
    %v4107 = vunpack.c.l.b16 %v3915
    %v4108 = vunpack.c.h.b16 %v3915
    %v4109 = vunpack.c.l.b16 %v3916
    %v4110 = vunpack.c.h.b16 %v3916
    %v4111 = vunpack.c.l.b16 %v3917
    %v4112 = vunpack.c.h.b16 %v3917
    %v4113 = vunpack.c.l.b16 %v3918
    %v4114 = vunpack.c.h.b16 %v3918
    %v4115 = vunpack.c.l.b16 %v3919
    %v4116 = vunpack.c.h.b16 %v3919
    %v4117 = vunpack.c.l.b16 %v3920
    %v4118 = vunpack.c.h.b16 %v3920
    %v4119 = vunpack.c.l.b16 %v3921
    %v4120 = vunpack.c.h.b16 %v3921
    %v4121 = vunpack.c.l.b16 %v3922
    %v4122 = vunpack.c.h.b16 %v3922
    %v4123 = vunpack.c.l.b16 %v3923
    %v4124 = vunpack.c.h.b16 %v3923
    %v4125 = vunpack.c.l.b16 %v3924
    %v4126 = vunpack.c.h.b16 %v3924
    %v4127 = vunpack.c.l.b16 %v3925
    %v4128 = vunpack.c.h.b16 %v3925
    %v4129 = vunpack.c.l.b16 %v3926
    %v4130 = vunpack.c.h.b16 %v3926
    %v4131 = vpack.c.b16 %v4005, %v4003
    %v4132 = vpack.c.b16 %v4006, %v4004
    %v4133 = vpack.c.b16 %v4009, %v4007
    %v4134 = vpack.c.b16 %v4010, %v4008
    %v4135 = vpack.c.b16 %v4013, %v4011
    %v4136 = vpack.c.b16 %v4014, %v4012
    %v4137 = vpack.c.b16 %v4017, %v4015
    %v4138 = vpack.c.b16 %v4018, %v4016
    %v4139 = vpack.c.b16 %v4021, %v4019
    %v4140 = vpack.c.b16 %v4022, %v4020
    %v4141 = vpack.c.b16 %v4025, %v4023
    %v4142 = vpack.c.b16 %v4026, %v4024
    %v4143 = vpack.c.b16 %v4029, %v4027
    %v4144 = vpack.c.b16 %v4030, %v4028
    %v4145 = vpack.c.b16 %v4033, %v4031
    %v4146 = vpack.c.b16 %v4034, %v4032
    %v4147 = vpack.c.b16 %v4037, %v4035
    %v4148 = vpack.c.b16 %v4038, %v4036
    %v4149 = vpack.c.b16 %v4041, %v4039
    %v4150 = vpack.c.b16 %v4042, %v4040
    %v4151 = vpack.c.b16 %v4045, %v4043
    %v4152 = vpack.c.b16 %v4046, %v4044
    %v4153 = vpack.c.b16 %v4049, %v4047
    %v4154 = vpack.c.b16 %v4050, %v4048
    %v4155 = vpack.c.b16 %v4053, %v4051
    %v4156 = vpack.c.b16 %v4054, %v4052
    %v4157 = vpack.c.b16 %v4057, %v4055
    %v4158 = vpack.c.b16 %v4058, %v4056
    %v4159 = vpack.c.b16 %v4061, %v4059
    %v4160 = vpack.c.b16 %v4062, %v4060
    %v4161 = vpack.c.b16 %v4065, %v4063
    %v4162 = vpack.c.b16 %v4066, %v4064
    %v4163 = vpack.c.b16 %v4069, %v4067
    %v4164 = vpack.c.b16 %v4070, %v4068
    %v4165 = vpack.c.b16 %v4073, %v4071
    %v4166 = vpack.c.b16 %v4074, %v4072
    %v4167 = vpack.c.b16 %v4077, %v4075
    %v4168 = vpack.c.b16 %v4078, %v4076
    %v4169 = vpack.c.b16 %v4081, %v4079
    %v4170 = vpack.c.b16 %v4082, %v4080
    %v4171 = vpack.c.b16 %v4085, %v4083
    %v4172 = vpack.c.b16 %v4086, %v4084
    %v4173 = vpack.c.b16 %v4089, %v4087
    %v4174 = vpack.c.b16 %v4090, %v4088
    %v4175 = vpack.c.b16 %v4093, %v4091
    %v4176 = vpack.c.b16 %v4094, %v4092
    %v4177 = vpack.c.b16 %v4097, %v4095
    %v4178 = vpack.c.b16 %v4098, %v4096
    %v4179 = vpack.c.b16 %v4101, %v4099
    %v4180 = vpack.c.b16 %v4102, %v4100
    %v4181 = vpack.c.b16 %v4105, %v4103
    %v4182 = vpack.c.b16 %v4106, %v4104
    %v4183 = vpack.c.b16 %v4109, %v4107
    %v4184 = vpack.c.b16 %v4110, %v4108
    %v4185 = vpack.c.b16 %v4113, %v4111
    %v4186 = vpack.c.b16 %v4114, %v4112
    %v4187 = vpack.c.b16 %v4117, %v4115
    %v4188 = vpack.c.b16 %v4118, %v4116
    %v4189 = vpack.c.b16 %v4121, %v4119
    %v4190 = vpack.c.b16 %v4122, %v4120
    %v4191 = vpack.c.b16 %v4125, %v4123
    %v4192 = vpack.c.b16 %v4126, %v4124
    %v4193 = vpack.c.b16 %v4129, %v4127
    %v4194 = vpack.c.b16 %v4130, %v4128
    %4259 = vmatprep.subr.bf16.mxu0 %v4132
    %4260 = vmatpush1.bf16.msra.mxu0 %v4131
    %4261 = vmatprep.subr.bf16.mxu0 %v4134
    %4262 = vmatpush1.bf16.msra.mxu0 %v4133
    %4263 = vmatprep.subr.bf16.mxu0 %v4136
    %4264 = vmatpush1.bf16.msra.mxu0 %v4135
    %4265 = vmatprep.subr.bf16.mxu0 %v4138
    %4266 = vmatpush1.bf16.msra.mxu0 %v4137
    %4267 = vmatprep.subr.bf16.mxu0 %v4140
    %4268 = vmatpush1.bf16.msra.mxu0 %v4139
    %4269 = vmatprep.subr.bf16.mxu0 %v4142
    %4270 = vmatpush1.bf16.msra.mxu0 %v4141
    %4271 = vmatprep.subr.bf16.mxu0 %v4144
    %4272 = vmatpush1.bf16.msra.mxu0 %v4143
    %4273 = vmatprep.subr.bf16.mxu0 %v4146
    %4274 = vmatpush1.bf16.msra.mxu0 %v4145
    %4275 = vmatprep.subr.bf16.mxu0 %v4148
    %4276 = vmatpush1.bf16.msra.mxu0 %v4147
    %4277 = vmatprep.subr.bf16.mxu0 %v4150
    %4278 = vmatpush1.bf16.msra.mxu0 %v4149
    %4279 = vmatprep.subr.bf16.mxu0 %v4152
    %4280 = vmatpush1.bf16.msra.mxu0 %v4151
    %4281 = vmatprep.subr.bf16.mxu0 %v4154
    %4282 = vmatpush1.bf16.msra.mxu0 %v4153
    %4283 = vmatprep.subr.bf16.mxu0 %v4156
    %4284 = vmatpush1.bf16.msra.mxu0 %v4155
    %4285 = vmatprep.subr.bf16.mxu0 %v4158
    %4286 = vmatpush1.bf16.msra.mxu0 %v4157
    %4287 = vmatprep.subr.bf16.mxu0 %v4160
    %4288 = vmatpush1.bf16.msra.mxu0 %v4159
    %4289 = vmatprep.subr.bf16.mxu0 %v4162
    %4290 = vmatpush1.bf16.msra.mxu0 %v4161
    %4291 = vmatprep.mubr.bf16.mxu0 %v3860
    %4292 = vmatmul.mubr.bf16.gmra.mrb[0].mxu0 %v3859
    %v4293 = vpop.f32.mrb[0].mxu0
    %v4294 = vadd.f32 %v3932, %v4293
    %v4295 = vpop.f32.mrb[0].mxu0
    %v4296 = vadd.f32 %v3936, %v4295
    %v4297 = vpop.f32.mrb[0].mxu0
    %v4298 = vpop.f32.mrb[0].mxu0
    %4299 = vdwg.mxu0
    %4300 = vmatprep.subr.bf16.mxu0 %v4164
    %4301 = vmatpush1.bf16.msra.mxu0 %v4163
    %4302 = vmatprep.subr.bf16.mxu0 %v4166
    %4303 = vmatpush1.bf16.msra.mxu0 %v4165
    %4304 = vmatprep.subr.bf16.mxu0 %v4168
    %4305 = vmatpush1.bf16.msra.mxu0 %v4167
    %4306 = vmatprep.subr.bf16.mxu0 %v4170
    %4307 = vmatpush1.bf16.msra.mxu0 %v4169
    %4308 = vmatprep.subr.bf16.mxu0 %v4172
    %4309 = vmatpush1.bf16.msra.mxu0 %v4171
    %4310 = vmatprep.subr.bf16.mxu0 %v4174
    %4311 = vmatpush1.bf16.msra.mxu0 %v4173
    %4312 = vmatprep.subr.bf16.mxu0 %v4176
    %4313 = vmatpush1.bf16.msra.mxu0 %v4175
    %4314 = vmatprep.subr.bf16.mxu0 %v4178
    %4315 = vmatpush1.bf16.msra.mxu0 %v4177
    %4316 = vmatprep.subr.bf16.mxu0 %v4180
    %4317 = vmatpush1.bf16.msra.mxu0 %v4179
    %4318 = vmatprep.subr.bf16.mxu0 %v4182
    %4319 = vmatpush1.bf16.msra.mxu0 %v4181
    %4320 = vmatprep.subr.bf16.mxu0 %v4184
    %4321 = vmatpush1.bf16.msra.mxu0 %v4183
    %4322 = vmatprep.subr.bf16.mxu0 %v4186
    %4323 = vmatpush1.bf16.msra.mxu0 %v4185
    %4324 = vmatprep.subr.bf16.mxu0 %v4188
    %4325 = vmatpush1.bf16.msra.mxu0 %v4187
    %4326 = vmatprep.subr.bf16.mxu0 %v4190
    %4327 = vmatpush1.bf16.msra.mxu0 %v4189
    %4328 = vmatprep.subr.bf16.mxu0 %v4192
    %4329 = vmatpush1.bf16.msra.mxu0 %v4191
    %4330 = vmatprep.subr.bf16.mxu0 %v4194
    %4331 = vmatpush1.bf16.msra.mxu0 %v4193
    %4332 = vmatprep.mubr.bf16.mxu0 %v3862
    %4333 = vmatmul.mubr.bf16.gmra.mrb[0].mxu0 %v3861
    %v4334 = vpop.f32.mrb[0].mxu0
    %v4335 = vadd.f32 %v4294, %v4334
    %v4336 = vpop.f32.mrb[0].mxu0
    %v4337 = vadd.f32 %v4296, %v4336
    %v4338 = vpop.f32.mrb[0].mxu0
    %v4339 = vpop.f32.mrb[0].mxu0
    %4340 = vdwg.mxu0
    %v4341 = vmax.f32 %v4335, 0.0
    %v4342 = vmax.f32 %v4337, 0.0
    %v4343 = vpack.c.bf16 %v4341, %v4341
    %v4344 = vpack.c.bf16 %v4342, %v4342
    %v4345 = vld [vmem:[%s23] sm:$0xf]
    %v4346 = vld [vmem:[%s23 + $0x4] sm:$0xf]
    %v4347 = vld [vmem:[%s23 + $0x8] sm:$0xf]
    %v4348 = vld [vmem:[%s23 + $0xc] sm:$0xf]
    %v4349 = vld [vmem:[%s23 + $0x10] sm:$0xf]
    %v4350 = vld [vmem:[%s23 + $0x14] sm:$0xf]
    %v4351 = vld [vmem:[%s23 + $0x18] sm:$0xf]
    %v4352 = vld [vmem:[%s23 + $0x1c] sm:$0xf]
    %v4353 = vld [vmem:[%s23 + $0x20] sm:$0xf]
    %v4354 = vld [vmem:[%s23 + $0x24] sm:$0xf]
    %v4355 = vld [vmem:[%s23 + $0x28] sm:$0xf]
    %v4356 = vld [vmem:[%s23 + $0x2c] sm:$0xf]
    %v4357 = vld [vmem:[%s23 + $0x30] sm:$0xf]
    %v4358 = vld [vmem:[%s23 + $0x34] sm:$0xf]
    %v4359 = vld [vmem:[%s23 + $0x38] sm:$0xf]
    %v4360 = vld [vmem:[%s23 + $0x3c] sm:$0xf]
    %v4361 = vld [vmem:[%s23 + $0x40] sm:$0xf]
    %v4362 = vld [vmem:[%s23 + $0x44] sm:$0xf]
    %v4363 = vld [vmem:[%s23 + $0x48] sm:$0xf]
    %v4364 = vld [vmem:[%s23 + $0x4c] sm:$0xf]
    %v4365 = vld [vmem:[%s23 + $0x50] sm:$0xf]
    %v4366 = vld [vmem:[%s23 + $0x54] sm:$0xf]
    %v4367 = vld [vmem:[%s23 + $0x58] sm:$0xf]
    %v4368 = vld [vmem:[%s23 + $0x5c] sm:$0xf]
    %v4369 = vld [vmem:[%s23 + $0x60] sm:$0xf]
    %v4370 = vld [vmem:[%s23 + $0x64] sm:$0xf]
    %v4371 = vld [vmem:[%s23 + $0x68] sm:$0xf]
    %v4372 = vld [vmem:[%s23 + $0x6c] sm:$0xf]
    %v4373 = vld [vmem:[%s23 + $0x70] sm:$0xf]
    %v4374 = vld [vmem:[%s23 + $0x74] sm:$0xf]
    %v4375 = vld [vmem:[%s23 + $0x78] sm:$0xf]
    %v4376 = vld [vmem:[%s23 + $0x7c] sm:$0xf]
    %v4377 = vld [vmem:[#allocation17] sm:$0x1]
    %v4379 = vlaneseq
    %v4380 = vshrl.u32 %v4379, 7
    %v4381 = vsub.s32 0, %v4380
    %v4382 = vrot.slane %v4377, %v4381
    %v4416 = vunpack.c.l.b16 %v4345
    %v4417 = vunpack.c.l.b16 %v4346
    %v4418 = vunpack.c.l.b16 %v4347
    %v4419 = vunpack.c.l.b16 %v4348
    %v4420 = vunpack.c.l.b16 %v4349
    %v4421 = vunpack.c.l.b16 %v4350
    %v4422 = vunpack.c.l.b16 %v4351
    %v4423 = vunpack.c.l.b16 %v4352
    %v4424 = vunpack.c.l.b16 %v4353
    %v4425 = vunpack.c.l.b16 %v4354
    %v4426 = vunpack.c.l.b16 %v4355
    %v4427 = vunpack.c.l.b16 %v4356
    %v4428 = vunpack.c.l.b16 %v4357
    %v4429 = vunpack.c.l.b16 %v4358
    %v4430 = vunpack.c.l.b16 %v4359
    %v4431 = vunpack.c.l.b16 %v4360
    %v4432 = vunpack.c.l.b16 %v4361
    %v4433 = vunpack.c.l.b16 %v4362
    %v4434 = vunpack.c.l.b16 %v4363
    %v4435 = vunpack.c.l.b16 %v4364
    %v4436 = vunpack.c.l.b16 %v4365
    %v4437 = vunpack.c.l.b16 %v4366
    %v4438 = vunpack.c.l.b16 %v4367
    %v4439 = vunpack.c.l.b16 %v4368
    %v4440 = vunpack.c.l.b16 %v4369
    %v4441 = vunpack.c.l.b16 %v4370
    %v4442 = vunpack.c.l.b16 %v4371
    %v4443 = vunpack.c.l.b16 %v4372
    %v4444 = vunpack.c.l.b16 %v4373
    %v4445 = vunpack.c.l.b16 %v4374
    %v4446 = vunpack.c.l.b16 %v4375
    %v4447 = vunpack.c.l.b16 %v4376
    %v4448 = vpack.c.b16 %v4417, %v4416
    %v4449 = vpack.c.b16 %v4419, %v4418
    %v4450 = vpack.c.b16 %v4421, %v4420
    %v4451 = vpack.c.b16 %v4423, %v4422
    %v4452 = vpack.c.b16 %v4425, %v4424
    %v4453 = vpack.c.b16 %v4427, %v4426
    %v4454 = vpack.c.b16 %v4429, %v4428
    %v4455 = vpack.c.b16 %v4431, %v4430
    %v4456 = vpack.c.b16 %v4433, %v4432
    %v4457 = vpack.c.b16 %v4435, %v4434
    %v4458 = vpack.c.b16 %v4437, %v4436
    %v4459 = vpack.c.b16 %v4439, %v4438
    %v4460 = vpack.c.b16 %v4441, %v4440
    %v4461 = vpack.c.b16 %v4443, %v4442
    %v4462 = vpack.c.b16 %v4445, %v4444
    %v4463 = vpack.c.b16 %v4447, %v4446
    %4480 = vmatprep.subr.bf16.mxu0 0
    %4481 = vmatpush1.bf16.msra.mxu0 %v4448
    %4482 = vmatprep.subr.bf16.mxu0 0
    %4483 = vmatpush1.bf16.msra.mxu0 %v4449
    %4484 = vmatprep.subr.bf16.mxu0 0
    %4485 = vmatpush1.bf16.msra.mxu0 %v4450
    %4486 = vmatprep.subr.bf16.mxu0 0
    %4487 = vmatpush1.bf16.msra.mxu0 %v4451
    %4488 = vmatprep.subr.bf16.mxu0 0
    %4489 = vmatpush1.bf16.msra.mxu0 %v4452
    %4490 = vmatprep.subr.bf16.mxu0 0
    %4491 = vmatpush1.bf16.msra.mxu0 %v4453
    %4492 = vmatprep.subr.bf16.mxu0 0
    %4493 = vmatpush1.bf16.msra.mxu0 %v4454
    %4494 = vmatprep.subr.bf16.mxu0 0
    %4495 = vmatpush1.bf16.msra.mxu0 %v4455
    %4496 = vmatprep.subr.bf16.mxu0 0
    %4497 = vmatpush1.bf16.msra.mxu0 %v4456
    %4498 = vmatprep.subr.bf16.mxu0 0
    %4499 = vmatpush1.bf16.msra.mxu0 %v4457
    %4500 = vmatprep.subr.bf16.mxu0 0
    %4501 = vmatpush1.bf16.msra.mxu0 %v4458
    %4502 = vmatprep.subr.bf16.mxu0 0
    %4503 = vmatpush1.bf16.msra.mxu0 %v4459
    %4504 = vmatprep.subr.bf16.mxu0 0
    %4505 = vmatpush1.bf16.msra.mxu0 %v4460
    %4506 = vmatprep.subr.bf16.mxu0 0
    %4507 = vmatpush1.bf16.msra.mxu0 %v4461
    %4508 = vmatprep.subr.bf16.mxu0 0
    %4509 = vmatpush1.bf16.msra.mxu0 %v4462
    %4510 = vmatprep.subr.bf16.mxu0 0
    %4511 = vmatpush1.bf16.msra.mxu0 %v4463
    %4512 = vmatprep.mubr.bf16.mxu0 %v4344
    %4513 = vmatmul.mubr.bf16.gmra.mrb[0].mxu0 %v4343
    %v4514 = vpop.f32.mrb[0].mxu0
    %v4515 = vadd.f32 %v4382, %v4514
    %v4516 = vpop.f32.mrb[0].mxu0
    %v4517 = vpop.f32.mrb[0].mxu0
    %v4518 = vpop.f32.mrb[0].mxu0
    %4519 = vdwg.mxu0
    %v4520 = vlaneseq
    %v4521 = vshrl.u32 %v4520, 7
    %v4522 = vsub.s32 0, %v4521
    %v4523 = vrot.slane %v4515, %v4522
    %v4524 = vmul.f32 %v369, %v4523
    %v4525 = vmul.f32 %v370, %v4523
    %v4526 = vmul.f32 %v371, %v4523
    %v4527 = vmul.f32 %v372, %v4523
    %v4528 = vmul.f32 %v373, %v4523
    %v4529 = vmul.f32 %v374, %v4523
    %v4530 = vmul.f32 %v375, %v4523
    %v4531 = vmul.f32 %v376, %v4523
    %4540 = vrot.lane.b32.xlu0 %v4524, 127
    %v4541 = vpop.permute.xlu0 %4540
    %4542 = vrot.lane.b32.xlu0 %v4525, 127
    %v4543 = vpop.permute.xlu0 %4542
    %4544 = vrot.lane.b32.xlu0 %v4526, 127
    %v4545 = vpop.permute.xlu0 %4544
    %4546 = vrot.lane.b32.xlu0 %v4527, 127
    %v4547 = vpop.permute.xlu0 %4546
    %4548 = vrot.lane.b32.xlu0 %v4528, 127
    %v4549 = vpop.permute.xlu0 %4548
    %4550 = vrot.lane.b32.xlu0 %v4529, 127
    %v4551 = vpop.permute.xlu0 %4550
    %4552 = vrot.lane.b32.xlu0 %v4530, 127
    %v4553 = vpop.permute.xlu0 %4552
    %4554 = vrot.lane.b32.xlu0 %v4531, 127
    %v4555 = vpop.permute.xlu0 %4554
    %v4564 = vadd.f32 %v4524, %v4541
    %v4565 = vadd.f32 %v4525, %v4543
    %v4566 = vadd.f32 %v4526, %v4545
    %v4567 = vadd.f32 %v4527, %v4547
    %v4568 = vadd.f32 %v4528, %v4549
    %v4569 = vadd.f32 %v4529, %v4551
    %v4570 = vadd.f32 %v4530, %v4553
    %v4571 = vadd.f32 %v4531, %v4555
    %4572 = vrot.lane.b32.xlu0 %v4524, 126
    %v4573 = vpop.permute.xlu0 %4572
    %4574 = vrot.lane.b32.xlu0 %v4525, 126
    %v4575 = vpop.permute.xlu0 %4574
    %4576 = vrot.lane.b32.xlu0 %v4526, 126
    %v4577 = vpop.permute.xlu0 %4576
    %4578 = vrot.lane.b32.xlu0 %v4527, 126
    %v4579 = vpop.permute.xlu0 %4578
    %4580 = vrot.lane.b32.xlu0 %v4528, 126
    %v4581 = vpop.permute.xlu0 %4580
    %4582 = vrot.lane.b32.xlu0 %v4529, 126
    %v4583 = vpop.permute.xlu0 %4582
    %4584 = vrot.lane.b32.xlu0 %v4530, 126
    %v4585 = vpop.permute.xlu0 %4584
    %4586 = vrot.lane.b32.xlu0 %v4531, 126
    %v4587 = vpop.permute.xlu0 %4586
    %v4596 = vadd.f32 %v4564, %v4573
    %v4597 = vadd.f32 %v4565, %v4575
    %v4598 = vadd.f32 %v4566, %v4577
    %v4599 = vadd.f32 %v4567, %v4579
    %v4600 = vadd.f32 %v4568, %v4581
    %v4601 = vadd.f32 %v4569, %v4583
    %v4602 = vadd.f32 %v4570, %v4585
    %v4603 = vadd.f32 %v4571, %v4587
    %v4604 = vadd.f32 %v4596, %v369
    %v4605 = vadd.f32 %v4597, %v370
    %v4606 = vadd.f32 %v4598, %v371
    %v4607 = vadd.f32 %v4599, %v372
    %v4608 = vadd.f32 %v4600, %v373
    %v4609 = vadd.f32 %v4601, %v374
    %v4610 = vadd.f32 %v4602, %v375
    %v4611 = vadd.f32 %v4603, %v376
    %4613 = vrot.lane.b32.xlu0 %v4523, 125
    %v4614 = vpop.permute.xlu0 %4613
    %v4616 = vmul.f32 %v369, %v4614
    %v4617 = vmul.f32 %v370, %v4614
    %v4618 = vmul.f32 %v371, %v4614
    %v4619 = vmul.f32 %v372, %v4614
    %v4620 = vmul.f32 %v373, %v4614
    %v4621 = vmul.f32 %v374, %v4614
    %v4622 = vmul.f32 %v375, %v4614
    %v4623 = vmul.f32 %v376, %v4614
    %4632 = vrot.lane.b32.xlu0 %v4616, 127
    %v4633 = vpop.permute.xlu0 %4632
    %4634 = vrot.lane.b32.xlu0 %v4617, 127
    %v4635 = vpop.permute.xlu0 %4634
    %4636 = vrot.lane.b32.xlu0 %v4618, 127
    %v4637 = vpop.permute.xlu0 %4636
    %4638 = vrot.lane.b32.xlu0 %v4619, 127
    %v4639 = vpop.permute.xlu0 %4638
    %4640 = vrot.lane.b32.xlu0 %v4620, 127
    %v4641 = vpop.permute.xlu0 %4640
    %4642 = vrot.lane.b32.xlu0 %v4621, 127
    %v4643 = vpop.permute.xlu0 %4642
    %4644 = vrot.lane.b32.xlu0 %v4622, 127
    %v4645 = vpop.permute.xlu0 %4644
    %4646 = vrot.lane.b32.xlu0 %v4623, 127
    %v4647 = vpop.permute.xlu0 %4646
    %v4656 = vadd.f32 %v4616, %v4633
    %v4657 = vadd.f32 %v4617, %v4635
    %v4658 = vadd.f32 %v4618, %v4637
    %v4659 = vadd.f32 %v4619, %v4639
    %v4660 = vadd.f32 %v4620, %v4641
    %v4661 = vadd.f32 %v4621, %v4643
    %v4662 = vadd.f32 %v4622, %v4645
    %v4663 = vadd.f32 %v4623, %v4647
    %4664 = vrot.lane.b32.xlu0 %v4616, 126
    %v4665 = vpop.permute.xlu0 %4664
    %4666 = vrot.lane.b32.xlu0 %v4617, 126
    %v4667 = vpop.permute.xlu0 %4666
    %4668 = vrot.lane.b32.xlu0 %v4618, 126
    %v4669 = vpop.permute.xlu0 %4668
    %4670 = vrot.lane.b32.xlu0 %v4619, 126
    %v4671 = vpop.permute.xlu0 %4670
    %4672 = vrot.lane.b32.xlu0 %v4620, 126
    %v4673 = vpop.permute.xlu0 %4672
    %4674 = vrot.lane.b32.xlu0 %v4621, 126
    %v4675 = vpop.permute.xlu0 %4674
    %4676 = vrot.lane.b32.xlu0 %v4622, 126
    %v4677 = vpop.permute.xlu0 %4676
    %4678 = vrot.lane.b32.xlu0 %v4623, 126
    %v4679 = vpop.permute.xlu0 %4678
    %v4688 = vadd.f32 %v4656, %v4665
    %v4689 = vadd.f32 %v4657, %v4667
    %v4690 = vadd.f32 %v4658, %v4669
    %v4691 = vadd.f32 %v4659, %v4671
    %v4692 = vadd.f32 %v4660, %v4673
    %v4693 = vadd.f32 %v4661, %v4675
    %v4694 = vadd.f32 %v4662, %v4677
    %v4695 = vadd.f32 %v4663, %v4679
    %4704 = vrot.lane.b32.xlu0 %v369, 127
    %v4705 = vpop.permute.xlu0 %4704
    %4706 = vrot.lane.b32.xlu0 %v370, 127
    %v4707 = vpop.permute.xlu0 %4706
    %4708 = vrot.lane.b32.xlu0 %v371, 127
    %v4709 = vpop.permute.xlu0 %4708
    %4710 = vrot.lane.b32.xlu0 %v372, 127
    %v4711 = vpop.permute.xlu0 %4710
    %4712 = vrot.lane.b32.xlu0 %v373, 127
    %v4713 = vpop.permute.xlu0 %4712
    %4714 = vrot.lane.b32.xlu0 %v374, 127
    %v4715 = vpop.permute.xlu0 %4714
    %4716 = vrot.lane.b32.xlu0 %v375, 127
    %v4717 = vpop.permute.xlu0 %4716
    %4718 = vrot.lane.b32.xlu0 %v376, 127
    %v4719 = vpop.permute.xlu0 %4718
    %v4728 = vadd.f32 %v4688, %v4705
    %v4729 = vadd.f32 %v4689, %v4707
    %v4730 = vadd.f32 %v4690, %v4709
    %v4731 = vadd.f32 %v4691, %v4711
    %v4732 = vadd.f32 %v4692, %v4713
    %v4733 = vadd.f32 %v4693, %v4715
    %v4734 = vadd.f32 %v4694, %v4717
    %v4735 = vadd.f32 %v4695, %v4719
    %4736 = vrot.lane.b32.xlu0 %v4523, 122
    %v4737 = vpop.permute.xlu0 %4736
    %v4739 = vmul.f32 %v369, %v4737
    %v4740 = vmul.f32 %v370, %v4737
    %v4741 = vmul.f32 %v371, %v4737
    %v4742 = vmul.f32 %v372, %v4737
    %v4743 = vmul.f32 %v373, %v4737
    %v4744 = vmul.f32 %v374, %v4737
    %v4745 = vmul.f32 %v375, %v4737
    %v4746 = vmul.f32 %v376, %v4737
    %4755 = vrot.lane.b32.xlu0 %v4739, 127
    %v4756 = vpop.permute.xlu0 %4755
    %4757 = vrot.lane.b32.xlu0 %v4740, 127
    %v4758 = vpop.permute.xlu0 %4757
    %4759 = vrot.lane.b32.xlu0 %v4741, 127
    %v4760 = vpop.permute.xlu0 %4759
    %4761 = vrot.lane.b32.xlu0 %v4742, 127
    %v4762 = vpop.permute.xlu0 %4761
    %4763 = vrot.lane.b32.xlu0 %v4743, 127
    %v4764 = vpop.permute.xlu0 %4763
    %4765 = vrot.lane.b32.xlu0 %v4744, 127
    %v4766 = vpop.permute.xlu0 %4765
    %4767 = vrot.lane.b32.xlu0 %v4745, 127
    %v4768 = vpop.permute.xlu0 %4767
    %4769 = vrot.lane.b32.xlu0 %v4746, 127
    %v4770 = vpop.permute.xlu0 %4769
    %v4779 = vadd.f32 %v4739, %v4756
    %v4780 = vadd.f32 %v4740, %v4758
    %v4781 = vadd.f32 %v4741, %v4760
    %v4782 = vadd.f32 %v4742, %v4762
    %v4783 = vadd.f32 %v4743, %v4764
    %v4784 = vadd.f32 %v4744, %v4766
    %v4785 = vadd.f32 %v4745, %v4768
    %v4786 = vadd.f32 %v4746, %v4770
    %4787 = vrot.lane.b32.xlu0 %v4739, 126
    %v4788 = vpop.permute.xlu0 %4787
    %4789 = vrot.lane.b32.xlu0 %v4740, 126
    %v4790 = vpop.permute.xlu0 %4789
    %4791 = vrot.lane.b32.xlu0 %v4741, 126
    %v4792 = vpop.permute.xlu0 %4791
    %4793 = vrot.lane.b32.xlu0 %v4742, 126
    %v4794 = vpop.permute.xlu0 %4793
    %4795 = vrot.lane.b32.xlu0 %v4743, 126
    %v4796 = vpop.permute.xlu0 %4795
    %4797 = vrot.lane.b32.xlu0 %v4744, 126
    %v4798 = vpop.permute.xlu0 %4797
    %4799 = vrot.lane.b32.xlu0 %v4745, 126
    %v4800 = vpop.permute.xlu0 %4799
    %4801 = vrot.lane.b32.xlu0 %v4746, 126
    %v4802 = vpop.permute.xlu0 %4801
    %v4811 = vadd.f32 %v4779, %v4788
    %v4812 = vadd.f32 %v4780, %v4790
    %v4813 = vadd.f32 %v4781, %v4792
    %v4814 = vadd.f32 %v4782, %v4794
    %v4815 = vadd.f32 %v4783, %v4796
    %v4816 = vadd.f32 %v4784, %v4798
    %v4817 = vadd.f32 %v4785, %v4800
    %v4818 = vadd.f32 %v4786, %v4802
    %4819 = vrot.lane.b32.xlu0 %v369, 126
    %v4820 = vpop.permute.xlu0 %4819
    %4821 = vrot.lane.b32.xlu0 %v370, 126
    %v4822 = vpop.permute.xlu0 %4821
    %4823 = vrot.lane.b32.xlu0 %v371, 126
    %v4824 = vpop.permute.xlu0 %4823
    %4825 = vrot.lane.b32.xlu0 %v372, 126
    %v4826 = vpop.permute.xlu0 %4825
    %4827 = vrot.lane.b32.xlu0 %v373, 126
    %v4828 = vpop.permute.xlu0 %4827
    %4829 = vrot.lane.b32.xlu0 %v374, 126
    %v4830 = vpop.permute.xlu0 %4829
    %4831 = vrot.lane.b32.xlu0 %v375, 126
    %v4832 = vpop.permute.xlu0 %4831
    %4833 = vrot.lane.b32.xlu0 %v376, 126
    %v4834 = vpop.permute.xlu0 %4833
    %v4843 = vadd.f32 %v4811, %v4820
    %v4844 = vadd.f32 %v4812, %v4822
    %v4845 = vadd.f32 %v4813, %v4824
    %v4846 = vadd.f32 %v4814, %v4826
    %v4847 = vadd.f32 %v4815, %v4828
    %v4848 = vadd.f32 %v4816, %v4830
    %v4849 = vadd.f32 %v4817, %v4832
    %v4850 = vadd.f32 %v4818, %v4834
    %4859 = vrot.lane.b32.xlu0 %v4728, 1
    %v4860 = vpop.permute.xlu0 %4859
    %4861 = vrot.lane.b32.xlu0 %v4729, 1
    %v4862 = vpop.permute.xlu0 %4861
    %4863 = vrot.lane.b32.xlu0 %v4730, 1
    %v4864 = vpop.permute.xlu0 %4863
    %4865 = vrot.lane.b32.xlu0 %v4731, 1
    %v4866 = vpop.permute.xlu0 %4865
    %4867 = vrot.lane.b32.xlu0 %v4732, 1
    %v4868 = vpop.permute.xlu0 %4867
    %4869 = vrot.lane.b32.xlu0 %v4733, 1
    %v4870 = vpop.permute.xlu0 %4869
    %4871 = vrot.lane.b32.xlu0 %v4734, 1
    %v4872 = vpop.permute.xlu0 %4871
    %4873 = vrot.lane.b32.xlu0 %v4735, 1
    %v4874 = vpop.permute.xlu0 %4873
    %4891 = vrot.lane.b32.xlu0 %v4843, 2
    %v4892 = vpop.permute.xlu0 %4891
    %4893 = vrot.lane.b32.xlu0 %v4844, 2
    %v4894 = vpop.permute.xlu0 %4893
    %4895 = vrot.lane.b32.xlu0 %v4845, 2
    %v4896 = vpop.permute.xlu0 %4895
    %4897 = vrot.lane.b32.xlu0 %v4846, 2
    %v4898 = vpop.permute.xlu0 %4897
    %4899 = vrot.lane.b32.xlu0 %v4847, 2
    %v4900 = vpop.permute.xlu0 %4899
    %4901 = vrot.lane.b32.xlu0 %v4848, 2
    %v4902 = vpop.permute.xlu0 %4901
    %4903 = vrot.lane.b32.xlu0 %v4849, 2
    %v4904 = vpop.permute.xlu0 %4903
    %4905 = vrot.lane.b32.xlu0 %v4850, 2
    %v4906 = vpop.permute.xlu0 %4905
    %vm4915 = vcmask 7168
    %v4916 = vsel %vm4915, %v4604, %v4860
    %v4917 = vsel %vm4915, %v4605, %v4862
    %v4918 = vsel %vm4915, %v4606, %v4864
    %v4919 = vsel %vm4915, %v4607, %v4866
    %v4920 = vsel %vm4915, %v4608, %v4868
    %v4921 = vsel %vm4915, %v4609, %v4870
    %v4922 = vsel %vm4915, %v4610, %v4872
    %v4923 = vsel %vm4915, %v4611, %v4874
    %vm4924 = vcmask 15360
    %v4925 = vsel %vm4924, %v4916, %v4892
    %v4926 = vsel %vm4924, %v4917, %v4894
    %v4927 = vsel %vm4924, %v4918, %v4896
    %v4928 = vsel %vm4924, %v4919, %v4898
    %v4929 = vsel %vm4924, %v4920, %v4900
    %v4930 = vsel %vm4924, %v4921, %v4902
    %v4931 = vsel %vm4924, %v4922, %v4904
    %v4932 = vsel %vm4924, %v4923, %v4906
    %v4933 = vlaneseq
    %v4934 = vshrl.u32 %v4933, 7
    %v4935 = vsub.s32 1, %v4934
    %v4936 = vrot.slane %v4515, %v4935
    %v4937 = vmul.f32 %v377, %v4936
    %v4938 = vmul.f32 %v378, %v4936
    %v4939 = vmul.f32 %v379, %v4936
    %v4940 = vmul.f32 %v380, %v4936
    %v4941 = vmul.f32 %v381, %v4936
    %v4942 = vmul.f32 %v382, %v4936
    %v4943 = vmul.f32 %v383, %v4936
    %v4944 = vmul.f32 %v384, %v4936
    %4953 = vrot.lane.b32.xlu0 %v4937, 127
    %v4954 = vpop.permute.xlu0 %4953
    %4955 = vrot.lane.b32.xlu0 %v4938, 127
    %v4956 = vpop.permute.xlu0 %4955
    %4957 = vrot.lane.b32.xlu0 %v4939, 127
    %v4958 = vpop.permute.xlu0 %4957
    %4959 = vrot.lane.b32.xlu0 %v4940, 127
    %v4960 = vpop.permute.xlu0 %4959
    %4961 = vrot.lane.b32.xlu0 %v4941, 127
    %v4962 = vpop.permute.xlu0 %4961
    %4963 = vrot.lane.b32.xlu0 %v4942, 127
    %v4964 = vpop.permute.xlu0 %4963
    %4965 = vrot.lane.b32.xlu0 %v4943, 127
    %v4966 = vpop.permute.xlu0 %4965
    %4967 = vrot.lane.b32.xlu0 %v4944, 127
    %v4968 = vpop.permute.xlu0 %4967
    %v4977 = vadd.f32 %v4937, %v4954
    %v4978 = vadd.f32 %v4938, %v4956
    %v4979 = vadd.f32 %v4939, %v4958
    %v4980 = vadd.f32 %v4940, %v4960
    %v4981 = vadd.f32 %v4941, %v4962
    %v4982 = vadd.f32 %v4942, %v4964
    %v4983 = vadd.f32 %v4943, %v4966
    %v4984 = vadd.f32 %v4944, %v4968
    %4985 = vrot.lane.b32.xlu0 %v4937, 126
    %v4986 = vpop.permute.xlu0 %4985
    %4987 = vrot.lane.b32.xlu0 %v4938, 126
    %v4988 = vpop.permute.xlu0 %4987
    %4989 = vrot.lane.b32.xlu0 %v4939, 126
    %v4990 = vpop.permute.xlu0 %4989
    %4991 = vrot.lane.b32.xlu0 %v4940, 126
    %v4992 = vpop.permute.xlu0 %4991
    %4993 = vrot.lane.b32.xlu0 %v4941, 126
    %v4994 = vpop.permute.xlu0 %4993
    %4995 = vrot.lane.b32.xlu0 %v4942, 126
    %v4996 = vpop.permute.xlu0 %4995
    %4997 = vrot.lane.b32.xlu0 %v4943, 126
    %v4998 = vpop.permute.xlu0 %4997
    %4999 = vrot.lane.b32.xlu0 %v4944, 126
    %v5000 = vpop.permute.xlu0 %4999
    %v5009 = vadd.f32 %v4977, %v4986
    %v5010 = vadd.f32 %v4978, %v4988
    %v5011 = vadd.f32 %v4979, %v4990
    %v5012 = vadd.f32 %v4980, %v4992
    %v5013 = vadd.f32 %v4981, %v4994
    %v5014 = vadd.f32 %v4982, %v4996
    %v5015 = vadd.f32 %v4983, %v4998
    %v5016 = vadd.f32 %v4984, %v5000
    %v5017 = vadd.f32 %v5009, %v377
    %v5018 = vadd.f32 %v5010, %v378
    %v5019 = vadd.f32 %v5011, %v379
    %v5020 = vadd.f32 %v5012, %v380
    %v5021 = vadd.f32 %v5013, %v381
    %v5022 = vadd.f32 %v5014, %v382
    %v5023 = vadd.f32 %v5015, %v383
    %v5024 = vadd.f32 %v5016, %v384
    %5026 = vrot.lane.b32.xlu0 %v4936, 125
    %v5027 = vpop.permute.xlu0 %5026
    %v5029 = vmul.f32 %v377, %v5027
    %v5030 = vmul.f32 %v378, %v5027
    %v5031 = vmul.f32 %v379, %v5027
    %v5032 = vmul.f32 %v380, %v5027
    %v5033 = vmul.f32 %v381, %v5027
    %v5034 = vmul.f32 %v382, %v5027
    %v5035 = vmul.f32 %v383, %v5027
    %v5036 = vmul.f32 %v384, %v5027
    %5045 = vrot.lane.b32.xlu0 %v5029, 127
    %v5046 = vpop.permute.xlu0 %5045
    %5047 = vrot.lane.b32.xlu0 %v5030, 127
    %v5048 = vpop.permute.xlu0 %5047
    %5049 = vrot.lane.b32.xlu0 %v5031, 127
    %v5050 = vpop.permute.xlu0 %5049
    %5051 = vrot.lane.b32.xlu0 %v5032, 127
    %v5052 = vpop.permute.xlu0 %5051
    %5053 = vrot.lane.b32.xlu0 %v5033, 127
    %v5054 = vpop.permute.xlu0 %5053
    %5055 = vrot.lane.b32.xlu0 %v5034, 127
    %v5056 = vpop.permute.xlu0 %5055
    %5057 = vrot.lane.b32.xlu0 %v5035, 127
    %v5058 = vpop.permute.xlu0 %5057
    %5059 = vrot.lane.b32.xlu0 %v5036, 127
    %v5060 = vpop.permute.xlu0 %5059
    %v5069 = vadd.f32 %v5029, %v5046
    %v5070 = vadd.f32 %v5030, %v5048
    %v5071 = vadd.f32 %v5031, %v5050
    %v5072 = vadd.f32 %v5032, %v5052
    %v5073 = vadd.f32 %v5033, %v5054
    %v5074 = vadd.f32 %v5034, %v5056
    %v5075 = vadd.f32 %v5035, %v5058
    %v5076 = vadd.f32 %v5036, %v5060
    %5077 = vrot.lane.b32.xlu0 %v5029, 126
    %v5078 = vpop.permute.xlu0 %5077
    %5079 = vrot.lane.b32.xlu0 %v5030, 126
    %v5080 = vpop.permute.xlu0 %5079
    %5081 = vrot.lane.b32.xlu0 %v5031, 126
    %v5082 = vpop.permute.xlu0 %5081
    %5083 = vrot.lane.b32.xlu0 %v5032, 126
    %v5084 = vpop.permute.xlu0 %5083
    %5085 = vrot.lane.b32.xlu0 %v5033, 126
    %v5086 = vpop.permute.xlu0 %5085
    %5087 = vrot.lane.b32.xlu0 %v5034, 126
    %v5088 = vpop.permute.xlu0 %5087
    %5089 = vrot.lane.b32.xlu0 %v5035, 126
    %v5090 = vpop.permute.xlu0 %5089
    %5091 = vrot.lane.b32.xlu0 %v5036, 126
    %v5092 = vpop.permute.xlu0 %5091
    %v5101 = vadd.f32 %v5069, %v5078
    %v5102 = vadd.f32 %v5070, %v5080
    %v5103 = vadd.f32 %v5071, %v5082
    %v5104 = vadd.f32 %v5072, %v5084
    %v5105 = vadd.f32 %v5073, %v5086
    %v5106 = vadd.f32 %v5074, %v5088
    %v5107 = vadd.f32 %v5075, %v5090
    %v5108 = vadd.f32 %v5076, %v5092
    %5117 = vrot.lane.b32.xlu0 %v377, 127
    %v5118 = vpop.permute.xlu0 %5117
    %5119 = vrot.lane.b32.xlu0 %v378, 127
    %v5120 = vpop.permute.xlu0 %5119
    %5121 = vrot.lane.b32.xlu0 %v379, 127
    %v5122 = vpop.permute.xlu0 %5121
    %5123 = vrot.lane.b32.xlu0 %v380, 127
    %v5124 = vpop.permute.xlu0 %5123
    %5125 = vrot.lane.b32.xlu0 %v381, 127
    %v5126 = vpop.permute.xlu0 %5125
    %5127 = vrot.lane.b32.xlu0 %v382, 127
    %v5128 = vpop.permute.xlu0 %5127
    %5129 = vrot.lane.b32.xlu0 %v383, 127
    %v5130 = vpop.permute.xlu0 %5129
    %5131 = vrot.lane.b32.xlu0 %v384, 127
    %v5132 = vpop.permute.xlu0 %5131
    %v5141 = vadd.f32 %v5101, %v5118
    %v5142 = vadd.f32 %v5102, %v5120
    %v5143 = vadd.f32 %v5103, %v5122
    %v5144 = vadd.f32 %v5104, %v5124
    %v5145 = vadd.f32 %v5105, %v5126
    %v5146 = vadd.f32 %v5106, %v5128
    %v5147 = vadd.f32 %v5107, %v5130
    %v5148 = vadd.f32 %v5108, %v5132
    %5149 = vrot.lane.b32.xlu0 %v4936, 122
    %v5150 = vpop.permute.xlu0 %5149
    %v5152 = vmul.f32 %v377, %v5150
    %v5153 = vmul.f32 %v378, %v5150
    %v5154 = vmul.f32 %v379, %v5150
    %v5155 = vmul.f32 %v380, %v5150
    %v5156 = vmul.f32 %v381, %v5150
    %v5157 = vmul.f32 %v382, %v5150
    %v5158 = vmul.f32 %v383, %v5150
    %v5159 = vmul.f32 %v384, %v5150
    %5168 = vrot.lane.b32.xlu0 %v5152, 127
    %v5169 = vpop.permute.xlu0 %5168
    %5170 = vrot.lane.b32.xlu0 %v5153, 127
    %v5171 = vpop.permute.xlu0 %5170
    %5172 = vrot.lane.b32.xlu0 %v5154, 127
    %v5173 = vpop.permute.xlu0 %5172
    %5174 = vrot.lane.b32.xlu0 %v5155, 127
    %v5175 = vpop.permute.xlu0 %5174
    %5176 = vrot.lane.b32.xlu0 %v5156, 127
    %v5177 = vpop.permute.xlu0 %5176
    %5178 = vrot.lane.b32.xlu0 %v5157, 127
    %v5179 = vpop.permute.xlu0 %5178
    %5180 = vrot.lane.b32.xlu0 %v5158, 127
    %v5181 = vpop.permute.xlu0 %5180
    %5182 = vrot.lane.b32.xlu0 %v5159, 127
    %v5183 = vpop.permute.xlu0 %5182
    %v5192 = vadd.f32 %v5152, %v5169
    %v5193 = vadd.f32 %v5153, %v5171
    %v5194 = vadd.f32 %v5154, %v5173
    %v5195 = vadd.f32 %v5155, %v5175
    %v5196 = vadd.f32 %v5156, %v5177
    %v5197 = vadd.f32 %v5157, %v5179
    %v5198 = vadd.f32 %v5158, %v5181
    %v5199 = vadd.f32 %v5159, %v5183
    %5200 = vrot.lane.b32.xlu0 %v5152, 126
    %v5201 = vpop.permute.xlu0 %5200
    %5202 = vrot.lane.b32.xlu0 %v5153, 126
    %v5203 = vpop.permute.xlu0 %5202
    %5204 = vrot.lane.b32.xlu0 %v5154, 126
    %v5205 = vpop.permute.xlu0 %5204
    %5206 = vrot.lane.b32.xlu0 %v5155, 126
    %v5207 = vpop.permute.xlu0 %5206
    %5208 = vrot.lane.b32.xlu0 %v5156, 126
    %v5209 = vpop.permute.xlu0 %5208
    %5210 = vrot.lane.b32.xlu0 %v5157, 126
    %v5211 = vpop.permute.xlu0 %5210
    %5212 = vrot.lane.b32.xlu0 %v5158, 126
    %v5213 = vpop.permute.xlu0 %5212
    %5214 = vrot.lane.b32.xlu0 %v5159, 126
    %v5215 = vpop.permute.xlu0 %5214
    %v5224 = vadd.f32 %v5192, %v5201
    %v5225 = vadd.f32 %v5193, %v5203
    %v5226 = vadd.f32 %v5194, %v5205
    %v5227 = vadd.f32 %v5195, %v5207
    %v5228 = vadd.f32 %v5196, %v5209
    %v5229 = vadd.f32 %v5197, %v5211
    %v5230 = vadd.f32 %v5198, %v5213
    %v5231 = vadd.f32 %v5199, %v5215
    %5232 = vrot.lane.b32.xlu0 %v377, 126
    %v5233 = vpop.permute.xlu0 %5232
    %5234 = vrot.lane.b32.xlu0 %v378, 126
    %v5235 = vpop.permute.xlu0 %5234
    %5236 = vrot.lane.b32.xlu0 %v379, 126
    %v5237 = vpop.permute.xlu0 %5236
    %5238 = vrot.lane.b32.xlu0 %v380, 126
    %v5239 = vpop.permute.xlu0 %5238
    %5240 = vrot.lane.b32.xlu0 %v381, 126
    %v5241 = vpop.permute.xlu0 %5240
    %5242 = vrot.lane.b32.xlu0 %v382, 126
    %v5243 = vpop.permute.xlu0 %5242
    %5244 = vrot.lane.b32.xlu0 %v383, 126
    %v5245 = vpop.permute.xlu0 %5244
    %5246 = vrot.lane.b32.xlu0 %v384, 126
    %v5247 = vpop.permute.xlu0 %5246
    %v5256 = vadd.f32 %v5224, %v5233
    %v5257 = vadd.f32 %v5225, %v5235
    %v5258 = vadd.f32 %v5226, %v5237
    %v5259 = vadd.f32 %v5227, %v5239
    %v5260 = vadd.f32 %v5228, %v5241
    %v5261 = vadd.f32 %v5229, %v5243
    %v5262 = vadd.f32 %v5230, %v5245
    %v5263 = vadd.f32 %v5231, %v5247
    %5272 = vrot.lane.b32.xlu0 %v5141, 1
    %v5273 = vpop.permute.xlu0 %5272
    %5274 = vrot.lane.b32.xlu0 %v5142, 1
    %v5275 = vpop.permute.xlu0 %5274
    %5276 = vrot.lane.b32.xlu0 %v5143, 1
    %v5277 = vpop.permute.xlu0 %5276
    %5278 = vrot.lane.b32.xlu0 %v5144, 1
    %v5279 = vpop.permute.xlu0 %5278
    %5280 = vrot.lane.b32.xlu0 %v5145, 1
    %v5281 = vpop.permute.xlu0 %5280
    %5282 = vrot.lane.b32.xlu0 %v5146, 1
    %v5283 = vpop.permute.xlu0 %5282
    %5284 = vrot.lane.b32.xlu0 %v5147, 1
    %v5285 = vpop.permute.xlu0 %5284
    %5286 = vrot.lane.b32.xlu0 %v5148, 1
    %v5287 = vpop.permute.xlu0 %5286
    %5304 = vrot.lane.b32.xlu0 %v5256, 2
    %v5305 = vpop.permute.xlu0 %5304
    %5306 = vrot.lane.b32.xlu0 %v5257, 2
    %v5307 = vpop.permute.xlu0 %5306
    %5308 = vrot.lane.b32.xlu0 %v5258, 2
    %v5309 = vpop.permute.xlu0 %5308
    %5310 = vrot.lane.b32.xlu0 %v5259, 2
    %v5311 = vpop.permute.xlu0 %5310
    %5312 = vrot.lane.b32.xlu0 %v5260, 2
    %v5313 = vpop.permute.xlu0 %5312
    %5314 = vrot.lane.b32.xlu0 %v5261, 2
    %v5315 = vpop.permute.xlu0 %5314
    %5316 = vrot.lane.b32.xlu0 %v5262, 2
    %v5317 = vpop.permute.xlu0 %5316
    %5318 = vrot.lane.b32.xlu0 %v5263, 2
    %v5319 = vpop.permute.xlu0 %5318
    %v5328 = vsel %vm4915, %v5017, %v5273
    %v5329 = vsel %vm4915, %v5018, %v5275
    %v5330 = vsel %vm4915, %v5019, %v5277
    %v5331 = vsel %vm4915, %v5020, %v5279
    %v5332 = vsel %vm4915, %v5021, %v5281
    %v5333 = vsel %vm4915, %v5022, %v5283
    %v5334 = vsel %vm4915, %v5023, %v5285
    %v5335 = vsel %vm4915, %v5024, %v5287
    %v5336 = vsel %vm4924, %v5328, %v5305
    %v5337 = vsel %vm4924, %v5329, %v5307
    %v5338 = vsel %vm4924, %v5330, %v5309
    %v5339 = vsel %vm4924, %v5331, %v5311
    %v5340 = vsel %vm4924, %v5332, %v5313
    %v5341 = vsel %vm4924, %v5333, %v5315
    %v5342 = vsel %vm4924, %v5334, %v5317
    %v5343 = vsel %vm4924, %v5335, %v5319
    %v5344 = vpack.c.bf16 %v4926, %v4925
    %v5345 = vpack.c.bf16 %v4928, %v4927
    %v5346 = vpack.c.bf16 %v4930, %v4929
    %v5347 = vpack.c.bf16 %v4932, %v4931
    %v5348 = vpack.c.bf16 %v5337, %v5336
    %v5349 = vpack.c.bf16 %v5339, %v5338
    %v5350 = vpack.c.bf16 %v5341, %v5340
    %v5351 = vpack.c.bf16 %v5343, %v5342
    %v5352 = vld [vmem:[#allocation19] sm:$0x3]
    %v5353 = vld [vmem:[#allocation20] sm:$0x1]
    %v5355 = vlaneseq
    %v5356 = vshrl.u32 %v5355, 7
    %v5357 = vsub.s32 0, %v5356
    %v5358 = vrot.slane %v5353, %v5357
    %v5361 = vsel %vm401, %v5344, 0
    %v5364 = vsel %vm401, %v5345, 0
    %v5367 = vsel %vm401, %v5346, 0
    %v5370 = vsel %vm401, %v5347, 0
    %v5373 = vsel %vm401, %v5348, 0
    %v5376 = vsel %vm401, %v5349, 0
    %v5379 = vsel %vm401, %v5350, 0
    %v5382 = vsel %vm401, %v5351, 0
    %v5385 = vand.u32 %v5352, %v429
    %5387 = vmatprep.subr.bf16.mxu0 0
    %5388 = vmatpush1.bf16.msra.mxu0 %v5385
    %5389 = vmatprep.subr.bf16.mxu0 0
    %5390 = vmatpush1.bf16.msra.mxu0 0
    %5391 = vmatprep.subr.bf16.mxu0 0
    %5392 = vmatpush1.bf16.msra.mxu0 0
    %5393 = vmatprep.subr.bf16.mxu0 0
    %5394 = vmatpush1.bf16.msra.mxu0 0
    %5395 = vmatprep.subr.bf16.mxu0 0
    %5396 = vmatpush1.bf16.msra.mxu0 0
    %5397 = vmatprep.subr.bf16.mxu0 0
    %5398 = vmatpush1.bf16.msra.mxu0 0
    %5399 = vmatprep.subr.bf16.mxu0 0
    %5400 = vmatpush1.bf16.msra.mxu0 0
    %5401 = vmatprep.subr.bf16.mxu0 0
    %5402 = vmatpush1.bf16.msra.mxu0 0
    %5403 = vmatprep.subr.bf16.mxu0 0
    %5404 = vmatpush1.bf16.msra.mxu0 0
    %5405 = vmatprep.subr.bf16.mxu0 0
    %5406 = vmatpush1.bf16.msra.mxu0 0
    %5407 = vmatprep.subr.bf16.mxu0 0
    %5408 = vmatpush1.bf16.msra.mxu0 0
    %5409 = vmatprep.subr.bf16.mxu0 0
    %5410 = vmatpush1.bf16.msra.mxu0 0
    %5411 = vmatprep.subr.bf16.mxu0 0
    %5412 = vmatpush1.bf16.msra.mxu0 0
    %5413 = vmatprep.subr.bf16.mxu0 0
    %5414 = vmatpush1.bf16.msra.mxu0 0
    %5415 = vmatprep.subr.bf16.mxu0 0
    %5416 = vmatpush1.bf16.msra.mxu0 0
    %5417 = vmatprep.subr.bf16.mxu0 0
    %5418 = vmatpush1.bf16.msra.mxu0 0
    %5419 = vmatprep.mubr.bf16.mxu0 0
    %5420 = vmatmul.mubr.bf16.gmra.mrb[0].mxu0 %v5361
    %v5421 = vpop.f32.mrb[0].mxu0
    %v5422 = vadd.f32 %v5358, %v5421
    %v5423 = vpop.f32.mrb[0].mxu0
    %v5424 = vpop.f32.mrb[0].mxu0
    %v5425 = vadd.f32 %v5358, %v5424
    %v5426 = vpop.f32.mrb[0].mxu0
    %5427 = vmatprep.mubr.bf16.mxu0 0
    %5428 = vmatmul.mubr.bf16.gmra.mrb[0].mxu0 %v5364
    %v5429 = vpop.f32.mrb[0].mxu0
    %v5430 = vadd.f32 %v5358, %v5429
    %v5431 = vpop.f32.mrb[0].mxu0
    %v5432 = vpop.f32.mrb[0].mxu0
    %v5433 = vadd.f32 %v5358, %v5432
    %v5434 = vpop.f32.mrb[0].mxu0
    %5435 = vmatprep.mubr.bf16.mxu0 0
    %5436 = vmatmul.mubr.bf16.gmra.mrb[0].mxu0 %v5367
    %v5437 = vpop.f32.mrb[0].mxu0
    %v5438 = vadd.f32 %v5358, %v5437
    %v5439 = vpop.f32.mrb[0].mxu0
    %v5440 = vpop.f32.mrb[0].mxu0
    %v5441 = vadd.f32 %v5358, %v5440
    %v5442 = vpop.f32.mrb[0].mxu0
    %5443 = vmatprep.mubr.bf16.mxu0 0
    %5444 = vmatmul.mubr.bf16.gmra.mrb[0].mxu0 %v5370
    %v5445 = vpop.f32.mrb[0].mxu0
    %v5446 = vadd.f32 %v5358, %v5445
    %v5447 = vpop.f32.mrb[0].mxu0
    %v5448 = vpop.f32.mrb[0].mxu0
    %v5449 = vadd.f32 %v5358, %v5448
    %v5450 = vpop.f32.mrb[0].mxu0
    %5451 = vmatprep.mubr.bf16.mxu0 0
    %5452 = vmatmul.mubr.bf16.gmra.mrb[0].mxu0 %v5373
    %v5453 = vpop.f32.mrb[0].mxu0
    %v5454 = vadd.f32 %v5358, %v5453
    %v5455 = vpop.f32.mrb[0].mxu0
    %v5456 = vpop.f32.mrb[0].mxu0
    %v5457 = vadd.f32 %v5358, %v5456
    %v5458 = vpop.f32.mrb[0].mxu0
    %5459 = vmatprep.mubr.bf16.mxu0 0
    %5460 = vmatmul.mubr.bf16.gmra.mrb[0].mxu0 %v5376
    %v5461 = vpop.f32.mrb[0].mxu0
    %v5462 = vadd.f32 %v5358, %v5461
    %v5463 = vpop.f32.mrb[0].mxu0
    %v5464 = vpop.f32.mrb[0].mxu0
    %v5465 = vadd.f32 %v5358, %v5464
    %v5466 = vpop.f32.mrb[0].mxu0
    %5467 = vmatprep.mubr.bf16.mxu0 0
    %5468 = vmatmul.mubr.bf16.gmra.mrb[0].mxu0 %v5379
    %v5469 = vpop.f32.mrb[0].mxu0
    %v5470 = vadd.f32 %v5358, %v5469
    %v5471 = vpop.f32.mrb[0].mxu0
    %v5472 = vpop.f32.mrb[0].mxu0
    %v5473 = vadd.f32 %v5358, %v5472
    %v5474 = vpop.f32.mrb[0].mxu0
    %5475 = vmatprep.mubr.bf16.mxu0 0
    %5476 = vmatmul.mubr.bf16.gmra.mrb[0].mxu0 %v5382
    %v5477 = vpop.f32.mrb[0].mxu0
    %v5478 = vadd.f32 %v5358, %v5477
    %v5479 = vpop.f32.mrb[0].mxu0
    %v5480 = vpop.f32.mrb[0].mxu0
    %v5481 = vadd.f32 %v5358, %v5480
    %v5482 = vpop.f32.mrb[0].mxu0
    %5483 = vdwg.mxu0
    %v5484 = vmax.f32 %v5422, 0.0
    %v5485 = vmax.f32 %v5425, 0.0
    %v5486 = vmax.f32 %v5430, 0.0
    %v5487 = vmax.f32 %v5433, 0.0
    %v5488 = vmax.f32 %v5438, 0.0
    %v5489 = vmax.f32 %v5441, 0.0
    %v5490 = vmax.f32 %v5446, 0.0
    %v5491 = vmax.f32 %v5449, 0.0
    %v5492 = vmax.f32 %v5454, 0.0
    %v5493 = vmax.f32 %v5457, 0.0
    %v5494 = vmax.f32 %v5462, 0.0
    %v5495 = vmax.f32 %v5465, 0.0
    %v5496 = vmax.f32 %v5470, 0.0
    %v5497 = vmax.f32 %v5473, 0.0
    %v5498 = vmax.f32 %v5478, 0.0
    %v5499 = vmax.f32 %v5481, 0.0
    %v5500 = vpack.c.bf16 %v5485, %v5484
    %v5501 = vpack.c.bf16 %v5487, %v5486
    %v5502 = vpack.c.bf16 %v5489, %v5488
    %v5503 = vpack.c.bf16 %v5491, %v5490
    %v5504 = vpack.c.bf16 %v5493, %v5492
    %v5505 = vpack.c.bf16 %v5495, %v5494
    %v5506 = vpack.c.bf16 %v5497, %v5496
    %v5507 = vpack.c.bf16 %v5499, %v5498
    %v5508 = vld [vmem:[%s31] sm:$0xf]
    %v5509 = vld [vmem:[%s31 + $0x4] sm:$0xf]
    %v5510 = vld [vmem:[%s31 + $0x8] sm:$0xf]
    %v5511 = vld [vmem:[%s31 + $0xc] sm:$0xf]
    %v5512 = vld [vmem:[#allocation22] sm:$0x1]
    %v5514 = vlaneseq
    %v5515 = vshrl.u32 %v5514, 7
    %v5516 = vsub.s32 0, %v5515
    %v5517 = vrot.slane %v5512, %v5516
    %v5523 = vunpack.c.l.b16 %v5508
    %v5524 = vunpack.c.l.b16 %v5509
    %v5525 = vunpack.c.l.b16 %v5510
    %v5526 = vunpack.c.l.b16 %v5511
    %v5527 = vpack.c.b16 %v5524, %v5523
    %v5528 = vpack.c.b16 %v5526, %v5525
    %vm5531 = vcmask 261120
    %v5533 = vsel %vm5531, %v5500, 0
    %v5536 = vsel %vm5531, %v5501, 0
    %v5539 = vsel %vm5531, %v5502, 0
    %v5542 = vsel %vm5531, %v5503, 0
    %v5545 = vsel %vm5531, %v5504, 0
    %v5548 = vsel %vm5531, %v5505, 0
    %v5551 = vsel %vm5531, %v5506, 0
    %v5554 = vsel %vm5531, %v5507, 0
    %5556 = vmatprep.subr.bf16.mxu0 0
    %5557 = vmatpush1.bf16.msra.mxu0 %v5527
    %5558 = vmatprep.subr.bf16.mxu0 0
    %5559 = vmatpush1.bf16.msra.mxu0 %v5528
    %5560 = vmatprep.subr.bf16.mxu0 0
    %5561 = vmatpush1.bf16.msra.mxu0 0
    %5562 = vmatprep.subr.bf16.mxu0 0
    %5563 = vmatpush1.bf16.msra.mxu0 0
    %5564 = vmatprep.subr.bf16.mxu0 0
    %5565 = vmatpush1.bf16.msra.mxu0 0
    %5566 = vmatprep.subr.bf16.mxu0 0
    %5567 = vmatpush1.bf16.msra.mxu0 0
    %5568 = vmatprep.subr.bf16.mxu0 0
    %5569 = vmatpush1.bf16.msra.mxu0 0
    %5570 = vmatprep.subr.bf16.mxu0 0
    %5571 = vmatpush1.bf16.msra.mxu0 0
    %5572 = vmatprep.subr.bf16.mxu0 0
    %5573 = vmatpush1.bf16.msra.mxu0 0
    %5574 = vmatprep.subr.bf16.mxu0 0
    %5575 = vmatpush1.bf16.msra.mxu0 0
    %5576 = vmatprep.subr.bf16.mxu0 0
    %5577 = vmatpush1.bf16.msra.mxu0 0
    %5578 = vmatprep.subr.bf16.mxu0 0
    %5579 = vmatpush1.bf16.msra.mxu0 0
    %5580 = vmatprep.subr.bf16.mxu0 0
    %5581 = vmatpush1.bf16.msra.mxu0 0
    %5582 = vmatprep.subr.bf16.mxu0 0
    %5583 = vmatpush1.bf16.msra.mxu0 0
    %5584 = vmatprep.subr.bf16.mxu0 0
    %5585 = vmatpush1.bf16.msra.mxu0 0
    %5586 = vmatprep.subr.bf16.mxu0 0
    %5587 = vmatpush1.bf16.msra.mxu0 0
    %5588 = vmatprep.mubr.bf16.mxu0 0
    %5589 = vmatmul.mubr.bf16.gmra.mrb[0].mxu0 %v5533
    %v5590 = vpop.f32.mrb[0].mxu0
    %v5591 = vadd.f32 %v5517, %v5590
    %v5592 = vpop.f32.mrb[0].mxu0
    %v5593 = vpop.f32.mrb[0].mxu0
    %v5594 = vadd.f32 %v5517, %v5593
    %v5595 = vpop.f32.mrb[0].mxu0
    %5596 = vmatprep.mubr.bf16.mxu0 0
    %5597 = vmatmul.mubr.bf16.gmra.mrb[0].mxu0 %v5536
    %v5598 = vpop.f32.mrb[0].mxu0
    %v5599 = vadd.f32 %v5517, %v5598
    %v5600 = vpop.f32.mrb[0].mxu0
    %v5601 = vpop.f32.mrb[0].mxu0
    %v5602 = vadd.f32 %v5517, %v5601
    %v5603 = vpop.f32.mrb[0].mxu0
    %5604 = vmatprep.mubr.bf16.mxu0 0
    %5605 = vmatmul.mubr.bf16.gmra.mrb[0].mxu0 %v5539
    %v5606 = vpop.f32.mrb[0].mxu0
    %v5607 = vadd.f32 %v5517, %v5606
    %v5608 = vpop.f32.mrb[0].mxu0
    %v5609 = vpop.f32.mrb[0].mxu0
    %v5610 = vadd.f32 %v5517, %v5609
    %v5611 = vpop.f32.mrb[0].mxu0
    %5612 = vmatprep.mubr.bf16.mxu0 0
    %5613 = vmatmul.mubr.bf16.gmra.mrb[0].mxu0 %v5542
    %v5614 = vpop.f32.mrb[0].mxu0
    %v5615 = vadd.f32 %v5517, %v5614
    %v5616 = vpop.f32.mrb[0].mxu0
    %v5617 = vpop.f32.mrb[0].mxu0
    %v5618 = vadd.f32 %v5517, %v5617
    %v5619 = vpop.f32.mrb[0].mxu0
    %5620 = vmatprep.mubr.bf16.mxu0 0
    %5621 = vmatmul.mubr.bf16.gmra.mrb[0].mxu0 %v5545
    %v5622 = vpop.f32.mrb[0].mxu0
    %v5623 = vadd.f32 %v5517, %v5622
    %v5624 = vpop.f32.mrb[0].mxu0
    %v5625 = vpop.f32.mrb[0].mxu0
    %v5626 = vadd.f32 %v5517, %v5625
    %v5627 = vpop.f32.mrb[0].mxu0
    %5628 = vmatprep.mubr.bf16.mxu0 0
    %5629 = vmatmul.mubr.bf16.gmra.mrb[0].mxu0 %v5548
    %v5630 = vpop.f32.mrb[0].mxu0
    %v5631 = vadd.f32 %v5517, %v5630
    %v5632 = vpop.f32.mrb[0].mxu0
    %v5633 = vpop.f32.mrb[0].mxu0
    %v5634 = vadd.f32 %v5517, %v5633
    %v5635 = vpop.f32.mrb[0].mxu0
    %5636 = vmatprep.mubr.bf16.mxu0 0
    %5637 = vmatmul.mubr.bf16.gmra.mrb[0].mxu0 %v5551
    %v5638 = vpop.f32.mrb[0].mxu0
    %v5639 = vadd.f32 %v5517, %v5638
    %v5640 = vpop.f32.mrb[0].mxu0
    %v5641 = vpop.f32.mrb[0].mxu0
    %v5642 = vadd.f32 %v5517, %v5641
    %v5643 = vpop.f32.mrb[0].mxu0
    %5644 = vmatprep.mubr.bf16.mxu0 0
    %5645 = vmatmul.mubr.bf16.gmra.mrb[0].mxu0 %v5554
    %v5646 = vpop.f32.mrb[0].mxu0
    %v5647 = vadd.f32 %v5517, %v5646
    %v5648 = vpop.f32.mrb[0].mxu0
    %v5649 = vpop.f32.mrb[0].mxu0
    %v5650 = vadd.f32 %v5517, %v5649
    %v5651 = vpop.f32.mrb[0].mxu0
    %5652 = vdwg.mxu0
    %v5653 = vmax.f32 %v5591, 0.0
    %v5654 = vmax.f32 %v5594, 0.0
    %v5655 = vmax.f32 %v5599, 0.0
    %v5656 = vmax.f32 %v5602, 0.0
    %v5657 = vmax.f32 %v5607, 0.0
    %v5658 = vmax.f32 %v5610, 0.0
    %v5659 = vmax.f32 %v5615, 0.0
    %v5660 = vmax.f32 %v5618, 0.0
    %v5661 = vmax.f32 %v5623, 0.0
    %v5662 = vmax.f32 %v5626, 0.0
    %v5663 = vmax.f32 %v5631, 0.0
    %v5664 = vmax.f32 %v5634, 0.0
    %v5665 = vmax.f32 %v5639, 0.0
    %v5666 = vmax.f32 %v5642, 0.0
    %v5667 = vmax.f32 %v5647, 0.0
    %v5668 = vmax.f32 %v5650, 0.0
    %v5669 = vpack.c.bf16 %v5654, %v5653
    %v5670 = vpack.c.bf16 %v5656, %v5655
    %v5671 = vpack.c.bf16 %v5658, %v5657
    %v5672 = vpack.c.bf16 %v5660, %v5659
    %v5673 = vpack.c.bf16 %v5662, %v5661
    %v5674 = vpack.c.bf16 %v5664, %v5663
    %v5675 = vpack.c.bf16 %v5666, %v5665
    %v5676 = vpack.c.bf16 %v5668, %v5667
    %v5677 = vld [vmem:[#allocation23] sm:$0xff]
    %v5678 = vld [vmem:[#allocation23 + $0x8] sm:$0xff]
    %v5679 = vld [vmem:[#allocation23 + $0x10] sm:$0xff]
    %v5680 = vld [vmem:[#allocation23 + $0x18] sm:$0xff]
    %v5681 = vld [vmem:[#allocation23 + $0x20] sm:$0xff]
    %v5682 = vld [vmem:[#allocation23 + $0x28] sm:$0xff]
    %v5683 = vld [vmem:[#allocation23 + $0x30] sm:$0xff]
    %v5684 = vld [vmem:[#allocation23 + $0x38] sm:$0xff]
    %v5685 = vld [vmem:[#allocation23 + $0x40] sm:$0xff]
    %v5686 = vld [vmem:[#allocation23 + $0x48] sm:$0xff]
    %v5687 = vld [vmem:[#allocation23 + $0x50] sm:$0xff]
    %v5688 = vld [vmem:[#allocation23 + $0x58] sm:$0xff]
    %v5689 = vld [vmem:[#allocation23 + $0x60] sm:$0xff]
    %v5690 = vld [vmem:[#allocation23 + $0x68] sm:$0xff]
    %v5691 = vld [vmem:[#allocation23 + $0x70] sm:$0xff]
    %v5692 = vld [vmem:[#allocation23 + $0x78] sm:$0xff]
    %v5693 = vld [vmem:[#allocation25] sm:$0x3]
    %v5695 = vlaneseq
    %v5696 = vshrl.u32 %v5695, 7
    %v5697 = vsub.s32 0, %v5696
    %v5698 = vrot.slane %v5693, %v5697
    %v5699 = vlaneseq
    %v5700 = vshrl.u32 %v5699, 7
    %v5701 = vsub.s32 1, %v5700
    %v5702 = vrot.slane %v5693, %v5701
    %v5721 = vunpack.c.l.b16 %v5677
    %v5722 = vunpack.c.h.b16 %v5677
    %v5723 = vunpack.c.l.b16 %v5678
    %v5724 = vunpack.c.h.b16 %v5678
    %v5725 = vunpack.c.l.b16 %v5679
    %v5726 = vunpack.c.h.b16 %v5679
    %v5727 = vunpack.c.l.b16 %v5680
    %v5728 = vunpack.c.h.b16 %v5680
    %v5729 = vunpack.c.l.b16 %v5681
    %v5730 = vunpack.c.h.b16 %v5681
    %v5731 = vunpack.c.l.b16 %v5682
    %v5732 = vunpack.c.h.b16 %v5682
    %v5733 = vunpack.c.l.b16 %v5683
    %v5734 = vunpack.c.h.b16 %v5683
    %v5735 = vunpack.c.l.b16 %v5684
    %v5736 = vunpack.c.h.b16 %v5684
    %v5737 = vunpack.c.l.b16 %v5685
    %v5738 = vunpack.c.h.b16 %v5685
    %v5739 = vunpack.c.l.b16 %v5686
    %v5740 = vunpack.c.h.b16 %v5686
    %v5741 = vunpack.c.l.b16 %v5687
    %v5742 = vunpack.c.h.b16 %v5687
    %v5743 = vunpack.c.l.b16 %v5688
    %v5744 = vunpack.c.h.b16 %v5688
    %v5745 = vunpack.c.l.b16 %v5689
    %v5746 = vunpack.c.h.b16 %v5689
    %v5747 = vunpack.c.l.b16 %v5690
    %v5748 = vunpack.c.h.b16 %v5690
    %v5749 = vunpack.c.l.b16 %v5691
    %v5750 = vunpack.c.h.b16 %v5691
    %v5751 = vunpack.c.l.b16 %v5692
    %v5752 = vunpack.c.h.b16 %v5692
    %v5753 = vpack.c.b16 %v5723, %v5721
    %v5754 = vpack.c.b16 %v5724, %v5722
    %v5755 = vpack.c.b16 %v5727, %v5725
    %v5756 = vpack.c.b16 %v5728, %v5726
    %v5757 = vpack.c.b16 %v5731, %v5729
    %v5758 = vpack.c.b16 %v5732, %v5730
    %v5759 = vpack.c.b16 %v5735, %v5733
    %v5760 = vpack.c.b16 %v5736, %v5734
    %v5761 = vpack.c.b16 %v5739, %v5737
    %v5762 = vpack.c.b16 %v5740, %v5738
    %v5763 = vpack.c.b16 %v5743, %v5741
    %v5764 = vpack.c.b16 %v5744, %v5742
    %v5765 = vpack.c.b16 %v5747, %v5745
    %v5766 = vpack.c.b16 %v5748, %v5746
    %v5767 = vpack.c.b16 %v5751, %v5749
    %v5768 = vpack.c.b16 %v5752, %v5750
    %5785 = vmatprep.subr.bf16.mxu0 %v5754
    %5786 = vmatpush1.bf16.msra.mxu0 %v5753
    %5787 = vmatprep.subr.bf16.mxu0 %v5756
    %5788 = vmatpush1.bf16.msra.mxu0 %v5755
    %5789 = vmatprep.subr.bf16.mxu0 %v5758
    %5790 = vmatpush1.bf16.msra.mxu0 %v5757
    %5791 = vmatprep.subr.bf16.mxu0 %v5760
    %5792 = vmatpush1.bf16.msra.mxu0 %v5759
    %5793 = vmatprep.subr.bf16.mxu0 %v5762
    %5794 = vmatpush1.bf16.msra.mxu0 %v5761
    %5795 = vmatprep.subr.bf16.mxu0 %v5764
    %5796 = vmatpush1.bf16.msra.mxu0 %v5763
    %5797 = vmatprep.subr.bf16.mxu0 %v5766
    %5798 = vmatpush1.bf16.msra.mxu0 %v5765
    %5799 = vmatprep.subr.bf16.mxu0 %v5768
    %5800 = vmatpush1.bf16.msra.mxu0 %v5767
    %5801 = vmatprep.subr.bf16.mxu0 0
    %5802 = vmatpush1.bf16.msra.mxu0 0
    %5803 = vmatprep.subr.bf16.mxu0 0
    %5804 = vmatpush1.bf16.msra.mxu0 0
    %5805 = vmatprep.subr.bf16.mxu0 0
    %5806 = vmatpush1.bf16.msra.mxu0 0
    %5807 = vmatprep.subr.bf16.mxu0 0
    %5808 = vmatpush1.bf16.msra.mxu0 0
    %5809 = vmatprep.subr.bf16.mxu0 0
    %5810 = vmatpush1.bf16.msra.mxu0 0
    %5811 = vmatprep.subr.bf16.mxu0 0
    %5812 = vmatpush1.bf16.msra.mxu0 0
    %5813 = vmatprep.subr.bf16.mxu0 0
    %5814 = vmatpush1.bf16.msra.mxu0 0
    %5815 = vmatprep.subr.bf16.mxu0 0
    %5816 = vmatpush1.bf16.msra.mxu0 0
    %5817 = vmatprep.mubr.bf16.mxu0 0
    %5818 = vmatmul.mubr.bf16.gmra.mrb[0].mxu0 %v5669
    %v5819 = vpop.f32.mrb[0].mxu0
    %v5820 = vadd.f32 %v5698, %v5819
    %v5821 = vpop.f32.mrb[0].mxu0
    %v5822 = vadd.f32 %v5702, %v5821
    %v5823 = vpop.f32.mrb[0].mxu0
    %v5824 = vadd.f32 %v5698, %v5823
    %v5825 = vpop.f32.mrb[0].mxu0
    %v5826 = vadd.f32 %v5702, %v5825
    %5827 = vmatprep.mubr.bf16.mxu0 0
    %5828 = vmatmul.mubr.bf16.gmra.mrb[0].mxu0 %v5670
    %v5829 = vpop.f32.mrb[0].mxu0
    %v5830 = vadd.f32 %v5698, %v5829
    %v5831 = vpop.f32.mrb[0].mxu0
    %v5832 = vadd.f32 %v5702, %v5831
    %v5833 = vpop.f32.mrb[0].mxu0
    %v5834 = vadd.f32 %v5698, %v5833
    %v5835 = vpop.f32.mrb[0].mxu0
    %v5836 = vadd.f32 %v5702, %v5835
    %5837 = vmatprep.mubr.bf16.mxu0 0
    %5838 = vmatmul.mubr.bf16.gmra.mrb[0].mxu0 %v5671
    %v5839 = vpop.f32.mrb[0].mxu0
    %v5840 = vadd.f32 %v5698, %v5839
    %v5841 = vpop.f32.mrb[0].mxu0
    %v5842 = vadd.f32 %v5702, %v5841
    %v5843 = vpop.f32.mrb[0].mxu0
    %v5844 = vadd.f32 %v5698, %v5843
    %v5845 = vpop.f32.mrb[0].mxu0
    %v5846 = vadd.f32 %v5702, %v5845
    %5847 = vmatprep.mubr.bf16.mxu0 0
    %5848 = vmatmul.mubr.bf16.gmra.mrb[0].mxu0 %v5672
    %v5849 = vpop.f32.mrb[0].mxu0
    %v5850 = vadd.f32 %v5698, %v5849
    %v5851 = vpop.f32.mrb[0].mxu0
    %v5852 = vadd.f32 %v5702, %v5851
    %v5853 = vpop.f32.mrb[0].mxu0
    %v5854 = vadd.f32 %v5698, %v5853
    %v5855 = vpop.f32.mrb[0].mxu0
    %v5856 = vadd.f32 %v5702, %v5855
    %5857 = vmatprep.mubr.bf16.mxu0 0
    %5858 = vmatmul.mubr.bf16.gmra.mrb[0].mxu0 %v5673
    %v5859 = vpop.f32.mrb[0].mxu0
    %v5860 = vadd.f32 %v5698, %v5859
    %v5861 = vpop.f32.mrb[0].mxu0
    %v5862 = vadd.f32 %v5702, %v5861
    %v5863 = vpop.f32.mrb[0].mxu0
    %v5864 = vadd.f32 %v5698, %v5863
    %v5865 = vpop.f32.mrb[0].mxu0
    %v5866 = vadd.f32 %v5702, %v5865
    %5867 = vmatprep.mubr.bf16.mxu0 0
    %5868 = vmatmul.mubr.bf16.gmra.mrb[0].mxu0 %v5674
    %v5869 = vpop.f32.mrb[0].mxu0
    %v5870 = vadd.f32 %v5698, %v5869
    %v5871 = vpop.f32.mrb[0].mxu0
    %v5872 = vadd.f32 %v5702, %v5871
    %v5873 = vpop.f32.mrb[0].mxu0
    %v5874 = vadd.f32 %v5698, %v5873
    %v5875 = vpop.f32.mrb[0].mxu0
    %v5876 = vadd.f32 %v5702, %v5875
    %5877 = vmatprep.mubr.bf16.mxu0 0
    %5878 = vmatmul.mubr.bf16.gmra.mrb[0].mxu0 %v5675
    %v5879 = vpop.f32.mrb[0].mxu0
    %v5880 = vadd.f32 %v5698, %v5879
    %v5881 = vpop.f32.mrb[0].mxu0
    %v5882 = vadd.f32 %v5702, %v5881
    %v5883 = vpop.f32.mrb[0].mxu0
    %v5884 = vadd.f32 %v5698, %v5883
    %v5885 = vpop.f32.mrb[0].mxu0
    %v5886 = vadd.f32 %v5702, %v5885
    %5887 = vmatprep.mubr.bf16.mxu0 0
    %5888 = vmatmul.mubr.bf16.gmra.mrb[0].mxu0 %v5676
    %v5889 = vpop.f32.mrb[0].mxu0
    %v5890 = vadd.f32 %v5698, %v5889
    %v5891 = vpop.f32.mrb[0].mxu0
    %v5892 = vadd.f32 %v5702, %v5891
    %v5893 = vpop.f32.mrb[0].mxu0
    %v5894 = vadd.f32 %v5698, %v5893
    %v5895 = vpop.f32.mrb[0].mxu0
    %v5896 = vadd.f32 %v5702, %v5895
    %5897 = vdwg.mxu0
    %v5898 = vmax.f32 %v5820, 0.0
    %v5899 = vmax.f32 %v5822, 0.0
    %v5900 = vmax.f32 %v5824, 0.0
    %v5901 = vmax.f32 %v5826, 0.0
    %v5902 = vmax.f32 %v5830, 0.0
    %v5903 = vmax.f32 %v5832, 0.0
    %v5904 = vmax.f32 %v5834, 0.0
    %v5905 = vmax.f32 %v5836, 0.0
    %v5906 = vmax.f32 %v5840, 0.0
    %v5907 = vmax.f32 %v5842, 0.0
    %v5908 = vmax.f32 %v5844, 0.0
    %v5909 = vmax.f32 %v5846, 0.0
    %v5910 = vmax.f32 %v5850, 0.0
    %v5911 = vmax.f32 %v5852, 0.0
    %v5912 = vmax.f32 %v5854, 0.0
    %v5913 = vmax.f32 %v5856, 0.0
    %v5914 = vmax.f32 %v5860, 0.0
    %v5915 = vmax.f32 %v5862, 0.0
    %v5916 = vmax.f32 %v5864, 0.0
    %v5917 = vmax.f32 %v5866, 0.0
    %v5918 = vmax.f32 %v5870, 0.0
    %v5919 = vmax.f32 %v5872, 0.0
    %v5920 = vmax.f32 %v5874, 0.0
    %v5921 = vmax.f32 %v5876, 0.0
    %v5922 = vmax.f32 %v5880, 0.0
    %v5923 = vmax.f32 %v5882, 0.0
    %v5924 = vmax.f32 %v5884, 0.0
    %v5925 = vmax.f32 %v5886, 0.0
    %v5926 = vmax.f32 %v5890, 0.0
    %v5927 = vmax.f32 %v5892, 0.0
    %v5928 = vmax.f32 %v5894, 0.0
    %v5929 = vmax.f32 %v5896, 0.0
    %v5930 = vpack.c.bf16 %v5900, %v5898
    %v5931 = vpack.c.bf16 %v5901, %v5899
    %v5932 = vpack.c.bf16 %v5904, %v5902
    %v5933 = vpack.c.bf16 %v5905, %v5903
    %v5934 = vpack.c.bf16 %v5908, %v5906
    %v5935 = vpack.c.bf16 %v5909, %v5907
    %v5936 = vpack.c.bf16 %v5912, %v5910
    %v5937 = vpack.c.bf16 %v5913, %v5911
    %v5938 = vpack.c.bf16 %v5916, %v5914
    %v5939 = vpack.c.bf16 %v5917, %v5915
    %v5940 = vpack.c.bf16 %v5920, %v5918
    %v5941 = vpack.c.bf16 %v5921, %v5919
    %v5942 = vpack.c.bf16 %v5924, %v5922
    %v5943 = vpack.c.bf16 %v5925, %v5923
    %v5944 = vpack.c.bf16 %v5928, %v5926
    %v5945 = vpack.c.bf16 %v5929, %v5927
    %v5946 = vld [vmem:[%s39] sm:$0xf]
    %v5947 = vld [vmem:[%s39 + $0x4] sm:$0xf]
    %v5948 = vld [vmem:[%s39 + $0x8] sm:$0xf]
    %v5949 = vld [vmem:[%s39 + $0xc] sm:$0xf]
    %v5950 = vld [vmem:[%s39 + $0x10] sm:$0xf]
    %v5951 = vld [vmem:[%s39 + $0x14] sm:$0xf]
    %v5952 = vld [vmem:[%s39 + $0x18] sm:$0xf]
    %v5953 = vld [vmem:[%s39 + $0x1c] sm:$0xf]
    %v5954 = vld [vmem:[%s39 + $0x20] sm:$0xf]
    %v5955 = vld [vmem:[%s39 + $0x24] sm:$0xf]
    %v5956 = vld [vmem:[%s39 + $0x28] sm:$0xf]
    %v5957 = vld [vmem:[%s39 + $0x2c] sm:$0xf]
    %v5958 = vld [vmem:[%s39 + $0x30] sm:$0xf]
    %v5959 = vld [vmem:[%s39 + $0x34] sm:$0xf]
    %v5960 = vld [vmem:[%s39 + $0x38] sm:$0xf]
    %v5961 = vld [vmem:[%s39 + $0x3c] sm:$0xf]
    %v5962 = vld [vmem:[%s39 + $0x40] sm:$0xf]
    %v5963 = vld [vmem:[%s39 + $0x44] sm:$0xf]
    %v5964 = vld [vmem:[%s39 + $0x48] sm:$0xf]
    %v5965 = vld [vmem:[%s39 + $0x4c] sm:$0xf]
    %v5966 = vld [vmem:[%s39 + $0x50] sm:$0xf]
    %v5967 = vld [vmem:[%s39 + $0x54] sm:$0xf]
    %v5968 = vld [vmem:[%s39 + $0x58] sm:$0xf]
    %v5969 = vld [vmem:[%s39 + $0x5c] sm:$0xf]
    %v5970 = vld [vmem:[%s39 + $0x60] sm:$0xf]
    %v5971 = vld [vmem:[%s39 + $0x64] sm:$0xf]
    %v5972 = vld [vmem:[%s39 + $0x68] sm:$0xf]
    %v5973 = vld [vmem:[%s39 + $0x6c] sm:$0xf]
    %v5974 = vld [vmem:[%s39 + $0x70] sm:$0xf]
    %v5975 = vld [vmem:[%s39 + $0x74] sm:$0xf]
    %v5976 = vld [vmem:[%s39 + $0x78] sm:$0xf]
    %v5977 = vld [vmem:[%s39 + $0x7c] sm:$0xf]
    %v5978 = vld [vmem:[#allocation26] sm:$0x1]
    %v5980 = vlaneseq
    %v5981 = vshrl.u32 %v5980, 7
    %v5982 = vsub.s32 0, %v5981
    %v5983 = vrot.slane %v5978, %v5982
    %v6017 = vunpack.c.l.b16 %v5946
    %v6018 = vunpack.c.l.b16 %v5947
    %v6019 = vunpack.c.l.b16 %v5948
    %v6020 = vunpack.c.l.b16 %v5949
    %v6021 = vunpack.c.l.b16 %v5950
    %v6022 = vunpack.c.l.b16 %v5951
    %v6023 = vunpack.c.l.b16 %v5952
    %v6024 = vunpack.c.l.b16 %v5953
    %v6025 = vunpack.c.l.b16 %v5954
    %v6026 = vunpack.c.l.b16 %v5955
    %v6027 = vunpack.c.l.b16 %v5956
    %v6028 = vunpack.c.l.b16 %v5957
    %v6029 = vunpack.c.l.b16 %v5958
    %v6030 = vunpack.c.l.b16 %v5959
    %v6031 = vunpack.c.l.b16 %v5960
    %v6032 = vunpack.c.l.b16 %v5961
    %v6033 = vunpack.c.l.b16 %v5962
    %v6034 = vunpack.c.l.b16 %v5963
    %v6035 = vunpack.c.l.b16 %v5964
    %v6036 = vunpack.c.l.b16 %v5965
    %v6037 = vunpack.c.l.b16 %v5966
    %v6038 = vunpack.c.l.b16 %v5967
    %v6039 = vunpack.c.l.b16 %v5968
    %v6040 = vunpack.c.l.b16 %v5969
    %v6041 = vunpack.c.l.b16 %v5970
    %v6042 = vunpack.c.l.b16 %v5971
    %v6043 = vunpack.c.l.b16 %v5972
    %v6044 = vunpack.c.l.b16 %v5973
    %v6045 = vunpack.c.l.b16 %v5974
    %v6046 = vunpack.c.l.b16 %v5975
    %v6047 = vunpack.c.l.b16 %v5976
    %v6048 = vunpack.c.l.b16 %v5977
    %v6049 = vpack.c.b16 %v6018, %v6017
    %v6050 = vpack.c.b16 %v6020, %v6019
    %v6051 = vpack.c.b16 %v6022, %v6021
    %v6052 = vpack.c.b16 %v6024, %v6023
    %v6053 = vpack.c.b16 %v6026, %v6025
    %v6054 = vpack.c.b16 %v6028, %v6027
    %v6055 = vpack.c.b16 %v6030, %v6029
    %v6056 = vpack.c.b16 %v6032, %v6031
    %v6057 = vpack.c.b16 %v6034, %v6033
    %v6058 = vpack.c.b16 %v6036, %v6035
    %v6059 = vpack.c.b16 %v6038, %v6037
    %v6060 = vpack.c.b16 %v6040, %v6039
    %v6061 = vpack.c.b16 %v6042, %v6041
    %v6062 = vpack.c.b16 %v6044, %v6043
    %v6063 = vpack.c.b16 %v6046, %v6045
    %v6064 = vpack.c.b16 %v6048, %v6047
    %6081 = vmatprep.subr.bf16.mxu0 0
    %6082 = vmatpush1.bf16.msra.mxu0 %v6049
    %6083 = vmatprep.subr.bf16.mxu0 0
    %6084 = vmatpush1.bf16.msra.mxu0 %v6050
    %6085 = vmatprep.subr.bf16.mxu0 0
    %6086 = vmatpush1.bf16.msra.mxu0 %v6051
    %6087 = vmatprep.subr.bf16.mxu0 0
    %6088 = vmatpush1.bf16.msra.mxu0 %v6052
    %6089 = vmatprep.subr.bf16.mxu0 0
    %6090 = vmatpush1.bf16.msra.mxu0 %v6053
    %6091 = vmatprep.subr.bf16.mxu0 0
    %6092 = vmatpush1.bf16.msra.mxu0 %v6054
    %6093 = vmatprep.subr.bf16.mxu0 0
    %6094 = vmatpush1.bf16.msra.mxu0 %v6055
    %6095 = vmatprep.subr.bf16.mxu0 0
    %6096 = vmatpush1.bf16.msra.mxu0 %v6056
    %6097 = vmatprep.subr.bf16.mxu0 0
    %6098 = vmatpush1.bf16.msra.mxu0 %v6057
    %6099 = vmatprep.subr.bf16.mxu0 0
    %6100 = vmatpush1.bf16.msra.mxu0 %v6058
    %6101 = vmatprep.subr.bf16.mxu0 0
    %6102 = vmatpush1.bf16.msra.mxu0 %v6059
    %6103 = vmatprep.subr.bf16.mxu0 0
    %6104 = vmatpush1.bf16.msra.mxu0 %v6060
    %6105 = vmatprep.subr.bf16.mxu0 0
    %6106 = vmatpush1.bf16.msra.mxu0 %v6061
    %6107 = vmatprep.subr.bf16.mxu0 0
    %6108 = vmatpush1.bf16.msra.mxu0 %v6062
    %6109 = vmatprep.subr.bf16.mxu0 0
    %6110 = vmatpush1.bf16.msra.mxu0 %v6063
    %6111 = vmatprep.subr.bf16.mxu0 0
    %6112 = vmatpush1.bf16.msra.mxu0 %v6064
    %6113 = vmatprep.mubr.bf16.mxu0 %v5931
    %6114 = vmatmul.mubr.bf16.gmra.mrb[0].mxu0 %v5930
    %v6115 = vpop.f32.mrb[0].mxu0
    %v6116 = vadd.f32 %v5983, %v6115
    %v6117 = vpop.f32.mrb[0].mxu0
    %v6118 = vpop.f32.mrb[0].mxu0
    %v6119 = vadd.f32 %v5983, %v6118
    %v6120 = vpop.f32.mrb[0].mxu0
    %6121 = vmatprep.mubr.bf16.mxu0 %v5933
    %6122 = vmatmul.mubr.bf16.gmra.mrb[0].mxu0 %v5932
    %v6123 = vpop.f32.mrb[0].mxu0
    %v6124 = vadd.f32 %v5983, %v6123
    %v6125 = vpop.f32.mrb[0].mxu0
    %v6126 = vpop.f32.mrb[0].mxu0
    %v6127 = vadd.f32 %v5983, %v6126
    %v6128 = vpop.f32.mrb[0].mxu0
    %6129 = vmatprep.mubr.bf16.mxu0 %v5935
    %6130 = vmatmul.mubr.bf16.gmra.mrb[0].mxu0 %v5934
    %v6131 = vpop.f32.mrb[0].mxu0
    %v6132 = vadd.f32 %v5983, %v6131
    %v6133 = vpop.f32.mrb[0].mxu0
    %v6134 = vpop.f32.mrb[0].mxu0
    %v6135 = vadd.f32 %v5983, %v6134
    %v6136 = vpop.f32.mrb[0].mxu0
    %6137 = vmatprep.mubr.bf16.mxu0 %v5937
    %6138 = vmatmul.mubr.bf16.gmra.mrb[0].mxu0 %v5936
    %v6139 = vpop.f32.mrb[0].mxu0
    %v6140 = vadd.f32 %v5983, %v6139
    %v6141 = vpop.f32.mrb[0].mxu0
    %v6142 = vpop.f32.mrb[0].mxu0
    %v6143 = vadd.f32 %v5983, %v6142
    %v6144 = vpop.f32.mrb[0].mxu0
    %6145 = vmatprep.mubr.bf16.mxu0 %v5939
    %6146 = vmatmul.mubr.bf16.gmra.mrb[0].mxu0 %v5938
    %v6147 = vpop.f32.mrb[0].mxu0
    %v6148 = vadd.f32 %v5983, %v6147
    %v6149 = vpop.f32.mrb[0].mxu0
    %v6150 = vpop.f32.mrb[0].mxu0
    %v6151 = vadd.f32 %v5983, %v6150
    %v6152 = vpop.f32.mrb[0].mxu0
    %6153 = vmatprep.mubr.bf16.mxu0 %v5941
    %6154 = vmatmul.mubr.bf16.gmra.mrb[0].mxu0 %v5940
    %v6155 = vpop.f32.mrb[0].mxu0
    %v6156 = vadd.f32 %v5983, %v6155
    %v6157 = vpop.f32.mrb[0].mxu0
    %v6158 = vpop.f32.mrb[0].mxu0
    %v6159 = vadd.f32 %v5983, %v6158
    %v6160 = vpop.f32.mrb[0].mxu0
    %6161 = vmatprep.mubr.bf16.mxu0 %v5943
    %6162 = vmatmul.mubr.bf16.gmra.mrb[0].mxu0 %v5942
    %v6163 = vpop.f32.mrb[0].mxu0
    %v6164 = vadd.f32 %v5983, %v6163
    %v6165 = vpop.f32.mrb[0].mxu0
    %v6166 = vpop.f32.mrb[0].mxu0
    %v6167 = vadd.f32 %v5983, %v6166
    %v6168 = vpop.f32.mrb[0].mxu0
    %6169 = vmatprep.mubr.bf16.mxu0 %v5945
    %6170 = vmatmul.mubr.bf16.gmra.mrb[0].mxu0 %v5944
    %v6171 = vpop.f32.mrb[0].mxu0
    %v6172 = vadd.f32 %v5983, %v6171
    %v6173 = vpop.f32.mrb[0].mxu0
    %v6174 = vpop.f32.mrb[0].mxu0
    %v6175 = vadd.f32 %v5983, %v6174
    %v6176 = vpop.f32.mrb[0].mxu0
    %6177 = vdwg.mxu0
    %v6178 = vmax.f32 %v6116, 0.0
    %v6179 = vmax.f32 %v6119, 0.0
    %v6180 = vmax.f32 %v6124, 0.0
    %v6181 = vmax.f32 %v6127, 0.0
    %v6182 = vmax.f32 %v6132, 0.0
    %v6183 = vmax.f32 %v6135, 0.0
    %v6184 = vmax.f32 %v6140, 0.0
    %v6185 = vmax.f32 %v6143, 0.0
    %v6186 = vmax.f32 %v6148, 0.0
    %v6187 = vmax.f32 %v6151, 0.0
    %v6188 = vmax.f32 %v6156, 0.0
    %v6189 = vmax.f32 %v6159, 0.0
    %v6190 = vmax.f32 %v6164, 0.0
    %v6191 = vmax.f32 %v6167, 0.0
    %v6192 = vmax.f32 %v6172, 0.0
    %v6193 = vmax.f32 %v6175, 0.0
    %v6194 = vsel %vm593, %v6178, -inf
    %v6195 = vsel %vm593, %v6179, -inf
    %v6196 = vsel %vm593, %v6180, -inf
    %v6197 = vsel %vm593, %v6181, -inf
    %v6198 = vsel %vm593, %v6182, -inf
    %v6199 = vmax.f32 %v6194, %v6198
    %v6200 = vsel %vm593, %v6183, -inf
    %v6201 = vmax.f32 %v6195, %v6200
    %v6202 = vsel %vm593, %v6184, -inf
    %v6203 = vmax.f32 %v6196, %v6202
    %v6204 = vsel %vm593, %v6185, -inf
    %v6205 = vmax.f32 %v6197, %v6204
    %v6206 = vmax.f32 %v6199, %v6201
    %v6207 = vmax.f32 %v6203, %v6205
    %v6208 = vmax.f32 %v6206, %v6207
    %v6209 = vrot.slane %v6208, 4
    %v6210 = vmax.f32 %v6208, %v6209
    %v6211 = vrot.slane %v6210, 2
    %v6212 = vmax.f32 %v6210, %v6211
    %v6213 = vrot.slane %v6212, 1
    %v6214 = vmax.f32 %v6212, %v6213
    %v6215 = vsel %vm593, %v6186, -inf
    %v6216 = vsel %vm593, %v6187, -inf
    %v6217 = vsel %vm593, %v6188, -inf
    %v6218 = vsel %vm593, %v6189, -inf
    %v6219 = vsel %vm593, %v6190, -inf
    %v6220 = vmax.f32 %v6215, %v6219
    %v6221 = vsel %vm593, %v6191, -inf
    %v6222 = vmax.f32 %v6216, %v6221
    %v6223 = vsel %vm593, %v6192, -inf
    %v6224 = vmax.f32 %v6217, %v6223
    %v6225 = vsel %vm593, %v6193, -inf
    %v6226 = vmax.f32 %v6218, %v6225
    %v6227 = vmax.f32 %v6220, %v6222
    %v6228 = vmax.f32 %v6224, %v6226
    %v6229 = vmax.f32 %v6227, %v6228
    %v6230 = vrot.slane %v6229, 4
    %v6231 = vmax.f32 %v6229, %v6230
    %v6232 = vrot.slane %v6231, 2
    %v6233 = vmax.f32 %v6231, %v6232
    %v6234 = vrot.slane %v6233, 1
    %v6235 = vmax.f32 %v6233, %v6234
    %v6236 = vsel %vm426, %v6214, %v6235
    %v6237 = vpack.c.bf16 %v6236, %v6236
    %v6238 = vld [vmem:[#allocation28] sm:$0xff]
    %v6239 = vld [vmem:[#allocation28 + $0x8] sm:$0xff]
    %v6240 = vld [vmem:[#allocation28 + $0x10] sm:$0xff]
    %v6241 = vld [vmem:[#allocation28 + $0x18] sm:$0xff]
    %v6242 = vld [vmem:[#allocation28 + $0x20] sm:$0xff]
    %v6243 = vld [vmem:[#allocation28 + $0x28] sm:$0xff]
    %v6244 = vld [vmem:[#allocation28 + $0x30] sm:$0xff]
    %v6245 = vld [vmem:[#allocation28 + $0x38] sm:$0xff]
    %v6246 = vld [vmem:[#allocation28 + $0x40] sm:$0xff]
    %v6247 = vld [vmem:[#allocation28 + $0x48] sm:$0xff]
    %v6248 = vld [vmem:[#allocation28 + $0x50] sm:$0xff]
    %v6249 = vld [vmem:[#allocation28 + $0x58] sm:$0xff]
    %v6250 = vld [vmem:[#allocation28 + $0x60] sm:$0xff]
    %v6251 = vld [vmem:[#allocation28 + $0x68] sm:$0xff]
    %v6252 = vld [vmem:[#allocation28 + $0x70] sm:$0xff]
    %v6253 = vld [vmem:[#allocation28 + $0x78] sm:$0xff]
    %v6254 = vld [vmem:[#allocation29] sm:$0xf]
    %v6256 = vlaneseq
    %v6257 = vshrl.u32 %v6256, 7
    %v6258 = vsub.s32 0, %v6257
    %v6259 = vrot.slane %v6254, %v6258
    %v6260 = vlaneseq
    %v6261 = vshrl.u32 %v6260, 7
    %v6262 = vsub.s32 1, %v6261
    %v6263 = vrot.slane %v6254, %v6262
    %v6264 = vlaneseq
    %v6265 = vshrl.u32 %v6264, 7
    %v6266 = vsub.s32 2, %v6265
    %v6267 = vrot.slane %v6254, %v6266
    %v6268 = vlaneseq
    %v6269 = vshrl.u32 %v6268, 7
    %v6270 = vsub.s32 3, %v6269
    %v6271 = vrot.slane %v6254, %v6270
    %v6292 = vunpack.c.l.b16 %v6238
    %v6293 = vunpack.c.h.b16 %v6238
    %v6294 = vunpack.c.l.b16 %v6239
    %v6295 = vunpack.c.h.b16 %v6239
    %v6296 = vunpack.c.l.b16 %v6240
    %v6297 = vunpack.c.h.b16 %v6240
    %v6298 = vunpack.c.l.b16 %v6241
    %v6299 = vunpack.c.h.b16 %v6241
    %v6300 = vunpack.c.l.b16 %v6242
    %v6301 = vunpack.c.h.b16 %v6242
    %v6302 = vunpack.c.l.b16 %v6243
    %v6303 = vunpack.c.h.b16 %v6243
    %v6304 = vunpack.c.l.b16 %v6244
    %v6305 = vunpack.c.h.b16 %v6244
    %v6306 = vunpack.c.l.b16 %v6245
    %v6307 = vunpack.c.h.b16 %v6245
    %v6308 = vunpack.c.l.b16 %v6246
    %v6309 = vunpack.c.h.b16 %v6246
    %v6310 = vunpack.c.l.b16 %v6247
    %v6311 = vunpack.c.h.b16 %v6247
    %v6312 = vunpack.c.l.b16 %v6248
    %v6313 = vunpack.c.h.b16 %v6248
    %v6314 = vunpack.c.l.b16 %v6249
    %v6315 = vunpack.c.h.b16 %v6249
    %v6316 = vunpack.c.l.b16 %v6250
    %v6317 = vunpack.c.h.b16 %v6250
    %v6318 = vunpack.c.l.b16 %v6251
    %v6319 = vunpack.c.h.b16 %v6251
    %v6320 = vunpack.c.l.b16 %v6252
    %v6321 = vunpack.c.h.b16 %v6252
    %v6322 = vunpack.c.l.b16 %v6253
    %v6323 = vunpack.c.h.b16 %v6253
    %v6324 = vpack.c.b16 %v6296, %v6292
    %v6325 = vpack.c.b16 %v6297, %v6293
    %v6326 = vpack.c.b16 %v6298, %v6294
    %v6327 = vpack.c.b16 %v6299, %v6295
    %v6328 = vpack.c.b16 %v6304, %v6300
    %v6329 = vpack.c.b16 %v6305, %v6301
    %v6330 = vpack.c.b16 %v6306, %v6302
    %v6331 = vpack.c.b16 %v6307, %v6303
    %v6332 = vpack.c.b16 %v6312, %v6308
    %v6333 = vpack.c.b16 %v6313, %v6309
    %v6334 = vpack.c.b16 %v6314, %v6310
    %v6335 = vpack.c.b16 %v6315, %v6311
    %v6336 = vpack.c.b16 %v6320, %v6316
    %v6337 = vpack.c.b16 %v6321, %v6317
    %v6338 = vpack.c.b16 %v6322, %v6318
    %v6339 = vpack.c.b16 %v6323, %v6319
    %v6357 = vsel %vm593, %v6237, 0
    %6359 = vmatprep.subr.bf16.mxu0 %v6325
    %6360 = vmatpush1.bf16.msra.mxu0 %v6324
    %6361 = vmatprep.subr.bf16.mxu0 %v6329
    %6362 = vmatpush1.bf16.msra.mxu0 %v6328
    %6363 = vmatprep.subr.bf16.mxu0 %v6333
    %6364 = vmatpush1.bf16.msra.mxu0 %v6332
    %6365 = vmatprep.subr.bf16.mxu0 %v6337
    %6366 = vmatpush1.bf16.msra.mxu0 %v6336
    %6367 = vmatprep.subr.bf16.mxu0 0
    %6368 = vmatpush1.bf16.msra.mxu0 0
    %6369 = vmatprep.subr.bf16.mxu0 0
    %6370 = vmatpush1.bf16.msra.mxu0 0
    %6371 = vmatprep.subr.bf16.mxu0 0
    %6372 = vmatpush1.bf16.msra.mxu0 0
    %6373 = vmatprep.subr.bf16.mxu0 0
    %6374 = vmatpush1.bf16.msra.mxu0 0
    %6375 = vmatprep.subr.bf16.mxu0 0
    %6376 = vmatpush1.bf16.msra.mxu0 0
    %6377 = vmatprep.subr.bf16.mxu0 0
    %6378 = vmatpush1.bf16.msra.mxu0 0
    %6379 = vmatprep.subr.bf16.mxu0 0
    %6380 = vmatpush1.bf16.msra.mxu0 0
    %6381 = vmatprep.subr.bf16.mxu0 0
    %6382 = vmatpush1.bf16.msra.mxu0 0
    %6383 = vmatprep.subr.bf16.mxu0 0
    %6384 = vmatpush1.bf16.msra.mxu0 0
    %6385 = vmatprep.subr.bf16.mxu0 0
    %6386 = vmatpush1.bf16.msra.mxu0 0
    %6387 = vmatprep.subr.bf16.mxu0 0
    %6388 = vmatpush1.bf16.msra.mxu0 0
    %6389 = vmatprep.subr.bf16.mxu0 0
    %6390 = vmatpush1.bf16.msra.mxu0 0
    %6391 = vmatprep.mubr.bf16.mxu0 0
    %6392 = vmatmul.mubr.bf16.gmra.mrb[0].mxu0 %v6357
    %v6393 = vpop.f32.mrb[0].mxu0
    %v6394 = vadd.f32 %v6259, %v6393
    %v6395 = vpop.f32.mrb[0].mxu0
    %v6396 = vadd.f32 %v6263, %v6395
    %v6397 = vpop.f32.mrb[0].mxu0
    %v6398 = vpop.f32.mrb[0].mxu0
    %6399 = vdwg.mxu0
    %6400 = vmatprep.subr.bf16.mxu0 %v6327
    %6401 = vmatpush1.bf16.msra.mxu0 %v6326
    %6402 = vmatprep.subr.bf16.mxu0 %v6331
    %6403 = vmatpush1.bf16.msra.mxu0 %v6330
    %6404 = vmatprep.subr.bf16.mxu0 %v6335
    %6405 = vmatpush1.bf16.msra.mxu0 %v6334
    %6406 = vmatprep.subr.bf16.mxu0 %v6339
    %6407 = vmatpush1.bf16.msra.mxu0 %v6338
    %6408 = vmatprep.subr.bf16.mxu0 0
    %6409 = vmatpush1.bf16.msra.mxu0 0
    %6410 = vmatprep.subr.bf16.mxu0 0
    %6411 = vmatpush1.bf16.msra.mxu0 0
    %6412 = vmatprep.subr.bf16.mxu0 0
    %6413 = vmatpush1.bf16.msra.mxu0 0
    %6414 = vmatprep.subr.bf16.mxu0 0
    %6415 = vmatpush1.bf16.msra.mxu0 0
    %6416 = vmatprep.subr.bf16.mxu0 0
    %6417 = vmatpush1.bf16.msra.mxu0 0
    %6418 = vmatprep.subr.bf16.mxu0 0
    %6419 = vmatpush1.bf16.msra.mxu0 0
    %6420 = vmatprep.subr.bf16.mxu0 0
    %6421 = vmatpush1.bf16.msra.mxu0 0
    %6422 = vmatprep.subr.bf16.mxu0 0
    %6423 = vmatpush1.bf16.msra.mxu0 0
    %6424 = vmatprep.subr.bf16.mxu0 0
    %6425 = vmatpush1.bf16.msra.mxu0 0
    %6426 = vmatprep.subr.bf16.mxu0 0
    %6427 = vmatpush1.bf16.msra.mxu0 0
    %6428 = vmatprep.subr.bf16.mxu0 0
    %6429 = vmatpush1.bf16.msra.mxu0 0
    %6430 = vmatprep.subr.bf16.mxu0 0
    %6431 = vmatpush1.bf16.msra.mxu0 0
    %6432 = vmatprep.mubr.bf16.mxu0 0
    %6433 = vmatmul.mubr.bf16.gmra.mrb[0].mxu0 %v6357
    %v6434 = vpop.f32.mrb[0].mxu0
    %v6435 = vadd.f32 %v6267, %v6434
    %v6436 = vpop.f32.mrb[0].mxu0
    %v6437 = vadd.f32 %v6271, %v6436
    %v6438 = vpop.f32.mrb[0].mxu0
    %v6439 = vpop.f32.mrb[0].mxu0
    %6440 = vdwg.mxu0
    %v6441 = vmax.f32 %v6394, 0.0
    %v6442 = vmax.f32 %v6396, 0.0
    %v6443 = vmax.f32 %v6435, 0.0
    %v6444 = vmax.f32 %v6437, 0.0
    %v6445 = vpack.c.bf16 %v6441, %v6441
    %v6446 = vpack.c.bf16 %v6442, %v6442
    %v6447 = vpack.c.bf16 %v6443, %v6443
    %v6448 = vpack.c.bf16 %v6444, %v6444
    %v6449 = vld [vmem:[%s47] sm:$0xff]
    %v6450 = vld [vmem:[%s47 + $0x8] sm:$0xff]
    %v6451 = vld [vmem:[%s47 + $0x10] sm:$0xff]
    %v6452 = vld [vmem:[%s47 + $0x18] sm:$0xff]
    %v6453 = vld [vmem:[%s47 + $0x20] sm:$0xff]
    %v6454 = vld [vmem:[%s47 + $0x28] sm:$0xff]
    %v6455 = vld [vmem:[%s47 + $0x30] sm:$0xff]
    %v6456 = vld [vmem:[%s47 + $0x38] sm:$0xff]
    %v6457 = vld [vmem:[%s47 + $0x40] sm:$0xff]
    %v6458 = vld [vmem:[%s47 + $0x48] sm:$0xff]
    %v6459 = vld [vmem:[%s47 + $0x50] sm:$0xff]
    %v6460 = vld [vmem:[%s47 + $0x58] sm:$0xff]
    %v6461 = vld [vmem:[%s47 + $0x60] sm:$0xff]
    %v6462 = vld [vmem:[%s47 + $0x68] sm:$0xff]
    %v6463 = vld [vmem:[%s47 + $0x70] sm:$0xff]
    %v6464 = vld [vmem:[%s47 + $0x78] sm:$0xff]
    %v6465 = vld [vmem:[%s47 + $0x80] sm:$0xff]
    %v6466 = vld [vmem:[%s47 + $0x88] sm:$0xff]
    %v6467 = vld [vmem:[%s47 + $0x90] sm:$0xff]
    %v6468 = vld [vmem:[%s47 + $0x98] sm:$0xff]
    %v6469 = vld [vmem:[%s47 + $0xa0] sm:$0xff]
    %v6470 = vld [vmem:[%s47 + $0xa8] sm:$0xff]
    %v6471 = vld [vmem:[%s47 + $0xb0] sm:$0xff]
    %v6472 = vld [vmem:[%s47 + $0xb8] sm:$0xff]
    %v6473 = vld [vmem:[%s47 + $0xc0] sm:$0xff]
    %v6474 = vld [vmem:[%s47 + $0xc8] sm:$0xff]
    %v6475 = vld [vmem:[%s47 + $0xd0] sm:$0xff]
    %v6476 = vld [vmem:[%s47 + $0xd8] sm:$0xff]
    %v6477 = vld [vmem:[%s47 + $0xe0] sm:$0xff]
    %v6478 = vld [vmem:[%s47 + $0xe8] sm:$0xff]
    %v6479 = vld [vmem:[%s47 + $0xf0] sm:$0xff]
    %v6480 = vld [vmem:[%s47 + $0xf8] sm:$0xff]
    %v6481 = vld [vmem:[%s47 + $0x100] sm:$0xff]
    %v6482 = vld [vmem:[%s47 + $0x108] sm:$0xff]
    %v6483 = vld [vmem:[%s47 + $0x110] sm:$0xff]
    %v6484 = vld [vmem:[%s47 + $0x118] sm:$0xff]
    %v6485 = vld [vmem:[%s47 + $0x120] sm:$0xff]
    %v6486 = vld [vmem:[%s47 + $0x128] sm:$0xff]
    %v6487 = vld [vmem:[%s47 + $0x130] sm:$0xff]
    %v6488 = vld [vmem:[%s47 + $0x138] sm:$0xff]
    %v6489 = vld [vmem:[%s47 + $0x140] sm:$0xff]
    %v6490 = vld [vmem:[%s47 + $0x148] sm:$0xff]
    %v6491 = vld [vmem:[%s47 + $0x150] sm:$0xff]
    %v6492 = vld [vmem:[%s47 + $0x158] sm:$0xff]
    %v6493 = vld [vmem:[%s47 + $0x160] sm:$0xff]
    %v6494 = vld [vmem:[%s47 + $0x168] sm:$0xff]
    %v6495 = vld [vmem:[%s47 + $0x170] sm:$0xff]
    %v6496 = vld [vmem:[%s47 + $0x178] sm:$0xff]
    %v6497 = vld [vmem:[%s47 + $0x180] sm:$0xff]
    %v6498 = vld [vmem:[%s47 + $0x188] sm:$0xff]
    %v6499 = vld [vmem:[%s47 + $0x190] sm:$0xff]
    %v6500 = vld [vmem:[%s47 + $0x198] sm:$0xff]
    %v6501 = vld [vmem:[%s47 + $0x1a0] sm:$0xff]
    %v6502 = vld [vmem:[%s47 + $0x1a8] sm:$0xff]
    %v6503 = vld [vmem:[%s47 + $0x1b0] sm:$0xff]
    %v6504 = vld [vmem:[%s47 + $0x1b8] sm:$0xff]
    %v6505 = vld [vmem:[%s47 + $0x1c0] sm:$0xff]
    %v6506 = vld [vmem:[%s47 + $0x1c8] sm:$0xff]
    %v6507 = vld [vmem:[%s47 + $0x1d0] sm:$0xff]
    %v6508 = vld [vmem:[%s47 + $0x1d8] sm:$0xff]
    %v6509 = vld [vmem:[%s47 + $0x1e0] sm:$0xff]
    %v6510 = vld [vmem:[%s47 + $0x1e8] sm:$0xff]
    %v6511 = vld [vmem:[%s47 + $0x1f0] sm:$0xff]
    %v6512 = vld [vmem:[%s47 + $0x1f8] sm:$0xff]
    %v6513 = vld [vmem:[%s49] sm:$0x3]
    %v6515 = vlaneseq
    %v6516 = vshrl.u32 %v6515, 7
    %v6517 = vsub.s32 0, %v6516
    %v6518 = vrot.slane %v6513, %v6517
    %v6519 = vlaneseq
    %v6520 = vshrl.u32 %v6519, 7
    %v6521 = vsub.s32 1, %v6520
    %v6522 = vrot.slane %v6513, %v6521
    %v6589 = vunpack.c.l.b16 %v6449
    %v6590 = vunpack.c.h.b16 %v6449
    %v6591 = vunpack.c.l.b16 %v6450
    %v6592 = vunpack.c.h.b16 %v6450
    %v6593 = vunpack.c.l.b16 %v6451
    %v6594 = vunpack.c.h.b16 %v6451
    %v6595 = vunpack.c.l.b16 %v6452
    %v6596 = vunpack.c.h.b16 %v6452
    %v6597 = vunpack.c.l.b16 %v6453
    %v6598 = vunpack.c.h.b16 %v6453
    %v6599 = vunpack.c.l.b16 %v6454
    %v6600 = vunpack.c.h.b16 %v6454
    %v6601 = vunpack.c.l.b16 %v6455
    %v6602 = vunpack.c.h.b16 %v6455
    %v6603 = vunpack.c.l.b16 %v6456
    %v6604 = vunpack.c.h.b16 %v6456
    %v6605 = vunpack.c.l.b16 %v6457
    %v6606 = vunpack.c.h.b16 %v6457
    %v6607 = vunpack.c.l.b16 %v6458
    %v6608 = vunpack.c.h.b16 %v6458
    %v6609 = vunpack.c.l.b16 %v6459
    %v6610 = vunpack.c.h.b16 %v6459
    %v6611 = vunpack.c.l.b16 %v6460
    %v6612 = vunpack.c.h.b16 %v6460
    %v6613 = vunpack.c.l.b16 %v6461
    %v6614 = vunpack.c.h.b16 %v6461
    %v6615 = vunpack.c.l.b16 %v6462
    %v6616 = vunpack.c.h.b16 %v6462
    %v6617 = vunpack.c.l.b16 %v6463
    %v6618 = vunpack.c.h.b16 %v6463
    %v6619 = vunpack.c.l.b16 %v6464
    %v6620 = vunpack.c.h.b16 %v6464
    %v6621 = vunpack.c.l.b16 %v6465
    %v6622 = vunpack.c.h.b16 %v6465
    %v6623 = vunpack.c.l.b16 %v6466
    %v6624 = vunpack.c.h.b16 %v6466
    %v6625 = vunpack.c.l.b16 %v6467
    %v6626 = vunpack.c.h.b16 %v6467
    %v6627 = vunpack.c.l.b16 %v6468
    %v6628 = vunpack.c.h.b16 %v6468
    %v6629 = vunpack.c.l.b16 %v6469
    %v6630 = vunpack.c.h.b16 %v6469
    %v6631 = vunpack.c.l.b16 %v6470
    %v6632 = vunpack.c.h.b16 %v6470
    %v6633 = vunpack.c.l.b16 %v6471
    %v6634 = vunpack.c.h.b16 %v6471
    %v6635 = vunpack.c.l.b16 %v6472
    %v6636 = vunpack.c.h.b16 %v6472
    %v6637 = vunpack.c.l.b16 %v6473
    %v6638 = vunpack.c.h.b16 %v6473
    %v6639 = vunpack.c.l.b16 %v6474
    %v6640 = vunpack.c.h.b16 %v6474
    %v6641 = vunpack.c.l.b16 %v6475
    %v6642 = vunpack.c.h.b16 %v6475
    %v6643 = vunpack.c.l.b16 %v6476
    %v6644 = vunpack.c.h.b16 %v6476
    %v6645 = vunpack.c.l.b16 %v6477
    %v6646 = vunpack.c.h.b16 %v6477
    %v6647 = vunpack.c.l.b16 %v6478
    %v6648 = vunpack.c.h.b16 %v6478
    %v6649 = vunpack.c.l.b16 %v6479
    %v6650 = vunpack.c.h.b16 %v6479
    %v6651 = vunpack.c.l.b16 %v6480
    %v6652 = vunpack.c.h.b16 %v6480
    %v6653 = vunpack.c.l.b16 %v6481
    %v6654 = vunpack.c.h.b16 %v6481
    %v6655 = vunpack.c.l.b16 %v6482
    %v6656 = vunpack.c.h.b16 %v6482
    %v6657 = vunpack.c.l.b16 %v6483
    %v6658 = vunpack.c.h.b16 %v6483
    %v6659 = vunpack.c.l.b16 %v6484
    %v6660 = vunpack.c.h.b16 %v6484
    %v6661 = vunpack.c.l.b16 %v6485
    %v6662 = vunpack.c.h.b16 %v6485
    %v6663 = vunpack.c.l.b16 %v6486
    %v6664 = vunpack.c.h.b16 %v6486
    %v6665 = vunpack.c.l.b16 %v6487
    %v6666 = vunpack.c.h.b16 %v6487
    %v6667 = vunpack.c.l.b16 %v6488
    %v6668 = vunpack.c.h.b16 %v6488
    %v6669 = vunpack.c.l.b16 %v6489
    %v6670 = vunpack.c.h.b16 %v6489
    %v6671 = vunpack.c.l.b16 %v6490
    %v6672 = vunpack.c.h.b16 %v6490
    %v6673 = vunpack.c.l.b16 %v6491
    %v6674 = vunpack.c.h.b16 %v6491
    %v6675 = vunpack.c.l.b16 %v6492
    %v6676 = vunpack.c.h.b16 %v6492
    %v6677 = vunpack.c.l.b16 %v6493
    %v6678 = vunpack.c.h.b16 %v6493
    %v6679 = vunpack.c.l.b16 %v6494
    %v6680 = vunpack.c.h.b16 %v6494
    %v6681 = vunpack.c.l.b16 %v6495
    %v6682 = vunpack.c.h.b16 %v6495
    %v6683 = vunpack.c.l.b16 %v6496
    %v6684 = vunpack.c.h.b16 %v6496
    %v6685 = vunpack.c.l.b16 %v6497
    %v6686 = vunpack.c.h.b16 %v6497
    %v6687 = vunpack.c.l.b16 %v6498
    %v6688 = vunpack.c.h.b16 %v6498
    %v6689 = vunpack.c.l.b16 %v6499
    %v6690 = vunpack.c.h.b16 %v6499
    %v6691 = vunpack.c.l.b16 %v6500
    %v6692 = vunpack.c.h.b16 %v6500
    %v6693 = vunpack.c.l.b16 %v6501
    %v6694 = vunpack.c.h.b16 %v6501
    %v6695 = vunpack.c.l.b16 %v6502
    %v6696 = vunpack.c.h.b16 %v6502
    %v6697 = vunpack.c.l.b16 %v6503
    %v6698 = vunpack.c.h.b16 %v6503
    %v6699 = vunpack.c.l.b16 %v6504
    %v6700 = vunpack.c.h.b16 %v6504
    %v6701 = vunpack.c.l.b16 %v6505
    %v6702 = vunpack.c.h.b16 %v6505
    %v6703 = vunpack.c.l.b16 %v6506
    %v6704 = vunpack.c.h.b16 %v6506
    %v6705 = vunpack.c.l.b16 %v6507
    %v6706 = vunpack.c.h.b16 %v6507
    %v6707 = vunpack.c.l.b16 %v6508
    %v6708 = vunpack.c.h.b16 %v6508
    %v6709 = vunpack.c.l.b16 %v6509
    %v6710 = vunpack.c.h.b16 %v6509
    %v6711 = vunpack.c.l.b16 %v6510
    %v6712 = vunpack.c.h.b16 %v6510
    %v6713 = vunpack.c.l.b16 %v6511
    %v6714 = vunpack.c.h.b16 %v6511
    %v6715 = vunpack.c.l.b16 %v6512
    %v6716 = vunpack.c.h.b16 %v6512
    %v6717 = vpack.c.b16 %v6591, %v6589
    %v6718 = vpack.c.b16 %v6592, %v6590
    %v6719 = vpack.c.b16 %v6595, %v6593
    %v6720 = vpack.c.b16 %v6596, %v6594
    %v6721 = vpack.c.b16 %v6599, %v6597
    %v6722 = vpack.c.b16 %v6600, %v6598
    %v6723 = vpack.c.b16 %v6603, %v6601
    %v6724 = vpack.c.b16 %v6604, %v6602
    %v6725 = vpack.c.b16 %v6607, %v6605
    %v6726 = vpack.c.b16 %v6608, %v6606
    %v6727 = vpack.c.b16 %v6611, %v6609
    %v6728 = vpack.c.b16 %v6612, %v6610
    %v6729 = vpack.c.b16 %v6615, %v6613
    %v6730 = vpack.c.b16 %v6616, %v6614
    %v6731 = vpack.c.b16 %v6619, %v6617
    %v6732 = vpack.c.b16 %v6620, %v6618
    %v6733 = vpack.c.b16 %v6623, %v6621
    %v6734 = vpack.c.b16 %v6624, %v6622
    %v6735 = vpack.c.b16 %v6627, %v6625
    %v6736 = vpack.c.b16 %v6628, %v6626
    %v6737 = vpack.c.b16 %v6631, %v6629
    %v6738 = vpack.c.b16 %v6632, %v6630
    %v6739 = vpack.c.b16 %v6635, %v6633
    %v6740 = vpack.c.b16 %v6636, %v6634
    %v6741 = vpack.c.b16 %v6639, %v6637
    %v6742 = vpack.c.b16 %v6640, %v6638
    %v6743 = vpack.c.b16 %v6643, %v6641
    %v6744 = vpack.c.b16 %v6644, %v6642
    %v6745 = vpack.c.b16 %v6647, %v6645
    %v6746 = vpack.c.b16 %v6648, %v6646
    %v6747 = vpack.c.b16 %v6651, %v6649
    %v6748 = vpack.c.b16 %v6652, %v6650
    %v6749 = vpack.c.b16 %v6655, %v6653
    %v6750 = vpack.c.b16 %v6656, %v6654
    %v6751 = vpack.c.b16 %v6659, %v6657
    %v6752 = vpack.c.b16 %v6660, %v6658
    %v6753 = vpack.c.b16 %v6663, %v6661
    %v6754 = vpack.c.b16 %v6664, %v6662
    %v6755 = vpack.c.b16 %v6667, %v6665
    %v6756 = vpack.c.b16 %v6668, %v6666
    %v6757 = vpack.c.b16 %v6671, %v6669
    %v6758 = vpack.c.b16 %v6672, %v6670
    %v6759 = vpack.c.b16 %v6675, %v6673
    %v6760 = vpack.c.b16 %v6676, %v6674
    %v6761 = vpack.c.b16 %v6679, %v6677
    %v6762 = vpack.c.b16 %v6680, %v6678
    %v6763 = vpack.c.b16 %v6683, %v6681
    %v6764 = vpack.c.b16 %v6684, %v6682
    %v6765 = vpack.c.b16 %v6687, %v6685
    %v6766 = vpack.c.b16 %v6688, %v6686
    %v6767 = vpack.c.b16 %v6691, %v6689
    %v6768 = vpack.c.b16 %v6692, %v6690
    %v6769 = vpack.c.b16 %v6695, %v6693
    %v6770 = vpack.c.b16 %v6696, %v6694
    %v6771 = vpack.c.b16 %v6699, %v6697
    %v6772 = vpack.c.b16 %v6700, %v6698
    %v6773 = vpack.c.b16 %v6703, %v6701
    %v6774 = vpack.c.b16 %v6704, %v6702
    %v6775 = vpack.c.b16 %v6707, %v6705
    %v6776 = vpack.c.b16 %v6708, %v6706
    %v6777 = vpack.c.b16 %v6711, %v6709
    %v6778 = vpack.c.b16 %v6712, %v6710
    %v6779 = vpack.c.b16 %v6715, %v6713
    %v6780 = vpack.c.b16 %v6716, %v6714
    %6845 = vmatprep.subr.bf16.mxu0 %v6718
    %6846 = vmatpush1.bf16.msra.mxu0 %v6717
    %6847 = vmatprep.subr.bf16.mxu0 %v6720
    %6848 = vmatpush1.bf16.msra.mxu0 %v6719
    %6849 = vmatprep.subr.bf16.mxu0 %v6722
    %6850 = vmatpush1.bf16.msra.mxu0 %v6721
    %6851 = vmatprep.subr.bf16.mxu0 %v6724
    %6852 = vmatpush1.bf16.msra.mxu0 %v6723
    %6853 = vmatprep.subr.bf16.mxu0 %v6726
    %6854 = vmatpush1.bf16.msra.mxu0 %v6725
    %6855 = vmatprep.subr.bf16.mxu0 %v6728
    %6856 = vmatpush1.bf16.msra.mxu0 %v6727
    %6857 = vmatprep.subr.bf16.mxu0 %v6730
    %6858 = vmatpush1.bf16.msra.mxu0 %v6729
    %6859 = vmatprep.subr.bf16.mxu0 %v6732
    %6860 = vmatpush1.bf16.msra.mxu0 %v6731
    %6861 = vmatprep.subr.bf16.mxu0 %v6734
    %6862 = vmatpush1.bf16.msra.mxu0 %v6733
    %6863 = vmatprep.subr.bf16.mxu0 %v6736
    %6864 = vmatpush1.bf16.msra.mxu0 %v6735
    %6865 = vmatprep.subr.bf16.mxu0 %v6738
    %6866 = vmatpush1.bf16.msra.mxu0 %v6737
    %6867 = vmatprep.subr.bf16.mxu0 %v6740
    %6868 = vmatpush1.bf16.msra.mxu0 %v6739
    %6869 = vmatprep.subr.bf16.mxu0 %v6742
    %6870 = vmatpush1.bf16.msra.mxu0 %v6741
    %6871 = vmatprep.subr.bf16.mxu0 %v6744
    %6872 = vmatpush1.bf16.msra.mxu0 %v6743
    %6873 = vmatprep.subr.bf16.mxu0 %v6746
    %6874 = vmatpush1.bf16.msra.mxu0 %v6745
    %6875 = vmatprep.subr.bf16.mxu0 %v6748
    %6876 = vmatpush1.bf16.msra.mxu0 %v6747
    %6877 = vmatprep.mubr.bf16.mxu0 %v6446
    %6878 = vmatmul.mubr.bf16.gmra.mrb[0].mxu0 %v6445
    %v6879 = vpop.f32.mrb[0].mxu0
    %v6880 = vadd.f32 %v6518, %v6879
    %v6881 = vpop.f32.mrb[0].mxu0
    %v6882 = vadd.f32 %v6522, %v6881
    %v6883 = vpop.f32.mrb[0].mxu0
    %v6884 = vpop.f32.mrb[0].mxu0
    %6885 = vdwg.mxu0
    %6886 = vmatprep.subr.bf16.mxu0 %v6750
    %6887 = vmatpush1.bf16.msra.mxu0 %v6749
    %6888 = vmatprep.subr.bf16.mxu0 %v6752
    %6889 = vmatpush1.bf16.msra.mxu0 %v6751
    %6890 = vmatprep.subr.bf16.mxu0 %v6754
    %6891 = vmatpush1.bf16.msra.mxu0 %v6753
    %6892 = vmatprep.subr.bf16.mxu0 %v6756
    %6893 = vmatpush1.bf16.msra.mxu0 %v6755
    %6894 = vmatprep.subr.bf16.mxu0 %v6758
    %6895 = vmatpush1.bf16.msra.mxu0 %v6757
    %6896 = vmatprep.subr.bf16.mxu0 %v6760
    %6897 = vmatpush1.bf16.msra.mxu0 %v6759
    %6898 = vmatprep.subr.bf16.mxu0 %v6762
    %6899 = vmatpush1.bf16.msra.mxu0 %v6761
    %6900 = vmatprep.subr.bf16.mxu0 %v6764
    %6901 = vmatpush1.bf16.msra.mxu0 %v6763
    %6902 = vmatprep.subr.bf16.mxu0 %v6766
    %6903 = vmatpush1.bf16.msra.mxu0 %v6765
    %6904 = vmatprep.subr.bf16.mxu0 %v6768
    %6905 = vmatpush1.bf16.msra.mxu0 %v6767
    %6906 = vmatprep.subr.bf16.mxu0 %v6770
    %6907 = vmatpush1.bf16.msra.mxu0 %v6769
    %6908 = vmatprep.subr.bf16.mxu0 %v6772
    %6909 = vmatpush1.bf16.msra.mxu0 %v6771
    %6910 = vmatprep.subr.bf16.mxu0 %v6774
    %6911 = vmatpush1.bf16.msra.mxu0 %v6773
    %6912 = vmatprep.subr.bf16.mxu0 %v6776
    %6913 = vmatpush1.bf16.msra.mxu0 %v6775
    %6914 = vmatprep.subr.bf16.mxu0 %v6778
    %6915 = vmatpush1.bf16.msra.mxu0 %v6777
    %6916 = vmatprep.subr.bf16.mxu0 %v6780
    %6917 = vmatpush1.bf16.msra.mxu0 %v6779
    %6918 = vmatprep.mubr.bf16.mxu0 %v6448
    %6919 = vmatmul.mubr.bf16.gmra.mrb[0].mxu0 %v6447
    %v6920 = vpop.f32.mrb[0].mxu0
    %v6921 = vadd.f32 %v6880, %v6920
    %v6922 = vpop.f32.mrb[0].mxu0
    %v6923 = vadd.f32 %v6882, %v6922
    %v6924 = vpop.f32.mrb[0].mxu0
    %v6925 = vpop.f32.mrb[0].mxu0
    %6926 = vdwg.mxu0
    %v6927 = vmax.f32 %v6921, 0.0
    %v6928 = vmax.f32 %v6923, 0.0
    %v6929 = vpack.c.bf16 %v6927, %v6927
    %v6930 = vpack.c.bf16 %v6928, %v6928
    %v6931 = vld [vmem:[#allocation31] sm:$0xf]
    %v6932 = vld [vmem:[#allocation31 + $0x4] sm:$0xf]
    %v6933 = vld [vmem:[#allocation31 + $0x8] sm:$0xf]
    %v6934 = vld [vmem:[#allocation31 + $0xc] sm:$0xf]
    %v6935 = vld [vmem:[#allocation31 + $0x10] sm:$0xf]
    %v6936 = vld [vmem:[#allocation31 + $0x14] sm:$0xf]
    %v6937 = vld [vmem:[#allocation31 + $0x18] sm:$0xf]
    %v6938 = vld [vmem:[#allocation31 + $0x1c] sm:$0xf]
    %v6939 = vld [vmem:[#allocation31 + $0x20] sm:$0xf]
    %v6940 = vld [vmem:[#allocation31 + $0x24] sm:$0xf]
    %v6941 = vld [vmem:[#allocation31 + $0x28] sm:$0xf]
    %v6942 = vld [vmem:[#allocation31 + $0x2c] sm:$0xf]
    %v6943 = vld [vmem:[#allocation31 + $0x30] sm:$0xf]
    %v6944 = vld [vmem:[#allocation31 + $0x34] sm:$0xf]
    %v6945 = vld [vmem:[#allocation31 + $0x38] sm:$0xf]
    %v6946 = vld [vmem:[#allocation31 + $0x3c] sm:$0xf]
    %v6947 = vld [vmem:[#allocation31 + $0x40] sm:$0xf]
    %v6948 = vld [vmem:[#allocation31 + $0x44] sm:$0xf]
    %v6949 = vld [vmem:[#allocation31 + $0x48] sm:$0xf]
    %v6950 = vld [vmem:[#allocation31 + $0x4c] sm:$0xf]
    %v6951 = vld [vmem:[#allocation31 + $0x50] sm:$0xf]
    %v6952 = vld [vmem:[#allocation31 + $0x54] sm:$0xf]
    %v6953 = vld [vmem:[#allocation31 + $0x58] sm:$0xf]
    %v6954 = vld [vmem:[#allocation31 + $0x5c] sm:$0xf]
    %v6955 = vld [vmem:[#allocation31 + $0x60] sm:$0xf]
    %v6956 = vld [vmem:[#allocation31 + $0x64] sm:$0xf]
    %v6957 = vld [vmem:[#allocation31 + $0x68] sm:$0xf]
    %v6958 = vld [vmem:[#allocation31 + $0x6c] sm:$0xf]
    %v6959 = vld [vmem:[#allocation31 + $0x70] sm:$0xf]
    %v6960 = vld [vmem:[#allocation31 + $0x74] sm:$0xf]
    %v6961 = vld [vmem:[#allocation31 + $0x78] sm:$0xf]
    %v6962 = vld [vmem:[#allocation31 + $0x7c] sm:$0xf]
    %v6963 = vld [vmem:[%s53] sm:$0x1]
    %v6965 = vlaneseq
    %v6966 = vshrl.u32 %v6965, 7
    %v6967 = vsub.s32 0, %v6966
    %v6968 = vrot.slane %v6963, %v6967
    %v7002 = vunpack.c.l.b16 %v6931
    %v7003 = vunpack.c.l.b16 %v6932
    %v7004 = vunpack.c.l.b16 %v6933
    %v7005 = vunpack.c.l.b16 %v6934
    %v7006 = vunpack.c.l.b16 %v6935
    %v7007 = vunpack.c.l.b16 %v6936
    %v7008 = vunpack.c.l.b16 %v6937
    %v7009 = vunpack.c.l.b16 %v6938
    %v7010 = vunpack.c.l.b16 %v6939
    %v7011 = vunpack.c.l.b16 %v6940
    %v7012 = vunpack.c.l.b16 %v6941
    %v7013 = vunpack.c.l.b16 %v6942
    %v7014 = vunpack.c.l.b16 %v6943
    %v7015 = vunpack.c.l.b16 %v6944
    %v7016 = vunpack.c.l.b16 %v6945
    %v7017 = vunpack.c.l.b16 %v6946
    %v7018 = vunpack.c.l.b16 %v6947
    %v7019 = vunpack.c.l.b16 %v6948
    %v7020 = vunpack.c.l.b16 %v6949
    %v7021 = vunpack.c.l.b16 %v6950
    %v7022 = vunpack.c.l.b16 %v6951
    %v7023 = vunpack.c.l.b16 %v6952
    %v7024 = vunpack.c.l.b16 %v6953
    %v7025 = vunpack.c.l.b16 %v6954
    %v7026 = vunpack.c.l.b16 %v6955
    %v7027 = vunpack.c.l.b16 %v6956
    %v7028 = vunpack.c.l.b16 %v6957
    %v7029 = vunpack.c.l.b16 %v6958
    %v7030 = vunpack.c.l.b16 %v6959
    %v7031 = vunpack.c.l.b16 %v6960
    %v7032 = vunpack.c.l.b16 %v6961
    %v7033 = vunpack.c.l.b16 %v6962
    %v7034 = vpack.c.b16 %v7003, %v7002
    %v7035 = vpack.c.b16 %v7005, %v7004
    %v7036 = vpack.c.b16 %v7007, %v7006
    %v7037 = vpack.c.b16 %v7009, %v7008
    %v7038 = vpack.c.b16 %v7011, %v7010
    %v7039 = vpack.c.b16 %v7013, %v7012
    %v7040 = vpack.c.b16 %v7015, %v7014
    %v7041 = vpack.c.b16 %v7017, %v7016
    %v7042 = vpack.c.b16 %v7019, %v7018
    %v7043 = vpack.c.b16 %v7021, %v7020
    %v7044 = vpack.c.b16 %v7023, %v7022
    %v7045 = vpack.c.b16 %v7025, %v7024
    %v7046 = vpack.c.b16 %v7027, %v7026
    %v7047 = vpack.c.b16 %v7029, %v7028
    %v7048 = vpack.c.b16 %v7031, %v7030
    %v7049 = vpack.c.b16 %v7033, %v7032
    %7066 = vmatprep.subr.bf16.mxu0 0
    %7067 = vmatpush1.bf16.msra.mxu0 %v7034
    %7068 = vmatprep.subr.bf16.mxu0 0
    %7069 = vmatpush1.bf16.msra.mxu0 %v7035
    %7070 = vmatprep.subr.bf16.mxu0 0
    %7071 = vmatpush1.bf16.msra.mxu0 %v7036
    %7072 = vmatprep.subr.bf16.mxu0 0
    %7073 = vmatpush1.bf16.msra.mxu0 %v7037
    %7074 = vmatprep.subr.bf16.mxu0 0
    %7075 = vmatpush1.bf16.msra.mxu0 %v7038
    %7076 = vmatprep.subr.bf16.mxu0 0
    %7077 = vmatpush1.bf16.msra.mxu0 %v7039
    %7078 = vmatprep.subr.bf16.mxu0 0
    %7079 = vmatpush1.bf16.msra.mxu0 %v7040
    %7080 = vmatprep.subr.bf16.mxu0 0
    %7081 = vmatpush1.bf16.msra.mxu0 %v7041
    %7082 = vmatprep.subr.bf16.mxu0 0
    %7083 = vmatpush1.bf16.msra.mxu0 %v7042
    %7084 = vmatprep.subr.bf16.mxu0 0
    %7085 = vmatpush1.bf16.msra.mxu0 %v7043
    %7086 = vmatprep.subr.bf16.mxu0 0
    %7087 = vmatpush1.bf16.msra.mxu0 %v7044
    %7088 = vmatprep.subr.bf16.mxu0 0
    %7089 = vmatpush1.bf16.msra.mxu0 %v7045
    %7090 = vmatprep.subr.bf16.mxu0 0
    %7091 = vmatpush1.bf16.msra.mxu0 %v7046
    %7092 = vmatprep.subr.bf16.mxu0 0
    %7093 = vmatpush1.bf16.msra.mxu0 %v7047
    %7094 = vmatprep.subr.bf16.mxu0 0
    %7095 = vmatpush1.bf16.msra.mxu0 %v7048
    %7096 = vmatprep.subr.bf16.mxu0 0
    %7097 = vmatpush1.bf16.msra.mxu0 %v7049
    %7098 = vmatprep.mubr.bf16.mxu0 %v6930
    %7099 = vmatmul.mubr.bf16.gmra.mrb[0].mxu0 %v6929
    %v7100 = vpop.f32.mrb[0].mxu0
    %v7101 = vadd.f32 %v6968, %v7100
    %v7102 = vpop.f32.mrb[0].mxu0
    %v7103 = vpop.f32.mrb[0].mxu0
    %v7104 = vpop.f32.mrb[0].mxu0
    %7105 = vdwg.mxu0
    %v7106 = vmax.f32 %v7101, 0.0
    %v7107 = vpack.c.bf16 %v7106, %v7106
    %v7108 = vld [vmem:[#allocation32] sm:$0xf]
    %v7109 = vld [vmem:[#allocation32 + $0x4] sm:$0xf]
    %v7110 = vld [vmem:[#allocation32 + $0x8] sm:$0xf]
    %v7111 = vld [vmem:[#allocation32 + $0xc] sm:$0xf]
    %v7112 = vld [vmem:[#allocation32 + $0x10] sm:$0xf]
    %v7113 = vld [vmem:[#allocation32 + $0x14] sm:$0xf]
    %v7114 = vld [vmem:[#allocation32 + $0x18] sm:$0xf]
    %v7115 = vld [vmem:[#allocation32 + $0x1c] sm:$0xf]
    %v7116 = vld [vmem:[#allocation32 + $0x20] sm:$0xf]
    %v7117 = vld [vmem:[#allocation32 + $0x24] sm:$0xf]
    %v7118 = vld [vmem:[#allocation32 + $0x28] sm:$0xf]
    %v7119 = vld [vmem:[#allocation32 + $0x2c] sm:$0xf]
    %v7120 = vld [vmem:[#allocation32 + $0x30] sm:$0xf]
    %v7121 = vld [vmem:[#allocation32 + $0x34] sm:$0xf]
    %v7122 = vld [vmem:[#allocation32 + $0x38] sm:$0xf]
    %v7123 = vld [vmem:[#allocation32 + $0x3c] sm:$0xf]
    %v7124 = vld [vmem:[%s57] sm:$0x1]
    %v7126 = vlaneseq
    %v7127 = vshrl.u32 %v7126, 7
    %v7128 = vsub.s32 0, %v7127
    %v7129 = vrot.slane %v7124, %v7128
    %v7147 = vunpack.c.l.b16 %v7108
    %v7148 = vunpack.c.l.b16 %v7109
    %v7149 = vunpack.c.l.b16 %v7110
    %v7150 = vunpack.c.l.b16 %v7111
    %v7151 = vunpack.c.l.b16 %v7112
    %v7152 = vunpack.c.l.b16 %v7113
    %v7153 = vunpack.c.l.b16 %v7114
    %v7154 = vunpack.c.l.b16 %v7115
    %v7155 = vunpack.c.l.b16 %v7116
    %v7156 = vunpack.c.l.b16 %v7117
    %v7157 = vunpack.c.l.b16 %v7118
    %v7158 = vunpack.c.l.b16 %v7119
    %v7159 = vunpack.c.l.b16 %v7120
    %v7160 = vunpack.c.l.b16 %v7121
    %v7161 = vunpack.c.l.b16 %v7122
    %v7162 = vunpack.c.l.b16 %v7123
    %v7163 = vpack.c.b16 %v7148, %v7147
    %v7164 = vpack.c.b16 %v7150, %v7149
    %v7165 = vpack.c.b16 %v7152, %v7151
    %v7166 = vpack.c.b16 %v7154, %v7153
    %v7167 = vpack.c.b16 %v7156, %v7155
    %v7168 = vpack.c.b16 %v7158, %v7157
    %v7169 = vpack.c.b16 %v7160, %v7159
    %v7170 = vpack.c.b16 %v7162, %v7161
    %7179 = vmatprep.subr.bf16.mxu0 0
    %7180 = vmatpush1.bf16.msra.mxu0 %v7163
    %7181 = vmatprep.subr.bf16.mxu0 0
    %7182 = vmatpush1.bf16.msra.mxu0 %v7164
    %7183 = vmatprep.subr.bf16.mxu0 0
    %7184 = vmatpush1.bf16.msra.mxu0 %v7165
    %7185 = vmatprep.subr.bf16.mxu0 0
    %7186 = vmatpush1.bf16.msra.mxu0 %v7166
    %7187 = vmatprep.subr.bf16.mxu0 0
    %7188 = vmatpush1.bf16.msra.mxu0 %v7167
    %7189 = vmatprep.subr.bf16.mxu0 0
    %7190 = vmatpush1.bf16.msra.mxu0 %v7168
    %7191 = vmatprep.subr.bf16.mxu0 0
    %7192 = vmatpush1.bf16.msra.mxu0 %v7169
    %7193 = vmatprep.subr.bf16.mxu0 0
    %7194 = vmatpush1.bf16.msra.mxu0 %v7170
    %7195 = vmatprep.subr.bf16.mxu0 0
    %7196 = vmatpush1.bf16.msra.mxu0 0
    %7197 = vmatprep.subr.bf16.mxu0 0
    %7198 = vmatpush1.bf16.msra.mxu0 0
    %7199 = vmatprep.subr.bf16.mxu0 0
    %7200 = vmatpush1.bf16.msra.mxu0 0
    %7201 = vmatprep.subr.bf16.mxu0 0
    %7202 = vmatpush1.bf16.msra.mxu0 0
    %7203 = vmatprep.subr.bf16.mxu0 0
    %7204 = vmatpush1.bf16.msra.mxu0 0
    %7205 = vmatprep.subr.bf16.mxu0 0
    %7206 = vmatpush1.bf16.msra.mxu0 0
    %7207 = vmatprep.subr.bf16.mxu0 0
    %7208 = vmatpush1.bf16.msra.mxu0 0
    %7209 = vmatprep.subr.bf16.mxu0 0
    %7210 = vmatpush1.bf16.msra.mxu0 0
    %7211 = vmatprep.mubr.bf16.mxu0 0
    %7212 = vmatmul.mubr.bf16.gmra.mrb[0].mxu0 %v7107
    %v7213 = vpop.f32.mrb[0].mxu0
    %v7214 = vadd.f32 %v7129, %v7213
    %v7215 = vpop.f32.mrb[0].mxu0
    %v7216 = vpop.f32.mrb[0].mxu0
    %v7217 = vpop.f32.mrb[0].mxu0
    %7218 = vdwg.mxu0
    %7219 = vst [vmem:[#allocation34] sm:$0x3] %v7214
    // Predicated region
    $region198: #{encoder_forward.1} parent=1 // pred_check
      _
    $region199: #{encoder_forward.1} parent=1 // pred_check_branch
      %7221 = sbr.rel (0) target = $region201
    $region200: #{encoder_forward.1} parent=1 // pred_region
      %s7223 = ssub.s32 32, 32
      %7224 = vsyncadd [#allocation4], %s7223
      %s7226 = sshll.u32 [#allocation34], 4
      %s7227 = int_to_ptr.vmem [resolvable:$true] %s7226
      %7229 = dma.vmem_to_hbm [thread:$0]  %s7227, 32, %s59, [#allocation4]
    $region201: #{encoder_forward.1} parent=1 // pred_fallthru
      _
    // Predicated region
    $region202: #{encoder_forward.1} parent=1 // pred_check
      _
    $region203: #{encoder_forward.1} parent=1 // pred_check_branch
      %7231 = sbr.rel (0) target = $region205
    $region204: #{encoder_forward.1} parent=1 // pred_region
      %7232 = dma.done [#allocation4], 32
    $region205: #{encoder_forward.1} parent=1 // pred_fallthru
      _
    %7233 = vsyncpa [#allocation3], 1
    %7234 = vsyncpa [#allocation6], 1
    %7235 = vsyncpa [#allocation9], 1
    %7236 = vsyncpa [#allocation12], 1
    %7237 = vsyncpa [#allocation15], 1
    %7238 = vsyncpa [#allocation18], 1
    %7239 = vsyncpa [#allocation21], 1
    %7240 = vsyncpa [#allocation24], 1
    %7241 = vsyncpa [#allocation27], 1
    %7242 = vsyncpa [#allocation30], 1
    %7243 = vsyncpa [#allocation33], 1
    %7244 = vsyncpa [#allocation4], 1

</llo_original>
